<compile_context>
chip_gen: v7x
topology: tpu7x:2x2x1
jax: 0.10.0
libtpu: 0.0.40
codegen_flags: <defaults>
</compile_context>

<pallas_src>
import math
from functools import partial

import jax
import jax.numpy as jnp
from jax.experimental import pallas as pl
from jax.experimental.pallas import tpu as pltpu

# ----------------------------- model config ---------------------------------
CFG = dict(vocab=256, d_model=32, n_heads=4, d_kv=8, d_ff=64, n_layers=2,
           rel_buckets=32, rel_max_dist=128)


# --------------------------- in-kernel helpers -------------------------------
def _rms(x, w, eps=1e-6):
    var = jnp.mean(x * x, axis=-1, keepdims=True)
    return x * jax.lax.rsqrt(var + eps) * w


def _softmax_rows(s):
    m = jnp.max(s, axis=-1, keepdims=True)
    p = jnp.exp(s - m)
    return p / jnp.sum(p, axis=-1, keepdims=True)


def _multihead_attention(qkv_or_q, kv, bias_rows, wo, attn_sc,
                         B, Tq, Tk, H, Dh, inner, self_attn):
    """Per-(batch,head) attention with O-projection accumulated per head.

    self_attn=True : qkv_or_q is (B*Tq, 3*inner) fused q|k|v, kv is unused,
                     bias_rows[b] is a (Tq, Tk) additive bias.
    self_attn=False: qkv_or_q is (B*Tq, inner) queries, kv is (B*Tk, 2*inner)
                     fused k|v of the encoder states, bias_rows[b] is (1, Tk).
    Result (B*Tq, D) is written row-block-wise into attn_sc.
    """
    for b in range(B):
        qrows = qkv_or_q[b * Tq:(b + 1) * Tq, :]
        krows = qrows if self_attn else kv[b * Tk:(b + 1) * Tk, :]
        bias_b = bias_rows[b]
        acc = None
        for h in range(H):
            if self_attn:
                q = qrows[:, h * Dh:(h + 1) * Dh]
                k = krows[:, inner + h * Dh:inner + (h + 1) * Dh]
                v = krows[:, 2 * inner + h * Dh:2 * inner + (h + 1) * Dh]
                bias_bh = bias_b[h]
            else:
                q = qrows[:, h * Dh:(h + 1) * Dh]
                k = krows[:, h * Dh:(h + 1) * Dh]
                v = krows[:, inner + h * Dh:inner + (h + 1) * Dh]
                bias_bh = bias_b
            # T5 attention: no 1/sqrt(d) scaling, additive bias.
            s = jax.lax.dot_general(q, k, (((1,), (1,)), ((), ())),
                                    preferred_element_type=jnp.float32)
            p = _softmax_rows(s + bias_bh)
            ctx = jnp.dot(p, v, preferred_element_type=jnp.float32)  # (Tq, Dh)
            contrib = jnp.dot(ctx, wo[h * Dh:(h + 1) * Dh, :],
                              preferred_element_type=jnp.float32)    # (Tq, D)
            acc = contrib if acc is None else acc + contrib
        attn_sc[b * Tq:(b + 1) * Tq, :] = acc


# ----------------------------- Pallas kernels -------------------------------
def _encoder_kernel(B, T, H, Dh,
                    x_emb_ref, bias_ref, ln1_ref, wqkv_ref, wo_ref,
                    ln2_ref, wi_ref, wff_ref, fln_ref,
                    out_ref, x_sc, attn_sc):
    inner = H * Dh
    l = pl.program_id(0)
    L = pl.num_programs(0)

    @pl.when(l == 0)
    def _():
        x_sc[...] = x_emb_ref[...]

    x = x_sc[...]                                     # (B*T, D) residual stream

    # ---- self-attention block (pre-norm) ----
    y = _rms(x, ln1_ref[0])
    qkv = jnp.dot(y, wqkv_ref[0], preferred_element_type=jnp.float32)
    bias = bias_ref[...]                              # (B, H, T, T)
    _multihead_attention(qkv, None, bias, wo_ref[0], attn_sc,
                         B, T, T, H, Dh, inner, self_attn=True)
    x = x + attn_sc[...]

    # ---- FFN block ----
    y = _rms(x, ln2_ref[0])
    hdn = jnp.maximum(
        jnp.dot(y, wi_ref[0], preferred_element_type=jnp.float32), 0.0)
    x = x + jnp.dot(hdn, wff_ref[0], preferred_element_type=jnp.float32)

    x_sc[...] = x
    out_ref[...] = x

    @pl.when(l == L - 1)
    def _():
        out_ref[...] = _rms(x, fln_ref[...])          # fused final layer norm


def _decoder_kernel(B, Td, Te, H, Dh,
                    x_emb_ref, enc_ref, sbias_ref, cbias_ref,
                    ln1_ref, wsqkv_ref, wso_ref,
                    ln2_ref, wcq_ref, wckv_ref, wco_ref,
                    ln3_ref, wi_ref, wff_ref, fln_ref,
                    hs_ref, out_ref, x_sc, attn_sc):
    inner = H * Dh
    l = pl.program_id(0)
    L = pl.num_programs(0)

    @pl.when(l == 0)
    def _():
        x_sc[...] = x_emb_ref[...]

    x = x_sc[...]                                     # (B*Td, D)
    hs_ref[0] = x                                     # hidden state entering layer l

    # ---- causal self-attention ----
    y = _rms(x, ln1_ref[0])
    qkv = jnp.dot(y, wsqkv_ref[0], preferred_element_type=jnp.float32)
    sbias = sbias_ref[...]                            # (H, Td, Td) batch-independent
    _multihead_attention(qkv, None, [sbias] * B, wso_ref[0], attn_sc,
                         B, Td, Td, H, Dh, inner, self_attn=True)
    x = x + attn_sc[...]

    # ---- cross-attention over encoder states ----
    y = _rms(x, ln2_ref[0])
    q_all = jnp.dot(y, wcq_ref[0], preferred_element_type=jnp.float32)
    kv_all = jnp.dot(enc_ref[...], wckv_ref[0],
                     preferred_element_type=jnp.float32)
    cbias = cbias_ref[...]                            # (B, Te)
    cbias_rows = [cbias[b:b + 1, :] for b in range(B)]
    _multihead_attention(q_all, kv_all, cbias_rows, wco_ref[0], attn_sc,
                         B, Td, Te, H, Dh, inner, self_attn=False)
    x = x + attn_sc[...]

    # ---- FFN ----
    y = _rms(x, ln3_ref[0])
    hdn = jnp.maximum(
        jnp.dot(y, wi_ref[0], preferred_element_type=jnp.float32), 0.0)
    x = x + jnp.dot(hdn, wff_ref[0], preferred_element_type=jnp.float32)

    x_sc[...] = x
    out_ref[...] = x

    @pl.when(l == L - 1)
    def _():
        out_ref[...] = _rms(x, fln_ref[...])          # fused final layer norm


def _head_kernel(x_ref, wlm_ref, w1_ref, b1_ref, w2p_ref, b2p_ref,
                 logits_ref, val_ref):
    x = x_ref[...]                                    # (B*T, D), already normed
    logits_ref[...] = jnp.dot(x, wlm_ref[...],
                              preferred_element_type=jnp.float32)
    h = jnp.maximum(
        jnp.dot(x, w1_ref[...], preferred_element_type=jnp.float32)
        + b1_ref[...], 0.0)
    # w2 is zero-padded to 128 output lanes -> lane-dense store; column 0 = value
    val_ref[...] = jnp.dot(h, w2p_ref[...],
                           preferred_element_type=jnp.float32) + b2p_ref[...]


# ----------------------------- kernel wrappers -------------------------------
def fused_encoder(x_emb, bias, p):
    BT, D = x_emb.shape
    L = p['ln1'].shape[0]
    H, Dh = CFG['n_heads'], CFG['d_kv']
    inner = H * Dh
    F = CFG['d_ff']
    B, _, T, _ = bias.shape
    kern = partial(_encoder_kernel, B, T, H, Dh)
    return pl.pallas_call(
        kern,
        out_shape=jax.ShapeDtypeStruct((BT, D), jnp.float32),
        grid_spec=pltpu.PrefetchScalarGridSpec(
            num_scalar_prefetch=0,
            grid=(L,),
            in_specs=[
                pl.BlockSpec((BT, D), lambda l: (0, 0)),
                pl.BlockSpec((B, H, T, T), lambda l: (0, 0, 0, 0)),
                pl.BlockSpec((1, 1, D), lambda l: (l, 0, 0)),
                pl.BlockSpec((1, D, 3 * inner), lambda l: (l, 0, 0)),
                pl.BlockSpec((1, inner, D), lambda l: (l, 0, 0)),
                pl.BlockSpec((1, 1, D), lambda l: (l, 0, 0)),
                pl.BlockSpec((1, D, F), lambda l: (l, 0, 0)),
                pl.BlockSpec((1, F, D), lambda l: (l, 0, 0)),
                pl.BlockSpec((1, D), lambda l: (0, 0)),
            ],
            out_specs=pl.BlockSpec((BT, D), lambda l: (0, 0)),
            scratch_shapes=[pltpu.VMEM((BT, D), jnp.float32),
                            pltpu.VMEM((BT, D), jnp.float32)],
        ),
        compiler_params=pltpu.CompilerParams(
            dimension_semantics=("arbitrary",)),
    )(x_emb, bias, p['ln1'], p['wqkv'], p['wo'],
      p['ln2'], p['wi'], p['wff'], p['final_ln'])


def fused_decoder(x_emb, enc_flat, self_bias, cross_bias, p):
    BT, D = x_emb.shape
    BTe = enc_flat.shape[0]
    L = p['ln1'].shape[0]
    H, Dh = CFG['n_heads'], CFG['d_kv']
    inner = H * Dh
    F = CFG['d_ff']
    _, Td, _ = self_bias.shape
    B, Te = cross_bias.shape
    kern = partial(_decoder_kernel, B, Td, Te, H, Dh)
    return pl.pallas_call(
        kern,
        out_shape=(jax.ShapeDtypeStruct((L, BT, D), jnp.float32),
                   jax.ShapeDtypeStruct((BT, D), jnp.float32)),
        grid_spec=pltpu.PrefetchScalarGridSpec(
            num_scalar_prefetch=0,
            grid=(L,),
            in_specs=[
                pl.BlockSpec((BT, D), lambda l: (0, 0)),
                pl.BlockSpec((BTe, D), lambda l: (0, 0)),
                pl.BlockSpec((H, Td, Td), lambda l: (0, 0, 0)),
                pl.BlockSpec((B, Te), lambda l: (0, 0)),
                pl.BlockSpec((1, 1, D), lambda l: (l, 0, 0)),
                pl.BlockSpec((1, D, 3 * inner), lambda l: (l, 0, 0)),
                pl.BlockSpec((1, inner, D), lambda l: (l, 0, 0)),
                pl.BlockSpec((1, 1, D), lambda l: (l, 0, 0)),
                pl.BlockSpec((1, D, inner), lambda l: (l, 0, 0)),
                pl.BlockSpec((1, D, 2 * inner), lambda l: (l, 0, 0)),
                pl.BlockSpec((1, inner, D), lambda l: (l, 0, 0)),
                pl.BlockSpec((1, 1, D), lambda l: (l, 0, 0)),
                pl.BlockSpec((1, D, F), lambda l: (l, 0, 0)),
                pl.BlockSpec((1, F, D), lambda l: (l, 0, 0)),
                pl.BlockSpec((1, D), lambda l: (0, 0)),
            ],
            out_specs=[
                pl.BlockSpec((1, BT, D), lambda l: (l, 0, 0)),
                pl.BlockSpec((BT, D), lambda l: (0, 0)),
            ],
            scratch_shapes=[pltpu.VMEM((BT, D), jnp.float32),
                            pltpu.VMEM((BT, D), jnp.float32)],
        ),
        compiler_params=pltpu.CompilerParams(
            dimension_semantics=("arbitrary",)),
    )(x_emb, enc_flat, self_bias, cross_bias,
      p['ln1'], p['wsqkv'], p['wso'],
      p['ln2'], p['wcq'], p['wckv'], p['wco'],
      p['ln3'], p['wi'], p['wff'], p['final_ln'])


def fused_head(dec_last_flat, p):
    BT, D = dec_last_flat.shape
    V = p['lm_head'].shape[1]
    D2 = p['w1'].shape[1]
    VP = p['w2_pad'].shape[1]
    return pl.pallas_call(
        _head_kernel,
        out_shape=(jax.ShapeDtypeStruct((BT, V), jnp.float32),
                   jax.ShapeDtypeStruct((BT, VP), jnp.float32)),
        grid=(1,),
        in_specs=[pl.BlockSpec((BT, D), lambda i: (0, 0)),
                  pl.BlockSpec((D, V), lambda i: (0, 0)),
                  pl.BlockSpec((D, D2), lambda i: (0, 0)),
                  pl.BlockSpec((1, D2), lambda i: (0, 0)),
                  pl.BlockSpec((D2, VP), lambda i: (0, 0)),
                  pl.BlockSpec((1, VP), lambda i: (0, 0))],
        out_specs=(pl.BlockSpec((BT, V), lambda i: (0, 0)),
                   pl.BlockSpec((BT, VP), lambda i: (0, 0))),
    )(dec_last_flat, p['lm_head'], p['w1'], p['b1'], p['w2_pad'], p['b2_pad'])


# --------------------- relative-position bias (JAX glue) ---------------------
def _relative_position_bucket(rel_pos, bidirectional, num_buckets, max_distance):
    buckets = jnp.zeros_like(rel_pos)
    if bidirectional:
        num_buckets //= 2
        buckets = buckets + (rel_pos > 0).astype(jnp.int32) * num_buckets
        rel_pos = jnp.abs(rel_pos)
    else:
        rel_pos = -jnp.minimum(rel_pos, 0)
    max_exact = num_buckets // 2
    is_small = rel_pos < max_exact
    rel_large = max_exact + (
        jnp.log(jnp.maximum(rel_pos, 1).astype(jnp.float32) / max_exact)
        / math.log(max_distance / max_exact)
        * (num_buckets - max_exact)
    ).astype(jnp.int32)
    rel_large = jnp.minimum(rel_large, num_buckets - 1)
    return buckets + jnp.where(is_small, rel_pos, rel_large)


def compute_rel_bias(rel_emb, qlen, klen, bidirectional):
    ctx = jnp.arange(qlen)[:, None]
    mem = jnp.arange(klen)[None, :]
    bucket = _relative_position_bucket(mem - ctx, bidirectional,
                                       CFG['rel_buckets'], CFG['rel_max_dist'])
    values = jnp.take(rel_emb, bucket, axis=0)          # (q, k, H)
    return jnp.transpose(values, (2, 0, 1))             # (H, q, k)


# -------------------------------- forward ------------------------------------
def seq2seq_lm_with_value_head_forward(params, input_ids, attention_mask,
                                       decoder_input_ids):
    """Reproduces Seq2SeqLMHydraWithValueHead.forward (inference, dropout=noop)."""
    B, Te = input_ids.shape
    _, Td = decoder_input_ids.shape
    D, H, V, L = CFG['d_model'], CFG['n_heads'], CFG['vocab'], CFG['n_layers']

    # ---- encoder ----
    enc_emb = params['embed'][input_ids].reshape(B * Te, D)
    enc_pos = compute_rel_bias(params['enc_rel'], Te, Te, True)          # (H,Te,Te)
    mask_bias = (1.0 - attention_mask.astype(jnp.float32))[:, None, None, :] * -1e9
    enc_bias = enc_pos[None] + mask_bias                                 # (B,H,Te,Te)
    enc_last_flat = fused_encoder(enc_emb, enc_bias, params['enc'])
    enc_last = enc_last_flat.reshape(B, Te, D)

    # ---- decoder ----
    dec_emb = params['embed'][decoder_input_ids].reshape(B * Td, D)
    dec_pos = compute_rel_bias(params['dec_rel'], Td, Td, False)         # (H,Td,Td)
    causal = jnp.tril(jnp.ones((Td, Td), jnp.float32))
    self_bias = dec_pos + (1.0 - causal)[None] * -1e9                    # (H,Td,Td)
    cross_bias = (1.0 - attention_mask.astype(jnp.float32)) * -1e9       # (B,Te)
    hs_stack, dec_last_flat = fused_decoder(dec_emb, enc_last_flat,
                                            self_bias, cross_bias,
                                            params['dec'])
    dec_last = dec_last_flat.reshape(B, Td, D)
    dec_hidden = tuple(hs_stack[i].reshape(B, Td, D) for i in range(L)) + (dec_last,)

    # ---- lm_head + v_head (single fused kernel) ----
    logits_flat, val_pad = fused_head(dec_last_flat, params['head'])
    logits = logits_flat.reshape(B, Td, V)
    value = val_pad[:, 0].reshape(B, Td)                                 # .squeeze(-1)

    return {'logits': logits,
            'decoder_hidden_states': dec_hidden,
            'encoder_last_hidden_state': enc_last,
            'value': value}


# TODO(synk): forward_hydra / frozen T5Branch and generate() are not exercised
# by forward(); they are not implemented here.

# ----------------------------- deterministic init ----------------------------
def init_params(key):
    D, H, Dh = CFG['d_model'], CFG['n_heads'], CFG['d_kv']
    F, V, L = CFG['d_ff'], CFG['vocab'], CFG['n_layers']
    inner = H * Dh
    keys = iter(jax.random.split(key, 64))

    def w(shape, scale=0.02):
        return scale * jax.random.normal(next(keys), shape, jnp.float32)

    w2 = w((2 * D, 1))
    params = {
        'embed': w((V, D)),
        'enc_rel': w((CFG['rel_buckets'], H)),
        'dec_rel': w((CFG['rel_buckets'], H)),
        'enc': {
            'ln1': jnp.ones((L, 1, D), jnp.float32),
            'wqkv': w((L, D, 3 * inner)),            # fused q|k|v
            'wo': w((L, inner, D)),
            'ln2': jnp.ones((L, 1, D), jnp.float32),
            'wi': w((L, D, F)),
            'wff': w((L, F, D)),
            'final_ln': jnp.ones((1, D), jnp.float32),
        },
        'dec': {
            'ln1': jnp.ones((L, 1, D), jnp.float32),
            'wsqkv': w((L, D, 3 * inner)),           # fused self q|k|v
            'wso': w((L, inner, D)),
            'ln2': jnp.ones((L, 1, D), jnp.float32),
            'wcq': w((L, D, inner)),
            'wckv': w((L, D, 2 * inner)),            # fused cross k|v
            'wco': w((L, inner, D)),
            'ln3': jnp.ones((L, 1, D), jnp.float32),
            'wi': w((L, D, F)),
            'wff': w((L, F, D)),
            'final_ln': jnp.ones((1, D), jnp.float32),
        },
        'head': {
            'lm_head': w((D, V)),
            'w1': w((D, 2 * D)),
            'b1': jnp.zeros((1, 2 * D), jnp.float32),
            # value column 0 is real; pad to 128 lanes for a dense store
            'w2_pad': jnp.concatenate(
                [w2, jnp.zeros((2 * D, 127), jnp.float32)], axis=1),
            'b2_pad': jnp.zeros((1, 128), jnp.float32),
        },
    }
    return params


# ----------------------------------- main ------------------------------------
if __name__ == "__main__":
    key = jax.random.PRNGKey(0)
    kp, ki, kd = jax.random.split(key, 3)

    params = init_params(kp)

    B, T_enc, T_dec = 2, 8, 8
    input_ids = jax.random.randint(ki, (B, T_enc), 0, CFG['vocab'], jnp.int32)
    decoder_input_ids = jax.random.randint(kd, (B, T_dec), 0, CFG['vocab'], jnp.int32)
    attention_mask = jnp.ones((B, T_enc), jnp.float32)

    fwd = jax.jit(seq2seq_lm_with_value_head_forward)
    out = fwd(params, input_ids, attention_mask, decoder_input_ids)
    jax.block_until_ready(out)

    assert out['logits'].shape == (B, T_dec, CFG['vocab'])
    assert out['value'].shape == (B, T_dec)
    assert len(out['decoder_hidden_states']) == CFG['n_layers'] + 1
    assert out['encoder_last_hidden_state'].shape == (B, T_enc, CFG['d_model'])

    print("KERNEL_OK")
</pallas_src>

<mosaic_0001>
module attributes {stable_mosaic.version = 11 : i64} {
  func.func @_head_kernel(%arg0: i32, %arg1: memref<16x32xf32, #tpu.memory_space<vmem>>, %arg2: memref<32x256xf32, #tpu.memory_space<vmem>>, %arg3: memref<32x64xf32, #tpu.memory_space<vmem>>, %arg4: memref<1x64xf32, #tpu.memory_space<vmem>>, %arg5: memref<64x128xf32, #tpu.memory_space<vmem>>, %arg6: memref<1x128xf32, #tpu.memory_space<vmem>>, %arg7: memref<16x256xf32, #tpu.memory_space<vmem>>, %arg8: memref<16x128xf32, #tpu.memory_space<vmem>>) attributes {dimension_semantics = [#tpu.dimension_semantics<arbitrary>], iteration_bounds = array<i64: 1>, scalar_prefetch = 0 : i64, scratch_operands = 0 : i64, tpu.core_type = #tpu.core_type<tc>, window_params = [{pipeline_mode = #tpu.pipeline_mode<synchronous>, transform_indices = @transform_0, window_bounds = array<i64: 16, 32>}, {pipeline_mode = #tpu.pipeline_mode<synchronous>, transform_indices = @transform_1, window_bounds = array<i64: 32, 256>}, {pipeline_mode = #tpu.pipeline_mode<synchronous>, transform_indices = @transform_2, window_bounds = array<i64: 32, 64>}, {pipeline_mode = #tpu.pipeline_mode<synchronous>, transform_indices = @transform_3, window_bounds = array<i64: 1, 64>}, {pipeline_mode = #tpu.pipeline_mode<synchronous>, transform_indices = @transform_4, window_bounds = array<i64: 64, 128>}, {pipeline_mode = #tpu.pipeline_mode<synchronous>, transform_indices = @transform_5, window_bounds = array<i64: 1, 128>}, {pipeline_mode = #tpu.pipeline_mode<synchronous>, transform_indices = @transform_6, window_bounds = array<i64: 16, 256>}, {pipeline_mode = #tpu.pipeline_mode<synchronous>, transform_indices = @transform_7, window_bounds = array<i64: 16, 128>}]} {
    %c0 = arith.constant 0 : index
    %c0_0 = arith.constant 0 : index
    %0 = vector.load %arg1[%c0, %c0_0] : memref<16x32xf32, #tpu.memory_space<vmem>>, vector<16x32xf32>
    %c0_1 = arith.constant 0 : index
    %c0_2 = arith.constant 0 : index
    %1 = vector.load %arg2[%c0_1, %c0_2] : memref<32x256xf32, #tpu.memory_space<vmem>>, vector<32x256xf32>
    %cst = arith.constant dense<0.000000e+00> : vector<16x256xf32>
    %2 = tpu.matmul %0, %1, %cst {dimension_numbers = #tpu.dot_dimension_numbers<[1], [0], [0], [1], [0, 0, 1, 1], [], []>} : vector<16x32xf32>, vector<32x256xf32>, vector<16x256xf32> -> vector<16x256xf32>
    %c0_3 = arith.constant 0 : index
    %c0_4 = arith.constant 0 : index
    %3 = vector.load %arg7[%c0_3, %c0_4] : memref<16x256xf32, #tpu.memory_space<vmem>>, vector<16x256xf32>
    tpu.vector_store %arg7[%c0_3, %c0_4], %2 {strides = array<i32>} : memref<16x256xf32, #tpu.memory_space<vmem>>, vector<16x256xf32>,
    %c0_5 = arith.constant 0 : index
    %c0_6 = arith.constant 0 : index
    %4 = vector.load %arg3[%c0_5, %c0_6] : memref<32x64xf32, #tpu.memory_space<vmem>>, vector<32x64xf32>
    %cst_7 = arith.constant dense<0.000000e+00> : vector<16x64xf32>
    %5 = tpu.matmul %0, %4, %cst_7 {dimension_numbers = #tpu.dot_dimension_numbers<[1], [0], [0], [1], [0, 0, 1, 1], [], []>} : vector<16x32xf32>, vector<32x64xf32>, vector<16x64xf32> -> vector<16x64xf32>
    %c0_8 = arith.constant 0 : index
    %c0_9 = arith.constant 0 : index
    %6 = vector.load %arg4[%c0_8, %c0_9] : memref<1x64xf32, #tpu.memory_space<vmem>>, vector<1x64xf32>
    %7 = vector.broadcast %6 : vector<1x64xf32> to vector<16x64xf32>
    %8 = arith.addf %5, %7 : vector<16x64xf32>
    %cst_10 = arith.constant 0.000000e+00 : f32
    %9 = vector.broadcast %cst_10 : f32 to vector<16x64xf32>
    %10 = arith.maximumf %8, %9 : vector<16x64xf32>
    %c0_11 = arith.constant 0 : index
    %c0_12 = arith.constant 0 : index
    %11 = vector.load %arg5[%c0_11, %c0_12] : memref<64x128xf32, #tpu.memory_space<vmem>>, vector<64x128xf32>
    %cst_13 = arith.constant dense<0.000000e+00> : vector<16x128xf32>
    %12 = tpu.matmul %10, %11, %cst_13 {dimension_numbers = #tpu.dot_dimension_numbers<[1], [0], [0], [1], [0, 0, 1, 1], [], []>} : vector<16x64xf32>, vector<64x128xf32>, vector<16x128xf32> -> vector<16x128xf32>
    %c0_14 = arith.constant 0 : index
    %c0_15 = arith.constant 0 : index
    %13 = vector.load %arg6[%c0_14, %c0_15] : memref<1x128xf32, #tpu.memory_space<vmem>>, vector<1x128xf32>
    %14 = vector.broadcast %13 : vector<1x128xf32> to vector<16x128xf32>
    %15 = arith.addf %12, %14 : vector<16x128xf32>
    %c0_16 = arith.constant 0 : index
    %c0_17 = arith.constant 0 : index
    %16 = vector.load %arg8[%c0_16, %c0_17] : memref<16x128xf32, #tpu.memory_space<vmem>>, vector<16x128xf32>
    tpu.vector_store %arg8[%c0_16, %c0_17], %15 {strides = array<i32>} : memref<16x128xf32, #tpu.memory_space<vmem>>, vector<16x128xf32>,
    return
  }
  func.func @transform_0(%arg0: i32) -> (i32, i32) {
    %c0_i32 = arith.constant 0 : i32
    %c0_i32_0 = arith.constant 0 : i32
    %c0_i32_1 = arith.constant 0 : i32
    return %c0_i32, %c0_i32_0 : i32, i32
  }
  func.func @transform_1(%arg0: i32) -> (i32, i32) {
    %c0_i32 = arith.constant 0 : i32
    %c0_i32_0 = arith.constant 0 : i32
    %c0_i32_1 = arith.constant 0 : i32
    return %c0_i32, %c0_i32_0 : i32, i32
  }
  func.func @transform_2(%arg0: i32) -> (i32, i32) {
    %c0_i32 = arith.constant 0 : i32
    %c0_i32_0 = arith.constant 0 : i32
    %c0_i32_1 = arith.constant 0 : i32
    return %c0_i32, %c0_i32_0 : i32, i32
  }
  func.func @transform_3(%arg0: i32) -> (i32, i32) {
    %c0_i32 = arith.constant 0 : i32
    %c0_i32_0 = arith.constant 0 : i32
    %c0_i32_1 = arith.constant 0 : i32
    return %c0_i32, %c0_i32_0 : i32, i32
  }
  func.func @transform_4(%arg0: i32) -> (i32, i32) {
    %c0_i32 = arith.constant 0 : i32
    %c0_i32_0 = arith.constant 0 : i32
    %c0_i32_1 = arith.constant 0 : i32
    return %c0_i32, %c0_i32_0 : i32, i32
  }
  func.func @transform_5(%arg0: i32) -> (i32, i32) {
    %c0_i32 = arith.constant 0 : i32
    %c0_i32_0 = arith.constant 0 : i32
    %c0_i32_1 = arith.constant 0 : i32
    return %c0_i32, %c0_i32_0 : i32, i32
  }
  func.func @transform_6(%arg0: i32) -> (i32, i32) {
    %c0_i32 = arith.constant 0 : i32
    %c0_i32_0 = arith.constant 0 : i32
    %c0_i32_1 = arith.constant 0 : i32
    return %c0_i32, %c0_i32_0 : i32, i32
  }
  func.func @transform_7(%arg0: i32) -> (i32, i32) {
    %c0_i32 = arith.constant 0 : i32
    %c0_i32_0 = arith.constant 0 : i32
    %c0_i32_1 = arith.constant 0 : i32
    return %c0_i32, %c0_i32_0 : i32, i32
  }
}

module attributes {stable_mosaic.version = 11 : i64} {
  func.func @_encoder_kernel(%arg0: i32, %arg1: memref<16x32xf32, #tpu.memory_space<vmem>>, %arg2: memref<2x4x8x8xf32, #tpu.memory_space<vmem>>, %arg3: memref<1x1x32xf32, #tpu.memory_space<vmem>>, %arg4: memref<1x32x96xf32, #tpu.memory_space<vmem>>, %arg5: memref<1x32x32xf32, #tpu.memory_space<vmem>>, %arg6: memref<1x1x32xf32, #tpu.memory_space<vmem>>, %arg7: memref<1x32x64xf32, #tpu.memory_space<vmem>>, %arg8: memref<1x64x32xf32, #tpu.memory_space<vmem>>, %arg9: memref<1x32xf32, #tpu.memory_space<vmem>>, %arg10: memref<16x32xf32, #tpu.memory_space<vmem>>, %arg11: memref<16x32xf32, #tpu.memory_space<vmem>>, %arg12: memref<16x32xf32, #tpu.memory_space<vmem>>) attributes {dimension_semantics = [#tpu.dimension_semantics<arbitrary>], iteration_bounds = array<i64: 2>, scalar_prefetch = 0 : i64, scratch_operands = 2 : i64, tpu.core_type = #tpu.core_type<tc>, window_params = [{pipeline_mode = #tpu.pipeline_mode<synchronous>, transform_indices = @transform_0, window_bounds = array<i64: 16, 32>}, {pipeline_mode = #tpu.pipeline_mode<synchronous>, transform_indices = @transform_1, window_bounds = array<i64: 2, 4, 8, 8>}, {transform_indices = @transform_2, window_bounds = array<i64: 1, 1, 32>}, {transform_indices = @transform_3, window_bounds = array<i64: 1, 32, 96>}, {transform_indices = @transform_4, window_bounds = array<i64: 1, 32, 32>}, {transform_indices = @transform_5, window_bounds = array<i64: 1, 1, 32>}, {transform_indices = @transform_6, window_bounds = array<i64: 1, 32, 64>}, {transform_indices = @transform_7, window_bounds = array<i64: 1, 64, 32>}, {pipeline_mode = #tpu.pipeline_mode<synchronous>, transform_indices = @transform_8, window_bounds = array<i64: 1, 32>}, {pipeline_mode = #tpu.pipeline_mode<synchronous>, transform_indices = @transform_9, window_bounds = array<i64: 16, 32>}]} {
    %c0_i32 = arith.constant 0 : i32
    %0 = arith.cmpi eq, %arg0, %c0_i32 : i32
    %1 = arith.extui %0 : i1 to i32
    %c0_i32_0 = arith.constant 0 : i32
    %2 = arith.cmpi ne, %1, %c0_i32_0 : i32
    scf.if %2 {
      %c0_83 = arith.constant 0 : index
      %c0_84 = arith.constant 0 : index
      %220 = vector.load %arg1[%c0_83, %c0_84] : memref<16x32xf32, #tpu.memory_space<vmem>>, vector<16x32xf32>
      %c0_85 = arith.constant 0 : index
      %c0_86 = arith.constant 0 : index
      %221 = vector.load %arg11[%c0_85, %c0_86] : memref<16x32xf32, #tpu.memory_space<vmem>>, vector<16x32xf32>
      tpu.vector_store %arg11[%c0_85, %c0_86], %220 {strides = array<i32>} : memref<16x32xf32, #tpu.memory_space<vmem>>, vector<16x32xf32>,
    } else {
    }
    %c0 = arith.constant 0 : index
    %c0_1 = arith.constant 0 : index
    %3 = vector.load %arg11[%c0, %c0_1] : memref<16x32xf32, #tpu.memory_space<vmem>>, vector<16x32xf32>
    %c0_2 = arith.constant 0 : index
    %c0_3 = arith.constant 0 : index
    %c0_4 = arith.constant 0 : index
    %4 = vector.load %arg3[%c0_2, %c0_3, %c0_4] : memref<1x1x32xf32, #tpu.memory_space<vmem>>, vector<1x1x32xf32>
    %5 = vector.shape_cast %4 : vector<1x1x32xf32> to vector<1x32xf32>
    %6 = arith.mulf %3, %3 : vector<16x32xf32>
    %cst = arith.constant dense<0.000000e+00> : vector<16xf32>
    %7 = vector.multi_reduction <add>, %6, %cst [1] : vector<16x32xf32> to vector<16xf32>
    %8 = vector.shape_cast %7 : vector<16xf32> to vector<16x1xf32>
    %cst_5 = arith.constant 3.200000e+01 : f32
    %9 = vector.broadcast %cst_5 : f32 to vector<16x1xf32>
    %10 = arith.divf %8, %9 : vector<16x1xf32>
    %cst_6 = arith.constant 9.99999997E-7 : f32
    %11 = vector.broadcast %cst_6 : f32 to vector<16x1xf32>
    %12 = arith.addf %10, %11 : vector<16x1xf32>
    %13 = math.rsqrt %12 : vector<16x1xf32>
    %14 = vector.broadcast %13 : vector<16x1xf32> to vector<16x32xf32>
    %15 = arith.mulf %3, %14 : vector<16x32xf32>
    %16 = vector.broadcast %5 : vector<1x32xf32> to vector<16x32xf32>
    %17 = arith.mulf %15, %16 : vector<16x32xf32>
    %c0_7 = arith.constant 0 : index
    %c0_8 = arith.constant 0 : index
    %c0_9 = arith.constant 0 : index
    %18 = vector.load %arg4[%c0_7, %c0_8, %c0_9] : memref<1x32x96xf32, #tpu.memory_space<vmem>>, vector<1x32x96xf32>
    %19 = vector.shape_cast %18 : vector<1x32x96xf32> to vector<32x96xf32>
    %cst_10 = arith.constant dense<0.000000e+00> : vector<16x96xf32>
    %20 = tpu.matmul %17, %19, %cst_10 {dimension_numbers = #tpu.dot_dimension_numbers<[1], [0], [0], [1], [0, 0, 1, 1], [], []>} : vector<16x32xf32>, vector<32x96xf32>, vector<16x96xf32> -> vector<16x96xf32>
    %c0_11 = arith.constant 0 : index
    %c0_12 = arith.constant 0 : index
    %c0_13 = arith.constant 0 : index
    %c0_14 = arith.constant 0 : index
    %21 = vector.load %arg2[%c0_11, %c0_12, %c0_13, %c0_14] : memref<2x4x8x8xf32, #tpu.memory_space<vmem>>, vector<2x4x8x8xf32>
    %c0_15 = arith.constant 0 : index
    %c0_16 = arith.constant 0 : index
    %c0_17 = arith.constant 0 : index
    %22 = vector.load %arg5[%c0_15, %c0_16, %c0_17] : memref<1x32x32xf32, #tpu.memory_space<vmem>>, vector<1x32x32xf32>
    %23 = vector.shape_cast %22 : vector<1x32x32xf32> to vector<32x32xf32>
    %24 = vector.extract_strided_slice %20 {offsets = [0, 0], sizes = [8, 96], strides = [1, 1]} : vector<16x96xf32> to vector<8x96xf32>
    %25 = vector.extract_strided_slice %21 {offsets = [0, 0, 0, 0], sizes = [1, 4, 8, 8], strides = [1, 1, 1, 1]} : vector<2x4x8x8xf32> to vector<1x4x8x8xf32>
    %26 = vector.shape_cast %25 : vector<1x4x8x8xf32> to vector<4x8x8xf32>
    %27 = vector.extract_strided_slice %24 {offsets = [0, 0], sizes = [8, 8], strides = [1, 1]} : vector<8x96xf32> to vector<8x8xf32>
    %28 = vector.extract_strided_slice %24 {offsets = [0, 32], sizes = [8, 8], strides = [1, 1]} : vector<8x96xf32> to vector<8x8xf32>
    %29 = vector.extract_strided_slice %24 {offsets = [0, 64], sizes = [8, 8], strides = [1, 1]} : vector<8x96xf32> to vector<8x8xf32>
    %30 = vector.extract_strided_slice %26 {offsets = [0, 0, 0], sizes = [1, 8, 8], strides = [1, 1, 1]} : vector<4x8x8xf32> to vector<1x8x8xf32>
    %31 = vector.shape_cast %30 : vector<1x8x8xf32> to vector<8x8xf32>
    %cst_18 = arith.constant dense<0.000000e+00> : vector<8x8xf32>
    %32 = tpu.matmul %27, %28, %cst_18 {dimension_numbers = #tpu.dot_dimension_numbers<[1], [1], [0], [0], [0, 0, 1, 0], [], []>} : vector<8x8xf32>, vector<8x8xf32>, vector<8x8xf32> -> vector<8x8xf32>
    %33 = arith.addf %32, %31 : vector<8x8xf32>
    %cst_19 = arith.constant dense<0xFF800000> : vector<8xf32>
    %34 = vector.multi_reduction <maximumf>, %33, %cst_19 [1] : vector<8x8xf32> to vector<8xf32>
    %35 = vector.shape_cast %34 : vector<8xf32> to vector<8x1xf32>
    %36 = vector.broadcast %35 : vector<8x1xf32> to vector<8x8xf32>
    %37 = arith.subf %33, %36 : vector<8x8xf32>
    %38 = math.exp %37 : vector<8x8xf32>
    %cst_20 = arith.constant dense<0.000000e+00> : vector<8xf32>
    %39 = vector.multi_reduction <add>, %38, %cst_20 [1] : vector<8x8xf32> to vector<8xf32>
    %40 = vector.shape_cast %39 : vector<8xf32> to vector<8x1xf32>
    %41 = vector.broadcast %40 : vector<8x1xf32> to vector<8x8xf32>
    %42 = arith.divf %38, %41 : vector<8x8xf32>
    %cst_21 = arith.constant dense<0.000000e+00> : vector<8x8xf32>
    %43 = tpu.matmul %42, %29, %cst_21 {dimension_numbers = #tpu.dot_dimension_numbers<[1], [0], [0], [1], [0, 0, 1, 1], [], []>} : vector<8x8xf32>, vector<8x8xf32>, vector<8x8xf32> -> vector<8x8xf32>
    %44 = vector.extract_strided_slice %23 {offsets = [0, 0], sizes = [8, 32], strides = [1, 1]} : vector<32x32xf32> to vector<8x32xf32>
    %cst_22 = arith.constant dense<0.000000e+00> : vector<8x32xf32>
    %45 = tpu.matmul %43, %44, %cst_22 {dimension_numbers = #tpu.dot_dimension_numbers<[1], [0], [0], [1], [0, 0, 1, 1], [], []>} : vector<8x8xf32>, vector<8x32xf32>, vector<8x32xf32> -> vector<8x32xf32>
    %46 = vector.extract_strided_slice %24 {offsets = [0, 8], sizes = [8, 8], strides = [1, 1]} : vector<8x96xf32> to vector<8x8xf32>
    %47 = vector.extract_strided_slice %24 {offsets = [0, 40], sizes = [8, 8], strides = [1, 1]} : vector<8x96xf32> to vector<8x8xf32>
    %48 = vector.extract_strided_slice %24 {offsets = [0, 72], sizes = [8, 8], strides = [1, 1]} : vector<8x96xf32> to vector<8x8xf32>
    %49 = vector.extract_strided_slice %26 {offsets = [1, 0, 0], sizes = [1, 8, 8], strides = [1, 1, 1]} : vector<4x8x8xf32> to vector<1x8x8xf32>
    %50 = vector.shape_cast %49 : vector<1x8x8xf32> to vector<8x8xf32>
    %cst_23 = arith.constant dense<0.000000e+00> : vector<8x8xf32>
    %51 = tpu.matmul %46, %47, %cst_23 {dimension_numbers = #tpu.dot_dimension_numbers<[1], [1], [0], [0], [0, 0, 1, 0], [], []>} : vector<8x8xf32>, vector<8x8xf32>, vector<8x8xf32> -> vector<8x8xf32>
    %52 = arith.addf %51, %50 : vector<8x8xf32>
    %cst_24 = arith.constant dense<0xFF800000> : vector<8xf32>
    %53 = vector.multi_reduction <maximumf>, %52, %cst_24 [1] : vector<8x8xf32> to vector<8xf32>
    %54 = vector.shape_cast %53 : vector<8xf32> to vector<8x1xf32>
    %55 = vector.broadcast %54 : vector<8x1xf32> to vector<8x8xf32>
    %56 = arith.subf %52, %55 : vector<8x8xf32>
    %57 = math.exp %56 : vector<8x8xf32>
    %cst_25 = arith.constant dense<0.000000e+00> : vector<8xf32>
    %58 = vector.multi_reduction <add>, %57, %cst_25 [1] : vector<8x8xf32> to vector<8xf32>
    %59 = vector.shape_cast %58 : vector<8xf32> to vector<8x1xf32>
    %60 = vector.broadcast %59 : vector<8x1xf32> to vector<8x8xf32>
    %61 = arith.divf %57, %60 : vector<8x8xf32>
    %cst_26 = arith.constant dense<0.000000e+00> : vector<8x8xf32>
    %62 = tpu.matmul %61, %48, %cst_26 {dimension_numbers = #tpu.dot_dimension_numbers<[1], [0], [0], [1], [0, 0, 1, 1], [], []>} : vector<8x8xf32>, vector<8x8xf32>, vector<8x8xf32> -> vector<8x8xf32>
    %63 = vector.extract_strided_slice %23 {offsets = [8, 0], sizes = [8, 32], strides = [1, 1]} : vector<32x32xf32> to vector<8x32xf32>
    %cst_27 = arith.constant dense<0.000000e+00> : vector<8x32xf32>
    %64 = tpu.matmul %62, %63, %cst_27 {dimension_numbers = #tpu.dot_dimension_numbers<[1], [0], [0], [1], [0, 0, 1, 1], [], []>} : vector<8x8xf32>, vector<8x32xf32>, vector<8x32xf32> -> vector<8x32xf32>
    %65 = arith.addf %45, %64 : vector<8x32xf32>
    %66 = vector.extract_strided_slice %24 {offsets = [0, 16], sizes = [8, 8], strides = [1, 1]} : vector<8x96xf32> to vector<8x8xf32>
    %67 = vector.extract_strided_slice %24 {offsets = [0, 48], sizes = [8, 8], strides = [1, 1]} : vector<8x96xf32> to vector<8x8xf32>
    %68 = vector.extract_strided_slice %24 {offsets = [0, 80], sizes = [8, 8], strides = [1, 1]} : vector<8x96xf32> to vector<8x8xf32>
    %69 = vector.extract_strided_slice %26 {offsets = [2, 0, 0], sizes = [1, 8, 8], strides = [1, 1, 1]} : vector<4x8x8xf32> to vector<1x8x8xf32>
    %70 = vector.shape_cast %69 : vector<1x8x8xf32> to vector<8x8xf32>
    %cst_28 = arith.constant dense<0.000000e+00> : vector<8x8xf32>
    %71 = tpu.matmul %66, %67, %cst_28 {dimension_numbers = #tpu.dot_dimension_numbers<[1], [1], [0], [0], [0, 0, 1, 0], [], []>} : vector<8x8xf32>, vector<8x8xf32>, vector<8x8xf32> -> vector<8x8xf32>
    %72 = arith.addf %71, %70 : vector<8x8xf32>
    %cst_29 = arith.constant dense<0xFF800000> : vector<8xf32>
    %73 = vector.multi_reduction <maximumf>, %72, %cst_29 [1] : vector<8x8xf32> to vector<8xf32>
    %74 = vector.shape_cast %73 : vector<8xf32> to vector<8x1xf32>
    %75 = vector.broadcast %74 : vector<8x1xf32> to vector<8x8xf32>
    %76 = arith.subf %72, %75 : vector<8x8xf32>
    %77 = math.exp %76 : vector<8x8xf32>
    %cst_30 = arith.constant dense<0.000000e+00> : vector<8xf32>
    %78 = vector.multi_reduction <add>, %77, %cst_30 [1] : vector<8x8xf32> to vector<8xf32>
    %79 = vector.shape_cast %78 : vector<8xf32> to vector<8x1xf32>
    %80 = vector.broadcast %79 : vector<8x1xf32> to vector<8x8xf32>
    %81 = arith.divf %77, %80 : vector<8x8xf32>
    %cst_31 = arith.constant dense<0.000000e+00> : vector<8x8xf32>
    %82 = tpu.matmul %81, %68, %cst_31 {dimension_numbers = #tpu.dot_dimension_numbers<[1], [0], [0], [1], [0, 0, 1, 1], [], []>} : vector<8x8xf32>, vector<8x8xf32>, vector<8x8xf32> -> vector<8x8xf32>
    %83 = vector.extract_strided_slice %23 {offsets = [16, 0], sizes = [8, 32], strides = [1, 1]} : vector<32x32xf32> to vector<8x32xf32>
    %cst_32 = arith.constant dense<0.000000e+00> : vector<8x32xf32>
    %84 = tpu.matmul %82, %83, %cst_32 {dimension_numbers = #tpu.dot_dimension_numbers<[1], [0], [0], [1], [0, 0, 1, 1], [], []>} : vector<8x8xf32>, vector<8x32xf32>, vector<8x32xf32> -> vector<8x32xf32>
    %85 = arith.addf %65, %84 : vector<8x32xf32>
    %86 = vector.extract_strided_slice %24 {offsets = [0, 24], sizes = [8, 8], strides = [1, 1]} : vector<8x96xf32> to vector<8x8xf32>
    %87 = vector.extract_strided_slice %24 {offsets = [0, 56], sizes = [8, 8], strides = [1, 1]} : vector<8x96xf32> to vector<8x8xf32>
    %88 = vector.extract_strided_slice %24 {offsets = [0, 88], sizes = [8, 8], strides = [1, 1]} : vector<8x96xf32> to vector<8x8xf32>
    %89 = vector.extract_strided_slice %26 {offsets = [3, 0, 0], sizes = [1, 8, 8], strides = [1, 1, 1]} : vector<4x8x8xf32> to vector<1x8x8xf32>
    %90 = vector.shape_cast %89 : vector<1x8x8xf32> to vector<8x8xf32>
    %cst_33 = arith.constant dense<0.000000e+00> : vector<8x8xf32>
    %91 = tpu.matmul %86, %87, %cst_33 {dimension_numbers = #tpu.dot_dimension_numbers<[1], [1], [0], [0], [0, 0, 1, 0], [], []>} : vector<8x8xf32>, vector<8x8xf32>, vector<8x8xf32> -> vector<8x8xf32>
    %92 = arith.addf %91, %90 : vector<8x8xf32>
    %cst_34 = arith.constant dense<0xFF800000> : vector<8xf32>
    %93 = vector.multi_reduction <maximumf>, %92, %cst_34 [1] : vector<8x8xf32> to vector<8xf32>
    %94 = vector.shape_cast %93 : vector<8xf32> to vector<8x1xf32>
    %95 = vector.broadcast %94 : vector<8x1xf32> to vector<8x8xf32>
    %96 = arith.subf %92, %95 : vector<8x8xf32>
    %97 = math.exp %96 : vector<8x8xf32>
    %cst_35 = arith.constant dense<0.000000e+00> : vector<8xf32>
    %98 = vector.multi_reduction <add>, %97, %cst_35 [1] : vector<8x8xf32> to vector<8xf32>
    %99 = vector.shape_cast %98 : vector<8xf32> to vector<8x1xf32>
    %100 = vector.broadcast %99 : vector<8x1xf32> to vector<8x8xf32>
    %101 = arith.divf %97, %100 : vector<8x8xf32>
    %cst_36 = arith.constant dense<0.000000e+00> : vector<8x8xf32>
    %102 = tpu.matmul %101, %88, %cst_36 {dimension_numbers = #tpu.dot_dimension_numbers<[1], [0], [0], [1], [0, 0, 1, 1], [], []>} : vector<8x8xf32>, vector<8x8xf32>, vector<8x8xf32> -> vector<8x8xf32>
    %103 = vector.extract_strided_slice %23 {offsets = [24, 0], sizes = [8, 32], strides = [1, 1]} : vector<32x32xf32> to vector<8x32xf32>
    %cst_37 = arith.constant dense<0.000000e+00> : vector<8x32xf32>
    %104 = tpu.matmul %102, %103, %cst_37 {dimension_numbers = #tpu.dot_dimension_numbers<[1], [0], [0], [1], [0, 0, 1, 1], [], []>} : vector<8x8xf32>, vector<8x32xf32>, vector<8x32xf32> -> vector<8x32xf32>
    %105 = arith.addf %85, %104 : vector<8x32xf32>
    %c0_38 = arith.constant 0 : index
    %c0_39 = arith.constant 0 : index
    %106 = vector.load %arg12[%c0_38, %c0_39] : memref<16x32xf32, #tpu.memory_space<vmem>>, vector<8x32xf32>
    tpu.vector_store %arg12[%c0_38, %c0_39], %105 {strides = array<i32>} : memref<16x32xf32, #tpu.memory_space<vmem>>, vector<8x32xf32>,
    %107 = vector.extract_strided_slice %20 {offsets = [8, 0], sizes = [8, 96], strides = [1, 1]} : vector<16x96xf32> to vector<8x96xf32>
    %108 = vector.extract_strided_slice %21 {offsets = [1, 0, 0, 0], sizes = [1, 4, 8, 8], strides = [1, 1, 1, 1]} : vector<2x4x8x8xf32> to vector<1x4x8x8xf32>
    %109 = vector.shape_cast %108 : vector<1x4x8x8xf32> to vector<4x8x8xf32>
    %110 = vector.extract_strided_slice %107 {offsets = [0, 0], sizes = [8, 8], strides = [1, 1]} : vector<8x96xf32> to vector<8x8xf32>
    %111 = vector.extract_strided_slice %107 {offsets = [0, 32], sizes = [8, 8], strides = [1, 1]} : vector<8x96xf32> to vector<8x8xf32>
    %112 = vector.extract_strided_slice %107 {offsets = [0, 64], sizes = [8, 8], strides = [1, 1]} : vector<8x96xf32> to vector<8x8xf32>
    %113 = vector.extract_strided_slice %109 {offsets = [0, 0, 0], sizes = [1, 8, 8], strides = [1, 1, 1]} : vector<4x8x8xf32> to vector<1x8x8xf32>
    %114 = vector.shape_cast %113 : vector<1x8x8xf32> to vector<8x8xf32>
    %cst_40 = arith.constant dense<0.000000e+00> : vector<8x8xf32>
    %115 = tpu.matmul %110, %111, %cst_40 {dimension_numbers = #tpu.dot_dimension_numbers<[1], [1], [0], [0], [0, 0, 1, 0], [], []>} : vector<8x8xf32>, vector<8x8xf32>, vector<8x8xf32> -> vector<8x8xf32>
    %116 = arith.addf %115, %114 : vector<8x8xf32>
    %cst_41 = arith.constant dense<0xFF800000> : vector<8xf32>
    %117 = vector.multi_reduction <maximumf>, %116, %cst_41 [1] : vector<8x8xf32> to vector<8xf32>
    %118 = vector.shape_cast %117 : vector<8xf32> to vector<8x1xf32>
    %119 = vector.broadcast %118 : vector<8x1xf32> to vector<8x8xf32>
    %120 = arith.subf %116, %119 : vector<8x8xf32>
    %121 = math.exp %120 : vector<8x8xf32>
    %cst_42 = arith.constant dense<0.000000e+00> : vector<8xf32>
    %122 = vector.multi_reduction <add>, %121, %cst_42 [1] : vector<8x8xf32> to vector<8xf32>
    %123 = vector.shape_cast %122 : vector<8xf32> to vector<8x1xf32>
    %124 = vector.broadcast %123 : vector<8x1xf32> to vector<8x8xf32>
    %125 = arith.divf %121, %124 : vector<8x8xf32>
    %cst_43 = arith.constant dense<0.000000e+00> : vector<8x8xf32>
    %126 = tpu.matmul %125, %112, %cst_43 {dimension_numbers = #tpu.dot_dimension_numbers<[1], [0], [0], [1], [0, 0, 1, 1], [], []>} : vector<8x8xf32>, vector<8x8xf32>, vector<8x8xf32> -> vector<8x8xf32>
    %127 = vector.extract_strided_slice %23 {offsets = [0, 0], sizes = [8, 32], strides = [1, 1]} : vector<32x32xf32> to vector<8x32xf32>
    %cst_44 = arith.constant dense<0.000000e+00> : vector<8x32xf32>
    %128 = tpu.matmul %126, %127, %cst_44 {dimension_numbers = #tpu.dot_dimension_numbers<[1], [0], [0], [1], [0, 0, 1, 1], [], []>} : vector<8x8xf32>, vector<8x32xf32>, vector<8x32xf32> -> vector<8x32xf32>
    %129 = vector.extract_strided_slice %107 {offsets = [0, 8], sizes = [8, 8], strides = [1, 1]} : vector<8x96xf32> to vector<8x8xf32>
    %130 = vector.extract_strided_slice %107 {offsets = [0, 40], sizes = [8, 8], strides = [1, 1]} : vector<8x96xf32> to vector<8x8xf32>
    %131 = vector.extract_strided_slice %107 {offsets = [0, 72], sizes = [8, 8], strides = [1, 1]} : vector<8x96xf32> to vector<8x8xf32>
    %132 = vector.extract_strided_slice %109 {offsets = [1, 0, 0], sizes = [1, 8, 8], strides = [1, 1, 1]} : vector<4x8x8xf32> to vector<1x8x8xf32>
    %133 = vector.shape_cast %132 : vector<1x8x8xf32> to vector<8x8xf32>
    %cst_45 = arith.constant dense<0.000000e+00> : vector<8x8xf32>
    %134 = tpu.matmul %129, %130, %cst_45 {dimension_numbers = #tpu.dot_dimension_numbers<[1], [1], [0], [0], [0, 0, 1, 0], [], []>} : vector<8x8xf32>, vector<8x8xf32>, vector<8x8xf32> -> vector<8x8xf32>
    %135 = arith.addf %134, %133 : vector<8x8xf32>
    %cst_46 = arith.constant dense<0xFF800000> : vector<8xf32>
    %136 = vector.multi_reduction <maximumf>, %135, %cst_46 [1] : vector<8x8xf32> to vector<8xf32>
    %137 = vector.shape_cast %136 : vector<8xf32> to vector<8x1xf32>
    %138 = vector.broadcast %137 : vector<8x1xf32> to vector<8x8xf32>
    %139 = arith.subf %135, %138 : vector<8x8xf32>
    %140 = math.exp %139 : vector<8x8xf32>
    %cst_47 = arith.constant dense<0.000000e+00> : vector<8xf32>
    %141 = vector.multi_reduction <add>, %140, %cst_47 [1] : vector<8x8xf32> to vector<8xf32>
    %142 = vector.shape_cast %141 : vector<8xf32> to vector<8x1xf32>
    %143 = vector.broadcast %142 : vector<8x1xf32> to vector<8x8xf32>
    %144 = arith.divf %140, %143 : vector<8x8xf32>
    %cst_48 = arith.constant dense<0.000000e+00> : vector<8x8xf32>
    %145 = tpu.matmul %144, %131, %cst_48 {dimension_numbers = #tpu.dot_dimension_numbers<[1], [0], [0], [1], [0, 0, 1, 1], [], []>} : vector<8x8xf32>, vector<8x8xf32>, vector<8x8xf32> -> vector<8x8xf32>
    %146 = vector.extract_strided_slice %23 {offsets = [8, 0], sizes = [8, 32], strides = [1, 1]} : vector<32x32xf32> to vector<8x32xf32>
    %cst_49 = arith.constant dense<0.000000e+00> : vector<8x32xf32>
    %147 = tpu.matmul %145, %146, %cst_49 {dimension_numbers = #tpu.dot_dimension_numbers<[1], [0], [0], [1], [0, 0, 1, 1], [], []>} : vector<8x8xf32>, vector<8x32xf32>, vector<8x32xf32> -> vector<8x32xf32>
    %148 = arith.addf %128, %147 : vector<8x32xf32>
    %149 = vector.extract_strided_slice %107 {offsets = [0, 16], sizes = [8, 8], strides = [1, 1]} : vector<8x96xf32> to vector<8x8xf32>
    %150 = vector.extract_strided_slice %107 {offsets = [0, 48], sizes = [8, 8], strides = [1, 1]} : vector<8x96xf32> to vector<8x8xf32>
    %151 = vector.extract_strided_slice %107 {offsets = [0, 80], sizes = [8, 8], strides = [1, 1]} : vector<8x96xf32> to vector<8x8xf32>
    %152 = vector.extract_strided_slice %109 {offsets = [2, 0, 0], sizes = [1, 8, 8], strides = [1, 1, 1]} : vector<4x8x8xf32> to vector<1x8x8xf32>
    %153 = vector.shape_cast %152 : vector<1x8x8xf32> to vector<8x8xf32>
    %cst_50 = arith.constant dense<0.000000e+00> : vector<8x8xf32>
    %154 = tpu.matmul %149, %150, %cst_50 {dimension_numbers = #tpu.dot_dimension_numbers<[1], [1], [0], [0], [0, 0, 1, 0], [], []>} : vector<8x8xf32>, vector<8x8xf32>, vector<8x8xf32> -> vector<8x8xf32>
    %155 = arith.addf %154, %153 : vector<8x8xf32>
    %cst_51 = arith.constant dense<0xFF800000> : vector<8xf32>
    %156 = vector.multi_reduction <maximumf>, %155, %cst_51 [1] : vector<8x8xf32> to vector<8xf32>
    %157 = vector.shape_cast %156 : vector<8xf32> to vector<8x1xf32>
    %158 = vector.broadcast %157 : vector<8x1xf32> to vector<8x8xf32>
    %159 = arith.subf %155, %158 : vector<8x8xf32>
    %160 = math.exp %159 : vector<8x8xf32>
    %cst_52 = arith.constant dense<0.000000e+00> : vector<8xf32>
    %161 = vector.multi_reduction <add>, %160, %cst_52 [1] : vector<8x8xf32> to vector<8xf32>
    %162 = vector.shape_cast %161 : vector<8xf32> to vector<8x1xf32>
    %163 = vector.broadcast %162 : vector<8x1xf32> to vector<8x8xf32>
    %164 = arith.divf %160, %163 : vector<8x8xf32>
    %cst_53 = arith.constant dense<0.000000e+00> : vector<8x8xf32>
    %165 = tpu.matmul %164, %151, %cst_53 {dimension_numbers = #tpu.dot_dimension_numbers<[1], [0], [0], [1], [0, 0, 1, 1], [], []>} : vector<8x8xf32>, vector<8x8xf32>, vector<8x8xf32> -> vector<8x8xf32>
    %166 = vector.extract_strided_slice %23 {offsets = [16, 0], sizes = [8, 32], strides = [1, 1]} : vector<32x32xf32> to vector<8x32xf32>
    %cst_54 = arith.constant dense<0.000000e+00> : vector<8x32xf32>
    %167 = tpu.matmul %165, %166, %cst_54 {dimension_numbers = #tpu.dot_dimension_numbers<[1], [0], [0], [1], [0, 0, 1, 1], [], []>} : vector<8x8xf32>, vector<8x32xf32>, vector<8x32xf32> -> vector<8x32xf32>
    %168 = arith.addf %148, %167 : vector<8x32xf32>
    %169 = vector.extract_strided_slice %107 {offsets = [0, 24], sizes = [8, 8], strides = [1, 1]} : vector<8x96xf32> to vector<8x8xf32>
    %170 = vector.extract_strided_slice %107 {offsets = [0, 56], sizes = [8, 8], strides = [1, 1]} : vector<8x96xf32> to vector<8x8xf32>
    %171 = vector.extract_strided_slice %107 {offsets = [0, 88], sizes = [8, 8], strides = [1, 1]} : vector<8x96xf32> to vector<8x8xf32>
    %172 = vector.extract_strided_slice %109 {offsets = [3, 0, 0], sizes = [1, 8, 8], strides = [1, 1, 1]} : vector<4x8x8xf32> to vector<1x8x8xf32>
    %173 = vector.shape_cast %172 : vector<1x8x8xf32> to vector<8x8xf32>
    %cst_55 = arith.constant dense<0.000000e+00> : vector<8x8xf32>
    %174 = tpu.matmul %169, %170, %cst_55 {dimension_numbers = #tpu.dot_dimension_numbers<[1], [1], [0], [0], [0, 0, 1, 0], [], []>} : vector<8x8xf32>, vector<8x8xf32>, vector<8x8xf32> -> vector<8x8xf32>
    %175 = arith.addf %174, %173 : vector<8x8xf32>
    %cst_56 = arith.constant dense<0xFF800000> : vector<8xf32>
    %176 = vector.multi_reduction <maximumf>, %175, %cst_56 [1] : vector<8x8xf32> to vector<8xf32>
    %177 = vector.shape_cast %176 : vector<8xf32> to vector<8x1xf32>
    %178 = vector.broadcast %177 : vector<8x1xf32> to vector<8x8xf32>
    %179 = arith.subf %175, %178 : vector<8x8xf32>
    %180 = math.exp %179 : vector<8x8xf32>
    %cst_57 = arith.constant dense<0.000000e+00> : vector<8xf32>
    %181 = vector.multi_reduction <add>, %180, %cst_57 [1] : vector<8x8xf32> to vector<8xf32>
    %182 = vector.shape_cast %181 : vector<8xf32> to vector<8x1xf32>
    %183 = vector.broadcast %182 : vector<8x1xf32> to vector<8x8xf32>
    %184 = arith.divf %180, %183 : vector<8x8xf32>
    %cst_58 = arith.constant dense<0.000000e+00> : vector<8x8xf32>
    %185 = tpu.matmul %184, %171, %cst_58 {dimension_numbers = #tpu.dot_dimension_numbers<[1], [0], [0], [1], [0, 0, 1, 1], [], []>} : vector<8x8xf32>, vector<8x8xf32>, vector<8x8xf32> -> vector<8x8xf32>
    %186 = vector.extract_strided_slice %23 {offsets = [24, 0], sizes = [8, 32], strides = [1, 1]} : vector<32x32xf32> to vector<8x32xf32>
    %cst_59 = arith.constant dense<0.000000e+00> : vector<8x32xf32>
    %187 = tpu.matmul %185, %186, %cst_59 {dimension_numbers = #tpu.dot_dimension_numbers<[1], [0], [0], [1], [0, 0, 1, 1], [], []>} : vector<8x8xf32>, vector<8x32xf32>, vector<8x32xf32> -> vector<8x32xf32>
    %188 = arith.addf %168, %187 : vector<8x32xf32>
    %c8 = arith.constant 8 : index
    %c0_60 = arith.constant 0 : index
    %189 = vector.load %arg12[%c8, %c0_60] : memref<16x32xf32, #tpu.memory_space<vmem>>, vector<8x32xf32>
    tpu.vector_store %arg12[%c8, %c0_60], %188 {strides = array<i32>} : memref<16x32xf32, #tpu.memory_space<vmem>>, vector<8x32xf32>,
    %c0_61 = arith.constant 0 : index
    %c0_62 = arith.constant 0 : index
    %190 = vector.load %arg12[%c0_61, %c0_62] : memref<16x32xf32, #tpu.memory_space<vmem>>, vector<16x32xf32>
    %191 = arith.addf %3, %190 : vector<16x32xf32>
    %c0_63 = arith.constant 0 : index
    %c0_64 = arith.constant 0 : index
    %c0_65 = arith.constant 0 : index
    %192 = vector.load %arg6[%c0_63, %c0_64, %c0_65] : memref<1x1x32xf32, #tpu.memory_space<vmem>>, vector<1x1x32xf32>
    %193 = vector.shape_cast %192 : vector<1x1x32xf32> to vector<1x32xf32>
    %194 = arith.mulf %191, %191 : vector<16x32xf32>
    %cst_66 = arith.constant dense<0.000000e+00> : vector<16xf32>
    %195 = vector.multi_reduction <add>, %194, %cst_66 [1] : vector<16x32xf32> to vector<16xf32>
    %196 = vector.shape_cast %195 : vector<16xf32> to vector<16x1xf32>
    %cst_67 = arith.constant 3.200000e+01 : f32
    %197 = vector.broadcast %cst_67 : f32 to vector<16x1xf32>
    %198 = arith.divf %196, %197 : vector<16x1xf32>
    %cst_68 = arith.constant 9.99999997E-7 : f32
    %199 = vector.broadcast %cst_68 : f32 to vector<16x1xf32>
    %200 = arith.addf %198, %199 : vector<16x1xf32>
    %201 = math.rsqrt %200 : vector<16x1xf32>
    %202 = vector.broadcast %201 : vector<16x1xf32> to vector<16x32xf32>
    %203 = arith.mulf %191, %202 : vector<16x32xf32>
    %204 = vector.broadcast %193 : vector<1x32xf32> to vector<16x32xf32>
    %205 = arith.mulf %203, %204 : vector<16x32xf32>
    %c0_69 = arith.constant 0 : index
    %c0_70 = arith.constant 0 : index
    %c0_71 = arith.constant 0 : index
    %206 = vector.load %arg7[%c0_69, %c0_70, %c0_71] : memref<1x32x64xf32, #tpu.memory_space<vmem>>, vector<1x32x64xf32>
    %207 = vector.shape_cast %206 : vector<1x32x64xf32> to vector<32x64xf32>
    %cst_72 = arith.constant dense<0.000000e+00> : vector<16x64xf32>
    %208 = tpu.matmul %205, %207, %cst_72 {dimension_numbers = #tpu.dot_dimension_numbers<[1], [0], [0], [1], [0, 0, 1, 1], [], []>} : vector<16x32xf32>, vector<32x64xf32>, vector<16x64xf32> -> vector<16x64xf32>
    %cst_73 = arith.constant 0.000000e+00 : f32
    %209 = vector.broadcast %cst_73 : f32 to vector<16x64xf32>
    %210 = arith.maximumf %208, %209 : vector<16x64xf32>
    %c0_74 = arith.constant 0 : index
    %c0_75 = arith.constant 0 : index
    %c0_76 = arith.constant 0 : index
    %211 = vector.load %arg8[%c0_74, %c0_75, %c0_76] : memref<1x64x32xf32, #tpu.memory_space<vmem>>, vector<1x64x32xf32>
    %212 = vector.shape_cast %211 : vector<1x64x32xf32> to vector<64x32xf32>
    %cst_77 = arith.constant dense<0.000000e+00> : vector<16x32xf32>
    %213 = tpu.matmul %210, %212, %cst_77 {dimension_numbers = #tpu.dot_dimension_numbers<[1], [0], [0], [1], [0, 0, 1, 1], [], []>} : vector<16x64xf32>, vector<64x32xf32>, vector<16x32xf32> -> vector<16x32xf32>
    %214 = arith.addf %191, %213 : vector<16x32xf32>
    %c0_78 = arith.constant 0 : index
    %c0_79 = arith.constant 0 : index
    %215 = vector.load %arg11[%c0_78, %c0_79] : memref<16x32xf32, #tpu.memory_space<vmem>>, vector<16x32xf32>
    tpu.vector_store %arg11[%c0_78, %c0_79], %214 {strides = array<i32>} : memref<16x32xf32, #tpu.memory_space<vmem>>, vector<16x32xf32>,
    %c0_80 = arith.constant 0 : index
    %c0_81 = arith.constant 0 : index
    %216 = vector.load %arg10[%c0_80, %c0_81] : memref<16x32xf32, #tpu.memory_space<vmem>>, vector<16x32xf32>
    tpu.vector_store %arg10[%c0_80, %c0_81], %214 {strides = array<i32>} : memref<16x32xf32, #tpu.memory_space<vmem>>, vector<16x32xf32>,
    %c1_i32 = arith.constant 1 : i32
    %217 = arith.cmpi eq, %arg0, %c1_i32 : i32
    %218 = arith.extui %217 : i1 to i32
    %c0_i32_82 = arith.constant 0 : i32
    %219 = arith.cmpi ne, %218, %c0_i32_82 : i32
    scf.if %219 {
      %c0_83 = arith.constant 0 : index
      %c0_84 = arith.constant 0 : index
      %220 = vector.load %arg9[%c0_83, %c0_84] : memref<1x32xf32, #tpu.memory_space<vmem>>, vector<1x32xf32>
      %221 = arith.mulf %214, %214 : vector<16x32xf32>
      %cst_85 = arith.constant dense<0.000000e+00> : vector<16xf32>
      %222 = vector.multi_reduction <add>, %221, %cst_85 [1] : vector<16x32xf32> to vector<16xf32>
      %223 = vector.shape_cast %222 : vector<16xf32> to vector<16x1xf32>
      %cst_86 = arith.constant 3.200000e+01 : f32
      %224 = vector.broadcast %cst_86 : f32 to vector<16x1xf32>
      %225 = arith.divf %223, %224 : vector<16x1xf32>
      %cst_87 = arith.constant 9.99999997E-7 : f32
      %226 = vector.broadcast %cst_87 : f32 to vector<16x1xf32>
      %227 = arith.addf %225, %226 : vector<16x1xf32>
      %228 = math.rsqrt %227 : vector<16x1xf32>
      %229 = vector.broadcast %228 : vector<16x1xf32> to vector<16x32xf32>
      %230 = arith.mulf %214, %229 : vector<16x32xf32>
      %231 = vector.broadcast %220 : vector<1x32xf32> to vector<16x32xf32>
      %232 = arith.mulf %230, %231 : vector<16x32xf32>
      %c0_88 = arith.constant 0 : index
      %c0_89 = arith.constant 0 : index
      %233 = vector.load %arg10[%c0_88, %c0_89] : memref<16x32xf32, #tpu.memory_space<vmem>>, vector<16x32xf32>
      tpu.vector_store %arg10[%c0_88, %c0_89], %232 {strides = array<i32>} : memref<16x32xf32, #tpu.memory_space<vmem>>, vector<16x32xf32>,
    } else {
    }
    return
  }
  func.func @transform_0(%arg0: i32) -> (i32, i32) {
    %c0_i32 = arith.constant 0 : i32
    %c0_i32_0 = arith.constant 0 : i32
    %c0_i32_1 = arith.constant 0 : i32
    return %c0_i32, %c0_i32_0 : i32, i32
  }
  func.func @transform_1(%arg0: i32) -> (i32, i32, i32, i32) {
    %c0_i32 = arith.constant 0 : i32
    %c0_i32_0 = arith.constant 0 : i32
    %c0_i32_1 = arith.constant 0 : i32
    %c0_i32_2 = arith.constant 0 : i32
    %c0_i32_3 = arith.constant 0 : i32
    return %c0_i32, %c0_i32_0, %c0_i32_1, %c0_i32_2 : i32, i32, i32, i32
  }
  func.func @transform_2(%arg0: i32) -> (i32, i32, i32) {
    %c0_i32 = arith.constant 0 : i32
    %c0_i32_0 = arith.constant 0 : i32
    %c0_i32_1 = arith.constant 0 : i32
    return %arg0, %c0_i32, %c0_i32_0 : i32, i32, i32
  }
  func.func @transform_3(%arg0: i32) -> (i32, i32, i32) {
    %c0_i32 = arith.constant 0 : i32
    %c0_i32_0 = arith.constant 0 : i32
    %c0_i32_1 = arith.constant 0 : i32
    return %arg0, %c0_i32, %c0_i32_0 : i32, i32, i32
  }
  func.func @transform_4(%arg0: i32) -> (i32, i32, i32) {
    %c0_i32 = arith.constant 0 : i32
    %c0_i32_0 = arith.constant 0 : i32
    %c0_i32_1 = arith.constant 0 : i32
    return %arg0, %c0_i32, %c0_i32_0 : i32, i32, i32
  }
  func.func @transform_5(%arg0: i32) -> (i32, i32, i32) {
    %c0_i32 = arith.constant 0 : i32
    %c0_i32_0 = arith.constant 0 : i32
    %c0_i32_1 = arith.constant 0 : i32
    return %arg0, %c0_i32, %c0_i32_0 : i32, i32, i32
  }
  func.func @transform_6(%arg0: i32) -> (i32, i32, i32) {
    %c0_i32 = arith.constant 0 : i32
    %c0_i32_0 = arith.constant 0 : i32
    %c0_i32_1 = arith.constant 0 : i32
    return %arg0, %c0_i32, %c0_i32_0 : i32, i32, i32
  }
  func.func @transform_7(%arg0: i32) -> (i32, i32, i32) {
    %c0_i32 = arith.constant 0 : i32
    %c0_i32_0 = arith.constant 0 : i32
    %c0_i32_1 = arith.constant 0 : i32
    return %arg0, %c0_i32, %c0_i32_0 : i32, i32, i32
  }
  func.func @transform_8(%arg0: i32) -> (i32, i32) {
    %c0_i32 = arith.constant 0 : i32
    %c0_i32_0 = arith.constant 0 : i32
    %c0_i32_1 = arith.constant 0 : i32
    return %c0_i32, %c0_i32_0 : i32, i32
  }
  func.func @transform_9(%arg0: i32) -> (i32, i32) {
    %c0_i32 = arith.constant 0 : i32
    %c0_i32_0 = arith.constant 0 : i32
    %c0_i32_1 = arith.constant 0 : i32
    return %c0_i32, %c0_i32_0 : i32, i32
  }
}

module attributes {stable_mosaic.version = 11 : i64} {
  func.func @_decoder_kernel(%arg0: i32, %arg1: memref<16x32xf32, #tpu.memory_space<vmem>>, %arg2: memref<16x32xf32, #tpu.memory_space<vmem>>, %arg3: memref<4x8x8xf32, #tpu.memory_space<vmem>>, %arg4: memref<2x8xf32, #tpu.memory_space<vmem>>, %arg5: memref<1x1x32xf32, #tpu.memory_space<vmem>>, %arg6: memref<1x32x96xf32, #tpu.memory_space<vmem>>, %arg7: memref<1x32x32xf32, #tpu.memory_space<vmem>>, %arg8: memref<1x1x32xf32, #tpu.memory_space<vmem>>, %arg9: memref<1x32x32xf32, #tpu.memory_space<vmem>>, %arg10: memref<1x32x64xf32, #tpu.memory_space<vmem>>, %arg11: memref<1x32x32xf32, #tpu.memory_space<vmem>>, %arg12: memref<1x1x32xf32, #tpu.memory_space<vmem>>, %arg13: memref<1x32x64xf32, #tpu.memory_space<vmem>>, %arg14: memref<1x64x32xf32, #tpu.memory_space<vmem>>, %arg15: memref<1x32xf32, #tpu.memory_space<vmem>>, %arg16: memref<1x16x32xf32, #tpu.memory_space<vmem>>, %arg17: memref<16x32xf32, #tpu.memory_space<vmem>>, %arg18: memref<16x32xf32, #tpu.memory_space<vmem>>, %arg19: memref<16x32xf32, #tpu.memory_space<vmem>>) attributes {dimension_semantics = [#tpu.dimension_semantics<arbitrary>], iteration_bounds = array<i64: 2>, scalar_prefetch = 0 : i64, scratch_operands = 2 : i64, tpu.core_type = #tpu.core_type<tc>, window_params = [{pipeline_mode = #tpu.pipeline_mode<synchronous>, transform_indices = @transform_0, window_bounds = array<i64: 16, 32>}, {pipeline_mode = #tpu.pipeline_mode<synchronous>, transform_indices = @transform_1, window_bounds = array<i64: 16, 32>}, {pipeline_mode = #tpu.pipeline_mode<synchronous>, transform_indices = @transform_2, window_bounds = array<i64: 4, 8, 8>}, {pipeline_mode = #tpu.pipeline_mode<synchronous>, transform_indices = @transform_3, window_bounds = array<i64: 2, 8>}, {transform_indices = @transform_4, window_bounds = array<i64: 1, 1, 32>}, {transform_indices = @transform_5, window_bounds = array<i64: 1, 32, 96>}, {transform_indices = @transform_6, window_bounds = array<i64: 1, 32, 32>}, {transform_indices = @transform_7, window_bounds = array<i64: 1, 1, 32>}, {transform_indices = @transform_8, window_bounds = array<i64: 1, 32, 32>}, {transform_indices = @transform_9, window_bounds = array<i64: 1, 32, 64>}, {transform_indices = @transform_10, window_bounds = array<i64: 1, 32, 32>}, {transform_indices = @transform_11, window_bounds = array<i64: 1, 1, 32>}, {transform_indices = @transform_12, window_bounds = array<i64: 1, 32, 64>}, {transform_indices = @transform_13, window_bounds = array<i64: 1, 64, 32>}, {pipeline_mode = #tpu.pipeline_mode<synchronous>, transform_indices = @transform_14, window_bounds = array<i64: 1, 32>}, {transform_indices = @transform_15, window_bounds = array<i64: 1, 16, 32>}, {pipeline_mode = #tpu.pipeline_mode<synchronous>, transform_indices = @transform_16, window_bounds = array<i64: 16, 32>}]} {
    %c0_i32 = arith.constant 0 : i32
    %0 = arith.cmpi eq, %arg0, %c0_i32 : i32
    %1 = arith.extui %0 : i1 to i32
    %c0_i32_0 = arith.constant 0 : i32
    %2 = arith.cmpi ne, %1, %c0_i32_0 : i32
    scf.if %2 {
      %c0_152 = arith.constant 0 : index
      %c0_153 = arith.constant 0 : index
      %403 = vector.load %arg1[%c0_152, %c0_153] : memref<16x32xf32, #tpu.memory_space<vmem>>, vector<16x32xf32>
      %c0_154 = arith.constant 0 : index
      %c0_155 = arith.constant 0 : index
      %404 = vector.load %arg18[%c0_154, %c0_155] : memref<16x32xf32, #tpu.memory_space<vmem>>, vector<16x32xf32>
      tpu.vector_store %arg18[%c0_154, %c0_155], %403 {strides = array<i32>} : memref<16x32xf32, #tpu.memory_space<vmem>>, vector<16x32xf32>,
    } else {
    }
    %c0 = arith.constant 0 : index
    %c0_1 = arith.constant 0 : index
    %3 = vector.load %arg18[%c0, %c0_1] : memref<16x32xf32, #tpu.memory_space<vmem>>, vector<16x32xf32>
    %c0_2 = arith.constant 0 : index
    %c0_3 = arith.constant 0 : index
    %c0_4 = arith.constant 0 : index
    %4 = vector.load %arg16[%c0_2, %c0_3, %c0_4] : memref<1x16x32xf32, #tpu.memory_space<vmem>>, vector<1x16x32xf32>
    %5 = vector.shape_cast %4 : vector<1x16x32xf32> to vector<16x32xf32>
    %6 = vector.shape_cast %3 : vector<16x32xf32> to vector<1x16x32xf32>
    tpu.vector_store %arg16[%c0_2, %c0_3, %c0_4], %6 {strides = array<i32>} : memref<1x16x32xf32, #tpu.memory_space<vmem>>, vector<1x16x32xf32>,
    %c0_5 = arith.constant 0 : index
    %c0_6 = arith.constant 0 : index
    %c0_7 = arith.constant 0 : index
    %7 = vector.load %arg5[%c0_5, %c0_6, %c0_7] : memref<1x1x32xf32, #tpu.memory_space<vmem>>, vector<1x1x32xf32>
    %8 = vector.shape_cast %7 : vector<1x1x32xf32> to vector<1x32xf32>
    %9 = arith.mulf %3, %3 : vector<16x32xf32>
    %cst = arith.constant dense<0.000000e+00> : vector<16xf32>
    %10 = vector.multi_reduction <add>, %9, %cst [1] : vector<16x32xf32> to vector<16xf32>
    %11 = vector.shape_cast %10 : vector<16xf32> to vector<16x1xf32>
    %cst_8 = arith.constant 3.200000e+01 : f32
    %12 = vector.broadcast %cst_8 : f32 to vector<16x1xf32>
    %13 = arith.divf %11, %12 : vector<16x1xf32>
    %cst_9 = arith.constant 9.99999997E-7 : f32
    %14 = vector.broadcast %cst_9 : f32 to vector<16x1xf32>
    %15 = arith.addf %13, %14 : vector<16x1xf32>
    %16 = math.rsqrt %15 : vector<16x1xf32>
    %17 = vector.broadcast %16 : vector<16x1xf32> to vector<16x32xf32>
    %18 = arith.mulf %3, %17 : vector<16x32xf32>
    %19 = vector.broadcast %8 : vector<1x32xf32> to vector<16x32xf32>
    %20 = arith.mulf %18, %19 : vector<16x32xf32>
    %c0_10 = arith.constant 0 : index
    %c0_11 = arith.constant 0 : index
    %c0_12 = arith.constant 0 : index
    %21 = vector.load %arg6[%c0_10, %c0_11, %c0_12] : memref<1x32x96xf32, #tpu.memory_space<vmem>>, vector<1x32x96xf32>
    %22 = vector.shape_cast %21 : vector<1x32x96xf32> to vector<32x96xf32>
    %cst_13 = arith.constant dense<0.000000e+00> : vector<16x96xf32>
    %23 = tpu.matmul %20, %22, %cst_13 {dimension_numbers = #tpu.dot_dimension_numbers<[1], [0], [0], [1], [0, 0, 1, 1], [], []>} : vector<16x32xf32>, vector<32x96xf32>, vector<16x96xf32> -> vector<16x96xf32>
    %c0_14 = arith.constant 0 : index
    %c0_15 = arith.constant 0 : index
    %c0_16 = arith.constant 0 : index
    %24 = vector.load %arg3[%c0_14, %c0_15, %c0_16] : memref<4x8x8xf32, #tpu.memory_space<vmem>>, vector<4x8x8xf32>
    %c0_17 = arith.constant 0 : index
    %c0_18 = arith.constant 0 : index
    %c0_19 = arith.constant 0 : index
    %25 = vector.load %arg7[%c0_17, %c0_18, %c0_19] : memref<1x32x32xf32, #tpu.memory_space<vmem>>, vector<1x32x32xf32>
    %26 = vector.shape_cast %25 : vector<1x32x32xf32> to vector<32x32xf32>
    %27 = vector.extract_strided_slice %23 {offsets = [0, 0], sizes = [8, 96], strides = [1, 1]} : vector<16x96xf32> to vector<8x96xf32>
    %28 = vector.extract_strided_slice %27 {offsets = [0, 0], sizes = [8, 8], strides = [1, 1]} : vector<8x96xf32> to vector<8x8xf32>
    %29 = vector.extract_strided_slice %27 {offsets = [0, 32], sizes = [8, 8], strides = [1, 1]} : vector<8x96xf32> to vector<8x8xf32>
    %30 = vector.extract_strided_slice %27 {offsets = [0, 64], sizes = [8, 8], strides = [1, 1]} : vector<8x96xf32> to vector<8x8xf32>
    %31 = vector.extract_strided_slice %24 {offsets = [0, 0, 0], sizes = [1, 8, 8], strides = [1, 1, 1]} : vector<4x8x8xf32> to vector<1x8x8xf32>
    %32 = vector.shape_cast %31 : vector<1x8x8xf32> to vector<8x8xf32>
    %cst_20 = arith.constant dense<0.000000e+00> : vector<8x8xf32>
    %33 = tpu.matmul %28, %29, %cst_20 {dimension_numbers = #tpu.dot_dimension_numbers<[1], [1], [0], [0], [0, 0, 1, 0], [], []>} : vector<8x8xf32>, vector<8x8xf32>, vector<8x8xf32> -> vector<8x8xf32>
    %34 = arith.addf %33, %32 : vector<8x8xf32>
    %cst_21 = arith.constant dense<0xFF800000> : vector<8xf32>
    %35 = vector.multi_reduction <maximumf>, %34, %cst_21 [1] : vector<8x8xf32> to vector<8xf32>
    %36 = vector.shape_cast %35 : vector<8xf32> to vector<8x1xf32>
    %37 = vector.broadcast %36 : vector<8x1xf32> to vector<8x8xf32>
    %38 = arith.subf %34, %37 : vector<8x8xf32>
    %39 = math.exp %38 : vector<8x8xf32>
    %cst_22 = arith.constant dense<0.000000e+00> : vector<8xf32>
    %40 = vector.multi_reduction <add>, %39, %cst_22 [1] : vector<8x8xf32> to vector<8xf32>
    %41 = vector.shape_cast %40 : vector<8xf32> to vector<8x1xf32>
    %42 = vector.broadcast %41 : vector<8x1xf32> to vector<8x8xf32>
    %43 = arith.divf %39, %42 : vector<8x8xf32>
    %cst_23 = arith.constant dense<0.000000e+00> : vector<8x8xf32>
    %44 = tpu.matmul %43, %30, %cst_23 {dimension_numbers = #tpu.dot_dimension_numbers<[1], [0], [0], [1], [0, 0, 1, 1], [], []>} : vector<8x8xf32>, vector<8x8xf32>, vector<8x8xf32> -> vector<8x8xf32>
    %45 = vector.extract_strided_slice %26 {offsets = [0, 0], sizes = [8, 32], strides = [1, 1]} : vector<32x32xf32> to vector<8x32xf32>
    %cst_24 = arith.constant dense<0.000000e+00> : vector<8x32xf32>
    %46 = tpu.matmul %44, %45, %cst_24 {dimension_numbers = #tpu.dot_dimension_numbers<[1], [0], [0], [1], [0, 0, 1, 1], [], []>} : vector<8x8xf32>, vector<8x32xf32>, vector<8x32xf32> -> vector<8x32xf32>
    %47 = vector.extract_strided_slice %27 {offsets = [0, 8], sizes = [8, 8], strides = [1, 1]} : vector<8x96xf32> to vector<8x8xf32>
    %48 = vector.extract_strided_slice %27 {offsets = [0, 40], sizes = [8, 8], strides = [1, 1]} : vector<8x96xf32> to vector<8x8xf32>
    %49 = vector.extract_strided_slice %27 {offsets = [0, 72], sizes = [8, 8], strides = [1, 1]} : vector<8x96xf32> to vector<8x8xf32>
    %50 = vector.extract_strided_slice %24 {offsets = [1, 0, 0], sizes = [1, 8, 8], strides = [1, 1, 1]} : vector<4x8x8xf32> to vector<1x8x8xf32>
    %51 = vector.shape_cast %50 : vector<1x8x8xf32> to vector<8x8xf32>
    %cst_25 = arith.constant dense<0.000000e+00> : vector<8x8xf32>
    %52 = tpu.matmul %47, %48, %cst_25 {dimension_numbers = #tpu.dot_dimension_numbers<[1], [1], [0], [0], [0, 0, 1, 0], [], []>} : vector<8x8xf32>, vector<8x8xf32>, vector<8x8xf32> -> vector<8x8xf32>
    %53 = arith.addf %52, %51 : vector<8x8xf32>
    %cst_26 = arith.constant dense<0xFF800000> : vector<8xf32>
    %54 = vector.multi_reduction <maximumf>, %53, %cst_26 [1] : vector<8x8xf32> to vector<8xf32>
    %55 = vector.shape_cast %54 : vector<8xf32> to vector<8x1xf32>
    %56 = vector.broadcast %55 : vector<8x1xf32> to vector<8x8xf32>
    %57 = arith.subf %53, %56 : vector<8x8xf32>
    %58 = math.exp %57 : vector<8x8xf32>
    %cst_27 = arith.constant dense<0.000000e+00> : vector<8xf32>
    %59 = vector.multi_reduction <add>, %58, %cst_27 [1] : vector<8x8xf32> to vector<8xf32>
    %60 = vector.shape_cast %59 : vector<8xf32> to vector<8x1xf32>
    %61 = vector.broadcast %60 : vector<8x1xf32> to vector<8x8xf32>
    %62 = arith.divf %58, %61 : vector<8x8xf32>
    %cst_28 = arith.constant dense<0.000000e+00> : vector<8x8xf32>
    %63 = tpu.matmul %62, %49, %cst_28 {dimension_numbers = #tpu.dot_dimension_numbers<[1], [0], [0], [1], [0, 0, 1, 1], [], []>} : vector<8x8xf32>, vector<8x8xf32>, vector<8x8xf32> -> vector<8x8xf32>
    %64 = vector.extract_strided_slice %26 {offsets = [8, 0], sizes = [8, 32], strides = [1, 1]} : vector<32x32xf32> to vector<8x32xf32>
    %cst_29 = arith.constant dense<0.000000e+00> : vector<8x32xf32>
    %65 = tpu.matmul %63, %64, %cst_29 {dimension_numbers = #tpu.dot_dimension_numbers<[1], [0], [0], [1], [0, 0, 1, 1], [], []>} : vector<8x8xf32>, vector<8x32xf32>, vector<8x32xf32> -> vector<8x32xf32>
    %66 = arith.addf %46, %65 : vector<8x32xf32>
    %67 = vector.extract_strided_slice %27 {offsets = [0, 16], sizes = [8, 8], strides = [1, 1]} : vector<8x96xf32> to vector<8x8xf32>
    %68 = vector.extract_strided_slice %27 {offsets = [0, 48], sizes = [8, 8], strides = [1, 1]} : vector<8x96xf32> to vector<8x8xf32>
    %69 = vector.extract_strided_slice %27 {offsets = [0, 80], sizes = [8, 8], strides = [1, 1]} : vector<8x96xf32> to vector<8x8xf32>
    %70 = vector.extract_strided_slice %24 {offsets = [2, 0, 0], sizes = [1, 8, 8], strides = [1, 1, 1]} : vector<4x8x8xf32> to vector<1x8x8xf32>
    %71 = vector.shape_cast %70 : vector<1x8x8xf32> to vector<8x8xf32>
    %cst_30 = arith.constant dense<0.000000e+00> : vector<8x8xf32>
    %72 = tpu.matmul %67, %68, %cst_30 {dimension_numbers = #tpu.dot_dimension_numbers<[1], [1], [0], [0], [0, 0, 1, 0], [], []>} : vector<8x8xf32>, vector<8x8xf32>, vector<8x8xf32> -> vector<8x8xf32>
    %73 = arith.addf %72, %71 : vector<8x8xf32>
    %cst_31 = arith.constant dense<0xFF800000> : vector<8xf32>
    %74 = vector.multi_reduction <maximumf>, %73, %cst_31 [1] : vector<8x8xf32> to vector<8xf32>
    %75 = vector.shape_cast %74 : vector<8xf32> to vector<8x1xf32>
    %76 = vector.broadcast %75 : vector<8x1xf32> to vector<8x8xf32>
    %77 = arith.subf %73, %76 : vector<8x8xf32>
    %78 = math.exp %77 : vector<8x8xf32>
    %cst_32 = arith.constant dense<0.000000e+00> : vector<8xf32>
    %79 = vector.multi_reduction <add>, %78, %cst_32 [1] : vector<8x8xf32> to vector<8xf32>
    %80 = vector.shape_cast %79 : vector<8xf32> to vector<8x1xf32>
    %81 = vector.broadcast %80 : vector<8x1xf32> to vector<8x8xf32>
    %82 = arith.divf %78, %81 : vector<8x8xf32>
    %cst_33 = arith.constant dense<0.000000e+00> : vector<8x8xf32>
    %83 = tpu.matmul %82, %69, %cst_33 {dimension_numbers = #tpu.dot_dimension_numbers<[1], [0], [0], [1], [0, 0, 1, 1], [], []>} : vector<8x8xf32>, vector<8x8xf32>, vector<8x8xf32> -> vector<8x8xf32>
    %84 = vector.extract_strided_slice %26 {offsets = [16, 0], sizes = [8, 32], strides = [1, 1]} : vector<32x32xf32> to vector<8x32xf32>
    %cst_34 = arith.constant dense<0.000000e+00> : vector<8x32xf32>
    %85 = tpu.matmul %83, %84, %cst_34 {dimension_numbers = #tpu.dot_dimension_numbers<[1], [0], [0], [1], [0, 0, 1, 1], [], []>} : vector<8x8xf32>, vector<8x32xf32>, vector<8x32xf32> -> vector<8x32xf32>
    %86 = arith.addf %66, %85 : vector<8x32xf32>
    %87 = vector.extract_strided_slice %27 {offsets = [0, 24], sizes = [8, 8], strides = [1, 1]} : vector<8x96xf32> to vector<8x8xf32>
    %88 = vector.extract_strided_slice %27 {offsets = [0, 56], sizes = [8, 8], strides = [1, 1]} : vector<8x96xf32> to vector<8x8xf32>
    %89 = vector.extract_strided_slice %27 {offsets = [0, 88], sizes = [8, 8], strides = [1, 1]} : vector<8x96xf32> to vector<8x8xf32>
    %90 = vector.extract_strided_slice %24 {offsets = [3, 0, 0], sizes = [1, 8, 8], strides = [1, 1, 1]} : vector<4x8x8xf32> to vector<1x8x8xf32>
    %91 = vector.shape_cast %90 : vector<1x8x8xf32> to vector<8x8xf32>
    %cst_35 = arith.constant dense<0.000000e+00> : vector<8x8xf32>
    %92 = tpu.matmul %87, %88, %cst_35 {dimension_numbers = #tpu.dot_dimension_numbers<[1], [1], [0], [0], [0, 0, 1, 0], [], []>} : vector<8x8xf32>, vector<8x8xf32>, vector<8x8xf32> -> vector<8x8xf32>
    %93 = arith.addf %92, %91 : vector<8x8xf32>
    %cst_36 = arith.constant dense<0xFF800000> : vector<8xf32>
    %94 = vector.multi_reduction <maximumf>, %93, %cst_36 [1] : vector<8x8xf32> to vector<8xf32>
    %95 = vector.shape_cast %94 : vector<8xf32> to vector<8x1xf32>
    %96 = vector.broadcast %95 : vector<8x1xf32> to vector<8x8xf32>
    %97 = arith.subf %93, %96 : vector<8x8xf32>
    %98 = math.exp %97 : vector<8x8xf32>
    %cst_37 = arith.constant dense<0.000000e+00> : vector<8xf32>
    %99 = vector.multi_reduction <add>, %98, %cst_37 [1] : vector<8x8xf32> to vector<8xf32>
    %100 = vector.shape_cast %99 : vector<8xf32> to vector<8x1xf32>
    %101 = vector.broadcast %100 : vector<8x1xf32> to vector<8x8xf32>
    %102 = arith.divf %98, %101 : vector<8x8xf32>
    %cst_38 = arith.constant dense<0.000000e+00> : vector<8x8xf32>
    %103 = tpu.matmul %102, %89, %cst_38 {dimension_numbers = #tpu.dot_dimension_numbers<[1], [0], [0], [1], [0, 0, 1, 1], [], []>} : vector<8x8xf32>, vector<8x8xf32>, vector<8x8xf32> -> vector<8x8xf32>
    %104 = vector.extract_strided_slice %26 {offsets = [24, 0], sizes = [8, 32], strides = [1, 1]} : vector<32x32xf32> to vector<8x32xf32>
    %cst_39 = arith.constant dense<0.000000e+00> : vector<8x32xf32>
    %105 = tpu.matmul %103, %104, %cst_39 {dimension_numbers = #tpu.dot_dimension_numbers<[1], [0], [0], [1], [0, 0, 1, 1], [], []>} : vector<8x8xf32>, vector<8x32xf32>, vector<8x32xf32> -> vector<8x32xf32>
    %106 = arith.addf %86, %105 : vector<8x32xf32>
    %c0_40 = arith.constant 0 : index
    %c0_41 = arith.constant 0 : index
    %107 = vector.load %arg19[%c0_40, %c0_41] : memref<16x32xf32, #tpu.memory_space<vmem>>, vector<8x32xf32>
    tpu.vector_store %arg19[%c0_40, %c0_41], %106 {strides = array<i32>} : memref<16x32xf32, #tpu.memory_space<vmem>>, vector<8x32xf32>,
    %108 = vector.extract_strided_slice %23 {offsets = [8, 0], sizes = [8, 96], strides = [1, 1]} : vector<16x96xf32> to vector<8x96xf32>
    %109 = vector.extract_strided_slice %108 {offsets = [0, 0], sizes = [8, 8], strides = [1, 1]} : vector<8x96xf32> to vector<8x8xf32>
    %110 = vector.extract_strided_slice %108 {offsets = [0, 32], sizes = [8, 8], strides = [1, 1]} : vector<8x96xf32> to vector<8x8xf32>
    %111 = vector.extract_strided_slice %108 {offsets = [0, 64], sizes = [8, 8], strides = [1, 1]} : vector<8x96xf32> to vector<8x8xf32>
    %112 = vector.extract_strided_slice %24 {offsets = [0, 0, 0], sizes = [1, 8, 8], strides = [1, 1, 1]} : vector<4x8x8xf32> to vector<1x8x8xf32>
    %113 = vector.shape_cast %112 : vector<1x8x8xf32> to vector<8x8xf32>
    %cst_42 = arith.constant dense<0.000000e+00> : vector<8x8xf32>
    %114 = tpu.matmul %109, %110, %cst_42 {dimension_numbers = #tpu.dot_dimension_numbers<[1], [1], [0], [0], [0, 0, 1, 0], [], []>} : vector<8x8xf32>, vector<8x8xf32>, vector<8x8xf32> -> vector<8x8xf32>
    %115 = arith.addf %114, %113 : vector<8x8xf32>
    %cst_43 = arith.constant dense<0xFF800000> : vector<8xf32>
    %116 = vector.multi_reduction <maximumf>, %115, %cst_43 [1] : vector<8x8xf32> to vector<8xf32>
    %117 = vector.shape_cast %116 : vector<8xf32> to vector<8x1xf32>
    %118 = vector.broadcast %117 : vector<8x1xf32> to vector<8x8xf32>
    %119 = arith.subf %115, %118 : vector<8x8xf32>
    %120 = math.exp %119 : vector<8x8xf32>
    %cst_44 = arith.constant dense<0.000000e+00> : vector<8xf32>
    %121 = vector.multi_reduction <add>, %120, %cst_44 [1] : vector<8x8xf32> to vector<8xf32>
    %122 = vector.shape_cast %121 : vector<8xf32> to vector<8x1xf32>
    %123 = vector.broadcast %122 : vector<8x1xf32> to vector<8x8xf32>
    %124 = arith.divf %120, %123 : vector<8x8xf32>
    %cst_45 = arith.constant dense<0.000000e+00> : vector<8x8xf32>
    %125 = tpu.matmul %124, %111, %cst_45 {dimension_numbers = #tpu.dot_dimension_numbers<[1], [0], [0], [1], [0, 0, 1, 1], [], []>} : vector<8x8xf32>, vector<8x8xf32>, vector<8x8xf32> -> vector<8x8xf32>
    %126 = vector.extract_strided_slice %26 {offsets = [0, 0], sizes = [8, 32], strides = [1, 1]} : vector<32x32xf32> to vector<8x32xf32>
    %cst_46 = arith.constant dense<0.000000e+00> : vector<8x32xf32>
    %127 = tpu.matmul %125, %126, %cst_46 {dimension_numbers = #tpu.dot_dimension_numbers<[1], [0], [0], [1], [0, 0, 1, 1], [], []>} : vector<8x8xf32>, vector<8x32xf32>, vector<8x32xf32> -> vector<8x32xf32>
    %128 = vector.extract_strided_slice %108 {offsets = [0, 8], sizes = [8, 8], strides = [1, 1]} : vector<8x96xf32> to vector<8x8xf32>
    %129 = vector.extract_strided_slice %108 {offsets = [0, 40], sizes = [8, 8], strides = [1, 1]} : vector<8x96xf32> to vector<8x8xf32>
    %130 = vector.extract_strided_slice %108 {offsets = [0, 72], sizes = [8, 8], strides = [1, 1]} : vector<8x96xf32> to vector<8x8xf32>
    %131 = vector.extract_strided_slice %24 {offsets = [1, 0, 0], sizes = [1, 8, 8], strides = [1, 1, 1]} : vector<4x8x8xf32> to vector<1x8x8xf32>
    %132 = vector.shape_cast %131 : vector<1x8x8xf32> to vector<8x8xf32>
    %cst_47 = arith.constant dense<0.000000e+00> : vector<8x8xf32>
    %133 = tpu.matmul %128, %129, %cst_47 {dimension_numbers = #tpu.dot_dimension_numbers<[1], [1], [0], [0], [0, 0, 1, 0], [], []>} : vector<8x8xf32>, vector<8x8xf32>, vector<8x8xf32> -> vector<8x8xf32>
    %134 = arith.addf %133, %132 : vector<8x8xf32>
    %cst_48 = arith.constant dense<0xFF800000> : vector<8xf32>
    %135 = vector.multi_reduction <maximumf>, %134, %cst_48 [1] : vector<8x8xf32> to vector<8xf32>
    %136 = vector.shape_cast %135 : vector<8xf32> to vector<8x1xf32>
    %137 = vector.broadcast %136 : vector<8x1xf32> to vector<8x8xf32>
    %138 = arith.subf %134, %137 : vector<8x8xf32>
    %139 = math.exp %138 : vector<8x8xf32>
    %cst_49 = arith.constant dense<0.000000e+00> : vector<8xf32>
    %140 = vector.multi_reduction <add>, %139, %cst_49 [1] : vector<8x8xf32> to vector<8xf32>
    %141 = vector.shape_cast %140 : vector<8xf32> to vector<8x1xf32>
    %142 = vector.broadcast %141 : vector<8x1xf32> to vector<8x8xf32>
    %143 = arith.divf %139, %142 : vector<8x8xf32>
    %cst_50 = arith.constant dense<0.000000e+00> : vector<8x8xf32>
    %144 = tpu.matmul %143, %130, %cst_50 {dimension_numbers = #tpu.dot_dimension_numbers<[1], [0], [0], [1], [0, 0, 1, 1], [], []>} : vector<8x8xf32>, vector<8x8xf32>, vector<8x8xf32> -> vector<8x8xf32>
    %145 = vector.extract_strided_slice %26 {offsets = [8, 0], sizes = [8, 32], strides = [1, 1]} : vector<32x32xf32> to vector<8x32xf32>
    %cst_51 = arith.constant dense<0.000000e+00> : vector<8x32xf32>
    %146 = tpu.matmul %144, %145, %cst_51 {dimension_numbers = #tpu.dot_dimension_numbers<[1], [0], [0], [1], [0, 0, 1, 1], [], []>} : vector<8x8xf32>, vector<8x32xf32>, vector<8x32xf32> -> vector<8x32xf32>
    %147 = arith.addf %127, %146 : vector<8x32xf32>
    %148 = vector.extract_strided_slice %108 {offsets = [0, 16], sizes = [8, 8], strides = [1, 1]} : vector<8x96xf32> to vector<8x8xf32>
    %149 = vector.extract_strided_slice %108 {offsets = [0, 48], sizes = [8, 8], strides = [1, 1]} : vector<8x96xf32> to vector<8x8xf32>
    %150 = vector.extract_strided_slice %108 {offsets = [0, 80], sizes = [8, 8], strides = [1, 1]} : vector<8x96xf32> to vector<8x8xf32>
    %151 = vector.extract_strided_slice %24 {offsets = [2, 0, 0], sizes = [1, 8, 8], strides = [1, 1, 1]} : vector<4x8x8xf32> to vector<1x8x8xf32>
    %152 = vector.shape_cast %151 : vector<1x8x8xf32> to vector<8x8xf32>
    %cst_52 = arith.constant dense<0.000000e+00> : vector<8x8xf32>
    %153 = tpu.matmul %148, %149, %cst_52 {dimension_numbers = #tpu.dot_dimension_numbers<[1], [1], [0], [0], [0, 0, 1, 0], [], []>} : vector<8x8xf32>, vector<8x8xf32>, vector<8x8xf32> -> vector<8x8xf32>
    %154 = arith.addf %153, %152 : vector<8x8xf32>
    %cst_53 = arith.constant dense<0xFF800000> : vector<8xf32>
    %155 = vector.multi_reduction <maximumf>, %154, %cst_53 [1] : vector<8x8xf32> to vector<8xf32>
    %156 = vector.shape_cast %155 : vector<8xf32> to vector<8x1xf32>
    %157 = vector.broadcast %156 : vector<8x1xf32> to vector<8x8xf32>
    %158 = arith.subf %154, %157 : vector<8x8xf32>
    %159 = math.exp %158 : vector<8x8xf32>
    %cst_54 = arith.constant dense<0.000000e+00> : vector<8xf32>
    %160 = vector.multi_reduction <add>, %159, %cst_54 [1] : vector<8x8xf32> to vector<8xf32>
    %161 = vector.shape_cast %160 : vector<8xf32> to vector<8x1xf32>
    %162 = vector.broadcast %161 : vector<8x1xf32> to vector<8x8xf32>
    %163 = arith.divf %159, %162 : vector<8x8xf32>
    %cst_55 = arith.constant dense<0.000000e+00> : vector<8x8xf32>
    %164 = tpu.matmul %163, %150, %cst_55 {dimension_numbers = #tpu.dot_dimension_numbers<[1], [0], [0], [1], [0, 0, 1, 1], [], []>} : vector<8x8xf32>, vector<8x8xf32>, vector<8x8xf32> -> vector<8x8xf32>
    %165 = vector.extract_strided_slice %26 {offsets = [16, 0], sizes = [8, 32], strides = [1, 1]} : vector<32x32xf32> to vector<8x32xf32>
    %cst_56 = arith.constant dense<0.000000e+00> : vector<8x32xf32>
    %166 = tpu.matmul %164, %165, %cst_56 {dimension_numbers = #tpu.dot_dimension_numbers<[1], [0], [0], [1], [0, 0, 1, 1], [], []>} : vector<8x8xf32>, vector<8x32xf32>, vector<8x32xf32> -> vector<8x32xf32>
    %167 = arith.addf %147, %166 : vector<8x32xf32>
    %168 = vector.extract_strided_slice %108 {offsets = [0, 24], sizes = [8, 8], strides = [1, 1]} : vector<8x96xf32> to vector<8x8xf32>
    %169 = vector.extract_strided_slice %108 {offsets = [0, 56], sizes = [8, 8], strides = [1, 1]} : vector<8x96xf32> to vector<8x8xf32>
    %170 = vector.extract_strided_slice %108 {offsets = [0, 88], sizes = [8, 8], strides = [1, 1]} : vector<8x96xf32> to vector<8x8xf32>
    %171 = vector.extract_strided_slice %24 {offsets = [3, 0, 0], sizes = [1, 8, 8], strides = [1, 1, 1]} : vector<4x8x8xf32> to vector<1x8x8xf32>
    %172 = vector.shape_cast %171 : vector<1x8x8xf32> to vector<8x8xf32>
    %cst_57 = arith.constant dense<0.000000e+00> : vector<8x8xf32>
    %173 = tpu.matmul %168, %169, %cst_57 {dimension_numbers = #tpu.dot_dimension_numbers<[1], [1], [0], [0], [0, 0, 1, 0], [], []>} : vector<8x8xf32>, vector<8x8xf32>, vector<8x8xf32> -> vector<8x8xf32>
    %174 = arith.addf %173, %172 : vector<8x8xf32>
    %cst_58 = arith.constant dense<0xFF800000> : vector<8xf32>
    %175 = vector.multi_reduction <maximumf>, %174, %cst_58 [1] : vector<8x8xf32> to vector<8xf32>
    %176 = vector.shape_cast %175 : vector<8xf32> to vector<8x1xf32>
    %177 = vector.broadcast %176 : vector<8x1xf32> to vector<8x8xf32>
    %178 = arith.subf %174, %177 : vector<8x8xf32>
    %179 = math.exp %178 : vector<8x8xf32>
    %cst_59 = arith.constant dense<0.000000e+00> : vector<8xf32>
    %180 = vector.multi_reduction <add>, %179, %cst_59 [1] : vector<8x8xf32> to vector<8xf32>
    %181 = vector.shape_cast %180 : vector<8xf32> to vector<8x1xf32>
    %182 = vector.broadcast %181 : vector<8x1xf32> to vector<8x8xf32>
    %183 = arith.divf %179, %182 : vector<8x8xf32>
    %cst_60 = arith.constant dense<0.000000e+00> : vector<8x8xf32>
    %184 = tpu.matmul %183, %170, %cst_60 {dimension_numbers = #tpu.dot_dimension_numbers<[1], [0], [0], [1], [0, 0, 1, 1], [], []>} : vector<8x8xf32>, vector<8x8xf32>, vector<8x8xf32> -> vector<8x8xf32>
    %185 = vector.extract_strided_slice %26 {offsets = [24, 0], sizes = [8, 32], strides = [1, 1]} : vector<32x32xf32> to vector<8x32xf32>
    %cst_61 = arith.constant dense<0.000000e+00> : vector<8x32xf32>
    %186 = tpu.matmul %184, %185, %cst_61 {dimension_numbers = #tpu.dot_dimension_numbers<[1], [0], [0], [1], [0, 0, 1, 1], [], []>} : vector<8x8xf32>, vector<8x32xf32>, vector<8x32xf32> -> vector<8x32xf32>
    %187 = arith.addf %167, %186 : vector<8x32xf32>
    %c8 = arith.constant 8 : index
    %c0_62 = arith.constant 0 : index
    %188 = vector.load %arg19[%c8, %c0_62] : memref<16x32xf32, #tpu.memory_space<vmem>>, vector<8x32xf32>
    tpu.vector_store %arg19[%c8, %c0_62], %187 {strides = array<i32>} : memref<16x32xf32, #tpu.memory_space<vmem>>, vector<8x32xf32>,
    %c0_63 = arith.constant 0 : index
    %c0_64 = arith.constant 0 : index
    %189 = vector.load %arg19[%c0_63, %c0_64] : memref<16x32xf32, #tpu.memory_space<vmem>>, vector<16x32xf32>
    %190 = arith.addf %3, %189 : vector<16x32xf32>
    %c0_65 = arith.constant 0 : index
    %c0_66 = arith.constant 0 : index
    %c0_67 = arith.constant 0 : index
    %191 = vector.load %arg8[%c0_65, %c0_66, %c0_67] : memref<1x1x32xf32, #tpu.memory_space<vmem>>, vector<1x1x32xf32>
    %192 = vector.shape_cast %191 : vector<1x1x32xf32> to vector<1x32xf32>
    %193 = arith.mulf %190, %190 : vector<16x32xf32>
    %cst_68 = arith.constant dense<0.000000e+00> : vector<16xf32>
    %194 = vector.multi_reduction <add>, %193, %cst_68 [1] : vector<16x32xf32> to vector<16xf32>
    %195 = vector.shape_cast %194 : vector<16xf32> to vector<16x1xf32>
    %cst_69 = arith.constant 3.200000e+01 : f32
    %196 = vector.broadcast %cst_69 : f32 to vector<16x1xf32>
    %197 = arith.divf %195, %196 : vector<16x1xf32>
    %cst_70 = arith.constant 9.99999997E-7 : f32
    %198 = vector.broadcast %cst_70 : f32 to vector<16x1xf32>
    %199 = arith.addf %197, %198 : vector<16x1xf32>
    %200 = math.rsqrt %199 : vector<16x1xf32>
    %201 = vector.broadcast %200 : vector<16x1xf32> to vector<16x32xf32>
    %202 = arith.mulf %190, %201 : vector<16x32xf32>
    %203 = vector.broadcast %192 : vector<1x32xf32> to vector<16x32xf32>
    %204 = arith.mulf %202, %203 : vector<16x32xf32>
    %c0_71 = arith.constant 0 : index
    %c0_72 = arith.constant 0 : index
    %c0_73 = arith.constant 0 : index
    %205 = vector.load %arg9[%c0_71, %c0_72, %c0_73] : memref<1x32x32xf32, #tpu.memory_space<vmem>>, vector<1x32x32xf32>
    %206 = vector.shape_cast %205 : vector<1x32x32xf32> to vector<32x32xf32>
    %cst_74 = arith.constant dense<0.000000e+00> : vector<16x32xf32>
    %207 = tpu.matmul %204, %206, %cst_74 {dimension_numbers = #tpu.dot_dimension_numbers<[1], [0], [0], [1], [0, 0, 1, 1], [], []>} : vector<16x32xf32>, vector<32x32xf32>, vector<16x32xf32> -> vector<16x32xf32>
    %c0_75 = arith.constant 0 : index
    %c0_76 = arith.constant 0 : index
    %208 = vector.load %arg2[%c0_75, %c0_76] : memref<16x32xf32, #tpu.memory_space<vmem>>, vector<16x32xf32>
    %c0_77 = arith.constant 0 : index
    %c0_78 = arith.constant 0 : index
    %c0_79 = arith.constant 0 : index
    %209 = vector.load %arg10[%c0_77, %c0_78, %c0_79] : memref<1x32x64xf32, #tpu.memory_space<vmem>>, vector<1x32x64xf32>
    %210 = vector.shape_cast %209 : vector<1x32x64xf32> to vector<32x64xf32>
    %cst_80 = arith.constant dense<0.000000e+00> : vector<16x64xf32>
    %211 = tpu.matmul %208, %210, %cst_80 {dimension_numbers = #tpu.dot_dimension_numbers<[1], [0], [0], [1], [0, 0, 1, 1], [], []>} : vector<16x32xf32>, vector<32x64xf32>, vector<16x64xf32> -> vector<16x64xf32>
    %c0_81 = arith.constant 0 : index
    %c0_82 = arith.constant 0 : index
    %212 = vector.load %arg4[%c0_81, %c0_82] : memref<2x8xf32, #tpu.memory_space<vmem>>, vector<2x8xf32>
    %213 = vector.extract_strided_slice %212 {offsets = [0, 0], sizes = [1, 8], strides = [1, 1]} : vector<2x8xf32> to vector<1x8xf32>
    %214 = vector.extract_strided_slice %212 {offsets = [1, 0], sizes = [1, 8], strides = [1, 1]} : vector<2x8xf32> to vector<1x8xf32>
    %c0_83 = arith.constant 0 : index
    %c0_84 = arith.constant 0 : index
    %c0_85 = arith.constant 0 : index
    %215 = vector.load %arg11[%c0_83, %c0_84, %c0_85] : memref<1x32x32xf32, #tpu.memory_space<vmem>>, vector<1x32x32xf32>
    %216 = vector.shape_cast %215 : vector<1x32x32xf32> to vector<32x32xf32>
    %217 = vector.extract_strided_slice %207 {offsets = [0, 0], sizes = [8, 32], strides = [1, 1]} : vector<16x32xf32> to vector<8x32xf32>
    %218 = vector.extract_strided_slice %211 {offsets = [0, 0], sizes = [8, 64], strides = [1, 1]} : vector<16x64xf32> to vector<8x64xf32>
    %219 = vector.extract_strided_slice %217 {offsets = [0, 0], sizes = [8, 8], strides = [1, 1]} : vector<8x32xf32> to vector<8x8xf32>
    %220 = vector.extract_strided_slice %218 {offsets = [0, 0], sizes = [8, 8], strides = [1, 1]} : vector<8x64xf32> to vector<8x8xf32>
    %221 = vector.extract_strided_slice %218 {offsets = [0, 32], sizes = [8, 8], strides = [1, 1]} : vector<8x64xf32> to vector<8x8xf32>
    %cst_86 = arith.constant dense<0.000000e+00> : vector<8x8xf32>
    %222 = tpu.matmul %219, %220, %cst_86 {dimension_numbers = #tpu.dot_dimension_numbers<[1], [1], [0], [0], [0, 0, 1, 0], [], []>} : vector<8x8xf32>, vector<8x8xf32>, vector<8x8xf32> -> vector<8x8xf32>
    %223 = vector.broadcast %213 : vector<1x8xf32> to vector<8x8xf32>
    %224 = arith.addf %222, %223 : vector<8x8xf32>
    %cst_87 = arith.constant dense<0xFF800000> : vector<8xf32>
    %225 = vector.multi_reduction <maximumf>, %224, %cst_87 [1] : vector<8x8xf32> to vector<8xf32>
    %226 = vector.shape_cast %225 : vector<8xf32> to vector<8x1xf32>
    %227 = vector.broadcast %226 : vector<8x1xf32> to vector<8x8xf32>
    %228 = arith.subf %224, %227 : vector<8x8xf32>
    %229 = math.exp %228 : vector<8x8xf32>
    %cst_88 = arith.constant dense<0.000000e+00> : vector<8xf32>
    %230 = vector.multi_reduction <add>, %229, %cst_88 [1] : vector<8x8xf32> to vector<8xf32>
    %231 = vector.shape_cast %230 : vector<8xf32> to vector<8x1xf32>
    %232 = vector.broadcast %231 : vector<8x1xf32> to vector<8x8xf32>
    %233 = arith.divf %229, %232 : vector<8x8xf32>
    %cst_89 = arith.constant dense<0.000000e+00> : vector<8x8xf32>
    %234 = tpu.matmul %233, %221, %cst_89 {dimension_numbers = #tpu.dot_dimension_numbers<[1], [0], [0], [1], [0, 0, 1, 1], [], []>} : vector<8x8xf32>, vector<8x8xf32>, vector<8x8xf32> -> vector<8x8xf32>
    %235 = vector.extract_strided_slice %216 {offsets = [0, 0], sizes = [8, 32], strides = [1, 1]} : vector<32x32xf32> to vector<8x32xf32>
    %cst_90 = arith.constant dense<0.000000e+00> : vector<8x32xf32>
    %236 = tpu.matmul %234, %235, %cst_90 {dimension_numbers = #tpu.dot_dimension_numbers<[1], [0], [0], [1], [0, 0, 1, 1], [], []>} : vector<8x8xf32>, vector<8x32xf32>, vector<8x32xf32> -> vector<8x32xf32>
    %237 = vector.extract_strided_slice %217 {offsets = [0, 8], sizes = [8, 8], strides = [1, 1]} : vector<8x32xf32> to vector<8x8xf32>
    %238 = vector.extract_strided_slice %218 {offsets = [0, 8], sizes = [8, 8], strides = [1, 1]} : vector<8x64xf32> to vector<8x8xf32>
    %239 = vector.extract_strided_slice %218 {offsets = [0, 40], sizes = [8, 8], strides = [1, 1]} : vector<8x64xf32> to vector<8x8xf32>
    %cst_91 = arith.constant dense<0.000000e+00> : vector<8x8xf32>
    %240 = tpu.matmul %237, %238, %cst_91 {dimension_numbers = #tpu.dot_dimension_numbers<[1], [1], [0], [0], [0, 0, 1, 0], [], []>} : vector<8x8xf32>, vector<8x8xf32>, vector<8x8xf32> -> vector<8x8xf32>
    %241 = vector.broadcast %213 : vector<1x8xf32> to vector<8x8xf32>
    %242 = arith.addf %240, %241 : vector<8x8xf32>
    %cst_92 = arith.constant dense<0xFF800000> : vector<8xf32>
    %243 = vector.multi_reduction <maximumf>, %242, %cst_92 [1] : vector<8x8xf32> to vector<8xf32>
    %244 = vector.shape_cast %243 : vector<8xf32> to vector<8x1xf32>
    %245 = vector.broadcast %244 : vector<8x1xf32> to vector<8x8xf32>
    %246 = arith.subf %242, %245 : vector<8x8xf32>
    %247 = math.exp %246 : vector<8x8xf32>
    %cst_93 = arith.constant dense<0.000000e+00> : vector<8xf32>
    %248 = vector.multi_reduction <add>, %247, %cst_93 [1] : vector<8x8xf32> to vector<8xf32>
    %249 = vector.shape_cast %248 : vector<8xf32> to vector<8x1xf32>
    %250 = vector.broadcast %249 : vector<8x1xf32> to vector<8x8xf32>
    %251 = arith.divf %247, %250 : vector<8x8xf32>
    %cst_94 = arith.constant dense<0.000000e+00> : vector<8x8xf32>
    %252 = tpu.matmul %251, %239, %cst_94 {dimension_numbers = #tpu.dot_dimension_numbers<[1], [0], [0], [1], [0, 0, 1, 1], [], []>} : vector<8x8xf32>, vector<8x8xf32>, vector<8x8xf32> -> vector<8x8xf32>
    %253 = vector.extract_strided_slice %216 {offsets = [8, 0], sizes = [8, 32], strides = [1, 1]} : vector<32x32xf32> to vector<8x32xf32>
    %cst_95 = arith.constant dense<0.000000e+00> : vector<8x32xf32>
    %254 = tpu.matmul %252, %253, %cst_95 {dimension_numbers = #tpu.dot_dimension_numbers<[1], [0], [0], [1], [0, 0, 1, 1], [], []>} : vector<8x8xf32>, vector<8x32xf32>, vector<8x32xf32> -> vector<8x32xf32>
    %255 = arith.addf %236, %254 : vector<8x32xf32>
    %256 = vector.extract_strided_slice %217 {offsets = [0, 16], sizes = [8, 8], strides = [1, 1]} : vector<8x32xf32> to vector<8x8xf32>
    %257 = vector.extract_strided_slice %218 {offsets = [0, 16], sizes = [8, 8], strides = [1, 1]} : vector<8x64xf32> to vector<8x8xf32>
    %258 = vector.extract_strided_slice %218 {offsets = [0, 48], sizes = [8, 8], strides = [1, 1]} : vector<8x64xf32> to vector<8x8xf32>
    %cst_96 = arith.constant dense<0.000000e+00> : vector<8x8xf32>
    %259 = tpu.matmul %256, %257, %cst_96 {dimension_numbers = #tpu.dot_dimension_numbers<[1], [1], [0], [0], [0, 0, 1, 0], [], []>} : vector<8x8xf32>, vector<8x8xf32>, vector<8x8xf32> -> vector<8x8xf32>
    %260 = vector.broadcast %213 : vector<1x8xf32> to vector<8x8xf32>
    %261 = arith.addf %259, %260 : vector<8x8xf32>
    %cst_97 = arith.constant dense<0xFF800000> : vector<8xf32>
    %262 = vector.multi_reduction <maximumf>, %261, %cst_97 [1] : vector<8x8xf32> to vector<8xf32>
    %263 = vector.shape_cast %262 : vector<8xf32> to vector<8x1xf32>
    %264 = vector.broadcast %263 : vector<8x1xf32> to vector<8x8xf32>
    %265 = arith.subf %261, %264 : vector<8x8xf32>
    %266 = math.exp %265 : vector<8x8xf32>
    %cst_98 = arith.constant dense<0.000000e+00> : vector<8xf32>
    %267 = vector.multi_reduction <add>, %266, %cst_98 [1] : vector<8x8xf32> to vector<8xf32>
    %268 = vector.shape_cast %267 : vector<8xf32> to vector<8x1xf32>
    %269 = vector.broadcast %268 : vector<8x1xf32> to vector<8x8xf32>
    %270 = arith.divf %266, %269 : vector<8x8xf32>
    %cst_99 = arith.constant dense<0.000000e+00> : vector<8x8xf32>
    %271 = tpu.matmul %270, %258, %cst_99 {dimension_numbers = #tpu.dot_dimension_numbers<[1], [0], [0], [1], [0, 0, 1, 1], [], []>} : vector<8x8xf32>, vector<8x8xf32>, vector<8x8xf32> -> vector<8x8xf32>
    %272 = vector.extract_strided_slice %216 {offsets = [16, 0], sizes = [8, 32], strides = [1, 1]} : vector<32x32xf32> to vector<8x32xf32>
    %cst_100 = arith.constant dense<0.000000e+00> : vector<8x32xf32>
    %273 = tpu.matmul %271, %272, %cst_100 {dimension_numbers = #tpu.dot_dimension_numbers<[1], [0], [0], [1], [0, 0, 1, 1], [], []>} : vector<8x8xf32>, vector<8x32xf32>, vector<8x32xf32> -> vector<8x32xf32>
    %274 = arith.addf %255, %273 : vector<8x32xf32>
    %275 = vector.extract_strided_slice %217 {offsets = [0, 24], sizes = [8, 8], strides = [1, 1]} : vector<8x32xf32> to vector<8x8xf32>
    %276 = vector.extract_strided_slice %218 {offsets = [0, 24], sizes = [8, 8], strides = [1, 1]} : vector<8x64xf32> to vector<8x8xf32>
    %277 = vector.extract_strided_slice %218 {offsets = [0, 56], sizes = [8, 8], strides = [1, 1]} : vector<8x64xf32> to vector<8x8xf32>
    %cst_101 = arith.constant dense<0.000000e+00> : vector<8x8xf32>
    %278 = tpu.matmul %275, %276, %cst_101 {dimension_numbers = #tpu.dot_dimension_numbers<[1], [1], [0], [0], [0, 0, 1, 0], [], []>} : vector<8x8xf32>, vector<8x8xf32>, vector<8x8xf32> -> vector<8x8xf32>
    %279 = vector.broadcast %213 : vector<1x8xf32> to vector<8x8xf32>
    %280 = arith.addf %278, %279 : vector<8x8xf32>
    %cst_102 = arith.constant dense<0xFF800000> : vector<8xf32>
    %281 = vector.multi_reduction <maximumf>, %280, %cst_102 [1] : vector<8x8xf32> to vector<8xf32>
    %282 = vector.shape_cast %281 : vector<8xf32> to vector<8x1xf32>
    %283 = vector.broadcast %282 : vector<8x1xf32> to vector<8x8xf32>
    %284 = arith.subf %280, %283 : vector<8x8xf32>
    %285 = math.exp %284 : vector<8x8xf32>
    %cst_103 = arith.constant dense<0.000000e+00> : vector<8xf32>
    %286 = vector.multi_reduction <add>, %285, %cst_103 [1] : vector<8x8xf32> to vector<8xf32>
    %287 = vector.shape_cast %286 : vector<8xf32> to vector<8x1xf32>
    %288 = vector.broadcast %287 : vector<8x1xf32> to vector<8x8xf32>
    %289 = arith.divf %285, %288 : vector<8x8xf32>
    %cst_104 = arith.constant dense<0.000000e+00> : vector<8x8xf32>
    %290 = tpu.matmul %289, %277, %cst_104 {dimension_numbers = #tpu.dot_dimension_numbers<[1], [0], [0], [1], [0, 0, 1, 1], [], []>} : vector<8x8xf32>, vector<8x8xf32>, vector<8x8xf32> -> vector<8x8xf32>
    %291 = vector.extract_strided_slice %216 {offsets = [24, 0], sizes = [8, 32], strides = [1, 1]} : vector<32x32xf32> to vector<8x32xf32>
    %cst_105 = arith.constant dense<0.000000e+00> : vector<8x32xf32>
    %292 = tpu.matmul %290, %291, %cst_105 {dimension_numbers = #tpu.dot_dimension_numbers<[1], [0], [0], [1], [0, 0, 1, 1], [], []>} : vector<8x8xf32>, vector<8x32xf32>, vector<8x32xf32> -> vector<8x32xf32>
    %293 = arith.addf %274, %292 : vector<8x32xf32>
    %c0_106 = arith.constant 0 : index
    %c0_107 = arith.constant 0 : index
    %294 = vector.load %arg19[%c0_106, %c0_107] : memref<16x32xf32, #tpu.memory_space<vmem>>, vector<8x32xf32>
    tpu.vector_store %arg19[%c0_106, %c0_107], %293 {strides = array<i32>} : memref<16x32xf32, #tpu.memory_space<vmem>>, vector<8x32xf32>,
    %295 = vector.extract_strided_slice %207 {offsets = [8, 0], sizes = [8, 32], strides = [1, 1]} : vector<16x32xf32> to vector<8x32xf32>
    %296 = vector.extract_strided_slice %211 {offsets = [8, 0], sizes = [8, 64], strides = [1, 1]} : vector<16x64xf32> to vector<8x64xf32>
    %297 = vector.extract_strided_slice %295 {offsets = [0, 0], sizes = [8, 8], strides = [1, 1]} : vector<8x32xf32> to vector<8x8xf32>
    %298 = vector.extract_strided_slice %296 {offsets = [0, 0], sizes = [8, 8], strides = [1, 1]} : vector<8x64xf32> to vector<8x8xf32>
    %299 = vector.extract_strided_slice %296 {offsets = [0, 32], sizes = [8, 8], strides = [1, 1]} : vector<8x64xf32> to vector<8x8xf32>
    %cst_108 = arith.constant dense<0.000000e+00> : vector<8x8xf32>
    %300 = tpu.matmul %297, %298, %cst_108 {dimension_numbers = #tpu.dot_dimension_numbers<[1], [1], [0], [0], [0, 0, 1, 0], [], []>} : vector<8x8xf32>, vector<8x8xf32>, vector<8x8xf32> -> vector<8x8xf32>
    %301 = vector.broadcast %214 : vector<1x8xf32> to vector<8x8xf32>
    %302 = arith.addf %300, %301 : vector<8x8xf32>
    %cst_109 = arith.constant dense<0xFF800000> : vector<8xf32>
    %303 = vector.multi_reduction <maximumf>, %302, %cst_109 [1] : vector<8x8xf32> to vector<8xf32>
    %304 = vector.shape_cast %303 : vector<8xf32> to vector<8x1xf32>
    %305 = vector.broadcast %304 : vector<8x1xf32> to vector<8x8xf32>
    %306 = arith.subf %302, %305 : vector<8x8xf32>
    %307 = math.exp %306 : vector<8x8xf32>
    %cst_110 = arith.constant dense<0.000000e+00> : vector<8xf32>
    %308 = vector.multi_reduction <add>, %307, %cst_110 [1] : vector<8x8xf32> to vector<8xf32>
    %309 = vector.shape_cast %308 : vector<8xf32> to vector<8x1xf32>
    %310 = vector.broadcast %309 : vector<8x1xf32> to vector<8x8xf32>
    %311 = arith.divf %307, %310 : vector<8x8xf32>
    %cst_111 = arith.constant dense<0.000000e+00> : vector<8x8xf32>
    %312 = tpu.matmul %311, %299, %cst_111 {dimension_numbers = #tpu.dot_dimension_numbers<[1], [0], [0], [1], [0, 0, 1, 1], [], []>} : vector<8x8xf32>, vector<8x8xf32>, vector<8x8xf32> -> vector<8x8xf32>
    %313 = vector.extract_strided_slice %216 {offsets = [0, 0], sizes = [8, 32], strides = [1, 1]} : vector<32x32xf32> to vector<8x32xf32>
    %cst_112 = arith.constant dense<0.000000e+00> : vector<8x32xf32>
    %314 = tpu.matmul %312, %313, %cst_112 {dimension_numbers = #tpu.dot_dimension_numbers<[1], [0], [0], [1], [0, 0, 1, 1], [], []>} : vector<8x8xf32>, vector<8x32xf32>, vector<8x32xf32> -> vector<8x32xf32>
    %315 = vector.extract_strided_slice %295 {offsets = [0, 8], sizes = [8, 8], strides = [1, 1]} : vector<8x32xf32> to vector<8x8xf32>
    %316 = vector.extract_strided_slice %296 {offsets = [0, 8], sizes = [8, 8], strides = [1, 1]} : vector<8x64xf32> to vector<8x8xf32>
    %317 = vector.extract_strided_slice %296 {offsets = [0, 40], sizes = [8, 8], strides = [1, 1]} : vector<8x64xf32> to vector<8x8xf32>
    %cst_113 = arith.constant dense<0.000000e+00> : vector<8x8xf32>
    %318 = tpu.matmul %315, %316, %cst_113 {dimension_numbers = #tpu.dot_dimension_numbers<[1], [1], [0], [0], [0, 0, 1, 0], [], []>} : vector<8x8xf32>, vector<8x8xf32>, vector<8x8xf32> -> vector<8x8xf32>
    %319 = vector.broadcast %214 : vector<1x8xf32> to vector<8x8xf32>
    %320 = arith.addf %318, %319 : vector<8x8xf32>
    %cst_114 = arith.constant dense<0xFF800000> : vector<8xf32>
    %321 = vector.multi_reduction <maximumf>, %320, %cst_114 [1] : vector<8x8xf32> to vector<8xf32>
    %322 = vector.shape_cast %321 : vector<8xf32> to vector<8x1xf32>
    %323 = vector.broadcast %322 : vector<8x1xf32> to vector<8x8xf32>
    %324 = arith.subf %320, %323 : vector<8x8xf32>
    %325 = math.exp %324 : vector<8x8xf32>
    %cst_115 = arith.constant dense<0.000000e+00> : vector<8xf32>
    %326 = vector.multi_reduction <add>, %325, %cst_115 [1] : vector<8x8xf32> to vector<8xf32>
    %327 = vector.shape_cast %326 : vector<8xf32> to vector<8x1xf32>
    %328 = vector.broadcast %327 : vector<8x1xf32> to vector<8x8xf32>
    %329 = arith.divf %325, %328 : vector<8x8xf32>
    %cst_116 = arith.constant dense<0.000000e+00> : vector<8x8xf32>
    %330 = tpu.matmul %329, %317, %cst_116 {dimension_numbers = #tpu.dot_dimension_numbers<[1], [0], [0], [1], [0, 0, 1, 1], [], []>} : vector<8x8xf32>, vector<8x8xf32>, vector<8x8xf32> -> vector<8x8xf32>
    %331 = vector.extract_strided_slice %216 {offsets = [8, 0], sizes = [8, 32], strides = [1, 1]} : vector<32x32xf32> to vector<8x32xf32>
    %cst_117 = arith.constant dense<0.000000e+00> : vector<8x32xf32>
    %332 = tpu.matmul %330, %331, %cst_117 {dimension_numbers = #tpu.dot_dimension_numbers<[1], [0], [0], [1], [0, 0, 1, 1], [], []>} : vector<8x8xf32>, vector<8x32xf32>, vector<8x32xf32> -> vector<8x32xf32>
    %333 = arith.addf %314, %332 : vector<8x32xf32>
    %334 = vector.extract_strided_slice %295 {offsets = [0, 16], sizes = [8, 8], strides = [1, 1]} : vector<8x32xf32> to vector<8x8xf32>
    %335 = vector.extract_strided_slice %296 {offsets = [0, 16], sizes = [8, 8], strides = [1, 1]} : vector<8x64xf32> to vector<8x8xf32>
    %336 = vector.extract_strided_slice %296 {offsets = [0, 48], sizes = [8, 8], strides = [1, 1]} : vector<8x64xf32> to vector<8x8xf32>
    %cst_118 = arith.constant dense<0.000000e+00> : vector<8x8xf32>
    %337 = tpu.matmul %334, %335, %cst_118 {dimension_numbers = #tpu.dot_dimension_numbers<[1], [1], [0], [0], [0, 0, 1, 0], [], []>} : vector<8x8xf32>, vector<8x8xf32>, vector<8x8xf32> -> vector<8x8xf32>
    %338 = vector.broadcast %214 : vector<1x8xf32> to vector<8x8xf32>
    %339 = arith.addf %337, %338 : vector<8x8xf32>
    %cst_119 = arith.constant dense<0xFF800000> : vector<8xf32>
    %340 = vector.multi_reduction <maximumf>, %339, %cst_119 [1] : vector<8x8xf32> to vector<8xf32>
    %341 = vector.shape_cast %340 : vector<8xf32> to vector<8x1xf32>
    %342 = vector.broadcast %341 : vector<8x1xf32> to vector<8x8xf32>
    %343 = arith.subf %339, %342 : vector<8x8xf32>
    %344 = math.exp %343 : vector<8x8xf32>
    %cst_120 = arith.constant dense<0.000000e+00> : vector<8xf32>
    %345 = vector.multi_reduction <add>, %344, %cst_120 [1] : vector<8x8xf32> to vector<8xf32>
    %346 = vector.shape_cast %345 : vector<8xf32> to vector<8x1xf32>
    %347 = vector.broadcast %346 : vector<8x1xf32> to vector<8x8xf32>
    %348 = arith.divf %344, %347 : vector<8x8xf32>
    %cst_121 = arith.constant dense<0.000000e+00> : vector<8x8xf32>
    %349 = tpu.matmul %348, %336, %cst_121 {dimension_numbers = #tpu.dot_dimension_numbers<[1], [0], [0], [1], [0, 0, 1, 1], [], []>} : vector<8x8xf32>, vector<8x8xf32>, vector<8x8xf32> -> vector<8x8xf32>
    %350 = vector.extract_strided_slice %216 {offsets = [16, 0], sizes = [8, 32], strides = [1, 1]} : vector<32x32xf32> to vector<8x32xf32>
    %cst_122 = arith.constant dense<0.000000e+00> : vector<8x32xf32>
    %351 = tpu.matmul %349, %350, %cst_122 {dimension_numbers = #tpu.dot_dimension_numbers<[1], [0], [0], [1], [0, 0, 1, 1], [], []>} : vector<8x8xf32>, vector<8x32xf32>, vector<8x32xf32> -> vector<8x32xf32>
    %352 = arith.addf %333, %351 : vector<8x32xf32>
    %353 = vector.extract_strided_slice %295 {offsets = [0, 24], sizes = [8, 8], strides = [1, 1]} : vector<8x32xf32> to vector<8x8xf32>
    %354 = vector.extract_strided_slice %296 {offsets = [0, 24], sizes = [8, 8], strides = [1, 1]} : vector<8x64xf32> to vector<8x8xf32>
    %355 = vector.extract_strided_slice %296 {offsets = [0, 56], sizes = [8, 8], strides = [1, 1]} : vector<8x64xf32> to vector<8x8xf32>
    %cst_123 = arith.constant dense<0.000000e+00> : vector<8x8xf32>
    %356 = tpu.matmul %353, %354, %cst_123 {dimension_numbers = #tpu.dot_dimension_numbers<[1], [1], [0], [0], [0, 0, 1, 0], [], []>} : vector<8x8xf32>, vector<8x8xf32>, vector<8x8xf32> -> vector<8x8xf32>
    %357 = vector.broadcast %214 : vector<1x8xf32> to vector<8x8xf32>
    %358 = arith.addf %356, %357 : vector<8x8xf32>
    %cst_124 = arith.constant dense<0xFF800000> : vector<8xf32>
    %359 = vector.multi_reduction <maximumf>, %358, %cst_124 [1] : vector<8x8xf32> to vector<8xf32>
    %360 = vector.shape_cast %359 : vector<8xf32> to vector<8x1xf32>
    %361 = vector.broadcast %360 : vector<8x1xf32> to vector<8x8xf32>
    %362 = arith.subf %358, %361 : vector<8x8xf32>
    %363 = math.exp %362 : vector<8x8xf32>
    %cst_125 = arith.constant dense<0.000000e+00> : vector<8xf32>
    %364 = vector.multi_reduction <add>, %363, %cst_125 [1] : vector<8x8xf32> to vector<8xf32>
    %365 = vector.shape_cast %364 : vector<8xf32> to vector<8x1xf32>
    %366 = vector.broadcast %365 : vector<8x1xf32> to vector<8x8xf32>
    %367 = arith.divf %363, %366 : vector<8x8xf32>
    %cst_126 = arith.constant dense<0.000000e+00> : vector<8x8xf32>
    %368 = tpu.matmul %367, %355, %cst_126 {dimension_numbers = #tpu.dot_dimension_numbers<[1], [0], [0], [1], [0, 0, 1, 1], [], []>} : vector<8x8xf32>, vector<8x8xf32>, vector<8x8xf32> -> vector<8x8xf32>
    %369 = vector.extract_strided_slice %216 {offsets = [24, 0], sizes = [8, 32], strides = [1, 1]} : vector<32x32xf32> to vector<8x32xf32>
    %cst_127 = arith.constant dense<0.000000e+00> : vector<8x32xf32>
    %370 = tpu.matmul %368, %369, %cst_127 {dimension_numbers = #tpu.dot_dimension_numbers<[1], [0], [0], [1], [0, 0, 1, 1], [], []>} : vector<8x8xf32>, vector<8x32xf32>, vector<8x32xf32> -> vector<8x32xf32>
    %371 = arith.addf %352, %370 : vector<8x32xf32>
    %c8_128 = arith.constant 8 : index
    %c0_129 = arith.constant 0 : index
    %372 = vector.load %arg19[%c8_128, %c0_129] : memref<16x32xf32, #tpu.memory_space<vmem>>, vector<8x32xf32>
    tpu.vector_store %arg19[%c8_128, %c0_129], %371 {strides = array<i32>} : memref<16x32xf32, #tpu.memory_space<vmem>>, vector<8x32xf32>,
    %c0_130 = arith.constant 0 : index
    %c0_131 = arith.constant 0 : index
    %373 = vector.load %arg19[%c0_130, %c0_131] : memref<16x32xf32, #tpu.memory_space<vmem>>, vector<16x32xf32>
    %374 = arith.addf %190, %373 : vector<16x32xf32>
    %c0_132 = arith.constant 0 : index
    %c0_133 = arith.constant 0 : index
    %c0_134 = arith.constant 0 : index
    %375 = vector.load %arg12[%c0_132, %c0_133, %c0_134] : memref<1x1x32xf32, #tpu.memory_space<vmem>>, vector<1x1x32xf32>
    %376 = vector.shape_cast %375 : vector<1x1x32xf32> to vector<1x32xf32>
    %377 = arith.mulf %374, %374 : vector<16x32xf32>
    %cst_135 = arith.constant dense<0.000000e+00> : vector<16xf32>
    %378 = vector.multi_reduction <add>, %377, %cst_135 [1] : vector<16x32xf32> to vector<16xf32>
    %379 = vector.shape_cast %378 : vector<16xf32> to vector<16x1xf32>
    %cst_136 = arith.constant 3.200000e+01 : f32
    %380 = vector.broadcast %cst_136 : f32 to vector<16x1xf32>
    %381 = arith.divf %379, %380 : vector<16x1xf32>
    %cst_137 = arith.constant 9.99999997E-7 : f32
    %382 = vector.broadcast %cst_137 : f32 to vector<16x1xf32>
    %383 = arith.addf %381, %382 : vector<16x1xf32>
    %384 = math.rsqrt %383 : vector<16x1xf32>
    %385 = vector.broadcast %384 : vector<16x1xf32> to vector<16x32xf32>
    %386 = arith.mulf %374, %385 : vector<16x32xf32>
    %387 = vector.broadcast %376 : vector<1x32xf32> to vector<16x32xf32>
    %388 = arith.mulf %386, %387 : vector<16x32xf32>
    %c0_138 = arith.constant 0 : index
    %c0_139 = arith.constant 0 : index
    %c0_140 = arith.constant 0 : index
    %389 = vector.load %arg13[%c0_138, %c0_139, %c0_140] : memref<1x32x64xf32, #tpu.memory_space<vmem>>, vector<1x32x64xf32>
    %390 = vector.shape_cast %389 : vector<1x32x64xf32> to vector<32x64xf32>
    %cst_141 = arith.constant dense<0.000000e+00> : vector<16x64xf32>
    %391 = tpu.matmul %388, %390, %cst_141 {dimension_numbers = #tpu.dot_dimension_numbers<[1], [0], [0], [1], [0, 0, 1, 1], [], []>} : vector<16x32xf32>, vector<32x64xf32>, vector<16x64xf32> -> vector<16x64xf32>
    %cst_142 = arith.constant 0.000000e+00 : f32
    %392 = vector.broadcast %cst_142 : f32 to vector<16x64xf32>
    %393 = arith.maximumf %391, %392 : vector<16x64xf32>
    %c0_143 = arith.constant 0 : index
    %c0_144 = arith.constant 0 : index
    %c0_145 = arith.constant 0 : index
    %394 = vector.load %arg14[%c0_143, %c0_144, %c0_145] : memref<1x64x32xf32, #tpu.memory_space<vmem>>, vector<1x64x32xf32>
    %395 = vector.shape_cast %394 : vector<1x64x32xf32> to vector<64x32xf32>
    %cst_146 = arith.constant dense<0.000000e+00> : vector<16x32xf32>
    %396 = tpu.matmul %393, %395, %cst_146 {dimension_numbers = #tpu.dot_dimension_numbers<[1], [0], [0], [1], [0, 0, 1, 1], [], []>} : vector<16x64xf32>, vector<64x32xf32>, vector<16x32xf32> -> vector<16x32xf32>
    %397 = arith.addf %374, %396 : vector<16x32xf32>
    %c0_147 = arith.constant 0 : index
    %c0_148 = arith.constant 0 : index
    %398 = vector.load %arg18[%c0_147, %c0_148] : memref<16x32xf32, #tpu.memory_space<vmem>>, vector<16x32xf32>
    tpu.vector_store %arg18[%c0_147, %c0_148], %397 {strides = array<i32>} : memref<16x32xf32, #tpu.memory_space<vmem>>, vector<16x32xf32>,
    %c0_149 = arith.constant 0 : index
    %c0_150 = arith.constant 0 : index
    %399 = vector.load %arg17[%c0_149, %c0_150] : memref<16x32xf32, #tpu.memory_space<vmem>>, vector<16x32xf32>
    tpu.vector_store %arg17[%c0_149, %c0_150], %397 {strides = array<i32>} : memref<16x32xf32, #tpu.memory_space<vmem>>, vector<16x32xf32>,
    %c1_i32 = arith.constant 1 : i32
    %400 = arith.cmpi eq, %arg0, %c1_i32 : i32
    %401 = arith.extui %400 : i1 to i32
    %c0_i32_151 = arith.constant 0 : i32
    %402 = arith.cmpi ne, %401, %c0_i32_151 : i32
    scf.if %402 {
      %c0_152 = arith.constant 0 : index
      %c0_153 = arith.constant 0 : index
      %403 = vector.load %arg15[%c0_152, %c0_153] : memref<1x32xf32, #tpu.memory_space<vmem>>, vector<1x32xf32>
      %404 = arith.mulf %397, %397 : vector<16x32xf32>
      %cst_154 = arith.constant dense<0.000000e+00> : vector<16xf32>
      %405 = vector.multi_reduction <add>, %404, %cst_154 [1] : vector<16x32xf32> to vector<16xf32>
      %406 = vector.shape_cast %405 : vector<16xf32> to vector<16x1xf32>
      %cst_155 = arith.constant 3.200000e+01 : f32
      %407 = vector.broadcast %cst_155 : f32 to vector<16x1xf32>
      %408 = arith.divf %406, %407 : vector<16x1xf32>
      %cst_156 = arith.constant 9.99999997E-7 : f32
      %409 = vector.broadcast %cst_156 : f32 to vector<16x1xf32>
      %410 = arith.addf %408, %409 : vector<16x1xf32>
      %411 = math.rsqrt %410 : vector<16x1xf32>
      %412 = vector.broadcast %411 : vector<16x1xf32> to vector<16x32xf32>
      %413 = arith.mulf %397, %412 : vector<16x32xf32>
      %414 = vector.broadcast %403 : vector<1x32xf32> to vector<16x32xf32>
      %415 = arith.mulf %413, %414 : vector<16x32xf32>
      %c0_157 = arith.constant 0 : index
      %c0_158 = arith.constant 0 : index
      %416 = vector.load %arg17[%c0_157, %c0_158] : memref<16x32xf32, #tpu.memory_space<vmem>>, vector<16x32xf32>
      tpu.vector_store %arg17[%c0_157, %c0_158], %415 {strides = array<i32>} : memref<16x32xf32, #tpu.memory_space<vmem>>, vector<16x32xf32>,
    } else {
    }
    return
  }
  func.func @transform_0(%arg0: i32) -> (i32, i32) {
    %c0_i32 = arith.constant 0 : i32
    %c0_i32_0 = arith.constant 0 : i32
    %c0_i32_1 = arith.constant 0 : i32
    return %c0_i32, %c0_i32_0 : i32, i32
  }
  func.func @transform_1(%arg0: i32) -> (i32, i32) {
    %c0_i32 = arith.constant 0 : i32
    %c0_i32_0 = arith.constant 0 : i32
    %c0_i32_1 = arith.constant 0 : i32
    return %c0_i32, %c0_i32_0 : i32, i32
  }
  func.func @transform_2(%arg0: i32) -> (i32, i32, i32) {
    %c0_i32 = arith.constant 0 : i32
    %c0_i32_0 = arith.constant 0 : i32
    %c0_i32_1 = arith.constant 0 : i32
    %c0_i32_2 = arith.constant 0 : i32
    return %c0_i32, %c0_i32_0, %c0_i32_1 : i32, i32, i32
  }
  func.func @transform_3(%arg0: i32) -> (i32, i32) {
    %c0_i32 = arith.constant 0 : i32
    %c0_i32_0 = arith.constant 0 : i32
    %c0_i32_1 = arith.constant 0 : i32
    return %c0_i32, %c0_i32_0 : i32, i32
  }
  func.func @transform_4(%arg0: i32) -> (i32, i32, i32) {
    %c0_i32 = arith.constant 0 : i32
    %c0_i32_0 = arith.constant 0 : i32
    %c0_i32_1 = arith.constant 0 : i32
    return %arg0, %c0_i32, %c0_i32_0 : i32, i32, i32
  }
  func.func @transform_5(%arg0: i32) -> (i32, i32, i32) {
    %c0_i32 = arith.constant 0 : i32
    %c0_i32_0 = arith.constant 0 : i32
    %c0_i32_1 = arith.constant 0 : i32
    return %arg0, %c0_i32, %c0_i32_0 : i32, i32, i32
  }
  func.func @transform_6(%arg0: i32) -> (i32, i32, i32) {
    %c0_i32 = arith.constant 0 : i32
    %c0_i32_0 = arith.constant 0 : i32
    %c0_i32_1 = arith.constant 0 : i32
    return %arg0, %c0_i32, %c0_i32_0 : i32, i32, i32
  }
  func.func @transform_7(%arg0: i32) -> (i32, i32, i32) {
    %c0_i32 = arith.constant 0 : i32
    %c0_i32_0 = arith.constant 0 : i32
    %c0_i32_1 = arith.constant 0 : i32
    return %arg0, %c0_i32, %c0_i32_0 : i32, i32, i32
  }
  func.func @transform_8(%arg0: i32) -> (i32, i32, i32) {
    %c0_i32 = arith.constant 0 : i32
    %c0_i32_0 = arith.constant 0 : i32
    %c0_i32_1 = arith.constant 0 : i32
    return %arg0, %c0_i32, %c0_i32_0 : i32, i32, i32
  }
  func.func @transform_9(%arg0: i32) -> (i32, i32, i32) {
    %c0_i32 = arith.constant 0 : i32
    %c0_i32_0 = arith.constant 0 : i32
    %c0_i32_1 = arith.constant 0 : i32
    return %arg0, %c0_i32, %c0_i32_0 : i32, i32, i32
  }
  func.func @transform_10(%arg0: i32) -> (i32, i32, i32) {
    %c0_i32 = arith.constant 0 : i32
    %c0_i32_0 = arith.constant 0 : i32
    %c0_i32_1 = arith.constant 0 : i32
    return %arg0, %c0_i32, %c0_i32_0 : i32, i32, i32
  }
  func.func @transform_11(%arg0: i32) -> (i32, i32, i32) {
    %c0_i32 = arith.constant 0 : i32
    %c0_i32_0 = arith.constant 0 : i32
    %c0_i32_1 = arith.constant 0 : i32
    return %arg0, %c0_i32, %c0_i32_0 : i32, i32, i32
  }
  func.func @transform_12(%arg0: i32) -> (i32, i32, i32) {
    %c0_i32 = arith.constant 0 : i32
    %c0_i32_0 = arith.constant 0 : i32
    %c0_i32_1 = arith.constant 0 : i32
    return %arg0, %c0_i32, %c0_i32_0 : i32, i32, i32
  }
  func.func @transform_13(%arg0: i32) -> (i32, i32, i32) {
    %c0_i32 = arith.constant 0 : i32
    %c0_i32_0 = arith.constant 0 : i32
    %c0_i32_1 = arith.constant 0 : i32
    return %arg0, %c0_i32, %c0_i32_0 : i32, i32, i32
  }
  func.func @transform_14(%arg0: i32) -> (i32, i32) {
    %c0_i32 = arith.constant 0 : i32
    %c0_i32_0 = arith.constant 0 : i32
    %c0_i32_1 = arith.constant 0 : i32
    return %c0_i32, %c0_i32_0 : i32, i32
  }
  func.func @transform_15(%arg0: i32) -> (i32, i32, i32) {
    %c0_i32 = arith.constant 0 : i32
    %c0_i32_0 = arith.constant 0 : i32
    %c0_i32_1 = arith.constant 0 : i32
    return %arg0, %c0_i32, %c0_i32_0 : i32, i32, i32
  }
  func.func @transform_16(%arg0: i32) -> (i32, i32) {
    %c0_i32 = arith.constant 0 : i32
    %c0_i32_0 = arith.constant 0 : i32
    %c0_i32_1 = arith.constant 0 : i32
    return %c0_i32, %c0_i32_0 : i32, i32
  }
}

</mosaic_0001>

<llo_original>
// kernel: squeeze.5
$region0: #{squeeze.5}
  %s0 = inlined_call_operand.vmem [shape: f32[16], index: 0, kind: input, shape index: {}]
  %s1 = inlined_call_operand.hbm [shape: f32[2,8], index: 1, kind: output, shape index: {}]
  $region1: #{squeeze.5} parent=0
    #allocation0 [shape = 'u8[1024]{0}', space=vmem, size = 0x400, scoped, tag = 'operand span for operand 1']
    #allocation1 [shape = 's32[1]{0}', space=sflag, size = 0x4, scoped, tag = 'scoped memory for squeeze.5']
    #allocation2 [shape = 'u8[4096]{0}', space=vmem, size = 0x1000, scoped, tag = 'scoped mem for output reshape']
    #allocation3 [shape = 'u8[4096]{0}', space=vmem, size = 0x1000, scoped, tag = 'scoped mem for input reshape']
    %2 = vsyncpa [#allocation1], 0
    %s4 = sshllo.u32 0, 1
    %v5 = vld [vmem:[%s0] sm:%s4]
    %6 = vst [vmem:[#allocation3] sm:%s4] %v5
    %v7 = vld [vmem:[#allocation3] sm:$0x1]
    %vm8 = vcmask 64512
    %9 = vst.msk [vmem:[#allocation2] sm:$0x1] %vm8, %v7
    %v10 = vld [vmem:[#allocation3] sm:$0x1]
    %11 = vrot.lane.b32.xlu0 %v10, 120
    %v12 = vpop.permute.xlu0 %11
    %vm13 = vcmask 64512
    %s14 = scalar_lea.vmem [#allocation2], 1
    %15 = vst.msk [vmem:[%s14] sm:$0x1] %vm13, %v12
    %s17 = sshllo.u32 0, 2
    %v19 = vld [vmem:[#allocation2] sm:%s17]
    %s20 = sshllo.u32 0, 2
    %21 = vst [vmem:[#allocation0] sm:%s20] %v19
    %s23 = ssub.s32 32, 32
    %24 = vsyncadd [#allocation1], %s23
    %s26 = sshll.u32 [#allocation0], 4
    %s27 = int_to_ptr.vmem [resolvable:$true] %s26
    %29 = dma.vmem_to_hbm [thread:$0]  %s27, 32, %s1, [#allocation1]
    %30 = dma.done [#allocation1], 32
    %31 = vsyncpa [#allocation1], 1

// kernel: seq2seq_lm_with_value_head_forward.5
$region0: #{seq2seq_lm_with_value_head_forward.5}
  #allocation0 [shape = 'u32[]', space=smem, size = 0x4, offset = 0x4, fixed_abs, tag = 'smem constant byte address 0x4 - core index']
  #allocation1 [shape = 'u32[144,128]{1,0:T(1,128)}', space=vmem, size = 0x12000, scoped, tag = 'internal scratch']
  %s0 = inlined_call_operand.vmem [shape: f32[16,32], index: 0, kind: input, shape index: {}]
  %s1 = inlined_call_operand.vmem [shape: f32[32,256], index: 1, kind: input, shape index: {}]
  %s2 = inlined_call_operand.vmem [shape: f32[32,64], index: 2, kind: input, shape index: {}]
  %s3 = inlined_call_operand.vmem [shape: f32[1,64], index: 3, kind: input, shape index: {}]
  %s4 = inlined_call_operand.vmem [shape: f32[64,128], index: 4, kind: input, shape index: {}]
  %s5 = inlined_call_operand.vmem [shape: f32[1,128], index: 5, kind: input, shape index: {}]
  %s6 = inlined_call_operand.hbm [shape: f32[16,256], index: 6, kind: output, shape index: {0}]
  %s7 = inlined_call_operand.vmem [shape: f32[16,128], index: 7, kind: output, shape index: {1}]
  %8 = xla_tuple %s6, %s7
  %s9 = sld [smem:[#allocation0]]
  $region42: #{seq2seq_lm_with_value_head_forward.5} parent=0
    _
  %s11 = ssub.s32 1, %s9
  %s12 = scalar_select 0, %s11, %s9
  $region1: #{seq2seq_lm_with_value_head_forward.5} parent=0
    #allocation2 [shape = 'u8[16384]{0}', space=vmem, size = 0x4000, scoped, tag = 'output window, operand 0, single buffered']
    #allocation3 [shape = 's32[1]{0}', space=sflag, size = 0x4, scoped, tag = 'scoped memory for seq2seq_lm_with_value_head_forward.5']
    %13 = vsyncpa [#allocation3], 0
    // Predicated region
    $region2: #{seq2seq_lm_with_value_head_forward.5} parent=1 // pred_check
      _
    $region3: #{seq2seq_lm_with_value_head_forward.5} parent=1 // pred_check_branch
      %15 = sbr.rel (0) target = $region5
    $region4: #{seq2seq_lm_with_value_head_forward.5} parent=1 // pred_region
      _
    $region5: #{seq2seq_lm_with_value_head_forward.5} parent=1 // pred_fallthru
      _
    // Predicated region
    $region6: #{seq2seq_lm_with_value_head_forward.5} parent=1 // pred_check
      _
    $region7: #{seq2seq_lm_with_value_head_forward.5} parent=1 // pred_check_branch
      %17 = sbr.rel (0) target = $region9
    $region8: #{seq2seq_lm_with_value_head_forward.5} parent=1 // pred_region
      _
    $region9: #{seq2seq_lm_with_value_head_forward.5} parent=1 // pred_fallthru
      _
    // Predicated region
    $region10: #{seq2seq_lm_with_value_head_forward.5} parent=1 // pred_check
      _
    $region11: #{seq2seq_lm_with_value_head_forward.5} parent=1 // pred_check_branch
      %19 = sbr.rel (0) target = $region13
    $region12: #{seq2seq_lm_with_value_head_forward.5} parent=1 // pred_region
      _
    $region13: #{seq2seq_lm_with_value_head_forward.5} parent=1 // pred_fallthru
      _
    // Predicated region
    $region14: #{seq2seq_lm_with_value_head_forward.5} parent=1 // pred_check
      _
    $region15: #{seq2seq_lm_with_value_head_forward.5} parent=1 // pred_check_branch
      %21 = sbr.rel (0) target = $region17
    $region16: #{seq2seq_lm_with_value_head_forward.5} parent=1 // pred_region
      _
    $region17: #{seq2seq_lm_with_value_head_forward.5} parent=1 // pred_fallthru
      _
    // Predicated region
    $region18: #{seq2seq_lm_with_value_head_forward.5} parent=1 // pred_check
      _
    $region19: #{seq2seq_lm_with_value_head_forward.5} parent=1 // pred_check_branch
      %23 = sbr.rel (0) target = $region21
    $region20: #{seq2seq_lm_with_value_head_forward.5} parent=1 // pred_region
      _
    $region21: #{seq2seq_lm_with_value_head_forward.5} parent=1 // pred_fallthru
      _
    // Predicated region
    $region22: #{seq2seq_lm_with_value_head_forward.5} parent=1 // pred_check
      _
    $region23: #{seq2seq_lm_with_value_head_forward.5} parent=1 // pred_check_branch
      %25 = sbr.rel (0) target = $region25
    $region24: #{seq2seq_lm_with_value_head_forward.5} parent=1 // pred_region
      _
    $region25: #{seq2seq_lm_with_value_head_forward.5} parent=1 // pred_fallthru
      _
    %v26 = vld [vmem:[%s0] sm:$0xff]
    %v27 = vld [vmem:[%s0 + $0x8] sm:$0xff]
    %v28 = vld [vmem:[%s1] sm:$0xff]
    %v29 = vld [vmem:[%s1 + $0x8] sm:$0xff]
    %v30 = vld [vmem:[%s1 + $0x10] sm:$0xff]
    %v31 = vld [vmem:[%s1 + $0x18] sm:$0xff]
    %v32 = vld [vmem:[%s1 + $0x20] sm:$0xff]
    %v33 = vld [vmem:[%s1 + $0x28] sm:$0xff]
    %v34 = vld [vmem:[%s1 + $0x30] sm:$0xff]
    %v35 = vld [vmem:[%s1 + $0x38] sm:$0xff]
    %vm36 = vcmask 261120
    %v38 = vsel %vm36, %v26, 0
    %v41 = vsel %vm36, %v27, 0
    %43 = vmatprep.subr.mxu0 %v29
    %44 = vmatpush1.msra.mxu0 %v28
    %45 = vmatprep.subr.mxu0 %v31
    %46 = vmatpush1.msra.mxu0 %v30
    %47 = vmatprep.subr.mxu0 %v33
    %48 = vmatpush1.msra.mxu0 %v32
    %49 = vmatprep.subr.mxu0 %v35
    %50 = vmatpush1.msra.mxu0 %v34
    %51 = vmatprep.subr.mxu0 0.0
    %52 = vmatpush1.msra.mxu0 0.0
    %53 = vmatprep.subr.mxu0 0.0
    %54 = vmatpush1.msra.mxu0 0.0
    %55 = vmatprep.subr.mxu0 0.0
    %56 = vmatpush1.msra.mxu0 0.0
    %57 = vmatprep.subr.mxu0 0.0
    %58 = vmatpush1.msra.mxu0 0.0
    %59 = vmatprep.subr.mxu0 0.0
    %60 = vmatpush1.msra.mxu0 0.0
    %61 = vmatprep.subr.mxu0 0.0
    %62 = vmatpush1.msra.mxu0 0.0
    %63 = vmatprep.subr.mxu0 0.0
    %64 = vmatpush1.msra.mxu0 0.0
    %65 = vmatprep.subr.mxu0 0.0
    %66 = vmatpush1.msra.mxu0 0.0
    %67 = vmatprep.subr.mxu0 0.0
    %68 = vmatpush1.msra.mxu0 0.0
    %69 = vmatprep.subr.mxu0 0.0
    %70 = vmatpush1.msra.mxu0 0.0
    %71 = vmatprep.subr.mxu0 0.0
    %72 = vmatpush1.msra.mxu0 0.0
    %73 = vmatprep.subr.mxu0 0.0
    %74 = vmatpush1.msra.mxu0 0.0
    %75 = vmatprep.subr.mxu0 0.0
    %76 = vmatpush1.msra.mxu0 0.0
    %77 = vmatprep.subr.mxu0 0.0
    %78 = vmatpush1.msra.mxu0 0.0
    %79 = vmatprep.subr.mxu0 0.0
    %80 = vmatpush1.msra.mxu0 0.0
    %81 = vmatprep.subr.mxu0 0.0
    %82 = vmatpush1.msra.mxu0 0.0
    %83 = vmatprep.subr.mxu0 0.0
    %84 = vmatpush1.msra.mxu0 0.0
    %85 = vmatprep.subr.mxu0 0.0
    %86 = vmatpush1.msra.mxu0 0.0
    %87 = vmatprep.subr.mxu0 0.0
    %88 = vmatpush1.msra.mxu0 0.0
    %89 = vmatprep.subr.mxu0 0.0
    %90 = vmatpush1.msra.mxu0 0.0
    %91 = vmatprep.subr.mxu0 0.0
    %92 = vmatpush1.msra.mxu0 0.0
    %93 = vmatprep.subr.mxu0 0.0
    %94 = vmatpush1.msra.mxu0 0.0
    %95 = vmatprep.subr.mxu0 0.0
    %96 = vmatpush1.msra.mxu0 0.0
    %97 = vmatprep.subr.mxu0 0.0
    %98 = vmatpush1.msra.mxu0 0.0
    %99 = vmatprep.subr.mxu0 0.0
    %100 = vmatpush1.msra.mxu0 0.0
    %101 = vmatprep.subr.mxu0 0.0
    %102 = vmatpush1.msra.mxu0 0.0
    %103 = vmatprep.subr.mxu0 0.0
    %104 = vmatpush1.msra.mxu0 0.0
    %105 = vmatprep.subr.mxu0 0.0
    %106 = vmatpush1.msra.mxu0 0.0
    %107 = vmatprep.mubr.f32.mxu0 0.0
    %108 = vmatmul.mubr.f32.gmra.mrb[0].mxu0 %v38
    %v109 = vpop.f32.mrb[0].mxu0
    %v110 = vadd.f32 0.0, %v109
    %v111 = vpop.f32.mrb[0].mxu0
    %v112 = vadd.f32 0.0, %v111
    %113 = vmatprep.mubr.f32.mxu0 0.0
    %114 = vmatmul.mubr.f32.gmra.mrb[0].mxu0 %v41
    %v115 = vpop.f32.mrb[0].mxu0
    %v116 = vadd.f32 0.0, %v115
    %v117 = vpop.f32.mrb[0].mxu0
    %v118 = vadd.f32 0.0, %v117
    %119 = vdwg.mxu0
    %120 = vst [vmem:[#allocation2] sm:$0xff] %v110
    %121 = vst [vmem:[#allocation2 + $0x8] sm:$0xff] %v112
    %122 = vst [vmem:[#allocation2 + $0x10] sm:$0xff] %v116
    %123 = vst [vmem:[#allocation2 + $0x18] sm:$0xff] %v118
    %v124 = vld [vmem:[%s2] sm:$0xff]
    %v125 = vld [vmem:[%s2 + $0x8] sm:$0xff]
    %v126 = vld [vmem:[%s2 + $0x10] sm:$0xff]
    %v127 = vld [vmem:[%s2 + $0x18] sm:$0xff]
    %v128 = vld [vmem:[%s3] sm:$0x1]
    %v130 = vlaneseq
    %v131 = vshrl.u32 %v130, 7
    %v132 = vsub.s32 0, %v131
    %v133 = vrot.slane %v128, %v132
    %135 = vmatprep.subr.mxu0 0.0
    %136 = vmatpush1.msra.mxu0 %v124
    %137 = vmatprep.subr.mxu0 0.0
    %138 = vmatpush1.msra.mxu0 %v125
    %139 = vmatprep.subr.mxu0 0.0
    %140 = vmatpush1.msra.mxu0 %v126
    %141 = vmatprep.subr.mxu0 0.0
    %142 = vmatpush1.msra.mxu0 %v127
    %143 = vmatprep.subr.mxu0 0.0
    %144 = vmatpush1.msra.mxu0 0.0
    %145 = vmatprep.subr.mxu0 0.0
    %146 = vmatpush1.msra.mxu0 0.0
    %147 = vmatprep.subr.mxu0 0.0
    %148 = vmatpush1.msra.mxu0 0.0
    %149 = vmatprep.subr.mxu0 0.0
    %150 = vmatpush1.msra.mxu0 0.0
    %151 = vmatprep.subr.mxu0 0.0
    %152 = vmatpush1.msra.mxu0 0.0
    %153 = vmatprep.subr.mxu0 0.0
    %154 = vmatpush1.msra.mxu0 0.0
    %155 = vmatprep.subr.mxu0 0.0
    %156 = vmatpush1.msra.mxu0 0.0
    %157 = vmatprep.subr.mxu0 0.0
    %158 = vmatpush1.msra.mxu0 0.0
    %159 = vmatprep.subr.mxu0 0.0
    %160 = vmatpush1.msra.mxu0 0.0
    %161 = vmatprep.subr.mxu0 0.0
    %162 = vmatpush1.msra.mxu0 0.0
    %163 = vmatprep.subr.mxu0 0.0
    %164 = vmatpush1.msra.mxu0 0.0
    %165 = vmatprep.subr.mxu0 0.0
    %166 = vmatpush1.msra.mxu0 0.0
    %167 = vmatprep.subr.mxu0 0.0
    %168 = vmatpush1.msra.mxu0 0.0
    %169 = vmatprep.subr.mxu0 0.0
    %170 = vmatpush1.msra.mxu0 0.0
    %171 = vmatprep.subr.mxu0 0.0
    %172 = vmatpush1.msra.mxu0 0.0
    %173 = vmatprep.subr.mxu0 0.0
    %174 = vmatpush1.msra.mxu0 0.0
    %175 = vmatprep.subr.mxu0 0.0
    %176 = vmatpush1.msra.mxu0 0.0
    %177 = vmatprep.subr.mxu0 0.0
    %178 = vmatpush1.msra.mxu0 0.0
    %179 = vmatprep.subr.mxu0 0.0
    %180 = vmatpush1.msra.mxu0 0.0
    %181 = vmatprep.subr.mxu0 0.0
    %182 = vmatpush1.msra.mxu0 0.0
    %183 = vmatprep.subr.mxu0 0.0
    %184 = vmatpush1.msra.mxu0 0.0
    %185 = vmatprep.subr.mxu0 0.0
    %186 = vmatpush1.msra.mxu0 0.0
    %187 = vmatprep.subr.mxu0 0.0
    %188 = vmatpush1.msra.mxu0 0.0
    %189 = vmatprep.subr.mxu0 0.0
    %190 = vmatpush1.msra.mxu0 0.0
    %191 = vmatprep.subr.mxu0 0.0
    %192 = vmatpush1.msra.mxu0 0.0
    %193 = vmatprep.subr.mxu0 0.0
    %194 = vmatpush1.msra.mxu0 0.0
    %195 = vmatprep.subr.mxu0 0.0
    %196 = vmatpush1.msra.mxu0 0.0
    %197 = vmatprep.subr.mxu0 0.0
    %198 = vmatpush1.msra.mxu0 0.0
    %199 = vmatprep.mubr.f32.mxu0 0.0
    %200 = vmatmul.mubr.f32.gmra.mrb[0].mxu0 %v38
    %v201 = vpop.f32.mrb[0].mxu0
    %v202 = vadd.f32 %v133, %v201
    %v203 = vpop.f32.mrb[0].mxu0
    %204 = vmatprep.mubr.f32.mxu0 0.0
    %205 = vmatmul.mubr.f32.gmra.mrb[0].mxu0 %v41
    %v206 = vpop.f32.mrb[0].mxu0
    %v207 = vadd.f32 %v133, %v206
    %v208 = vpop.f32.mrb[0].mxu0
    %209 = vdwg.mxu0
    %v210 = vmax.f32 %v202, 0.0
    %v211 = vmax.f32 %v207, 0.0
    %v212 = vld [vmem:[%s4] sm:$0xff]
    %v213 = vld [vmem:[%s4 + $0x8] sm:$0xff]
    %v214 = vld [vmem:[%s4 + $0x10] sm:$0xff]
    %v215 = vld [vmem:[%s4 + $0x18] sm:$0xff]
    %v216 = vld [vmem:[%s4 + $0x20] sm:$0xff]
    %v217 = vld [vmem:[%s4 + $0x28] sm:$0xff]
    %v218 = vld [vmem:[%s4 + $0x30] sm:$0xff]
    %v219 = vld [vmem:[%s4 + $0x38] sm:$0xff]
    %v220 = vld [vmem:[%s5] sm:$0x1]
    %v222 = vlaneseq
    %v223 = vshrl.u32 %v222, 7
    %v224 = vsub.s32 0, %v223
    %v225 = vrot.slane %v220, %v224
    %vm227 = vcmask 523264
    %v229 = vsel %vm227, %v210, 0
    %v232 = vsel %vm227, %v211, 0
    %234 = vmatprep.subr.mxu0 0.0
    %235 = vmatpush1.msra.mxu0 %v212
    %236 = vmatprep.subr.mxu0 0.0
    %237 = vmatpush1.msra.mxu0 %v213
    %238 = vmatprep.subr.mxu0 0.0
    %239 = vmatpush1.msra.mxu0 %v214
    %240 = vmatprep.subr.mxu0 0.0
    %241 = vmatpush1.msra.mxu0 %v215
    %242 = vmatprep.subr.mxu0 0.0
    %243 = vmatpush1.msra.mxu0 %v216
    %244 = vmatprep.subr.mxu0 0.0
    %245 = vmatpush1.msra.mxu0 %v217
    %246 = vmatprep.subr.mxu0 0.0
    %247 = vmatpush1.msra.mxu0 %v218
    %248 = vmatprep.subr.mxu0 0.0
    %249 = vmatpush1.msra.mxu0 %v219
    %250 = vmatprep.subr.mxu0 0.0
    %251 = vmatpush1.msra.mxu0 0.0
    %252 = vmatprep.subr.mxu0 0.0
    %253 = vmatpush1.msra.mxu0 0.0
    %254 = vmatprep.subr.mxu0 0.0
    %255 = vmatpush1.msra.mxu0 0.0
    %256 = vmatprep.subr.mxu0 0.0
    %257 = vmatpush1.msra.mxu0 0.0
    %258 = vmatprep.subr.mxu0 0.0
    %259 = vmatpush1.msra.mxu0 0.0
    %260 = vmatprep.subr.mxu0 0.0
    %261 = vmatpush1.msra.mxu0 0.0
    %262 = vmatprep.subr.mxu0 0.0
    %263 = vmatpush1.msra.mxu0 0.0
    %264 = vmatprep.subr.mxu0 0.0
    %265 = vmatpush1.msra.mxu0 0.0
    %266 = vmatprep.subr.mxu0 0.0
    %267 = vmatpush1.msra.mxu0 0.0
    %268 = vmatprep.subr.mxu0 0.0
    %269 = vmatpush1.msra.mxu0 0.0
    %270 = vmatprep.subr.mxu0 0.0
    %271 = vmatpush1.msra.mxu0 0.0
    %272 = vmatprep.subr.mxu0 0.0
    %273 = vmatpush1.msra.mxu0 0.0
    %274 = vmatprep.subr.mxu0 0.0
    %275 = vmatpush1.msra.mxu0 0.0
    %276 = vmatprep.subr.mxu0 0.0
    %277 = vmatpush1.msra.mxu0 0.0
    %278 = vmatprep.subr.mxu0 0.0
    %279 = vmatpush1.msra.mxu0 0.0
    %280 = vmatprep.subr.mxu0 0.0
    %281 = vmatpush1.msra.mxu0 0.0
    %282 = vmatprep.subr.mxu0 0.0
    %283 = vmatpush1.msra.mxu0 0.0
    %284 = vmatprep.subr.mxu0 0.0
    %285 = vmatpush1.msra.mxu0 0.0
    %286 = vmatprep.subr.mxu0 0.0
    %287 = vmatpush1.msra.mxu0 0.0
    %288 = vmatprep.subr.mxu0 0.0
    %289 = vmatpush1.msra.mxu0 0.0
    %290 = vmatprep.subr.mxu0 0.0
    %291 = vmatpush1.msra.mxu0 0.0
    %292 = vmatprep.subr.mxu0 0.0
    %293 = vmatpush1.msra.mxu0 0.0
    %294 = vmatprep.subr.mxu0 0.0
    %295 = vmatpush1.msra.mxu0 0.0
    %296 = vmatprep.subr.mxu0 0.0
    %297 = vmatpush1.msra.mxu0 0.0
    %298 = vmatprep.mubr.f32.mxu0 0.0
    %299 = vmatmul.mubr.f32.gmra.mrb[0].mxu0 %v229
    %v300 = vpop.f32.mrb[0].mxu0
    %v301 = vadd.f32 %v225, %v300
    %v302 = vpop.f32.mrb[0].mxu0
    %303 = vmatprep.mubr.f32.mxu0 0.0
    %304 = vmatmul.mubr.f32.gmra.mrb[0].mxu0 %v232
    %v305 = vpop.f32.mrb[0].mxu0
    %v306 = vadd.f32 %v225, %v305
    %v307 = vpop.f32.mrb[0].mxu0
    %308 = vdwg.mxu0
    %309 = vst [vmem:[%s7] sm:$0xff] %v301
    %310 = vst [vmem:[%s7 + $0x8] sm:$0xff] %v306
    // Predicated region
    $region26: #{seq2seq_lm_with_value_head_forward.5} parent=1 // pred_check
      _
    $region27: #{seq2seq_lm_with_value_head_forward.5} parent=1 // pred_check_branch
      %312 = sbr.rel (0) target = $region29
    $region28: #{seq2seq_lm_with_value_head_forward.5} parent=1 // pred_region
      %s314 = ssub.s32 512, 512
      %315 = vsyncadd [#allocation3], %s314
      %s316 = sshll.u32 [#allocation2], 4
      %s317 = int_to_ptr.vmem [resolvable:$true] %s316
      %322 = dma.vmem_to_hbm [thread:$0]  %s317, 512, %s6, [#allocation3], 256, 256, 16
    $region29: #{seq2seq_lm_with_value_head_forward.5} parent=1 // pred_fallthru
      _
    // Predicated region
    $region30: #{seq2seq_lm_with_value_head_forward.5} parent=1 // pred_check
      _
    $region31: #{seq2seq_lm_with_value_head_forward.5} parent=1 // pred_check_branch
      %324 = sbr.rel (0) target = $region33
    $region32: #{seq2seq_lm_with_value_head_forward.5} parent=1 // pred_region
      _
    $region33: #{seq2seq_lm_with_value_head_forward.5} parent=1 // pred_fallthru
      _
    // Predicated region
    $region34: #{seq2seq_lm_with_value_head_forward.5} parent=1 // pred_check
      _
    $region35: #{seq2seq_lm_with_value_head_forward.5} parent=1 // pred_check_branch
      %326 = sbr.rel (0) target = $region37
    $region36: #{seq2seq_lm_with_value_head_forward.5} parent=1 // pred_region
      %327 = dma.done [#allocation3], 512
    $region37: #{seq2seq_lm_with_value_head_forward.5} parent=1 // pred_fallthru
      _
    // Predicated region
    $region38: #{seq2seq_lm_with_value_head_forward.5} parent=1 // pred_check
      _
    $region39: #{seq2seq_lm_with_value_head_forward.5} parent=1 // pred_check_branch
      %329 = sbr.rel (0) target = $region41
    $region40: #{seq2seq_lm_with_value_head_forward.5} parent=1 // pred_region
      _
    $region41: #{seq2seq_lm_with_value_head_forward.5} parent=1 // pred_fallthru
      _
    %330 = vsyncpa [#allocation3], 1

// kernel: seq2seq_lm_with_value_head_forward.3
$region0: #{seq2seq_lm_with_value_head_forward.3}
  #allocation0 [shape = 'u32[]', space=smem, size = 0x4, offset = 0x4, fixed_abs, tag = 'smem constant byte address 0x4 - core index']
  #allocation1 [shape = 'u32[144,128]{1,0:T(1,128)}', space=vmem, size = 0x12000, scoped, tag = 'internal scratch']
  #allocation2 [shape = 'f32[16,32]{1,0:T(8,128)}', space=vmem, size = 0x2000, scoped, tag = 'scratch operand']
  #allocation3 [shape = 'f32[16,32]{1,0:T(8,128)}', space=vmem, size = 0x2000, scoped, tag = 'scratch operand']
  %s0 = inlined_call_operand.vmem [shape: f32[16,32], index: 0, kind: input, shape index: {}]
  %s1 = inlined_call_operand.vmem [shape: f32[2,4,8,8], index: 1, kind: input, shape index: {}]
  %s2 = inlined_call_operand.vmem [shape: f32[2,1,32], index: 2, kind: input, shape index: {}]
  %s3 = inlined_call_operand.vmem [shape: f32[2,32,96], index: 3, kind: input, shape index: {}]
  %s4 = inlined_call_operand.vmem [shape: f32[2,32,32], index: 4, kind: input, shape index: {}]
  %s5 = inlined_call_operand.vmem [shape: f32[2,1,32], index: 5, kind: input, shape index: {}]
  %s6 = inlined_call_operand.vmem [shape: f32[2,32,64], index: 6, kind: input, shape index: {}]
  %s7 = inlined_call_operand.vmem [shape: f32[2,64,32], index: 7, kind: input, shape index: {}]
  %s8 = inlined_call_operand.vmem [shape: f32[1,32], index: 8, kind: input, shape index: {}]
  %s9 = inlined_call_operand.vmem [shape: f32[16,32], index: 9, kind: output, shape index: {}]
  %s10 = sld [smem:[#allocation0]]
  $region77: #{seq2seq_lm_with_value_head_forward.3} parent=0
    _
  %s12 = ssub.s32 1, %s10
  %s13 = scalar_select 0, %s12, %s10
  loop: start=0, step=1, limit=4
  $region2: #{seq2seq_lm_with_value_head_forward.3} parent=0 // loop_pre_header
    _
  $region3: #{seq2seq_lm_with_value_head_forward.3} parent=0 // loop_header
    %s15 = sphi 0, %s19
    %p16 = scmp.ge.s32.totalorder %s15, 4
    %s23 = sphi 0, %s23
    %s25 = sphi 0, %s23
    %s26 = sphi 0, %s25
    %s40 = sphi 0, %s26
    %s44 = sphi 0, %s44
    %s46 = sphi 0, %s44
    %s47 = sphi 0, %s46
    %s61 = sphi 0, %s47
    %s67 = sphi 0, %s69
    %s70 = sphi 0, %s67
    %s71 = sphi 0, %s70
    %s87 = sphi 0, %s71
    %s93 = sphi 0, %s95
    %s96 = sphi 0, %s93
    %s97 = sphi 0, %s96
    %s113 = sphi 0, %s97
    %s119 = sphi 0, %s121
    %s122 = sphi 0, %s119
    %s123 = sphi 0, %s122
    %s139 = sphi 0, %s123
    %s145 = sphi 0, %s147
    %s148 = sphi 0, %s145
    %s149 = sphi 0, %s148
    %s165 = sphi 0, %s149
    %s171 = sphi 0, %s173
    %s174 = sphi 0, %s171
    %s175 = sphi 0, %s174
    %s191 = sphi 0, %s175
    %s197 = sphi 0, %s199
    %s200 = sphi 0, %s197
    %s201 = sphi 0, %s200
    %s217 = sphi 0, %s201
    %s221 = sphi 0, %s221
    %s223 = sphi 0, %s221
    %s224 = sphi 0, %s223
    %s238 = sphi 0, %s224
    %s242 = sphi 0, %s242
    %s244 = sphi 0, %s242
    %s245 = sphi 0, %s244
    %s259 = sphi 0, %s245
  $region4: #{seq2seq_lm_with_value_head_forward.3} parent=0 // loop_header_branch
    %18 = sbr.rel (%p16) target = $region8
  $region5: #{seq2seq_lm_with_value_head_forward.3} parent=0 // loop_body
    %s20 = ssub.s32 %s15, 1
    %s21 = ssub.s32 %s15, 2
    %s22 = sadd.s32 %s15, 1
    %s24 = sadd.s32 %s23, 1
    %p27 = scmp.eq.s32.totalorder %s15, 1
    %p28 = scmp.ne.s32.totalorder %s23, %s25
    %p29 = scmp.eq.s32.totalorder %s15, 0
    %p30 = por %p28, %p29
    %p31 = scmp.ne.s32.totalorder %s23, %s25
    %p32 = scmp.eq.s32.totalorder %s20, 1
    %p33 = por %p31, %p32
    %p34 = scmp.ne.s32.totalorder %s25, %s26
    %p35 = scmp.eq.s32.totalorder %s20, 0
    %p36 = por %p34, %p35
    %p37 = scmp.ne.s32.totalorder %s25, %s26
    %p38 = scmp.eq.s32.totalorder %s21, 1
    %p39 = por %p37, %p38
    %p41 = scmp.ne.s32.totalorder %s26, %s40
    %p42 = scmp.eq.s32.totalorder %s21, 0
    %p43 = por %p41, %p42
    %s45 = sadd.s32 %s44, 1
    %p48 = scmp.eq.s32.totalorder %s15, 1
    %p49 = scmp.ne.s32.totalorder %s44, %s46
    %p50 = scmp.eq.s32.totalorder %s15, 0
    %p51 = por %p49, %p50
    %p52 = scmp.ne.s32.totalorder %s44, %s46
    %p53 = scmp.eq.s32.totalorder %s20, 1
    %p54 = por %p52, %p53
    %p55 = scmp.ne.s32.totalorder %s46, %s47
    %p56 = scmp.eq.s32.totalorder %s20, 0
    %p57 = por %p55, %p56
    %p58 = scmp.ne.s32.totalorder %s46, %s47
    %p59 = scmp.eq.s32.totalorder %s21, 1
    %p60 = por %p58, %p59
    %p62 = scmp.ne.s32.totalorder %s47, %s61
    %p63 = scmp.eq.s32.totalorder %s21, 0
    %p64 = por %p62, %p63
    %s65 = ssub.s32 %s15, %s22
    %p66 = scmp.eq.s32.totalorder %s65, 0
    %s68 = sadd.s32 %s67, 1
    %s69 = scalar_select %p66, %s67, %s68
    %p72 = pneg %p66
    %p73 = scmp.eq.s32.totalorder %s15, 1
    %p74 = por %p72, %p73
    %p75 = scmp.ne.s32.totalorder %s67, %s70
    %p76 = scmp.eq.s32.totalorder %s15, 0
    %p77 = por %p75, %p76
    %p78 = scmp.ne.s32.totalorder %s67, %s70
    %p79 = scmp.eq.s32.totalorder %s20, 1
    %p80 = por %p78, %p79
    %p81 = scmp.ne.s32.totalorder %s70, %s71
    %p82 = scmp.eq.s32.totalorder %s20, 0
    %p83 = por %p81, %p82
    %p84 = scmp.ne.s32.totalorder %s70, %s71
    %p85 = scmp.eq.s32.totalorder %s21, 1
    %p86 = por %p84, %p85
    %p88 = scmp.ne.s32.totalorder %s71, %s87
    %p89 = scmp.eq.s32.totalorder %s21, 0
    %p90 = por %p88, %p89
    %s91 = ssub.s32 %s15, %s22
    %p92 = scmp.eq.s32.totalorder %s91, 0
    %s94 = sadd.s32 %s93, 1
    %s95 = scalar_select %p92, %s93, %s94
    %p98 = pneg %p92
    %p99 = scmp.eq.s32.totalorder %s15, 1
    %p100 = por %p98, %p99
    %p101 = scmp.ne.s32.totalorder %s93, %s96
    %p102 = scmp.eq.s32.totalorder %s15, 0
    %p103 = por %p101, %p102
    %p104 = scmp.ne.s32.totalorder %s93, %s96
    %p105 = scmp.eq.s32.totalorder %s20, 1
    %p106 = por %p104, %p105
    %p107 = scmp.ne.s32.totalorder %s96, %s97
    %p108 = scmp.eq.s32.totalorder %s20, 0
    %p109 = por %p107, %p108
    %p110 = scmp.ne.s32.totalorder %s96, %s97
    %p111 = scmp.eq.s32.totalorder %s21, 1
    %p112 = por %p110, %p111
    %p114 = scmp.ne.s32.totalorder %s97, %s113
    %p115 = scmp.eq.s32.totalorder %s21, 0
    %p116 = por %p114, %p115
    %s117 = ssub.s32 %s15, %s22
    %p118 = scmp.eq.s32.totalorder %s117, 0
    %s120 = sadd.s32 %s119, 1
    %s121 = scalar_select %p118, %s119, %s120
    %p124 = pneg %p118
    %p125 = scmp.eq.s32.totalorder %s15, 1
    %p126 = por %p124, %p125
    %p127 = scmp.ne.s32.totalorder %s119, %s122
    %p128 = scmp.eq.s32.totalorder %s15, 0
    %p129 = por %p127, %p128
    %p130 = scmp.ne.s32.totalorder %s119, %s122
    %p131 = scmp.eq.s32.totalorder %s20, 1
    %p132 = por %p130, %p131
    %p133 = scmp.ne.s32.totalorder %s122, %s123
    %p134 = scmp.eq.s32.totalorder %s20, 0
    %p135 = por %p133, %p134
    %p136 = scmp.ne.s32.totalorder %s122, %s123
    %p137 = scmp.eq.s32.totalorder %s21, 1
    %p138 = por %p136, %p137
    %p140 = scmp.ne.s32.totalorder %s123, %s139
    %p141 = scmp.eq.s32.totalorder %s21, 0
    %p142 = por %p140, %p141
    %s143 = ssub.s32 %s15, %s22
    %p144 = scmp.eq.s32.totalorder %s143, 0
    %s146 = sadd.s32 %s145, 1
    %s147 = scalar_select %p144, %s145, %s146
    %p150 = pneg %p144
    %p151 = scmp.eq.s32.totalorder %s15, 1
    %p152 = por %p150, %p151
    %p153 = scmp.ne.s32.totalorder %s145, %s148
    %p154 = scmp.eq.s32.totalorder %s15, 0
    %p155 = por %p153, %p154
    %p156 = scmp.ne.s32.totalorder %s145, %s148
    %p157 = scmp.eq.s32.totalorder %s20, 1
    %p158 = por %p156, %p157
    %p159 = scmp.ne.s32.totalorder %s148, %s149
    %p160 = scmp.eq.s32.totalorder %s20, 0
    %p161 = por %p159, %p160
    %p162 = scmp.ne.s32.totalorder %s148, %s149
    %p163 = scmp.eq.s32.totalorder %s21, 1
    %p164 = por %p162, %p163
    %p166 = scmp.ne.s32.totalorder %s149, %s165
    %p167 = scmp.eq.s32.totalorder %s21, 0
    %p168 = por %p166, %p167
    %s169 = ssub.s32 %s15, %s22
    %p170 = scmp.eq.s32.totalorder %s169, 0
    %s172 = sadd.s32 %s171, 1
    %s173 = scalar_select %p170, %s171, %s172
    %p176 = pneg %p170
    %p177 = scmp.eq.s32.totalorder %s15, 1
    %p178 = por %p176, %p177
    %p179 = scmp.ne.s32.totalorder %s171, %s174
    %p180 = scmp.eq.s32.totalorder %s15, 0
    %p181 = por %p179, %p180
    %p182 = scmp.ne.s32.totalorder %s171, %s174
    %p183 = scmp.eq.s32.totalorder %s20, 1
    %p184 = por %p182, %p183
    %p185 = scmp.ne.s32.totalorder %s174, %s175
    %p186 = scmp.eq.s32.totalorder %s20, 0
    %p187 = por %p185, %p186
    %p188 = scmp.ne.s32.totalorder %s174, %s175
    %p189 = scmp.eq.s32.totalorder %s21, 1
    %p190 = por %p188, %p189
    %p192 = scmp.ne.s32.totalorder %s175, %s191
    %p193 = scmp.eq.s32.totalorder %s21, 0
    %p194 = por %p192, %p193
    %s195 = ssub.s32 %s15, %s22
    %p196 = scmp.eq.s32.totalorder %s195, 0
    %s198 = sadd.s32 %s197, 1
    %s199 = scalar_select %p196, %s197, %s198
    %p202 = pneg %p196
    %p203 = scmp.eq.s32.totalorder %s15, 1
    %p204 = por %p202, %p203
    %p205 = scmp.ne.s32.totalorder %s197, %s200
    %p206 = scmp.eq.s32.totalorder %s15, 0
    %p207 = por %p205, %p206
    %p208 = scmp.ne.s32.totalorder %s197, %s200
    %p209 = scmp.eq.s32.totalorder %s20, 1
    %p210 = por %p208, %p209
    %p211 = scmp.ne.s32.totalorder %s200, %s201
    %p212 = scmp.eq.s32.totalorder %s20, 0
    %p213 = por %p211, %p212
    %p214 = scmp.ne.s32.totalorder %s200, %s201
    %p215 = scmp.eq.s32.totalorder %s21, 1
    %p216 = por %p214, %p215
    %p218 = scmp.ne.s32.totalorder %s201, %s217
    %p219 = scmp.eq.s32.totalorder %s21, 0
    %p220 = por %p218, %p219
    %s222 = sadd.s32 %s221, 1
    %p225 = scmp.eq.s32.totalorder %s15, 1
    %p226 = scmp.ne.s32.totalorder %s221, %s223
    %p227 = scmp.eq.s32.totalorder %s15, 0
    %p228 = por %p226, %p227
    %p229 = scmp.ne.s32.totalorder %s221, %s223
    %p230 = scmp.eq.s32.totalorder %s20, 1
    %p231 = por %p229, %p230
    %p232 = scmp.ne.s32.totalorder %s223, %s224
    %p233 = scmp.eq.s32.totalorder %s20, 0
    %p234 = por %p232, %p233
    %p235 = scmp.ne.s32.totalorder %s223, %s224
    %p236 = scmp.eq.s32.totalorder %s21, 1
    %p237 = por %p235, %p236
    %p239 = scmp.ne.s32.totalorder %s224, %s238
    %p240 = scmp.eq.s32.totalorder %s21, 0
    %p241 = por %p239, %p240
    %s243 = sadd.s32 %s242, 1
    %p246 = scmp.eq.s32.totalorder %s15, 1
    %p247 = scmp.ne.s32.totalorder %s242, %s244
    %p248 = scmp.eq.s32.totalorder %s15, 0
    %p249 = por %p247, %p248
    %p250 = scmp.ne.s32.totalorder %s242, %s244
    %p251 = scmp.eq.s32.totalorder %s20, 1
    %p252 = por %p250, %p251
    %p253 = scmp.ne.s32.totalorder %s244, %s245
    %p254 = scmp.eq.s32.totalorder %s20, 0
    %p255 = por %p253, %p254
    %p256 = scmp.ne.s32.totalorder %s244, %s245
    %p257 = scmp.eq.s32.totalorder %s21, 1
    %p258 = por %p256, %p257
    %p260 = scmp.ne.s32.totalorder %s245, %s259
    %p261 = scmp.eq.s32.totalorder %s21, 0
    %p262 = por %p260, %p261
    %p263 = scmp.le.s32.totalorder 1, %s15
    %p264 = scmp.lt.s32.totalorder %s15, 3
    %p265 = pnand %p263, %p264
    %p266 = pneg %p265
    // Predicated region
    $region9: #{seq2seq_lm_with_value_head_forward.3} parent=5 // pred_check
      _
    $region10: #{seq2seq_lm_with_value_head_forward.3} parent=5 // pred_check_branch
      %268 = sbr.rel (%p265) target = $region12
    $region11: #{seq2seq_lm_with_value_head_forward.3} parent=5 // pred_region
      %s269 = ssub.s32 %s15, 1
      // Predicated region
      $region13: #{seq2seq_lm_with_value_head_forward.3} parent=11 // pred_check
        %p270 = pneg %p36
      $region14: #{seq2seq_lm_with_value_head_forward.3} parent=11 // pred_check_branch
        %272 = sbr.rel (%p270) target = $region16
      $region15: #{seq2seq_lm_with_value_head_forward.3} parent=11 // pred_region
        _
      $region16: #{seq2seq_lm_with_value_head_forward.3} parent=11 // pred_fallthru
        _
      // Predicated region
      $region17: #{seq2seq_lm_with_value_head_forward.3} parent=11 // pred_check
        %p273 = pneg %p57
      $region18: #{seq2seq_lm_with_value_head_forward.3} parent=11 // pred_check_branch
        %275 = sbr.rel (%p273) target = $region20
      $region19: #{seq2seq_lm_with_value_head_forward.3} parent=11 // pred_region
        _
      $region20: #{seq2seq_lm_with_value_head_forward.3} parent=11 // pred_fallthru
        _
      // Predicated region
      $region21: #{seq2seq_lm_with_value_head_forward.3} parent=11 // pred_check
        %p276 = pneg %p234
      $region22: #{seq2seq_lm_with_value_head_forward.3} parent=11 // pred_check_branch
        %278 = sbr.rel (%p276) target = $region24
      $region23: #{seq2seq_lm_with_value_head_forward.3} parent=11 // pred_region
        _
      $region24: #{seq2seq_lm_with_value_head_forward.3} parent=11 // pred_fallthru
        _
    $region12: #{seq2seq_lm_with_value_head_forward.3} parent=5 // pred_fallthru
      _
    %p279 = scmp.lt.s32.totalorder %s15, 2
    // Predicated region
    $region25: #{seq2seq_lm_with_value_head_forward.3} parent=5 // pred_check
      %p280 = pneg %p279
    $region26: #{seq2seq_lm_with_value_head_forward.3} parent=5 // pred_check_branch
      %282 = sbr.rel (%p280) target = $region28
    $region27: #{seq2seq_lm_with_value_head_forward.3} parent=5 // pred_region
      // Predicated region
      $region29: #{seq2seq_lm_with_value_head_forward.3} parent=27 // pred_check
        %p283 = pneg %p77
      $region30: #{seq2seq_lm_with_value_head_forward.3} parent=27 // pred_check_branch
        %285 = sbr.rel (%p283) target = $region32
      $region31: #{seq2seq_lm_with_value_head_forward.3} parent=27 // pred_region
        %p286 = scmp.lt.s32.totalorder %s15, 1
        %s287 = scalar_select %p286, %s15, 1
        %s288 = scalar_lea.vmem %s2, %s287
      $region32: #{seq2seq_lm_with_value_head_forward.3} parent=27 // pred_fallthru
        _
      // Predicated region
      $region33: #{seq2seq_lm_with_value_head_forward.3} parent=27 // pred_check
        %p289 = pneg %p103
      $region34: #{seq2seq_lm_with_value_head_forward.3} parent=27 // pred_check_branch
        %291 = sbr.rel (%p289) target = $region36
      $region35: #{seq2seq_lm_with_value_head_forward.3} parent=27 // pred_region
        %p292 = scmp.lt.s32.totalorder %s15, 1
        %s293 = scalar_select %p292, %s15, 1
        %s294 = smul.addr %s293, 4
        %s295 = smul.addr %s294, 8
        %s296 = scalar_lea.vmem %s3, %s295
      $region36: #{seq2seq_lm_with_value_head_forward.3} parent=27 // pred_fallthru
        _
      // Predicated region
      $region37: #{seq2seq_lm_with_value_head_forward.3} parent=27 // pred_check
        %p297 = pneg %p129
      $region38: #{seq2seq_lm_with_value_head_forward.3} parent=27 // pred_check_branch
        %299 = sbr.rel (%p297) target = $region40
      $region39: #{seq2seq_lm_with_value_head_forward.3} parent=27 // pred_region
        %p300 = scmp.lt.s32.totalorder %s15, 1
        %s301 = scalar_select %p300, %s15, 1
        %s302 = smul.addr %s301, 4
        %s303 = smul.addr %s302, 8
        %s304 = scalar_lea.vmem %s4, %s303
      $region40: #{seq2seq_lm_with_value_head_forward.3} parent=27 // pred_fallthru
        _
      // Predicated region
      $region41: #{seq2seq_lm_with_value_head_forward.3} parent=27 // pred_check
        %p305 = pneg %p155
      $region42: #{seq2seq_lm_with_value_head_forward.3} parent=27 // pred_check_branch
        %307 = sbr.rel (%p305) target = $region44
      $region43: #{seq2seq_lm_with_value_head_forward.3} parent=27 // pred_region
        %p308 = scmp.lt.s32.totalorder %s15, 1
        %s309 = scalar_select %p308, %s15, 1
        %s310 = scalar_lea.vmem %s5, %s309
      $region44: #{seq2seq_lm_with_value_head_forward.3} parent=27 // pred_fallthru
        _
      // Predicated region
      $region45: #{seq2seq_lm_with_value_head_forward.3} parent=27 // pred_check
        %p311 = pneg %p181
      $region46: #{seq2seq_lm_with_value_head_forward.3} parent=27 // pred_check_branch
        %313 = sbr.rel (%p311) target = $region48
      $region47: #{seq2seq_lm_with_value_head_forward.3} parent=27 // pred_region
        %p314 = scmp.lt.s32.totalorder %s15, 1
        %s315 = scalar_select %p314, %s15, 1
        %s316 = smul.addr %s315, 4
        %s317 = smul.addr %s316, 8
        %s318 = scalar_lea.vmem %s6, %s317
      $region48: #{seq2seq_lm_with_value_head_forward.3} parent=27 // pred_fallthru
        _
      // Predicated region
      $region49: #{seq2seq_lm_with_value_head_forward.3} parent=27 // pred_check
        %p319 = pneg %p207
      $region50: #{seq2seq_lm_with_value_head_forward.3} parent=27 // pred_check_branch
        %321 = sbr.rel (%p319) target = $region52
      $region51: #{seq2seq_lm_with_value_head_forward.3} parent=27 // pred_region
        %p322 = scmp.lt.s32.totalorder %s15, 1
        %s323 = scalar_select %p322, %s15, 1
        %s324 = smul.addr %s323, 8
        %s325 = smul.addr %s324, 8
        %s326 = scalar_lea.vmem %s7, %s325
      $region52: #{seq2seq_lm_with_value_head_forward.3} parent=27 // pred_fallthru
        _
    $region28: #{seq2seq_lm_with_value_head_forward.3} parent=5 // pred_fallthru
      _
    %p327 = scmp.le.s32.totalorder 1, %s15
    %p328 = scmp.lt.s32.totalorder %s15, 3
    %p329 = pnand %p327, %p328
    %p330 = pneg %p329
    // Predicated region
    $region53: #{seq2seq_lm_with_value_head_forward.3} parent=5 // pred_check
      _
    $region54: #{seq2seq_lm_with_value_head_forward.3} parent=5 // pred_check_branch
      %332 = sbr.rel (%p329) target = $region56
    $region55: #{seq2seq_lm_with_value_head_forward.3} parent=5 // pred_region
      %s333 = ssub.s32 %s15, 1
      %p334 = pneg %p36
      %p335 = pneg %p33
      %p336 = pneg %p57
      %p337 = pneg %p54
      %p338 = scmp.lt.s32.totalorder %s20, 1
      %s339 = scalar_select %p338, %s20, 1
      %s340 = scalar_lea.vmem %s2, %s339
      %p341 = pneg %p83
      %p342 = pneg %p80
      %p343 = scmp.lt.s32.totalorder %s20, 1
      %s344 = scalar_select %p343, %s20, 1
      %s345 = smul.addr %s344, 4
      %s346 = smul.addr %s345, 8
      %s347 = scalar_lea.vmem %s3, %s346
      %p348 = pneg %p109
      %p349 = pneg %p106
      %p350 = scmp.lt.s32.totalorder %s20, 1
      %s351 = scalar_select %p350, %s20, 1
      %s352 = smul.addr %s351, 4
      %s353 = smul.addr %s352, 8
      %s354 = scalar_lea.vmem %s4, %s353
      %p355 = pneg %p135
      %p356 = pneg %p132
      %p357 = scmp.lt.s32.totalorder %s20, 1
      %s358 = scalar_select %p357, %s20, 1
      %s359 = scalar_lea.vmem %s5, %s358
      %p360 = pneg %p161
      %p361 = pneg %p158
      %p362 = scmp.lt.s32.totalorder %s20, 1
      %s363 = scalar_select %p362, %s20, 1
      %s364 = smul.addr %s363, 4
      %s365 = smul.addr %s364, 8
      %s366 = scalar_lea.vmem %s6, %s365
      %p367 = pneg %p187
      %p368 = pneg %p184
      %p369 = scmp.lt.s32.totalorder %s20, 1
      %s370 = scalar_select %p369, %s20, 1
      %s371 = smul.addr %s370, 8
      %s372 = smul.addr %s371, 8
      %s373 = scalar_lea.vmem %s7, %s372
      %p374 = pneg %p213
      %p375 = pneg %p210
      %p376 = pneg %p234
      %p377 = pneg %p231
      %p378 = pneg %p255
      %p379 = pneg %p252
      %p380 = scmp.lt.s32.totalorder %s20, 1
      %s381 = scalar_select %p380, %s20, 1
      %s382 = scalar_lea.vmem %s2, %s381
      %p383 = scmp.lt.s32.totalorder %s20, 1
      %s384 = scalar_select %p383, %s20, 1
      %s385 = smul.addr %s384, 4
      %s386 = smul.addr %s385, 8
      %s387 = scalar_lea.vmem %s3, %s386
      %p388 = scmp.lt.s32.totalorder %s20, 1
      %s389 = scalar_select %p388, %s20, 1
      %s390 = smul.addr %s389, 4
      %s391 = smul.addr %s390, 8
      %s392 = scalar_lea.vmem %s4, %s391
      %p393 = scmp.lt.s32.totalorder %s20, 1
      %s394 = scalar_select %p393, %s20, 1
      %s395 = scalar_lea.vmem %s5, %s394
      %p396 = scmp.lt.s32.totalorder %s20, 1
      %s397 = scalar_select %p396, %s20, 1
      %s398 = smul.addr %s397, 4
      %s399 = smul.addr %s398, 8
      %s400 = scalar_lea.vmem %s6, %s399
      %p401 = scmp.lt.s32.totalorder %s20, 1
      %s402 = scalar_select %p401, %s20, 1
      %s403 = smul.addr %s402, 8
      %s404 = smul.addr %s403, 8
      %s405 = scalar_lea.vmem %s7, %s404
      %p406 = scmp.eq.s32.totalorder %s20, 0
      // Predicated region
      $region57: #{seq2seq_lm_with_value_head_forward.3} parent=55 // pred_check
        %p407 = pneg %p406
      $region58: #{seq2seq_lm_with_value_head_forward.3} parent=55 // pred_check_branch
        %409 = sbr.rel (%p407) target = $region60
      $region59: #{seq2seq_lm_with_value_head_forward.3} parent=55 // pred_region
        %v410 = vld [vmem:[%s0] sm:$0xff]
        %v411 = vld [vmem:[%s0 + $0x8] sm:$0xff]
        %vm412 = vcmask 261120
        %413 = vst.msk [vmem:[#allocation2] sm:$0xff] %vm412, %v410
        %414 = vst.msk [vmem:[#allocation2 + $0x8] sm:$0xff] %vm412, %v411
      $region60: #{seq2seq_lm_with_value_head_forward.3} parent=55 // pred_fallthru
        _
      %v415 = vld [vmem:[#allocation2] sm:$0xff]
      %v416 = vld [vmem:[#allocation2 + $0x8] sm:$0xff]
      %v417 = vld [vmem:[%s382] sm:$0x1]
      %v418 = vmul.f32 %v415, %v415
      %v419 = vmul.f32 %v416, %v416
      %vm420 = vcmask 261120
      %v421 = vsel %vm420, %v418, 0.0
      %422 = vadd.xlane.f32.xlu0 %v421
      %v423 = vpop.xlane.xlu0 %422
      %v424 = vsel %vm420, %v419, 0.0
      %425 = vadd.xlane.f32.xlu0 %v424
      %v426 = vpop.xlane.xlu0 %425
      %v427 = vrcp.pop 32.0
      %v428 = vmul.f32 %v423, %v427
      %v429 = vmul.f32 %v426, %v427
      %v430 = vadd.f32 %v428, 1e-06
      %v431 = vadd.f32 %v429, 1e-06
      %v432 = vrsqrt.pop %v430
      %v433 = vrsqrt.pop %v431
      %v434 = vmul.f32 %v415, %v432
      %v435 = vmul.f32 %v416, %v433
      %v437 = vlaneseq
      %v438 = vshrl.u32 %v437, 7
      %v439 = vsub.s32 0, %v438
      %v440 = vrot.slane %v417, %v439
      %v442 = vmul.f32 %v434, %v440
      %v443 = vmul.f32 %v435, %v440
      %v444 = vld [vmem:[%s387] sm:$0xff]
      %v445 = vld [vmem:[%s387 + $0x8] sm:$0xff]
      %v446 = vld [vmem:[%s387 + $0x10] sm:$0xff]
      %v447 = vld [vmem:[%s387 + $0x18] sm:$0xff]
      %v449 = vsel %vm420, %v442, 0
      %v452 = vsel %vm420, %v443, 0
      %454 = vmatprep.subr.mxu0 0.0
      %455 = vmatpush1.msra.mxu0 %v444
      %456 = vmatprep.subr.mxu0 0.0
      %457 = vmatpush1.msra.mxu0 %v445
      %458 = vmatprep.subr.mxu0 0.0
      %459 = vmatpush1.msra.mxu0 %v446
      %460 = vmatprep.subr.mxu0 0.0
      %461 = vmatpush1.msra.mxu0 %v447
      %462 = vmatprep.subr.mxu0 0.0
      %463 = vmatpush1.msra.mxu0 0.0
      %464 = vmatprep.subr.mxu0 0.0
      %465 = vmatpush1.msra.mxu0 0.0
      %466 = vmatprep.subr.mxu0 0.0
      %467 = vmatpush1.msra.mxu0 0.0
      %468 = vmatprep.subr.mxu0 0.0
      %469 = vmatpush1.msra.mxu0 0.0
      %470 = vmatprep.subr.mxu0 0.0
      %471 = vmatpush1.msra.mxu0 0.0
      %472 = vmatprep.subr.mxu0 0.0
      %473 = vmatpush1.msra.mxu0 0.0
      %474 = vmatprep.subr.mxu0 0.0
      %475 = vmatpush1.msra.mxu0 0.0
      %476 = vmatprep.subr.mxu0 0.0
      %477 = vmatpush1.msra.mxu0 0.0
      %478 = vmatprep.subr.mxu0 0.0
      %479 = vmatpush1.msra.mxu0 0.0
      %480 = vmatprep.subr.mxu0 0.0
      %481 = vmatpush1.msra.mxu0 0.0
      %482 = vmatprep.subr.mxu0 0.0
      %483 = vmatpush1.msra.mxu0 0.0
      %484 = vmatprep.subr.mxu0 0.0
      %485 = vmatpush1.msra.mxu0 0.0
      %486 = vmatprep.subr.mxu0 0.0
      %487 = vmatpush1.msra.mxu0 0.0
      %488 = vmatprep.subr.mxu0 0.0
      %489 = vmatpush1.msra.mxu0 0.0
      %490 = vmatprep.subr.mxu0 0.0
      %491 = vmatpush1.msra.mxu0 0.0
      %492 = vmatprep.subr.mxu0 0.0
      %493 = vmatpush1.msra.mxu0 0.0
      %494 = vmatprep.subr.mxu0 0.0
      %495 = vmatpush1.msra.mxu0 0.0
      %496 = vmatprep.subr.mxu0 0.0
      %497 = vmatpush1.msra.mxu0 0.0
      %498 = vmatprep.subr.mxu0 0.0
      %499 = vmatpush1.msra.mxu0 0.0
      %500 = vmatprep.subr.mxu0 0.0
      %501 = vmatpush1.msra.mxu0 0.0
      %502 = vmatprep.subr.mxu0 0.0
      %503 = vmatpush1.msra.mxu0 0.0
      %504 = vmatprep.subr.mxu0 0.0
      %505 = vmatpush1.msra.mxu0 0.0
      %506 = vmatprep.subr.mxu0 0.0
      %507 = vmatpush1.msra.mxu0 0.0
      %508 = vmatprep.subr.mxu0 0.0
      %509 = vmatpush1.msra.mxu0 0.0
      %510 = vmatprep.subr.mxu0 0.0
      %511 = vmatpush1.msra.mxu0 0.0
      %512 = vmatprep.subr.mxu0 0.0
      %513 = vmatpush1.msra.mxu0 0.0
      %514 = vmatprep.subr.mxu0 0.0
      %515 = vmatpush1.msra.mxu0 0.0
      %516 = vmatprep.subr.mxu0 0.0
      %517 = vmatpush1.msra.mxu0 0.0
      %518 = vmatprep.mubr.f32.mxu0 0.0
      %519 = vmatmul.mubr.f32.gmra.mrb[0].mxu0 %v449
      %v520 = vpop.f32.mrb[0].mxu0
      %v521 = vadd.f32 0.0, %v520
      %v522 = vpop.f32.mrb[0].mxu0
      %523 = vmatprep.mubr.f32.mxu0 0.0
      %524 = vmatmul.mubr.f32.gmra.mrb[0].mxu0 %v452
      %v525 = vpop.f32.mrb[0].mxu0
      %v526 = vadd.f32 0.0, %v525
      %v527 = vpop.f32.mrb[0].mxu0
      %528 = vdwg.mxu0
      %v529 = vld [vmem:[%s1] sm:$0xff]
      %v530 = vld [vmem:[%s1 + $0x8] sm:$0xff]
      %v531 = vld [vmem:[%s1 + $0x10] sm:$0xff]
      %v532 = vld [vmem:[%s1 + $0x18] sm:$0xff]
      %v533 = vld [vmem:[%s1 + $0x20] sm:$0xff]
      %v534 = vld [vmem:[%s1 + $0x28] sm:$0xff]
      %v535 = vld [vmem:[%s1 + $0x30] sm:$0xff]
      %v536 = vld [vmem:[%s1 + $0x38] sm:$0xff]
      %v537 = vld [vmem:[%s392] sm:$0xff]
      %v538 = vld [vmem:[%s392 + $0x8] sm:$0xff]
      %v539 = vld [vmem:[%s392 + $0x10] sm:$0xff]
      %v540 = vld [vmem:[%s392 + $0x18] sm:$0xff]
      %542 = vrot.lane.b32.xlu0 %v521, 96
      %v543 = vpop.permute.xlu0 %542
      %vm544 = vcmask 64512
      %v545 = vsel %vm544, %v521, 0
      %v547 = vsel %vm544, %v543, 0
      %549 = vmatprep.subr.mxu0 0.0
      %550 = vmatpush1.xpose.msra.mxu0 %v547
      %551 = vmatprep.subr.mxu0 0.0
      %552 = vmatpush1.xpose.msra.mxu0 0.0
      %553 = vmatprep.subr.mxu0 0.0
      %554 = vmatpush1.xpose.msra.mxu0 0.0
      %555 = vmatprep.subr.mxu0 0.0
      %556 = vmatpush1.xpose.msra.mxu0 0.0
      %557 = vmatprep.subr.mxu0 0.0
      %558 = vmatpush1.xpose.msra.mxu0 0.0
      %559 = vmatprep.subr.mxu0 0.0
      %560 = vmatpush1.xpose.msra.mxu0 0.0
      %561 = vmatprep.subr.mxu0 0.0
      %562 = vmatpush1.xpose.msra.mxu0 0.0
      %563 = vmatprep.subr.mxu0 0.0
      %564 = vmatpush1.xpose.msra.mxu0 0.0
      %565 = vmatprep.subr.mxu0 0.0
      %566 = vmatpush1.xpose.msra.mxu0 0.0
      %567 = vmatprep.subr.mxu0 0.0
      %568 = vmatpush1.xpose.msra.mxu0 0.0
      %569 = vmatprep.subr.mxu0 0.0
      %570 = vmatpush1.xpose.msra.mxu0 0.0
      %571 = vmatprep.subr.mxu0 0.0
      %572 = vmatpush1.xpose.msra.mxu0 0.0
      %573 = vmatprep.subr.mxu0 0.0
      %574 = vmatpush1.xpose.msra.mxu0 0.0
      %575 = vmatprep.subr.mxu0 0.0
      %576 = vmatpush1.xpose.msra.mxu0 0.0
      %577 = vmatprep.subr.mxu0 0.0
      %578 = vmatpush1.xpose.msra.mxu0 0.0
      %579 = vmatprep.subr.mxu0 0.0
      %580 = vmatpush1.xpose.msra.mxu0 0.0
      %581 = vmatprep.subr.mxu0 0.0
      %582 = vmatpush1.xpose.msra.mxu0 0.0
      %583 = vmatprep.subr.mxu0 0.0
      %584 = vmatpush1.xpose.msra.mxu0 0.0
      %585 = vmatprep.subr.mxu0 0.0
      %586 = vmatpush1.xpose.msra.mxu0 0.0
      %587 = vmatprep.subr.mxu0 0.0
      %588 = vmatpush1.xpose.msra.mxu0 0.0
      %589 = vmatprep.subr.mxu0 0.0
      %590 = vmatpush1.xpose.msra.mxu0 0.0
      %591 = vmatprep.subr.mxu0 0.0
      %592 = vmatpush1.xpose.msra.mxu0 0.0
      %593 = vmatprep.subr.mxu0 0.0
      %594 = vmatpush1.xpose.msra.mxu0 0.0
      %595 = vmatprep.subr.mxu0 0.0
      %596 = vmatpush1.xpose.msra.mxu0 0.0
      %597 = vmatprep.subr.mxu0 0.0
      %598 = vmatpush1.xpose.msra.mxu0 0.0
      %599 = vmatprep.subr.mxu0 0.0
      %600 = vmatpush1.xpose.msra.mxu0 0.0
      %601 = vmatprep.subr.mxu0 0.0
      %602 = vmatpush1.xpose.msra.mxu0 0.0
      %603 = vmatprep.subr.mxu0 0.0
      %604 = vmatpush1.xpose.msra.mxu0 0.0
      %605 = vmatprep.subr.mxu0 0.0
      %606 = vmatpush1.xpose.msra.mxu0 0.0
      %607 = vmatprep.subr.mxu0 0.0
      %608 = vmatpush1.xpose.msra.mxu0 0.0
      %609 = vmatprep.subr.mxu0 0.0
      %610 = vmatpush1.xpose.msra.mxu0 0.0
      %611 = vmatprep.subr.mxu0 0.0
      %612 = vmatpush1.xpose.msra.mxu0 0.0
      %613 = vmatprep.mubr.f32.mxu0 0.0
      %614 = vmatmul.mubr.f32.gmra.mrb[0].mxu0 %v545
      %v615 = vpop.f32.mrb[0].mxu0
      %v616 = vadd.f32 %v529, %v615
      %v617 = vpop.f32.mrb[0].mxu0
      %618 = vdwg.mxu0
      %v619 = vsel %vm544, %v616, -inf
      %620 = vmax.xlane.f32.xlu0 %v619
      %v621 = vpop.xlane.xlu0 %620
      %v622 = vsub.f32 %v616, %v621
      %v623 = vmul.f32 %v622, 1.442695
      %v624 = vpow.pop %v623
      %v625 = vsel %vm544, %v624, 0.0
      %626 = vadd.xlane.f32.xlu0 %v625
      %v627 = vpop.xlane.xlu0 %626
      %v628 = vrcp.pop %v627
      %v629 = vmul.f32 %v624, %v628
      %630 = vrot.lane.b32.xlu0 %v521, 64
      %v631 = vpop.permute.xlu0 %630
      %v634 = vsel %vm544, %v629, 0
      %636 = vmatprep.subr.mxu0 0.0
      %637 = vmatpush1.msra.mxu0 %v631
      %638 = vmatprep.subr.mxu0 0.0
      %639 = vmatpush1.msra.mxu0 0.0
      %640 = vmatprep.subr.mxu0 0.0
      %641 = vmatpush1.msra.mxu0 0.0
      %642 = vmatprep.subr.mxu0 0.0
      %643 = vmatpush1.msra.mxu0 0.0
      %644 = vmatprep.subr.mxu0 0.0
      %645 = vmatpush1.msra.mxu0 0.0
      %646 = vmatprep.subr.mxu0 0.0
      %647 = vmatpush1.msra.mxu0 0.0
      %648 = vmatprep.subr.mxu0 0.0
      %649 = vmatpush1.msra.mxu0 0.0
      %650 = vmatprep.subr.mxu0 0.0
      %651 = vmatpush1.msra.mxu0 0.0
      %652 = vmatprep.subr.mxu0 0.0
      %653 = vmatpush1.msra.mxu0 0.0
      %654 = vmatprep.subr.mxu0 0.0
      %655 = vmatpush1.msra.mxu0 0.0
      %656 = vmatprep.subr.mxu0 0.0
      %657 = vmatpush1.msra.mxu0 0.0
      %658 = vmatprep.subr.mxu0 0.0
      %659 = vmatpush1.msra.mxu0 0.0
      %660 = vmatprep.subr.mxu0 0.0
      %661 = vmatpush1.msra.mxu0 0.0
      %662 = vmatprep.subr.mxu0 0.0
      %663 = vmatpush1.msra.mxu0 0.0
      %664 = vmatprep.subr.mxu0 0.0
      %665 = vmatpush1.msra.mxu0 0.0
      %666 = vmatprep.subr.mxu0 0.0
      %667 = vmatpush1.msra.mxu0 0.0
      %668 = vmatprep.subr.mxu0 0.0
      %669 = vmatpush1.msra.mxu0 0.0
      %670 = vmatprep.subr.mxu0 0.0
      %671 = vmatpush1.msra.mxu0 0.0
      %672 = vmatprep.subr.mxu0 0.0
      %673 = vmatpush1.msra.mxu0 0.0
      %674 = vmatprep.subr.mxu0 0.0
      %675 = vmatpush1.msra.mxu0 0.0
      %676 = vmatprep.subr.mxu0 0.0
      %677 = vmatpush1.msra.mxu0 0.0
      %678 = vmatprep.subr.mxu0 0.0
      %679 = vmatpush1.msra.mxu0 0.0
      %680 = vmatprep.subr.mxu0 0.0
      %681 = vmatpush1.msra.mxu0 0.0
      %682 = vmatprep.subr.mxu0 0.0
      %683 = vmatpush1.msra.mxu0 0.0
      %684 = vmatprep.subr.mxu0 0.0
      %685 = vmatpush1.msra.mxu0 0.0
      %686 = vmatprep.subr.mxu0 0.0
      %687 = vmatpush1.msra.mxu0 0.0
      %688 = vmatprep.subr.mxu0 0.0
      %689 = vmatpush1.msra.mxu0 0.0
      %690 = vmatprep.subr.mxu0 0.0
      %691 = vmatpush1.msra.mxu0 0.0
      %692 = vmatprep.subr.mxu0 0.0
      %693 = vmatpush1.msra.mxu0 0.0
      %694 = vmatprep.subr.mxu0 0.0
      %695 = vmatpush1.msra.mxu0 0.0
      %696 = vmatprep.subr.mxu0 0.0
      %697 = vmatpush1.msra.mxu0 0.0
      %698 = vmatprep.subr.mxu0 0.0
      %699 = vmatpush1.msra.mxu0 0.0
      %700 = vmatprep.mubr.f32.mxu0 0.0
      %701 = vmatmul.mubr.f32.gmra.mrb[0].mxu0 %v634
      %v702 = vpop.f32.mrb[0].mxu0
      %v703 = vadd.f32 0.0, %v702
      %v704 = vpop.f32.mrb[0].mxu0
      %705 = vdwg.mxu0
      %706 = vrot.lane.b32.xlu0 %v521, 120
      %v707 = vpop.permute.xlu0 %706
      %708 = vrot.lane.b32.xlu0 %v521, 88
      %v709 = vpop.permute.xlu0 %708
      %v710 = vsel %vm544, %v707, 0
      %v712 = vsel %vm544, %v709, 0
      %714 = vmatprep.subr.mxu0 0.0
      %715 = vmatpush1.xpose.msra.mxu0 %v712
      %716 = vmatprep.subr.mxu0 0.0
      %717 = vmatpush1.xpose.msra.mxu0 0.0
      %718 = vmatprep.subr.mxu0 0.0
      %719 = vmatpush1.xpose.msra.mxu0 0.0
      %720 = vmatprep.subr.mxu0 0.0
      %721 = vmatpush1.xpose.msra.mxu0 0.0
      %722 = vmatprep.subr.mxu0 0.0
      %723 = vmatpush1.xpose.msra.mxu0 0.0
      %724 = vmatprep.subr.mxu0 0.0
      %725 = vmatpush1.xpose.msra.mxu0 0.0
      %726 = vmatprep.subr.mxu0 0.0
      %727 = vmatpush1.xpose.msra.mxu0 0.0
      %728 = vmatprep.subr.mxu0 0.0
      %729 = vmatpush1.xpose.msra.mxu0 0.0
      %730 = vmatprep.subr.mxu0 0.0
      %731 = vmatpush1.xpose.msra.mxu0 0.0
      %732 = vmatprep.subr.mxu0 0.0
      %733 = vmatpush1.xpose.msra.mxu0 0.0
      %734 = vmatprep.subr.mxu0 0.0
      %735 = vmatpush1.xpose.msra.mxu0 0.0
      %736 = vmatprep.subr.mxu0 0.0
      %737 = vmatpush1.xpose.msra.mxu0 0.0
      %738 = vmatprep.subr.mxu0 0.0
      %739 = vmatpush1.xpose.msra.mxu0 0.0
      %740 = vmatprep.subr.mxu0 0.0
      %741 = vmatpush1.xpose.msra.mxu0 0.0
      %742 = vmatprep.subr.mxu0 0.0
      %743 = vmatpush1.xpose.msra.mxu0 0.0
      %744 = vmatprep.subr.mxu0 0.0
      %745 = vmatpush1.xpose.msra.mxu0 0.0
      %746 = vmatprep.subr.mxu0 0.0
      %747 = vmatpush1.xpose.msra.mxu0 0.0
      %748 = vmatprep.subr.mxu0 0.0
      %749 = vmatpush1.xpose.msra.mxu0 0.0
      %750 = vmatprep.subr.mxu0 0.0
      %751 = vmatpush1.xpose.msra.mxu0 0.0
      %752 = vmatprep.subr.mxu0 0.0
      %753 = vmatpush1.xpose.msra.mxu0 0.0
      %754 = vmatprep.subr.mxu0 0.0
      %755 = vmatpush1.xpose.msra.mxu0 0.0
      %756 = vmatprep.subr.mxu0 0.0
      %757 = vmatpush1.xpose.msra.mxu0 0.0
      %758 = vmatprep.subr.mxu0 0.0
      %759 = vmatpush1.xpose.msra.mxu0 0.0
      %760 = vmatprep.subr.mxu0 0.0
      %761 = vmatpush1.xpose.msra.mxu0 0.0
      %762 = vmatprep.subr.mxu0 0.0
      %763 = vmatpush1.xpose.msra.mxu0 0.0
      %764 = vmatprep.subr.mxu0 0.0
      %765 = vmatpush1.xpose.msra.mxu0 0.0
      %766 = vmatprep.subr.mxu0 0.0
      %767 = vmatpush1.xpose.msra.mxu0 0.0
      %768 = vmatprep.subr.mxu0 0.0
      %769 = vmatpush1.xpose.msra.mxu0 0.0
      %770 = vmatprep.subr.mxu0 0.0
      %771 = vmatpush1.xpose.msra.mxu0 0.0
      %772 = vmatprep.subr.mxu0 0.0
      %773 = vmatpush1.xpose.msra.mxu0 0.0
      %774 = vmatprep.subr.mxu0 0.0
      %775 = vmatpush1.xpose.msra.mxu0 0.0
      %776 = vmatprep.subr.mxu0 0.0
      %777 = vmatpush1.xpose.msra.mxu0 0.0
      %778 = vmatprep.mubr.f32.mxu0 0.0
      %779 = vmatmul.mubr.f32.gmra.mrb[0].mxu0 %v710
      %v780 = vpop.f32.mrb[0].mxu0
      %v781 = vadd.f32 %v530, %v780
      %v782 = vpop.f32.mrb[0].mxu0
      %783 = vdwg.mxu0
      %v784 = vsel %vm544, %v781, -inf
      %785 = vmax.xlane.f32.xlu0 %v784
      %v786 = vpop.xlane.xlu0 %785
      %v787 = vsub.f32 %v781, %v786
      %v788 = vmul.f32 %v787, 1.442695
      %v789 = vpow.pop %v788
      %v790 = vsel %vm544, %v789, 0.0
      %791 = vadd.xlane.f32.xlu0 %v790
      %v792 = vpop.xlane.xlu0 %791
      %v793 = vrcp.pop %v792
      %v794 = vmul.f32 %v789, %v793
      %795 = vrot.lane.b32.xlu0 %v521, 56
      %v796 = vpop.permute.xlu0 %795
      %v799 = vsel %vm544, %v794, 0
      %801 = vmatprep.subr.mxu0 0.0
      %802 = vmatpush1.msra.mxu0 %v796
      %803 = vmatprep.subr.mxu0 0.0
      %804 = vmatpush1.msra.mxu0 0.0
      %805 = vmatprep.subr.mxu0 0.0
      %806 = vmatpush1.msra.mxu0 0.0
      %807 = vmatprep.subr.mxu0 0.0
      %808 = vmatpush1.msra.mxu0 0.0
      %809 = vmatprep.subr.mxu0 0.0
      %810 = vmatpush1.msra.mxu0 0.0
      %811 = vmatprep.subr.mxu0 0.0
      %812 = vmatpush1.msra.mxu0 0.0
      %813 = vmatprep.subr.mxu0 0.0
      %814 = vmatpush1.msra.mxu0 0.0
      %815 = vmatprep.subr.mxu0 0.0
      %816 = vmatpush1.msra.mxu0 0.0
      %817 = vmatprep.subr.mxu0 0.0
      %818 = vmatpush1.msra.mxu0 0.0
      %819 = vmatprep.subr.mxu0 0.0
      %820 = vmatpush1.msra.mxu0 0.0
      %821 = vmatprep.subr.mxu0 0.0
      %822 = vmatpush1.msra.mxu0 0.0
      %823 = vmatprep.subr.mxu0 0.0
      %824 = vmatpush1.msra.mxu0 0.0
      %825 = vmatprep.subr.mxu0 0.0
      %826 = vmatpush1.msra.mxu0 0.0
      %827 = vmatprep.subr.mxu0 0.0
      %828 = vmatpush1.msra.mxu0 0.0
      %829 = vmatprep.subr.mxu0 0.0
      %830 = vmatpush1.msra.mxu0 0.0
      %831 = vmatprep.subr.mxu0 0.0
      %832 = vmatpush1.msra.mxu0 0.0
      %833 = vmatprep.subr.mxu0 0.0
      %834 = vmatpush1.msra.mxu0 0.0
      %835 = vmatprep.subr.mxu0 0.0
      %836 = vmatpush1.msra.mxu0 0.0
      %837 = vmatprep.subr.mxu0 0.0
      %838 = vmatpush1.msra.mxu0 0.0
      %839 = vmatprep.subr.mxu0 0.0
      %840 = vmatpush1.msra.mxu0 0.0
      %841 = vmatprep.subr.mxu0 0.0
      %842 = vmatpush1.msra.mxu0 0.0
      %843 = vmatprep.subr.mxu0 0.0
      %844 = vmatpush1.msra.mxu0 0.0
      %845 = vmatprep.subr.mxu0 0.0
      %846 = vmatpush1.msra.mxu0 0.0
      %847 = vmatprep.subr.mxu0 0.0
      %848 = vmatpush1.msra.mxu0 0.0
      %849 = vmatprep.subr.mxu0 0.0
      %850 = vmatpush1.msra.mxu0 0.0
      %851 = vmatprep.subr.mxu0 0.0
      %852 = vmatpush1.msra.mxu0 0.0
      %853 = vmatprep.subr.mxu0 0.0
      %854 = vmatpush1.msra.mxu0 0.0
      %855 = vmatprep.subr.mxu0 0.0
      %856 = vmatpush1.msra.mxu0 0.0
      %857 = vmatprep.subr.mxu0 0.0
      %858 = vmatpush1.msra.mxu0 0.0
      %859 = vmatprep.subr.mxu0 0.0
      %860 = vmatpush1.msra.mxu0 0.0
      %861 = vmatprep.subr.mxu0 0.0
      %862 = vmatpush1.msra.mxu0 0.0
      %863 = vmatprep.subr.mxu0 0.0
      %864 = vmatpush1.msra.mxu0 0.0
      %865 = vmatprep.mubr.f32.mxu0 0.0
      %866 = vmatmul.mubr.f32.gmra.mrb[0].mxu0 %v799
      %v867 = vpop.f32.mrb[0].mxu0
      %v868 = vadd.f32 0.0, %v867
      %v869 = vpop.f32.mrb[0].mxu0
      %870 = vdwg.mxu0
      %v872 = vsel %vm544, %v868, 0
      %874 = vmatprep.subr.mxu0 0.0
      %875 = vmatpush1.msra.mxu0 %v538
      %876 = vmatprep.subr.mxu0 0.0
      %877 = vmatpush1.msra.mxu0 0.0
      %878 = vmatprep.subr.mxu0 0.0
      %879 = vmatpush1.msra.mxu0 0.0
      %880 = vmatprep.subr.mxu0 0.0
      %881 = vmatpush1.msra.mxu0 0.0
      %882 = vmatprep.subr.mxu0 0.0
      %883 = vmatpush1.msra.mxu0 0.0
      %884 = vmatprep.subr.mxu0 0.0
      %885 = vmatpush1.msra.mxu0 0.0
      %886 = vmatprep.subr.mxu0 0.0
      %887 = vmatpush1.msra.mxu0 0.0
      %888 = vmatprep.subr.mxu0 0.0
      %889 = vmatpush1.msra.mxu0 0.0
      %890 = vmatprep.subr.mxu0 0.0
      %891 = vmatpush1.msra.mxu0 0.0
      %892 = vmatprep.subr.mxu0 0.0
      %893 = vmatpush1.msra.mxu0 0.0
      %894 = vmatprep.subr.mxu0 0.0
      %895 = vmatpush1.msra.mxu0 0.0
      %896 = vmatprep.subr.mxu0 0.0
      %897 = vmatpush1.msra.mxu0 0.0
      %898 = vmatprep.subr.mxu0 0.0
      %899 = vmatpush1.msra.mxu0 0.0
      %900 = vmatprep.subr.mxu0 0.0
      %901 = vmatpush1.msra.mxu0 0.0
      %902 = vmatprep.subr.mxu0 0.0
      %903 = vmatpush1.msra.mxu0 0.0
      %904 = vmatprep.subr.mxu0 0.0
      %905 = vmatpush1.msra.mxu0 0.0
      %906 = vmatprep.subr.mxu0 0.0
      %907 = vmatpush1.msra.mxu0 0.0
      %908 = vmatprep.subr.mxu0 0.0
      %909 = vmatpush1.msra.mxu0 0.0
      %910 = vmatprep.subr.mxu0 0.0
      %911 = vmatpush1.msra.mxu0 0.0
      %912 = vmatprep.subr.mxu0 0.0
      %913 = vmatpush1.msra.mxu0 0.0
      %914 = vmatprep.subr.mxu0 0.0
      %915 = vmatpush1.msra.mxu0 0.0
      %916 = vmatprep.subr.mxu0 0.0
      %917 = vmatpush1.msra.mxu0 0.0
      %918 = vmatprep.subr.mxu0 0.0
      %919 = vmatpush1.msra.mxu0 0.0
      %920 = vmatprep.subr.mxu0 0.0
      %921 = vmatpush1.msra.mxu0 0.0
      %922 = vmatprep.subr.mxu0 0.0
      %923 = vmatpush1.msra.mxu0 0.0
      %924 = vmatprep.subr.mxu0 0.0
      %925 = vmatpush1.msra.mxu0 0.0
      %926 = vmatprep.subr.mxu0 0.0
      %927 = vmatpush1.msra.mxu0 0.0
      %928 = vmatprep.subr.mxu0 0.0
      %929 = vmatpush1.msra.mxu0 0.0
      %930 = vmatprep.subr.mxu0 0.0
      %931 = vmatpush1.msra.mxu0 0.0
      %932 = vmatprep.subr.mxu0 0.0
      %933 = vmatpush1.msra.mxu0 0.0
      %934 = vmatprep.subr.mxu0 0.0
      %935 = vmatpush1.msra.mxu0 0.0
      %936 = vmatprep.subr.mxu0 0.0
      %937 = vmatpush1.msra.mxu0 0.0
      %938 = vmatprep.mubr.f32.mxu0 0.0
      %939 = vmatmul.mubr.f32.gmra.mrb[0].mxu0 %v872
      %v940 = vpop.f32.mrb[0].mxu0
      %v941 = vadd.f32 0.0, %v940
      %v942 = vpop.f32.mrb[0].mxu0
      %943 = vdwg.mxu0
      %v945 = vsel %vm544, %v703, 0
      %947 = vmatprep.subr.mxu0 0.0
      %948 = vmatpush1.msra.mxu0 %v537
      %949 = vmatprep.subr.mxu0 0.0
      %950 = vmatpush1.msra.mxu0 0.0
      %951 = vmatprep.subr.mxu0 0.0
      %952 = vmatpush1.msra.mxu0 0.0
      %953 = vmatprep.subr.mxu0 0.0
      %954 = vmatpush1.msra.mxu0 0.0
      %955 = vmatprep.subr.mxu0 0.0
      %956 = vmatpush1.msra.mxu0 0.0
      %957 = vmatprep.subr.mxu0 0.0
      %958 = vmatpush1.msra.mxu0 0.0
      %959 = vmatprep.subr.mxu0 0.0
      %960 = vmatpush1.msra.mxu0 0.0
      %961 = vmatprep.subr.mxu0 0.0
      %962 = vmatpush1.msra.mxu0 0.0
      %963 = vmatprep.subr.mxu0 0.0
      %964 = vmatpush1.msra.mxu0 0.0
      %965 = vmatprep.subr.mxu0 0.0
      %966 = vmatpush1.msra.mxu0 0.0
      %967 = vmatprep.subr.mxu0 0.0
      %968 = vmatpush1.msra.mxu0 0.0
      %969 = vmatprep.subr.mxu0 0.0
      %970 = vmatpush1.msra.mxu0 0.0
      %971 = vmatprep.subr.mxu0 0.0
      %972 = vmatpush1.msra.mxu0 0.0
      %973 = vmatprep.subr.mxu0 0.0
      %974 = vmatpush1.msra.mxu0 0.0
      %975 = vmatprep.subr.mxu0 0.0
      %976 = vmatpush1.msra.mxu0 0.0
      %977 = vmatprep.subr.mxu0 0.0
      %978 = vmatpush1.msra.mxu0 0.0
      %979 = vmatprep.subr.mxu0 0.0
      %980 = vmatpush1.msra.mxu0 0.0
      %981 = vmatprep.subr.mxu0 0.0
      %982 = vmatpush1.msra.mxu0 0.0
      %983 = vmatprep.subr.mxu0 0.0
      %984 = vmatpush1.msra.mxu0 0.0
      %985 = vmatprep.subr.mxu0 0.0
      %986 = vmatpush1.msra.mxu0 0.0
      %987 = vmatprep.subr.mxu0 0.0
      %988 = vmatpush1.msra.mxu0 0.0
      %989 = vmatprep.subr.mxu0 0.0
      %990 = vmatpush1.msra.mxu0 0.0
      %991 = vmatprep.subr.mxu0 0.0
      %992 = vmatpush1.msra.mxu0 0.0
      %993 = vmatprep.subr.mxu0 0.0
      %994 = vmatpush1.msra.mxu0 0.0
      %995 = vmatprep.subr.mxu0 0.0
      %996 = vmatpush1.msra.mxu0 0.0
      %997 = vmatprep.subr.mxu0 0.0
      %998 = vmatpush1.msra.mxu0 0.0
      %999 = vmatprep.subr.mxu0 0.0
      %1000 = vmatpush1.msra.mxu0 0.0
      %1001 = vmatprep.subr.mxu0 0.0
      %1002 = vmatpush1.msra.mxu0 0.0
      %1003 = vmatprep.subr.mxu0 0.0
      %1004 = vmatpush1.msra.mxu0 0.0
      %1005 = vmatprep.subr.mxu0 0.0
      %1006 = vmatpush1.msra.mxu0 0.0
      %1007 = vmatprep.subr.mxu0 0.0
      %1008 = vmatpush1.msra.mxu0 0.0
      %1009 = vmatprep.subr.mxu0 0.0
      %1010 = vmatpush1.msra.mxu0 0.0
      %1011 = vmatprep.mubr.f32.mxu0 0.0
      %1012 = vmatmul.mubr.f32.gmra.mrb[0].mxu0 %v945
      %v1013 = vpop.f32.mrb[0].mxu0
      %v1014 = vadd.f32 %v941, %v1013
      %v1015 = vpop.f32.mrb[0].mxu0
      %1016 = vdwg.mxu0
      %1017 = vrot.lane.b32.xlu0 %v521, 112
      %v1018 = vpop.permute.xlu0 %1017
      %1019 = vrot.lane.b32.xlu0 %v521, 80
      %v1020 = vpop.permute.xlu0 %1019
      %v1021 = vsel %vm544, %v1018, 0
      %v1023 = vsel %vm544, %v1020, 0
      %1025 = vmatprep.subr.mxu0 0.0
      %1026 = vmatpush1.xpose.msra.mxu0 %v1023
      %1027 = vmatprep.subr.mxu0 0.0
      %1028 = vmatpush1.xpose.msra.mxu0 0.0
      %1029 = vmatprep.subr.mxu0 0.0
      %1030 = vmatpush1.xpose.msra.mxu0 0.0
      %1031 = vmatprep.subr.mxu0 0.0
      %1032 = vmatpush1.xpose.msra.mxu0 0.0
      %1033 = vmatprep.subr.mxu0 0.0
      %1034 = vmatpush1.xpose.msra.mxu0 0.0
      %1035 = vmatprep.subr.mxu0 0.0
      %1036 = vmatpush1.xpose.msra.mxu0 0.0
      %1037 = vmatprep.subr.mxu0 0.0
      %1038 = vmatpush1.xpose.msra.mxu0 0.0
      %1039 = vmatprep.subr.mxu0 0.0
      %1040 = vmatpush1.xpose.msra.mxu0 0.0
      %1041 = vmatprep.subr.mxu0 0.0
      %1042 = vmatpush1.xpose.msra.mxu0 0.0
      %1043 = vmatprep.subr.mxu0 0.0
      %1044 = vmatpush1.xpose.msra.mxu0 0.0
      %1045 = vmatprep.subr.mxu0 0.0
      %1046 = vmatpush1.xpose.msra.mxu0 0.0
      %1047 = vmatprep.subr.mxu0 0.0
      %1048 = vmatpush1.xpose.msra.mxu0 0.0
      %1049 = vmatprep.subr.mxu0 0.0
      %1050 = vmatpush1.xpose.msra.mxu0 0.0
      %1051 = vmatprep.subr.mxu0 0.0
      %1052 = vmatpush1.xpose.msra.mxu0 0.0
      %1053 = vmatprep.subr.mxu0 0.0
      %1054 = vmatpush1.xpose.msra.mxu0 0.0
      %1055 = vmatprep.subr.mxu0 0.0
      %1056 = vmatpush1.xpose.msra.mxu0 0.0
      %1057 = vmatprep.subr.mxu0 0.0
      %1058 = vmatpush1.xpose.msra.mxu0 0.0
      %1059 = vmatprep.subr.mxu0 0.0
      %1060 = vmatpush1.xpose.msra.mxu0 0.0
      %1061 = vmatprep.subr.mxu0 0.0
      %1062 = vmatpush1.xpose.msra.mxu0 0.0
      %1063 = vmatprep.subr.mxu0 0.0
      %1064 = vmatpush1.xpose.msra.mxu0 0.0
      %1065 = vmatprep.subr.mxu0 0.0
      %1066 = vmatpush1.xpose.msra.mxu0 0.0
      %1067 = vmatprep.subr.mxu0 0.0
      %1068 = vmatpush1.xpose.msra.mxu0 0.0
      %1069 = vmatprep.subr.mxu0 0.0
      %1070 = vmatpush1.xpose.msra.mxu0 0.0
      %1071 = vmatprep.subr.mxu0 0.0
      %1072 = vmatpush1.xpose.msra.mxu0 0.0
      %1073 = vmatprep.subr.mxu0 0.0
      %1074 = vmatpush1.xpose.msra.mxu0 0.0
      %1075 = vmatprep.subr.mxu0 0.0
      %1076 = vmatpush1.xpose.msra.mxu0 0.0
      %1077 = vmatprep.subr.mxu0 0.0
      %1078 = vmatpush1.xpose.msra.mxu0 0.0
      %1079 = vmatprep.subr.mxu0 0.0
      %1080 = vmatpush1.xpose.msra.mxu0 0.0
      %1081 = vmatprep.subr.mxu0 0.0
      %1082 = vmatpush1.xpose.msra.mxu0 0.0
      %1083 = vmatprep.subr.mxu0 0.0
      %1084 = vmatpush1.xpose.msra.mxu0 0.0
      %1085 = vmatprep.subr.mxu0 0.0
      %1086 = vmatpush1.xpose.msra.mxu0 0.0
      %1087 = vmatprep.subr.mxu0 0.0
      %1088 = vmatpush1.xpose.msra.mxu0 0.0
      %1089 = vmatprep.mubr.f32.mxu0 0.0
      %1090 = vmatmul.mubr.f32.gmra.mrb[0].mxu0 %v1021
      %v1091 = vpop.f32.mrb[0].mxu0
      %v1092 = vadd.f32 %v531, %v1091
      %v1093 = vpop.f32.mrb[0].mxu0
      %1094 = vdwg.mxu0
      %v1095 = vsel %vm544, %v1092, -inf
      %1096 = vmax.xlane.f32.xlu0 %v1095
      %v1097 = vpop.xlane.xlu0 %1096
      %v1098 = vsub.f32 %v1092, %v1097
      %v1099 = vmul.f32 %v1098, 1.442695
      %v1100 = vpow.pop %v1099
      %v1101 = vsel %vm544, %v1100, 0.0
      %1102 = vadd.xlane.f32.xlu0 %v1101
      %v1103 = vpop.xlane.xlu0 %1102
      %v1104 = vrcp.pop %v1103
      %v1105 = vmul.f32 %v1100, %v1104
      %1106 = vrot.lane.b32.xlu0 %v521, 48
      %v1107 = vpop.permute.xlu0 %1106
      %v1110 = vsel %vm544, %v1105, 0
      %1112 = vmatprep.subr.mxu0 0.0
      %1113 = vmatpush1.msra.mxu0 %v1107
      %1114 = vmatprep.subr.mxu0 0.0
      %1115 = vmatpush1.msra.mxu0 0.0
      %1116 = vmatprep.subr.mxu0 0.0
      %1117 = vmatpush1.msra.mxu0 0.0
      %1118 = vmatprep.subr.mxu0 0.0
      %1119 = vmatpush1.msra.mxu0 0.0
      %1120 = vmatprep.subr.mxu0 0.0
      %1121 = vmatpush1.msra.mxu0 0.0
      %1122 = vmatprep.subr.mxu0 0.0
      %1123 = vmatpush1.msra.mxu0 0.0
      %1124 = vmatprep.subr.mxu0 0.0
      %1125 = vmatpush1.msra.mxu0 0.0
      %1126 = vmatprep.subr.mxu0 0.0
      %1127 = vmatpush1.msra.mxu0 0.0
      %1128 = vmatprep.subr.mxu0 0.0
      %1129 = vmatpush1.msra.mxu0 0.0
      %1130 = vmatprep.subr.mxu0 0.0
      %1131 = vmatpush1.msra.mxu0 0.0
      %1132 = vmatprep.subr.mxu0 0.0
      %1133 = vmatpush1.msra.mxu0 0.0
      %1134 = vmatprep.subr.mxu0 0.0
      %1135 = vmatpush1.msra.mxu0 0.0
      %1136 = vmatprep.subr.mxu0 0.0
      %1137 = vmatpush1.msra.mxu0 0.0
      %1138 = vmatprep.subr.mxu0 0.0
      %1139 = vmatpush1.msra.mxu0 0.0
      %1140 = vmatprep.subr.mxu0 0.0
      %1141 = vmatpush1.msra.mxu0 0.0
      %1142 = vmatprep.subr.mxu0 0.0
      %1143 = vmatpush1.msra.mxu0 0.0
      %1144 = vmatprep.subr.mxu0 0.0
      %1145 = vmatpush1.msra.mxu0 0.0
      %1146 = vmatprep.subr.mxu0 0.0
      %1147 = vmatpush1.msra.mxu0 0.0
      %1148 = vmatprep.subr.mxu0 0.0
      %1149 = vmatpush1.msra.mxu0 0.0
      %1150 = vmatprep.subr.mxu0 0.0
      %1151 = vmatpush1.msra.mxu0 0.0
      %1152 = vmatprep.subr.mxu0 0.0
      %1153 = vmatpush1.msra.mxu0 0.0
      %1154 = vmatprep.subr.mxu0 0.0
      %1155 = vmatpush1.msra.mxu0 0.0
      %1156 = vmatprep.subr.mxu0 0.0
      %1157 = vmatpush1.msra.mxu0 0.0
      %1158 = vmatprep.subr.mxu0 0.0
      %1159 = vmatpush1.msra.mxu0 0.0
      %1160 = vmatprep.subr.mxu0 0.0
      %1161 = vmatpush1.msra.mxu0 0.0
      %1162 = vmatprep.subr.mxu0 0.0
      %1163 = vmatpush1.msra.mxu0 0.0
      %1164 = vmatprep.subr.mxu0 0.0
      %1165 = vmatpush1.msra.mxu0 0.0
      %1166 = vmatprep.subr.mxu0 0.0
      %1167 = vmatpush1.msra.mxu0 0.0
      %1168 = vmatprep.subr.mxu0 0.0
      %1169 = vmatpush1.msra.mxu0 0.0
      %1170 = vmatprep.subr.mxu0 0.0
      %1171 = vmatpush1.msra.mxu0 0.0
      %1172 = vmatprep.subr.mxu0 0.0
      %1173 = vmatpush1.msra.mxu0 0.0
      %1174 = vmatprep.subr.mxu0 0.0
      %1175 = vmatpush1.msra.mxu0 0.0
      %1176 = vmatprep.mubr.f32.mxu0 0.0
      %1177 = vmatmul.mubr.f32.gmra.mrb[0].mxu0 %v1110
      %v1178 = vpop.f32.mrb[0].mxu0
      %v1179 = vadd.f32 0.0, %v1178
      %v1180 = vpop.f32.mrb[0].mxu0
      %1181 = vdwg.mxu0
      %v1183 = vsel %vm544, %v1179, 0
      %1185 = vmatprep.subr.mxu0 0.0
      %1186 = vmatpush1.msra.mxu0 %v539
      %1187 = vmatprep.subr.mxu0 0.0
      %1188 = vmatpush1.msra.mxu0 0.0
      %1189 = vmatprep.subr.mxu0 0.0
      %1190 = vmatpush1.msra.mxu0 0.0
      %1191 = vmatprep.subr.mxu0 0.0
      %1192 = vmatpush1.msra.mxu0 0.0
      %1193 = vmatprep.subr.mxu0 0.0
      %1194 = vmatpush1.msra.mxu0 0.0
      %1195 = vmatprep.subr.mxu0 0.0
      %1196 = vmatpush1.msra.mxu0 0.0
      %1197 = vmatprep.subr.mxu0 0.0
      %1198 = vmatpush1.msra.mxu0 0.0
      %1199 = vmatprep.subr.mxu0 0.0
      %1200 = vmatpush1.msra.mxu0 0.0
      %1201 = vmatprep.subr.mxu0 0.0
      %1202 = vmatpush1.msra.mxu0 0.0
      %1203 = vmatprep.subr.mxu0 0.0
      %1204 = vmatpush1.msra.mxu0 0.0
      %1205 = vmatprep.subr.mxu0 0.0
      %1206 = vmatpush1.msra.mxu0 0.0
      %1207 = vmatprep.subr.mxu0 0.0
      %1208 = vmatpush1.msra.mxu0 0.0
      %1209 = vmatprep.subr.mxu0 0.0
      %1210 = vmatpush1.msra.mxu0 0.0
      %1211 = vmatprep.subr.mxu0 0.0
      %1212 = vmatpush1.msra.mxu0 0.0
      %1213 = vmatprep.subr.mxu0 0.0
      %1214 = vmatpush1.msra.mxu0 0.0
      %1215 = vmatprep.subr.mxu0 0.0
      %1216 = vmatpush1.msra.mxu0 0.0
      %1217 = vmatprep.subr.mxu0 0.0
      %1218 = vmatpush1.msra.mxu0 0.0
      %1219 = vmatprep.subr.mxu0 0.0
      %1220 = vmatpush1.msra.mxu0 0.0
      %1221 = vmatprep.subr.mxu0 0.0
      %1222 = vmatpush1.msra.mxu0 0.0
      %1223 = vmatprep.subr.mxu0 0.0
      %1224 = vmatpush1.msra.mxu0 0.0
      %1225 = vmatprep.subr.mxu0 0.0
      %1226 = vmatpush1.msra.mxu0 0.0
      %1227 = vmatprep.subr.mxu0 0.0
      %1228 = vmatpush1.msra.mxu0 0.0
      %1229 = vmatprep.subr.mxu0 0.0
      %1230 = vmatpush1.msra.mxu0 0.0
      %1231 = vmatprep.subr.mxu0 0.0
      %1232 = vmatpush1.msra.mxu0 0.0
      %1233 = vmatprep.subr.mxu0 0.0
      %1234 = vmatpush1.msra.mxu0 0.0
      %1235 = vmatprep.subr.mxu0 0.0
      %1236 = vmatpush1.msra.mxu0 0.0
      %1237 = vmatprep.subr.mxu0 0.0
      %1238 = vmatpush1.msra.mxu0 0.0
      %1239 = vmatprep.subr.mxu0 0.0
      %1240 = vmatpush1.msra.mxu0 0.0
      %1241 = vmatprep.subr.mxu0 0.0
      %1242 = vmatpush1.msra.mxu0 0.0
      %1243 = vmatprep.subr.mxu0 0.0
      %1244 = vmatpush1.msra.mxu0 0.0
      %1245 = vmatprep.subr.mxu0 0.0
      %1246 = vmatpush1.msra.mxu0 0.0
      %1247 = vmatprep.subr.mxu0 0.0
      %1248 = vmatpush1.msra.mxu0 0.0
      %1249 = vmatprep.mubr.f32.mxu0 0.0
      %1250 = vmatmul.mubr.f32.gmra.mrb[0].mxu0 %v1183
      %v1251 = vpop.f32.mrb[0].mxu0
      %v1252 = vadd.f32 0.0, %v1251
      %v1253 = vpop.f32.mrb[0].mxu0
      %1254 = vdwg.mxu0
      %v1255 = vadd.f32 %v1014, %v1252
      %1256 = vrot.lane.b32.xlu0 %v521, 104
      %v1257 = vpop.permute.xlu0 %1256
      %1258 = vrot.lane.b32.xlu0 %v521, 72
      %v1259 = vpop.permute.xlu0 %1258
      %v1260 = vsel %vm544, %v1257, 0
      %v1262 = vsel %vm544, %v1259, 0
      %1264 = vmatprep.subr.mxu0 0.0
      %1265 = vmatpush1.xpose.msra.mxu0 %v1262
      %1266 = vmatprep.subr.mxu0 0.0
      %1267 = vmatpush1.xpose.msra.mxu0 0.0
      %1268 = vmatprep.subr.mxu0 0.0
      %1269 = vmatpush1.xpose.msra.mxu0 0.0
      %1270 = vmatprep.subr.mxu0 0.0
      %1271 = vmatpush1.xpose.msra.mxu0 0.0
      %1272 = vmatprep.subr.mxu0 0.0
      %1273 = vmatpush1.xpose.msra.mxu0 0.0
      %1274 = vmatprep.subr.mxu0 0.0
      %1275 = vmatpush1.xpose.msra.mxu0 0.0
      %1276 = vmatprep.subr.mxu0 0.0
      %1277 = vmatpush1.xpose.msra.mxu0 0.0
      %1278 = vmatprep.subr.mxu0 0.0
      %1279 = vmatpush1.xpose.msra.mxu0 0.0
      %1280 = vmatprep.subr.mxu0 0.0
      %1281 = vmatpush1.xpose.msra.mxu0 0.0
      %1282 = vmatprep.subr.mxu0 0.0
      %1283 = vmatpush1.xpose.msra.mxu0 0.0
      %1284 = vmatprep.subr.mxu0 0.0
      %1285 = vmatpush1.xpose.msra.mxu0 0.0
      %1286 = vmatprep.subr.mxu0 0.0
      %1287 = vmatpush1.xpose.msra.mxu0 0.0
      %1288 = vmatprep.subr.mxu0 0.0
      %1289 = vmatpush1.xpose.msra.mxu0 0.0
      %1290 = vmatprep.subr.mxu0 0.0
      %1291 = vmatpush1.xpose.msra.mxu0 0.0
      %1292 = vmatprep.subr.mxu0 0.0
      %1293 = vmatpush1.xpose.msra.mxu0 0.0
      %1294 = vmatprep.subr.mxu0 0.0
      %1295 = vmatpush1.xpose.msra.mxu0 0.0
      %1296 = vmatprep.subr.mxu0 0.0
      %1297 = vmatpush1.xpose.msra.mxu0 0.0
      %1298 = vmatprep.subr.mxu0 0.0
      %1299 = vmatpush1.xpose.msra.mxu0 0.0
      %1300 = vmatprep.subr.mxu0 0.0
      %1301 = vmatpush1.xpose.msra.mxu0 0.0
      %1302 = vmatprep.subr.mxu0 0.0
      %1303 = vmatpush1.xpose.msra.mxu0 0.0
      %1304 = vmatprep.subr.mxu0 0.0
      %1305 = vmatpush1.xpose.msra.mxu0 0.0
      %1306 = vmatprep.subr.mxu0 0.0
      %1307 = vmatpush1.xpose.msra.mxu0 0.0
      %1308 = vmatprep.subr.mxu0 0.0
      %1309 = vmatpush1.xpose.msra.mxu0 0.0
      %1310 = vmatprep.subr.mxu0 0.0
      %1311 = vmatpush1.xpose.msra.mxu0 0.0
      %1312 = vmatprep.subr.mxu0 0.0
      %1313 = vmatpush1.xpose.msra.mxu0 0.0
      %1314 = vmatprep.subr.mxu0 0.0
      %1315 = vmatpush1.xpose.msra.mxu0 0.0
      %1316 = vmatprep.subr.mxu0 0.0
      %1317 = vmatpush1.xpose.msra.mxu0 0.0
      %1318 = vmatprep.subr.mxu0 0.0
      %1319 = vmatpush1.xpose.msra.mxu0 0.0
      %1320 = vmatprep.subr.mxu0 0.0
      %1321 = vmatpush1.xpose.msra.mxu0 0.0
      %1322 = vmatprep.subr.mxu0 0.0
      %1323 = vmatpush1.xpose.msra.mxu0 0.0
      %1324 = vmatprep.subr.mxu0 0.0
      %1325 = vmatpush1.xpose.msra.mxu0 0.0
      %1326 = vmatprep.subr.mxu0 0.0
      %1327 = vmatpush1.xpose.msra.mxu0 0.0
      %1328 = vmatprep.mubr.f32.mxu0 0.0
      %1329 = vmatmul.mubr.f32.gmra.mrb[0].mxu0 %v1260
      %v1330 = vpop.f32.mrb[0].mxu0
      %v1331 = vadd.f32 %v532, %v1330
      %v1332 = vpop.f32.mrb[0].mxu0
      %1333 = vdwg.mxu0
      %v1334 = vsel %vm544, %v1331, -inf
      %1335 = vmax.xlane.f32.xlu0 %v1334
      %v1336 = vpop.xlane.xlu0 %1335
      %v1337 = vsub.f32 %v1331, %v1336
      %v1338 = vmul.f32 %v1337, 1.442695
      %v1339 = vpow.pop %v1338
      %v1340 = vsel %vm544, %v1339, 0.0
      %1341 = vadd.xlane.f32.xlu0 %v1340
      %v1342 = vpop.xlane.xlu0 %1341
      %v1343 = vrcp.pop %v1342
      %v1344 = vmul.f32 %v1339, %v1343
      %1345 = vrot.lane.b32.xlu0 %v521, 40
      %v1346 = vpop.permute.xlu0 %1345
      %v1349 = vsel %vm544, %v1344, 0
      %1351 = vmatprep.subr.mxu0 0.0
      %1352 = vmatpush1.msra.mxu0 %v1346
      %1353 = vmatprep.subr.mxu0 0.0
      %1354 = vmatpush1.msra.mxu0 0.0
      %1355 = vmatprep.subr.mxu0 0.0
      %1356 = vmatpush1.msra.mxu0 0.0
      %1357 = vmatprep.subr.mxu0 0.0
      %1358 = vmatpush1.msra.mxu0 0.0
      %1359 = vmatprep.subr.mxu0 0.0
      %1360 = vmatpush1.msra.mxu0 0.0
      %1361 = vmatprep.subr.mxu0 0.0
      %1362 = vmatpush1.msra.mxu0 0.0
      %1363 = vmatprep.subr.mxu0 0.0
      %1364 = vmatpush1.msra.mxu0 0.0
      %1365 = vmatprep.subr.mxu0 0.0
      %1366 = vmatpush1.msra.mxu0 0.0
      %1367 = vmatprep.subr.mxu0 0.0
      %1368 = vmatpush1.msra.mxu0 0.0
      %1369 = vmatprep.subr.mxu0 0.0
      %1370 = vmatpush1.msra.mxu0 0.0
      %1371 = vmatprep.subr.mxu0 0.0
      %1372 = vmatpush1.msra.mxu0 0.0
      %1373 = vmatprep.subr.mxu0 0.0
      %1374 = vmatpush1.msra.mxu0 0.0
      %1375 = vmatprep.subr.mxu0 0.0
      %1376 = vmatpush1.msra.mxu0 0.0
      %1377 = vmatprep.subr.mxu0 0.0
      %1378 = vmatpush1.msra.mxu0 0.0
      %1379 = vmatprep.subr.mxu0 0.0
      %1380 = vmatpush1.msra.mxu0 0.0
      %1381 = vmatprep.subr.mxu0 0.0
      %1382 = vmatpush1.msra.mxu0 0.0
      %1383 = vmatprep.subr.mxu0 0.0
      %1384 = vmatpush1.msra.mxu0 0.0
      %1385 = vmatprep.subr.mxu0 0.0
      %1386 = vmatpush1.msra.mxu0 0.0
      %1387 = vmatprep.subr.mxu0 0.0
      %1388 = vmatpush1.msra.mxu0 0.0
      %1389 = vmatprep.subr.mxu0 0.0
      %1390 = vmatpush1.msra.mxu0 0.0
      %1391 = vmatprep.subr.mxu0 0.0
      %1392 = vmatpush1.msra.mxu0 0.0
      %1393 = vmatprep.subr.mxu0 0.0
      %1394 = vmatpush1.msra.mxu0 0.0
      %1395 = vmatprep.subr.mxu0 0.0
      %1396 = vmatpush1.msra.mxu0 0.0
      %1397 = vmatprep.subr.mxu0 0.0
      %1398 = vmatpush1.msra.mxu0 0.0
      %1399 = vmatprep.subr.mxu0 0.0
      %1400 = vmatpush1.msra.mxu0 0.0
      %1401 = vmatprep.subr.mxu0 0.0
      %1402 = vmatpush1.msra.mxu0 0.0
      %1403 = vmatprep.subr.mxu0 0.0
      %1404 = vmatpush1.msra.mxu0 0.0
      %1405 = vmatprep.subr.mxu0 0.0
      %1406 = vmatpush1.msra.mxu0 0.0
      %1407 = vmatprep.subr.mxu0 0.0
      %1408 = vmatpush1.msra.mxu0 0.0
      %1409 = vmatprep.subr.mxu0 0.0
      %1410 = vmatpush1.msra.mxu0 0.0
      %1411 = vmatprep.subr.mxu0 0.0
      %1412 = vmatpush1.msra.mxu0 0.0
      %1413 = vmatprep.subr.mxu0 0.0
      %1414 = vmatpush1.msra.mxu0 0.0
      %1415 = vmatprep.mubr.f32.mxu0 0.0
      %1416 = vmatmul.mubr.f32.gmra.mrb[0].mxu0 %v1349
      %v1417 = vpop.f32.mrb[0].mxu0
      %v1418 = vadd.f32 0.0, %v1417
      %v1419 = vpop.f32.mrb[0].mxu0
      %1420 = vdwg.mxu0
      %v1422 = vsel %vm544, %v1418, 0
      %1424 = vmatprep.subr.mxu0 0.0
      %1425 = vmatpush1.msra.mxu0 %v540
      %1426 = vmatprep.subr.mxu0 0.0
      %1427 = vmatpush1.msra.mxu0 0.0
      %1428 = vmatprep.subr.mxu0 0.0
      %1429 = vmatpush1.msra.mxu0 0.0
      %1430 = vmatprep.subr.mxu0 0.0
      %1431 = vmatpush1.msra.mxu0 0.0
      %1432 = vmatprep.subr.mxu0 0.0
      %1433 = vmatpush1.msra.mxu0 0.0
      %1434 = vmatprep.subr.mxu0 0.0
      %1435 = vmatpush1.msra.mxu0 0.0
      %1436 = vmatprep.subr.mxu0 0.0
      %1437 = vmatpush1.msra.mxu0 0.0
      %1438 = vmatprep.subr.mxu0 0.0
      %1439 = vmatpush1.msra.mxu0 0.0
      %1440 = vmatprep.subr.mxu0 0.0
      %1441 = vmatpush1.msra.mxu0 0.0
      %1442 = vmatprep.subr.mxu0 0.0
      %1443 = vmatpush1.msra.mxu0 0.0
      %1444 = vmatprep.subr.mxu0 0.0
      %1445 = vmatpush1.msra.mxu0 0.0
      %1446 = vmatprep.subr.mxu0 0.0
      %1447 = vmatpush1.msra.mxu0 0.0
      %1448 = vmatprep.subr.mxu0 0.0
      %1449 = vmatpush1.msra.mxu0 0.0
      %1450 = vmatprep.subr.mxu0 0.0
      %1451 = vmatpush1.msra.mxu0 0.0
      %1452 = vmatprep.subr.mxu0 0.0
      %1453 = vmatpush1.msra.mxu0 0.0
      %1454 = vmatprep.subr.mxu0 0.0
      %1455 = vmatpush1.msra.mxu0 0.0
      %1456 = vmatprep.subr.mxu0 0.0
      %1457 = vmatpush1.msra.mxu0 0.0
      %1458 = vmatprep.subr.mxu0 0.0
      %1459 = vmatpush1.msra.mxu0 0.0
      %1460 = vmatprep.subr.mxu0 0.0
      %1461 = vmatpush1.msra.mxu0 0.0
      %1462 = vmatprep.subr.mxu0 0.0
      %1463 = vmatpush1.msra.mxu0 0.0
      %1464 = vmatprep.subr.mxu0 0.0
      %1465 = vmatpush1.msra.mxu0 0.0
      %1466 = vmatprep.subr.mxu0 0.0
      %1467 = vmatpush1.msra.mxu0 0.0
      %1468 = vmatprep.subr.mxu0 0.0
      %1469 = vmatpush1.msra.mxu0 0.0
      %1470 = vmatprep.subr.mxu0 0.0
      %1471 = vmatpush1.msra.mxu0 0.0
      %1472 = vmatprep.subr.mxu0 0.0
      %1473 = vmatpush1.msra.mxu0 0.0
      %1474 = vmatprep.subr.mxu0 0.0
      %1475 = vmatpush1.msra.mxu0 0.0
      %1476 = vmatprep.subr.mxu0 0.0
      %1477 = vmatpush1.msra.mxu0 0.0
      %1478 = vmatprep.subr.mxu0 0.0
      %1479 = vmatpush1.msra.mxu0 0.0
      %1480 = vmatprep.subr.mxu0 0.0
      %1481 = vmatpush1.msra.mxu0 0.0
      %1482 = vmatprep.subr.mxu0 0.0
      %1483 = vmatpush1.msra.mxu0 0.0
      %1484 = vmatprep.subr.mxu0 0.0
      %1485 = vmatpush1.msra.mxu0 0.0
      %1486 = vmatprep.subr.mxu0 0.0
      %1487 = vmatpush1.msra.mxu0 0.0
      %1488 = vmatprep.mubr.f32.mxu0 0.0
      %1489 = vmatmul.mubr.f32.gmra.mrb[0].mxu0 %v1422
      %v1490 = vpop.f32.mrb[0].mxu0
      %v1491 = vadd.f32 0.0, %v1490
      %v1492 = vpop.f32.mrb[0].mxu0
      %1493 = vdwg.mxu0
      %v1494 = vadd.f32 %v1255, %v1491
      %1495 = vst.msk [vmem:[#allocation3] sm:$0xff] %vm420, %v1494
      %1497 = vrot.lane.b32.xlu0 %v526, 96
      %v1498 = vpop.permute.xlu0 %1497
      %v1499 = vsel %vm544, %v526, 0
      %v1501 = vsel %vm544, %v1498, 0
      %1503 = vmatprep.subr.mxu0 0.0
      %1504 = vmatpush1.xpose.msra.mxu0 %v1501
      %1505 = vmatprep.subr.mxu0 0.0
      %1506 = vmatpush1.xpose.msra.mxu0 0.0
      %1507 = vmatprep.subr.mxu0 0.0
      %1508 = vmatpush1.xpose.msra.mxu0 0.0
      %1509 = vmatprep.subr.mxu0 0.0
      %1510 = vmatpush1.xpose.msra.mxu0 0.0
      %1511 = vmatprep.subr.mxu0 0.0
      %1512 = vmatpush1.xpose.msra.mxu0 0.0
      %1513 = vmatprep.subr.mxu0 0.0
      %1514 = vmatpush1.xpose.msra.mxu0 0.0
      %1515 = vmatprep.subr.mxu0 0.0
      %1516 = vmatpush1.xpose.msra.mxu0 0.0
      %1517 = vmatprep.subr.mxu0 0.0
      %1518 = vmatpush1.xpose.msra.mxu0 0.0
      %1519 = vmatprep.subr.mxu0 0.0
      %1520 = vmatpush1.xpose.msra.mxu0 0.0
      %1521 = vmatprep.subr.mxu0 0.0
      %1522 = vmatpush1.xpose.msra.mxu0 0.0
      %1523 = vmatprep.subr.mxu0 0.0
      %1524 = vmatpush1.xpose.msra.mxu0 0.0
      %1525 = vmatprep.subr.mxu0 0.0
      %1526 = vmatpush1.xpose.msra.mxu0 0.0
      %1527 = vmatprep.subr.mxu0 0.0
      %1528 = vmatpush1.xpose.msra.mxu0 0.0
      %1529 = vmatprep.subr.mxu0 0.0
      %1530 = vmatpush1.xpose.msra.mxu0 0.0
      %1531 = vmatprep.subr.mxu0 0.0
      %1532 = vmatpush1.xpose.msra.mxu0 0.0
      %1533 = vmatprep.subr.mxu0 0.0
      %1534 = vmatpush1.xpose.msra.mxu0 0.0
      %1535 = vmatprep.subr.mxu0 0.0
      %1536 = vmatpush1.xpose.msra.mxu0 0.0
      %1537 = vmatprep.subr.mxu0 0.0
      %1538 = vmatpush1.xpose.msra.mxu0 0.0
      %1539 = vmatprep.subr.mxu0 0.0
      %1540 = vmatpush1.xpose.msra.mxu0 0.0
      %1541 = vmatprep.subr.mxu0 0.0
      %1542 = vmatpush1.xpose.msra.mxu0 0.0
      %1543 = vmatprep.subr.mxu0 0.0
      %1544 = vmatpush1.xpose.msra.mxu0 0.0
      %1545 = vmatprep.subr.mxu0 0.0
      %1546 = vmatpush1.xpose.msra.mxu0 0.0
      %1547 = vmatprep.subr.mxu0 0.0
      %1548 = vmatpush1.xpose.msra.mxu0 0.0
      %1549 = vmatprep.subr.mxu0 0.0
      %1550 = vmatpush1.xpose.msra.mxu0 0.0
      %1551 = vmatprep.subr.mxu0 0.0
      %1552 = vmatpush1.xpose.msra.mxu0 0.0
      %1553 = vmatprep.subr.mxu0 0.0
      %1554 = vmatpush1.xpose.msra.mxu0 0.0
      %1555 = vmatprep.subr.mxu0 0.0
      %1556 = vmatpush1.xpose.msra.mxu0 0.0
      %1557 = vmatprep.subr.mxu0 0.0
      %1558 = vmatpush1.xpose.msra.mxu0 0.0
      %1559 = vmatprep.subr.mxu0 0.0
      %1560 = vmatpush1.xpose.msra.mxu0 0.0
      %1561 = vmatprep.subr.mxu0 0.0
      %1562 = vmatpush1.xpose.msra.mxu0 0.0
      %1563 = vmatprep.subr.mxu0 0.0
      %1564 = vmatpush1.xpose.msra.mxu0 0.0
      %1565 = vmatprep.subr.mxu0 0.0
      %1566 = vmatpush1.xpose.msra.mxu0 0.0
      %1567 = vmatprep.mubr.f32.mxu0 0.0
      %1568 = vmatmul.mubr.f32.gmra.mrb[0].mxu0 %v1499
      %v1569 = vpop.f32.mrb[0].mxu0
      %v1570 = vadd.f32 %v533, %v1569
      %v1571 = vpop.f32.mrb[0].mxu0
      %1572 = vdwg.mxu0
      %v1573 = vsel %vm544, %v1570, -inf
      %1574 = vmax.xlane.f32.xlu0 %v1573
      %v1575 = vpop.xlane.xlu0 %1574
      %v1576 = vsub.f32 %v1570, %v1575
      %v1577 = vmul.f32 %v1576, 1.442695
      %v1578 = vpow.pop %v1577
      %v1579 = vsel %vm544, %v1578, 0.0
      %1580 = vadd.xlane.f32.xlu0 %v1579
      %v1581 = vpop.xlane.xlu0 %1580
      %v1582 = vrcp.pop %v1581
      %v1583 = vmul.f32 %v1578, %v1582
      %1584 = vrot.lane.b32.xlu0 %v526, 64
      %v1585 = vpop.permute.xlu0 %1584
      %v1588 = vsel %vm544, %v1583, 0
      %1590 = vmatprep.subr.mxu0 0.0
      %1591 = vmatpush1.msra.mxu0 %v1585
      %1592 = vmatprep.subr.mxu0 0.0
      %1593 = vmatpush1.msra.mxu0 0.0
      %1594 = vmatprep.subr.mxu0 0.0
      %1595 = vmatpush1.msra.mxu0 0.0
      %1596 = vmatprep.subr.mxu0 0.0
      %1597 = vmatpush1.msra.mxu0 0.0
      %1598 = vmatprep.subr.mxu0 0.0
      %1599 = vmatpush1.msra.mxu0 0.0
      %1600 = vmatprep.subr.mxu0 0.0
      %1601 = vmatpush1.msra.mxu0 0.0
      %1602 = vmatprep.subr.mxu0 0.0
      %1603 = vmatpush1.msra.mxu0 0.0
      %1604 = vmatprep.subr.mxu0 0.0
      %1605 = vmatpush1.msra.mxu0 0.0
      %1606 = vmatprep.subr.mxu0 0.0
      %1607 = vmatpush1.msra.mxu0 0.0
      %1608 = vmatprep.subr.mxu0 0.0
      %1609 = vmatpush1.msra.mxu0 0.0
      %1610 = vmatprep.subr.mxu0 0.0
      %1611 = vmatpush1.msra.mxu0 0.0
      %1612 = vmatprep.subr.mxu0 0.0
      %1613 = vmatpush1.msra.mxu0 0.0
      %1614 = vmatprep.subr.mxu0 0.0
      %1615 = vmatpush1.msra.mxu0 0.0
      %1616 = vmatprep.subr.mxu0 0.0
      %1617 = vmatpush1.msra.mxu0 0.0
      %1618 = vmatprep.subr.mxu0 0.0
      %1619 = vmatpush1.msra.mxu0 0.0
      %1620 = vmatprep.subr.mxu0 0.0
      %1621 = vmatpush1.msra.mxu0 0.0
      %1622 = vmatprep.subr.mxu0 0.0
      %1623 = vmatpush1.msra.mxu0 0.0
      %1624 = vmatprep.subr.mxu0 0.0
      %1625 = vmatpush1.msra.mxu0 0.0
      %1626 = vmatprep.subr.mxu0 0.0
      %1627 = vmatpush1.msra.mxu0 0.0
      %1628 = vmatprep.subr.mxu0 0.0
      %1629 = vmatpush1.msra.mxu0 0.0
      %1630 = vmatprep.subr.mxu0 0.0
      %1631 = vmatpush1.msra.mxu0 0.0
      %1632 = vmatprep.subr.mxu0 0.0
      %1633 = vmatpush1.msra.mxu0 0.0
      %1634 = vmatprep.subr.mxu0 0.0
      %1635 = vmatpush1.msra.mxu0 0.0
      %1636 = vmatprep.subr.mxu0 0.0
      %1637 = vmatpush1.msra.mxu0 0.0
      %1638 = vmatprep.subr.mxu0 0.0
      %1639 = vmatpush1.msra.mxu0 0.0
      %1640 = vmatprep.subr.mxu0 0.0
      %1641 = vmatpush1.msra.mxu0 0.0
      %1642 = vmatprep.subr.mxu0 0.0
      %1643 = vmatpush1.msra.mxu0 0.0
      %1644 = vmatprep.subr.mxu0 0.0
      %1645 = vmatpush1.msra.mxu0 0.0
      %1646 = vmatprep.subr.mxu0 0.0
      %1647 = vmatpush1.msra.mxu0 0.0
      %1648 = vmatprep.subr.mxu0 0.0
      %1649 = vmatpush1.msra.mxu0 0.0
      %1650 = vmatprep.subr.mxu0 0.0
      %1651 = vmatpush1.msra.mxu0 0.0
      %1652 = vmatprep.subr.mxu0 0.0
      %1653 = vmatpush1.msra.mxu0 0.0
      %1654 = vmatprep.mubr.f32.mxu0 0.0
      %1655 = vmatmul.mubr.f32.gmra.mrb[0].mxu0 %v1588
      %v1656 = vpop.f32.mrb[0].mxu0
      %v1657 = vadd.f32 0.0, %v1656
      %v1658 = vpop.f32.mrb[0].mxu0
      %1659 = vdwg.mxu0
      %1660 = vrot.lane.b32.xlu0 %v526, 120
      %v1661 = vpop.permute.xlu0 %1660
      %1662 = vrot.lane.b32.xlu0 %v526, 88
      %v1663 = vpop.permute.xlu0 %1662
      %v1664 = vsel %vm544, %v1661, 0
      %v1666 = vsel %vm544, %v1663, 0
      %1668 = vmatprep.subr.mxu0 0.0
      %1669 = vmatpush1.xpose.msra.mxu0 %v1666
      %1670 = vmatprep.subr.mxu0 0.0
      %1671 = vmatpush1.xpose.msra.mxu0 0.0
      %1672 = vmatprep.subr.mxu0 0.0
      %1673 = vmatpush1.xpose.msra.mxu0 0.0
      %1674 = vmatprep.subr.mxu0 0.0
      %1675 = vmatpush1.xpose.msra.mxu0 0.0
      %1676 = vmatprep.subr.mxu0 0.0
      %1677 = vmatpush1.xpose.msra.mxu0 0.0
      %1678 = vmatprep.subr.mxu0 0.0
      %1679 = vmatpush1.xpose.msra.mxu0 0.0
      %1680 = vmatprep.subr.mxu0 0.0
      %1681 = vmatpush1.xpose.msra.mxu0 0.0
      %1682 = vmatprep.subr.mxu0 0.0
      %1683 = vmatpush1.xpose.msra.mxu0 0.0
      %1684 = vmatprep.subr.mxu0 0.0
      %1685 = vmatpush1.xpose.msra.mxu0 0.0
      %1686 = vmatprep.subr.mxu0 0.0
      %1687 = vmatpush1.xpose.msra.mxu0 0.0
      %1688 = vmatprep.subr.mxu0 0.0
      %1689 = vmatpush1.xpose.msra.mxu0 0.0
      %1690 = vmatprep.subr.mxu0 0.0
      %1691 = vmatpush1.xpose.msra.mxu0 0.0
      %1692 = vmatprep.subr.mxu0 0.0
      %1693 = vmatpush1.xpose.msra.mxu0 0.0
      %1694 = vmatprep.subr.mxu0 0.0
      %1695 = vmatpush1.xpose.msra.mxu0 0.0
      %1696 = vmatprep.subr.mxu0 0.0
      %1697 = vmatpush1.xpose.msra.mxu0 0.0
      %1698 = vmatprep.subr.mxu0 0.0
      %1699 = vmatpush1.xpose.msra.mxu0 0.0
      %1700 = vmatprep.subr.mxu0 0.0
      %1701 = vmatpush1.xpose.msra.mxu0 0.0
      %1702 = vmatprep.subr.mxu0 0.0
      %1703 = vmatpush1.xpose.msra.mxu0 0.0
      %1704 = vmatprep.subr.mxu0 0.0
      %1705 = vmatpush1.xpose.msra.mxu0 0.0
      %1706 = vmatprep.subr.mxu0 0.0
      %1707 = vmatpush1.xpose.msra.mxu0 0.0
      %1708 = vmatprep.subr.mxu0 0.0
      %1709 = vmatpush1.xpose.msra.mxu0 0.0
      %1710 = vmatprep.subr.mxu0 0.0
      %1711 = vmatpush1.xpose.msra.mxu0 0.0
      %1712 = vmatprep.subr.mxu0 0.0
      %1713 = vmatpush1.xpose.msra.mxu0 0.0
      %1714 = vmatprep.subr.mxu0 0.0
      %1715 = vmatpush1.xpose.msra.mxu0 0.0
      %1716 = vmatprep.subr.mxu0 0.0
      %1717 = vmatpush1.xpose.msra.mxu0 0.0
      %1718 = vmatprep.subr.mxu0 0.0
      %1719 = vmatpush1.xpose.msra.mxu0 0.0
      %1720 = vmatprep.subr.mxu0 0.0
      %1721 = vmatpush1.xpose.msra.mxu0 0.0
      %1722 = vmatprep.subr.mxu0 0.0
      %1723 = vmatpush1.xpose.msra.mxu0 0.0
      %1724 = vmatprep.subr.mxu0 0.0
      %1725 = vmatpush1.xpose.msra.mxu0 0.0
      %1726 = vmatprep.subr.mxu0 0.0
      %1727 = vmatpush1.xpose.msra.mxu0 0.0
      %1728 = vmatprep.subr.mxu0 0.0
      %1729 = vmatpush1.xpose.msra.mxu0 0.0
      %1730 = vmatprep.subr.mxu0 0.0
      %1731 = vmatpush1.xpose.msra.mxu0 0.0
      %1732 = vmatprep.mubr.f32.mxu0 0.0
      %1733 = vmatmul.mubr.f32.gmra.mrb[0].mxu0 %v1664
      %v1734 = vpop.f32.mrb[0].mxu0
      %v1735 = vadd.f32 %v534, %v1734
      %v1736 = vpop.f32.mrb[0].mxu0
      %1737 = vdwg.mxu0
      %v1738 = vsel %vm544, %v1735, -inf
      %1739 = vmax.xlane.f32.xlu0 %v1738
      %v1740 = vpop.xlane.xlu0 %1739
      %v1741 = vsub.f32 %v1735, %v1740
      %v1742 = vmul.f32 %v1741, 1.442695
      %v1743 = vpow.pop %v1742
      %v1744 = vsel %vm544, %v1743, 0.0
      %1745 = vadd.xlane.f32.xlu0 %v1744
      %v1746 = vpop.xlane.xlu0 %1745
      %v1747 = vrcp.pop %v1746
      %v1748 = vmul.f32 %v1743, %v1747
      %1749 = vrot.lane.b32.xlu0 %v526, 56
      %v1750 = vpop.permute.xlu0 %1749
      %v1753 = vsel %vm544, %v1748, 0
      %1755 = vmatprep.subr.mxu0 0.0
      %1756 = vmatpush1.msra.mxu0 %v1750
      %1757 = vmatprep.subr.mxu0 0.0
      %1758 = vmatpush1.msra.mxu0 0.0
      %1759 = vmatprep.subr.mxu0 0.0
      %1760 = vmatpush1.msra.mxu0 0.0
      %1761 = vmatprep.subr.mxu0 0.0
      %1762 = vmatpush1.msra.mxu0 0.0
      %1763 = vmatprep.subr.mxu0 0.0
      %1764 = vmatpush1.msra.mxu0 0.0
      %1765 = vmatprep.subr.mxu0 0.0
      %1766 = vmatpush1.msra.mxu0 0.0
      %1767 = vmatprep.subr.mxu0 0.0
      %1768 = vmatpush1.msra.mxu0 0.0
      %1769 = vmatprep.subr.mxu0 0.0
      %1770 = vmatpush1.msra.mxu0 0.0
      %1771 = vmatprep.subr.mxu0 0.0
      %1772 = vmatpush1.msra.mxu0 0.0
      %1773 = vmatprep.subr.mxu0 0.0
      %1774 = vmatpush1.msra.mxu0 0.0
      %1775 = vmatprep.subr.mxu0 0.0
      %1776 = vmatpush1.msra.mxu0 0.0
      %1777 = vmatprep.subr.mxu0 0.0
      %1778 = vmatpush1.msra.mxu0 0.0
      %1779 = vmatprep.subr.mxu0 0.0
      %1780 = vmatpush1.msra.mxu0 0.0
      %1781 = vmatprep.subr.mxu0 0.0
      %1782 = vmatpush1.msra.mxu0 0.0
      %1783 = vmatprep.subr.mxu0 0.0
      %1784 = vmatpush1.msra.mxu0 0.0
      %1785 = vmatprep.subr.mxu0 0.0
      %1786 = vmatpush1.msra.mxu0 0.0
      %1787 = vmatprep.subr.mxu0 0.0
      %1788 = vmatpush1.msra.mxu0 0.0
      %1789 = vmatprep.subr.mxu0 0.0
      %1790 = vmatpush1.msra.mxu0 0.0
      %1791 = vmatprep.subr.mxu0 0.0
      %1792 = vmatpush1.msra.mxu0 0.0
      %1793 = vmatprep.subr.mxu0 0.0
      %1794 = vmatpush1.msra.mxu0 0.0
      %1795 = vmatprep.subr.mxu0 0.0
      %1796 = vmatpush1.msra.mxu0 0.0
      %1797 = vmatprep.subr.mxu0 0.0
      %1798 = vmatpush1.msra.mxu0 0.0
      %1799 = vmatprep.subr.mxu0 0.0
      %1800 = vmatpush1.msra.mxu0 0.0
      %1801 = vmatprep.subr.mxu0 0.0
      %1802 = vmatpush1.msra.mxu0 0.0
      %1803 = vmatprep.subr.mxu0 0.0
      %1804 = vmatpush1.msra.mxu0 0.0
      %1805 = vmatprep.subr.mxu0 0.0
      %1806 = vmatpush1.msra.mxu0 0.0
      %1807 = vmatprep.subr.mxu0 0.0
      %1808 = vmatpush1.msra.mxu0 0.0
      %1809 = vmatprep.subr.mxu0 0.0
      %1810 = vmatpush1.msra.mxu0 0.0
      %1811 = vmatprep.subr.mxu0 0.0
      %1812 = vmatpush1.msra.mxu0 0.0
      %1813 = vmatprep.subr.mxu0 0.0
      %1814 = vmatpush1.msra.mxu0 0.0
      %1815 = vmatprep.subr.mxu0 0.0
      %1816 = vmatpush1.msra.mxu0 0.0
      %1817 = vmatprep.subr.mxu0 0.0
      %1818 = vmatpush1.msra.mxu0 0.0
      %1819 = vmatprep.mubr.f32.mxu0 0.0
      %1820 = vmatmul.mubr.f32.gmra.mrb[0].mxu0 %v1753
      %v1821 = vpop.f32.mrb[0].mxu0
      %v1822 = vadd.f32 0.0, %v1821
      %v1823 = vpop.f32.mrb[0].mxu0
      %1824 = vdwg.mxu0
      %v1826 = vsel %vm544, %v1822, 0
      %1828 = vmatprep.subr.mxu0 0.0
      %1829 = vmatpush1.msra.mxu0 %v538
      %1830 = vmatprep.subr.mxu0 0.0
      %1831 = vmatpush1.msra.mxu0 0.0
      %1832 = vmatprep.subr.mxu0 0.0
      %1833 = vmatpush1.msra.mxu0 0.0
      %1834 = vmatprep.subr.mxu0 0.0
      %1835 = vmatpush1.msra.mxu0 0.0
      %1836 = vmatprep.subr.mxu0 0.0
      %1837 = vmatpush1.msra.mxu0 0.0
      %1838 = vmatprep.subr.mxu0 0.0
      %1839 = vmatpush1.msra.mxu0 0.0
      %1840 = vmatprep.subr.mxu0 0.0
      %1841 = vmatpush1.msra.mxu0 0.0
      %1842 = vmatprep.subr.mxu0 0.0
      %1843 = vmatpush1.msra.mxu0 0.0
      %1844 = vmatprep.subr.mxu0 0.0
      %1845 = vmatpush1.msra.mxu0 0.0
      %1846 = vmatprep.subr.mxu0 0.0
      %1847 = vmatpush1.msra.mxu0 0.0
      %1848 = vmatprep.subr.mxu0 0.0
      %1849 = vmatpush1.msra.mxu0 0.0
      %1850 = vmatprep.subr.mxu0 0.0
      %1851 = vmatpush1.msra.mxu0 0.0
      %1852 = vmatprep.subr.mxu0 0.0
      %1853 = vmatpush1.msra.mxu0 0.0
      %1854 = vmatprep.subr.mxu0 0.0
      %1855 = vmatpush1.msra.mxu0 0.0
      %1856 = vmatprep.subr.mxu0 0.0
      %1857 = vmatpush1.msra.mxu0 0.0
      %1858 = vmatprep.subr.mxu0 0.0
      %1859 = vmatpush1.msra.mxu0 0.0
      %1860 = vmatprep.subr.mxu0 0.0
      %1861 = vmatpush1.msra.mxu0 0.0
      %1862 = vmatprep.subr.mxu0 0.0
      %1863 = vmatpush1.msra.mxu0 0.0
      %1864 = vmatprep.subr.mxu0 0.0
      %1865 = vmatpush1.msra.mxu0 0.0
      %1866 = vmatprep.subr.mxu0 0.0
      %1867 = vmatpush1.msra.mxu0 0.0
      %1868 = vmatprep.subr.mxu0 0.0
      %1869 = vmatpush1.msra.mxu0 0.0
      %1870 = vmatprep.subr.mxu0 0.0
      %1871 = vmatpush1.msra.mxu0 0.0
      %1872 = vmatprep.subr.mxu0 0.0
      %1873 = vmatpush1.msra.mxu0 0.0
      %1874 = vmatprep.subr.mxu0 0.0
      %1875 = vmatpush1.msra.mxu0 0.0
      %1876 = vmatprep.subr.mxu0 0.0
      %1877 = vmatpush1.msra.mxu0 0.0
      %1878 = vmatprep.subr.mxu0 0.0
      %1879 = vmatpush1.msra.mxu0 0.0
      %1880 = vmatprep.subr.mxu0 0.0
      %1881 = vmatpush1.msra.mxu0 0.0
      %1882 = vmatprep.subr.mxu0 0.0
      %1883 = vmatpush1.msra.mxu0 0.0
      %1884 = vmatprep.subr.mxu0 0.0
      %1885 = vmatpush1.msra.mxu0 0.0
      %1886 = vmatprep.subr.mxu0 0.0
      %1887 = vmatpush1.msra.mxu0 0.0
      %1888 = vmatprep.subr.mxu0 0.0
      %1889 = vmatpush1.msra.mxu0 0.0
      %1890 = vmatprep.subr.mxu0 0.0
      %1891 = vmatpush1.msra.mxu0 0.0
      %1892 = vmatprep.mubr.f32.mxu0 0.0
      %1893 = vmatmul.mubr.f32.gmra.mrb[0].mxu0 %v1826
      %v1894 = vpop.f32.mrb[0].mxu0
      %v1895 = vadd.f32 0.0, %v1894
      %v1896 = vpop.f32.mrb[0].mxu0
      %1897 = vdwg.mxu0
      %v1899 = vsel %vm544, %v1657, 0
      %1901 = vmatprep.subr.mxu0 0.0
      %1902 = vmatpush1.msra.mxu0 %v537
      %1903 = vmatprep.subr.mxu0 0.0
      %1904 = vmatpush1.msra.mxu0 0.0
      %1905 = vmatprep.subr.mxu0 0.0
      %1906 = vmatpush1.msra.mxu0 0.0
      %1907 = vmatprep.subr.mxu0 0.0
      %1908 = vmatpush1.msra.mxu0 0.0
      %1909 = vmatprep.subr.mxu0 0.0
      %1910 = vmatpush1.msra.mxu0 0.0
      %1911 = vmatprep.subr.mxu0 0.0
      %1912 = vmatpush1.msra.mxu0 0.0
      %1913 = vmatprep.subr.mxu0 0.0
      %1914 = vmatpush1.msra.mxu0 0.0
      %1915 = vmatprep.subr.mxu0 0.0
      %1916 = vmatpush1.msra.mxu0 0.0
      %1917 = vmatprep.subr.mxu0 0.0
      %1918 = vmatpush1.msra.mxu0 0.0
      %1919 = vmatprep.subr.mxu0 0.0
      %1920 = vmatpush1.msra.mxu0 0.0
      %1921 = vmatprep.subr.mxu0 0.0
      %1922 = vmatpush1.msra.mxu0 0.0
      %1923 = vmatprep.subr.mxu0 0.0
      %1924 = vmatpush1.msra.mxu0 0.0
      %1925 = vmatprep.subr.mxu0 0.0
      %1926 = vmatpush1.msra.mxu0 0.0
      %1927 = vmatprep.subr.mxu0 0.0
      %1928 = vmatpush1.msra.mxu0 0.0
      %1929 = vmatprep.subr.mxu0 0.0
      %1930 = vmatpush1.msra.mxu0 0.0
      %1931 = vmatprep.subr.mxu0 0.0
      %1932 = vmatpush1.msra.mxu0 0.0
      %1933 = vmatprep.subr.mxu0 0.0
      %1934 = vmatpush1.msra.mxu0 0.0
      %1935 = vmatprep.subr.mxu0 0.0
      %1936 = vmatpush1.msra.mxu0 0.0
      %1937 = vmatprep.subr.mxu0 0.0
      %1938 = vmatpush1.msra.mxu0 0.0
      %1939 = vmatprep.subr.mxu0 0.0
      %1940 = vmatpush1.msra.mxu0 0.0
      %1941 = vmatprep.subr.mxu0 0.0
      %1942 = vmatpush1.msra.mxu0 0.0
      %1943 = vmatprep.subr.mxu0 0.0
      %1944 = vmatpush1.msra.mxu0 0.0
      %1945 = vmatprep.subr.mxu0 0.0
      %1946 = vmatpush1.msra.mxu0 0.0
      %1947 = vmatprep.subr.mxu0 0.0
      %1948 = vmatpush1.msra.mxu0 0.0
      %1949 = vmatprep.subr.mxu0 0.0
      %1950 = vmatpush1.msra.mxu0 0.0
      %1951 = vmatprep.subr.mxu0 0.0
      %1952 = vmatpush1.msra.mxu0 0.0
      %1953 = vmatprep.subr.mxu0 0.0
      %1954 = vmatpush1.msra.mxu0 0.0
      %1955 = vmatprep.subr.mxu0 0.0
      %1956 = vmatpush1.msra.mxu0 0.0
      %1957 = vmatprep.subr.mxu0 0.0
      %1958 = vmatpush1.msra.mxu0 0.0
      %1959 = vmatprep.subr.mxu0 0.0
      %1960 = vmatpush1.msra.mxu0 0.0
      %1961 = vmatprep.subr.mxu0 0.0
      %1962 = vmatpush1.msra.mxu0 0.0
      %1963 = vmatprep.subr.mxu0 0.0
      %1964 = vmatpush1.msra.mxu0 0.0
      %1965 = vmatprep.mubr.f32.mxu0 0.0
      %1966 = vmatmul.mubr.f32.gmra.mrb[0].mxu0 %v1899
      %v1967 = vpop.f32.mrb[0].mxu0
      %v1968 = vadd.f32 %v1895, %v1967
      %v1969 = vpop.f32.mrb[0].mxu0
      %1970 = vdwg.mxu0
      %1971 = vrot.lane.b32.xlu0 %v526, 112
      %v1972 = vpop.permute.xlu0 %1971
      %1973 = vrot.lane.b32.xlu0 %v526, 80
      %v1974 = vpop.permute.xlu0 %1973
      %v1975 = vsel %vm544, %v1972, 0
      %v1977 = vsel %vm544, %v1974, 0
      %1979 = vmatprep.subr.mxu0 0.0
      %1980 = vmatpush1.xpose.msra.mxu0 %v1977
      %1981 = vmatprep.subr.mxu0 0.0
      %1982 = vmatpush1.xpose.msra.mxu0 0.0
      %1983 = vmatprep.subr.mxu0 0.0
      %1984 = vmatpush1.xpose.msra.mxu0 0.0
      %1985 = vmatprep.subr.mxu0 0.0
      %1986 = vmatpush1.xpose.msra.mxu0 0.0
      %1987 = vmatprep.subr.mxu0 0.0
      %1988 = vmatpush1.xpose.msra.mxu0 0.0
      %1989 = vmatprep.subr.mxu0 0.0
      %1990 = vmatpush1.xpose.msra.mxu0 0.0
      %1991 = vmatprep.subr.mxu0 0.0
      %1992 = vmatpush1.xpose.msra.mxu0 0.0
      %1993 = vmatprep.subr.mxu0 0.0
      %1994 = vmatpush1.xpose.msra.mxu0 0.0
      %1995 = vmatprep.subr.mxu0 0.0
      %1996 = vmatpush1.xpose.msra.mxu0 0.0
      %1997 = vmatprep.subr.mxu0 0.0
      %1998 = vmatpush1.xpose.msra.mxu0 0.0
      %1999 = vmatprep.subr.mxu0 0.0
      %2000 = vmatpush1.xpose.msra.mxu0 0.0
      %2001 = vmatprep.subr.mxu0 0.0
      %2002 = vmatpush1.xpose.msra.mxu0 0.0
      %2003 = vmatprep.subr.mxu0 0.0
      %2004 = vmatpush1.xpose.msra.mxu0 0.0
      %2005 = vmatprep.subr.mxu0 0.0
      %2006 = vmatpush1.xpose.msra.mxu0 0.0
      %2007 = vmatprep.subr.mxu0 0.0
      %2008 = vmatpush1.xpose.msra.mxu0 0.0
      %2009 = vmatprep.subr.mxu0 0.0
      %2010 = vmatpush1.xpose.msra.mxu0 0.0
      %2011 = vmatprep.subr.mxu0 0.0
      %2012 = vmatpush1.xpose.msra.mxu0 0.0
      %2013 = vmatprep.subr.mxu0 0.0
      %2014 = vmatpush1.xpose.msra.mxu0 0.0
      %2015 = vmatprep.subr.mxu0 0.0
      %2016 = vmatpush1.xpose.msra.mxu0 0.0
      %2017 = vmatprep.subr.mxu0 0.0
      %2018 = vmatpush1.xpose.msra.mxu0 0.0
      %2019 = vmatprep.subr.mxu0 0.0
      %2020 = vmatpush1.xpose.msra.mxu0 0.0
      %2021 = vmatprep.subr.mxu0 0.0
      %2022 = vmatpush1.xpose.msra.mxu0 0.0
      %2023 = vmatprep.subr.mxu0 0.0
      %2024 = vmatpush1.xpose.msra.mxu0 0.0
      %2025 = vmatprep.subr.mxu0 0.0
      %2026 = vmatpush1.xpose.msra.mxu0 0.0
      %2027 = vmatprep.subr.mxu0 0.0
      %2028 = vmatpush1.xpose.msra.mxu0 0.0
      %2029 = vmatprep.subr.mxu0 0.0
      %2030 = vmatpush1.xpose.msra.mxu0 0.0
      %2031 = vmatprep.subr.mxu0 0.0
      %2032 = vmatpush1.xpose.msra.mxu0 0.0
      %2033 = vmatprep.subr.mxu0 0.0
      %2034 = vmatpush1.xpose.msra.mxu0 0.0
      %2035 = vmatprep.subr.mxu0 0.0
      %2036 = vmatpush1.xpose.msra.mxu0 0.0
      %2037 = vmatprep.subr.mxu0 0.0
      %2038 = vmatpush1.xpose.msra.mxu0 0.0
      %2039 = vmatprep.subr.mxu0 0.0
      %2040 = vmatpush1.xpose.msra.mxu0 0.0
      %2041 = vmatprep.subr.mxu0 0.0
      %2042 = vmatpush1.xpose.msra.mxu0 0.0
      %2043 = vmatprep.mubr.f32.mxu0 0.0
      %2044 = vmatmul.mubr.f32.gmra.mrb[0].mxu0 %v1975
      %v2045 = vpop.f32.mrb[0].mxu0
      %v2046 = vadd.f32 %v535, %v2045
      %v2047 = vpop.f32.mrb[0].mxu0
      %2048 = vdwg.mxu0
      %v2049 = vsel %vm544, %v2046, -inf
      %2050 = vmax.xlane.f32.xlu0 %v2049
      %v2051 = vpop.xlane.xlu0 %2050
      %v2052 = vsub.f32 %v2046, %v2051
      %v2053 = vmul.f32 %v2052, 1.442695
      %v2054 = vpow.pop %v2053
      %v2055 = vsel %vm544, %v2054, 0.0
      %2056 = vadd.xlane.f32.xlu0 %v2055
      %v2057 = vpop.xlane.xlu0 %2056
      %v2058 = vrcp.pop %v2057
      %v2059 = vmul.f32 %v2054, %v2058
      %2060 = vrot.lane.b32.xlu0 %v526, 48
      %v2061 = vpop.permute.xlu0 %2060
      %v2064 = vsel %vm544, %v2059, 0
      %2066 = vmatprep.subr.mxu0 0.0
      %2067 = vmatpush1.msra.mxu0 %v2061
      %2068 = vmatprep.subr.mxu0 0.0
      %2069 = vmatpush1.msra.mxu0 0.0
      %2070 = vmatprep.subr.mxu0 0.0
      %2071 = vmatpush1.msra.mxu0 0.0
      %2072 = vmatprep.subr.mxu0 0.0
      %2073 = vmatpush1.msra.mxu0 0.0
      %2074 = vmatprep.subr.mxu0 0.0
      %2075 = vmatpush1.msra.mxu0 0.0
      %2076 = vmatprep.subr.mxu0 0.0
      %2077 = vmatpush1.msra.mxu0 0.0
      %2078 = vmatprep.subr.mxu0 0.0
      %2079 = vmatpush1.msra.mxu0 0.0
      %2080 = vmatprep.subr.mxu0 0.0
      %2081 = vmatpush1.msra.mxu0 0.0
      %2082 = vmatprep.subr.mxu0 0.0
      %2083 = vmatpush1.msra.mxu0 0.0
      %2084 = vmatprep.subr.mxu0 0.0
      %2085 = vmatpush1.msra.mxu0 0.0
      %2086 = vmatprep.subr.mxu0 0.0
      %2087 = vmatpush1.msra.mxu0 0.0
      %2088 = vmatprep.subr.mxu0 0.0
      %2089 = vmatpush1.msra.mxu0 0.0
      %2090 = vmatprep.subr.mxu0 0.0
      %2091 = vmatpush1.msra.mxu0 0.0
      %2092 = vmatprep.subr.mxu0 0.0
      %2093 = vmatpush1.msra.mxu0 0.0
      %2094 = vmatprep.subr.mxu0 0.0
      %2095 = vmatpush1.msra.mxu0 0.0
      %2096 = vmatprep.subr.mxu0 0.0
      %2097 = vmatpush1.msra.mxu0 0.0
      %2098 = vmatprep.subr.mxu0 0.0
      %2099 = vmatpush1.msra.mxu0 0.0
      %2100 = vmatprep.subr.mxu0 0.0
      %2101 = vmatpush1.msra.mxu0 0.0
      %2102 = vmatprep.subr.mxu0 0.0
      %2103 = vmatpush1.msra.mxu0 0.0
      %2104 = vmatprep.subr.mxu0 0.0
      %2105 = vmatpush1.msra.mxu0 0.0
      %2106 = vmatprep.subr.mxu0 0.0
      %2107 = vmatpush1.msra.mxu0 0.0
      %2108 = vmatprep.subr.mxu0 0.0
      %2109 = vmatpush1.msra.mxu0 0.0
      %2110 = vmatprep.subr.mxu0 0.0
      %2111 = vmatpush1.msra.mxu0 0.0
      %2112 = vmatprep.subr.mxu0 0.0
      %2113 = vmatpush1.msra.mxu0 0.0
      %2114 = vmatprep.subr.mxu0 0.0
      %2115 = vmatpush1.msra.mxu0 0.0
      %2116 = vmatprep.subr.mxu0 0.0
      %2117 = vmatpush1.msra.mxu0 0.0
      %2118 = vmatprep.subr.mxu0 0.0
      %2119 = vmatpush1.msra.mxu0 0.0
      %2120 = vmatprep.subr.mxu0 0.0
      %2121 = vmatpush1.msra.mxu0 0.0
      %2122 = vmatprep.subr.mxu0 0.0
      %2123 = vmatpush1.msra.mxu0 0.0
      %2124 = vmatprep.subr.mxu0 0.0
      %2125 = vmatpush1.msra.mxu0 0.0
      %2126 = vmatprep.subr.mxu0 0.0
      %2127 = vmatpush1.msra.mxu0 0.0
      %2128 = vmatprep.subr.mxu0 0.0
      %2129 = vmatpush1.msra.mxu0 0.0
      %2130 = vmatprep.mubr.f32.mxu0 0.0
      %2131 = vmatmul.mubr.f32.gmra.mrb[0].mxu0 %v2064
      %v2132 = vpop.f32.mrb[0].mxu0
      %v2133 = vadd.f32 0.0, %v2132
      %v2134 = vpop.f32.mrb[0].mxu0
      %2135 = vdwg.mxu0
      %v2137 = vsel %vm544, %v2133, 0
      %2139 = vmatprep.subr.mxu0 0.0
      %2140 = vmatpush1.msra.mxu0 %v539
      %2141 = vmatprep.subr.mxu0 0.0
      %2142 = vmatpush1.msra.mxu0 0.0
      %2143 = vmatprep.subr.mxu0 0.0
      %2144 = vmatpush1.msra.mxu0 0.0
      %2145 = vmatprep.subr.mxu0 0.0
      %2146 = vmatpush1.msra.mxu0 0.0
      %2147 = vmatprep.subr.mxu0 0.0
      %2148 = vmatpush1.msra.mxu0 0.0
      %2149 = vmatprep.subr.mxu0 0.0
      %2150 = vmatpush1.msra.mxu0 0.0
      %2151 = vmatprep.subr.mxu0 0.0
      %2152 = vmatpush1.msra.mxu0 0.0
      %2153 = vmatprep.subr.mxu0 0.0
      %2154 = vmatpush1.msra.mxu0 0.0
      %2155 = vmatprep.subr.mxu0 0.0
      %2156 = vmatpush1.msra.mxu0 0.0
      %2157 = vmatprep.subr.mxu0 0.0
      %2158 = vmatpush1.msra.mxu0 0.0
      %2159 = vmatprep.subr.mxu0 0.0
      %2160 = vmatpush1.msra.mxu0 0.0
      %2161 = vmatprep.subr.mxu0 0.0
      %2162 = vmatpush1.msra.mxu0 0.0
      %2163 = vmatprep.subr.mxu0 0.0
      %2164 = vmatpush1.msra.mxu0 0.0
      %2165 = vmatprep.subr.mxu0 0.0
      %2166 = vmatpush1.msra.mxu0 0.0
      %2167 = vmatprep.subr.mxu0 0.0
      %2168 = vmatpush1.msra.mxu0 0.0
      %2169 = vmatprep.subr.mxu0 0.0
      %2170 = vmatpush1.msra.mxu0 0.0
      %2171 = vmatprep.subr.mxu0 0.0
      %2172 = vmatpush1.msra.mxu0 0.0
      %2173 = vmatprep.subr.mxu0 0.0
      %2174 = vmatpush1.msra.mxu0 0.0
      %2175 = vmatprep.subr.mxu0 0.0
      %2176 = vmatpush1.msra.mxu0 0.0
      %2177 = vmatprep.subr.mxu0 0.0
      %2178 = vmatpush1.msra.mxu0 0.0
      %2179 = vmatprep.subr.mxu0 0.0
      %2180 = vmatpush1.msra.mxu0 0.0
      %2181 = vmatprep.subr.mxu0 0.0
      %2182 = vmatpush1.msra.mxu0 0.0
      %2183 = vmatprep.subr.mxu0 0.0
      %2184 = vmatpush1.msra.mxu0 0.0
      %2185 = vmatprep.subr.mxu0 0.0
      %2186 = vmatpush1.msra.mxu0 0.0
      %2187 = vmatprep.subr.mxu0 0.0
      %2188 = vmatpush1.msra.mxu0 0.0
      %2189 = vmatprep.subr.mxu0 0.0
      %2190 = vmatpush1.msra.mxu0 0.0
      %2191 = vmatprep.subr.mxu0 0.0
      %2192 = vmatpush1.msra.mxu0 0.0
      %2193 = vmatprep.subr.mxu0 0.0
      %2194 = vmatpush1.msra.mxu0 0.0
      %2195 = vmatprep.subr.mxu0 0.0
      %2196 = vmatpush1.msra.mxu0 0.0
      %2197 = vmatprep.subr.mxu0 0.0
      %2198 = vmatpush1.msra.mxu0 0.0
      %2199 = vmatprep.subr.mxu0 0.0
      %2200 = vmatpush1.msra.mxu0 0.0
      %2201 = vmatprep.subr.mxu0 0.0
      %2202 = vmatpush1.msra.mxu0 0.0
      %2203 = vmatprep.mubr.f32.mxu0 0.0
      %2204 = vmatmul.mubr.f32.gmra.mrb[0].mxu0 %v2137
      %v2205 = vpop.f32.mrb[0].mxu0
      %v2206 = vadd.f32 0.0, %v2205
      %v2207 = vpop.f32.mrb[0].mxu0
      %2208 = vdwg.mxu0
      %v2209 = vadd.f32 %v1968, %v2206
      %2210 = vrot.lane.b32.xlu0 %v526, 104
      %v2211 = vpop.permute.xlu0 %2210
      %2212 = vrot.lane.b32.xlu0 %v526, 72
      %v2213 = vpop.permute.xlu0 %2212
      %v2214 = vsel %vm544, %v2211, 0
      %v2216 = vsel %vm544, %v2213, 0
      %2218 = vmatprep.subr.mxu0 0.0
      %2219 = vmatpush1.xpose.msra.mxu0 %v2216
      %2220 = vmatprep.subr.mxu0 0.0
      %2221 = vmatpush1.xpose.msra.mxu0 0.0
      %2222 = vmatprep.subr.mxu0 0.0
      %2223 = vmatpush1.xpose.msra.mxu0 0.0
      %2224 = vmatprep.subr.mxu0 0.0
      %2225 = vmatpush1.xpose.msra.mxu0 0.0
      %2226 = vmatprep.subr.mxu0 0.0
      %2227 = vmatpush1.xpose.msra.mxu0 0.0
      %2228 = vmatprep.subr.mxu0 0.0
      %2229 = vmatpush1.xpose.msra.mxu0 0.0
      %2230 = vmatprep.subr.mxu0 0.0
      %2231 = vmatpush1.xpose.msra.mxu0 0.0
      %2232 = vmatprep.subr.mxu0 0.0
      %2233 = vmatpush1.xpose.msra.mxu0 0.0
      %2234 = vmatprep.subr.mxu0 0.0
      %2235 = vmatpush1.xpose.msra.mxu0 0.0
      %2236 = vmatprep.subr.mxu0 0.0
      %2237 = vmatpush1.xpose.msra.mxu0 0.0
      %2238 = vmatprep.subr.mxu0 0.0
      %2239 = vmatpush1.xpose.msra.mxu0 0.0
      %2240 = vmatprep.subr.mxu0 0.0
      %2241 = vmatpush1.xpose.msra.mxu0 0.0
      %2242 = vmatprep.subr.mxu0 0.0
      %2243 = vmatpush1.xpose.msra.mxu0 0.0
      %2244 = vmatprep.subr.mxu0 0.0
      %2245 = vmatpush1.xpose.msra.mxu0 0.0
      %2246 = vmatprep.subr.mxu0 0.0
      %2247 = vmatpush1.xpose.msra.mxu0 0.0
      %2248 = vmatprep.subr.mxu0 0.0
      %2249 = vmatpush1.xpose.msra.mxu0 0.0
      %2250 = vmatprep.subr.mxu0 0.0
      %2251 = vmatpush1.xpose.msra.mxu0 0.0
      %2252 = vmatprep.subr.mxu0 0.0
      %2253 = vmatpush1.xpose.msra.mxu0 0.0
      %2254 = vmatprep.subr.mxu0 0.0
      %2255 = vmatpush1.xpose.msra.mxu0 0.0
      %2256 = vmatprep.subr.mxu0 0.0
      %2257 = vmatpush1.xpose.msra.mxu0 0.0
      %2258 = vmatprep.subr.mxu0 0.0
      %2259 = vmatpush1.xpose.msra.mxu0 0.0
      %2260 = vmatprep.subr.mxu0 0.0
      %2261 = vmatpush1.xpose.msra.mxu0 0.0
      %2262 = vmatprep.subr.mxu0 0.0
      %2263 = vmatpush1.xpose.msra.mxu0 0.0
      %2264 = vmatprep.subr.mxu0 0.0
      %2265 = vmatpush1.xpose.msra.mxu0 0.0
      %2266 = vmatprep.subr.mxu0 0.0
      %2267 = vmatpush1.xpose.msra.mxu0 0.0
      %2268 = vmatprep.subr.mxu0 0.0
      %2269 = vmatpush1.xpose.msra.mxu0 0.0
      %2270 = vmatprep.subr.mxu0 0.0
      %2271 = vmatpush1.xpose.msra.mxu0 0.0
      %2272 = vmatprep.subr.mxu0 0.0
      %2273 = vmatpush1.xpose.msra.mxu0 0.0
      %2274 = vmatprep.subr.mxu0 0.0
      %2275 = vmatpush1.xpose.msra.mxu0 0.0
      %2276 = vmatprep.subr.mxu0 0.0
      %2277 = vmatpush1.xpose.msra.mxu0 0.0
      %2278 = vmatprep.subr.mxu0 0.0
      %2279 = vmatpush1.xpose.msra.mxu0 0.0
      %2280 = vmatprep.subr.mxu0 0.0
      %2281 = vmatpush1.xpose.msra.mxu0 0.0
      %2282 = vmatprep.mubr.f32.mxu0 0.0
      %2283 = vmatmul.mubr.f32.gmra.mrb[0].mxu0 %v2214
      %v2284 = vpop.f32.mrb[0].mxu0
      %v2285 = vadd.f32 %v536, %v2284
      %v2286 = vpop.f32.mrb[0].mxu0
      %2287 = vdwg.mxu0
      %v2288 = vsel %vm544, %v2285, -inf
      %2289 = vmax.xlane.f32.xlu0 %v2288
      %v2290 = vpop.xlane.xlu0 %2289
      %v2291 = vsub.f32 %v2285, %v2290
      %v2292 = vmul.f32 %v2291, 1.442695
      %v2293 = vpow.pop %v2292
      %v2294 = vsel %vm544, %v2293, 0.0
      %2295 = vadd.xlane.f32.xlu0 %v2294
      %v2296 = vpop.xlane.xlu0 %2295
      %v2297 = vrcp.pop %v2296
      %v2298 = vmul.f32 %v2293, %v2297
      %2299 = vrot.lane.b32.xlu0 %v526, 40
      %v2300 = vpop.permute.xlu0 %2299
      %v2303 = vsel %vm544, %v2298, 0
      %2305 = vmatprep.subr.mxu0 0.0
      %2306 = vmatpush1.msra.mxu0 %v2300
      %2307 = vmatprep.subr.mxu0 0.0
      %2308 = vmatpush1.msra.mxu0 0.0
      %2309 = vmatprep.subr.mxu0 0.0
      %2310 = vmatpush1.msra.mxu0 0.0
      %2311 = vmatprep.subr.mxu0 0.0
      %2312 = vmatpush1.msra.mxu0 0.0
      %2313 = vmatprep.subr.mxu0 0.0
      %2314 = vmatpush1.msra.mxu0 0.0
      %2315 = vmatprep.subr.mxu0 0.0
      %2316 = vmatpush1.msra.mxu0 0.0
      %2317 = vmatprep.subr.mxu0 0.0
      %2318 = vmatpush1.msra.mxu0 0.0
      %2319 = vmatprep.subr.mxu0 0.0
      %2320 = vmatpush1.msra.mxu0 0.0
      %2321 = vmatprep.subr.mxu0 0.0
      %2322 = vmatpush1.msra.mxu0 0.0
      %2323 = vmatprep.subr.mxu0 0.0
      %2324 = vmatpush1.msra.mxu0 0.0
      %2325 = vmatprep.subr.mxu0 0.0
      %2326 = vmatpush1.msra.mxu0 0.0
      %2327 = vmatprep.subr.mxu0 0.0
      %2328 = vmatpush1.msra.mxu0 0.0
      %2329 = vmatprep.subr.mxu0 0.0
      %2330 = vmatpush1.msra.mxu0 0.0
      %2331 = vmatprep.subr.mxu0 0.0
      %2332 = vmatpush1.msra.mxu0 0.0
      %2333 = vmatprep.subr.mxu0 0.0
      %2334 = vmatpush1.msra.mxu0 0.0
      %2335 = vmatprep.subr.mxu0 0.0
      %2336 = vmatpush1.msra.mxu0 0.0
      %2337 = vmatprep.subr.mxu0 0.0
      %2338 = vmatpush1.msra.mxu0 0.0
      %2339 = vmatprep.subr.mxu0 0.0
      %2340 = vmatpush1.msra.mxu0 0.0
      %2341 = vmatprep.subr.mxu0 0.0
      %2342 = vmatpush1.msra.mxu0 0.0
      %2343 = vmatprep.subr.mxu0 0.0
      %2344 = vmatpush1.msra.mxu0 0.0
      %2345 = vmatprep.subr.mxu0 0.0
      %2346 = vmatpush1.msra.mxu0 0.0
      %2347 = vmatprep.subr.mxu0 0.0
      %2348 = vmatpush1.msra.mxu0 0.0
      %2349 = vmatprep.subr.mxu0 0.0
      %2350 = vmatpush1.msra.mxu0 0.0
      %2351 = vmatprep.subr.mxu0 0.0
      %2352 = vmatpush1.msra.mxu0 0.0
      %2353 = vmatprep.subr.mxu0 0.0
      %2354 = vmatpush1.msra.mxu0 0.0
      %2355 = vmatprep.subr.mxu0 0.0
      %2356 = vmatpush1.msra.mxu0 0.0
      %2357 = vmatprep.subr.mxu0 0.0
      %2358 = vmatpush1.msra.mxu0 0.0
      %2359 = vmatprep.subr.mxu0 0.0
      %2360 = vmatpush1.msra.mxu0 0.0
      %2361 = vmatprep.subr.mxu0 0.0
      %2362 = vmatpush1.msra.mxu0 0.0
      %2363 = vmatprep.subr.mxu0 0.0
      %2364 = vmatpush1.msra.mxu0 0.0
      %2365 = vmatprep.subr.mxu0 0.0
      %2366 = vmatpush1.msra.mxu0 0.0
      %2367 = vmatprep.subr.mxu0 0.0
      %2368 = vmatpush1.msra.mxu0 0.0
      %2369 = vmatprep.mubr.f32.mxu0 0.0
      %2370 = vmatmul.mubr.f32.gmra.mrb[0].mxu0 %v2303
      %v2371 = vpop.f32.mrb[0].mxu0
      %v2372 = vadd.f32 0.0, %v2371
      %v2373 = vpop.f32.mrb[0].mxu0
      %2374 = vdwg.mxu0
      %v2376 = vsel %vm544, %v2372, 0
      %2378 = vmatprep.subr.mxu0 0.0
      %2379 = vmatpush1.msra.mxu0 %v540
      %2380 = vmatprep.subr.mxu0 0.0
      %2381 = vmatpush1.msra.mxu0 0.0
      %2382 = vmatprep.subr.mxu0 0.0
      %2383 = vmatpush1.msra.mxu0 0.0
      %2384 = vmatprep.subr.mxu0 0.0
      %2385 = vmatpush1.msra.mxu0 0.0
      %2386 = vmatprep.subr.mxu0 0.0
      %2387 = vmatpush1.msra.mxu0 0.0
      %2388 = vmatprep.subr.mxu0 0.0
      %2389 = vmatpush1.msra.mxu0 0.0
      %2390 = vmatprep.subr.mxu0 0.0
      %2391 = vmatpush1.msra.mxu0 0.0
      %2392 = vmatprep.subr.mxu0 0.0
      %2393 = vmatpush1.msra.mxu0 0.0
      %2394 = vmatprep.subr.mxu0 0.0
      %2395 = vmatpush1.msra.mxu0 0.0
      %2396 = vmatprep.subr.mxu0 0.0
      %2397 = vmatpush1.msra.mxu0 0.0
      %2398 = vmatprep.subr.mxu0 0.0
      %2399 = vmatpush1.msra.mxu0 0.0
      %2400 = vmatprep.subr.mxu0 0.0
      %2401 = vmatpush1.msra.mxu0 0.0
      %2402 = vmatprep.subr.mxu0 0.0
      %2403 = vmatpush1.msra.mxu0 0.0
      %2404 = vmatprep.subr.mxu0 0.0
      %2405 = vmatpush1.msra.mxu0 0.0
      %2406 = vmatprep.subr.mxu0 0.0
      %2407 = vmatpush1.msra.mxu0 0.0
      %2408 = vmatprep.subr.mxu0 0.0
      %2409 = vmatpush1.msra.mxu0 0.0
      %2410 = vmatprep.subr.mxu0 0.0
      %2411 = vmatpush1.msra.mxu0 0.0
      %2412 = vmatprep.subr.mxu0 0.0
      %2413 = vmatpush1.msra.mxu0 0.0
      %2414 = vmatprep.subr.mxu0 0.0
      %2415 = vmatpush1.msra.mxu0 0.0
      %2416 = vmatprep.subr.mxu0 0.0
      %2417 = vmatpush1.msra.mxu0 0.0
      %2418 = vmatprep.subr.mxu0 0.0
      %2419 = vmatpush1.msra.mxu0 0.0
      %2420 = vmatprep.subr.mxu0 0.0
      %2421 = vmatpush1.msra.mxu0 0.0
      %2422 = vmatprep.subr.mxu0 0.0
      %2423 = vmatpush1.msra.mxu0 0.0
      %2424 = vmatprep.subr.mxu0 0.0
      %2425 = vmatpush1.msra.mxu0 0.0
      %2426 = vmatprep.subr.mxu0 0.0
      %2427 = vmatpush1.msra.mxu0 0.0
      %2428 = vmatprep.subr.mxu0 0.0
      %2429 = vmatpush1.msra.mxu0 0.0
      %2430 = vmatprep.subr.mxu0 0.0
      %2431 = vmatpush1.msra.mxu0 0.0
      %2432 = vmatprep.subr.mxu0 0.0
      %2433 = vmatpush1.msra.mxu0 0.0
      %2434 = vmatprep.subr.mxu0 0.0
      %2435 = vmatpush1.msra.mxu0 0.0
      %2436 = vmatprep.subr.mxu0 0.0
      %2437 = vmatpush1.msra.mxu0 0.0
      %2438 = vmatprep.subr.mxu0 0.0
      %2439 = vmatpush1.msra.mxu0 0.0
      %2440 = vmatprep.subr.mxu0 0.0
      %2441 = vmatpush1.msra.mxu0 0.0
      %2442 = vmatprep.mubr.f32.mxu0 0.0
      %2443 = vmatmul.mubr.f32.gmra.mrb[0].mxu0 %v2376
      %v2444 = vpop.f32.mrb[0].mxu0
      %v2445 = vadd.f32 0.0, %v2444
      %v2446 = vpop.f32.mrb[0].mxu0
      %2447 = vdwg.mxu0
      %v2448 = vadd.f32 %v2209, %v2445
      %2449 = vst.msk [vmem:[#allocation3 + $0x8] sm:$0xff] %vm420, %v2448
      %v2450 = vld [vmem:[#allocation3] sm:$0xff]
      %v2451 = vld [vmem:[#allocation3 + $0x8] sm:$0xff]
      %v2452 = vadd.f32 %v415, %v2450
      %v2453 = vadd.f32 %v416, %v2451
      %v2454 = vld [vmem:[%s395] sm:$0x1]
      %v2455 = vmul.f32 %v2452, %v2452
      %v2456 = vmul.f32 %v2453, %v2453
      %v2457 = vsel %vm420, %v2455, 0.0
      %2458 = vadd.xlane.f32.xlu0 %v2457
      %v2459 = vpop.xlane.xlu0 %2458
      %v2460 = vsel %vm420, %v2456, 0.0
      %2461 = vadd.xlane.f32.xlu0 %v2460
      %v2462 = vpop.xlane.xlu0 %2461
      %v2463 = vmul.f32 %v2459, %v427
      %v2464 = vmul.f32 %v2462, %v427
      %v2465 = vadd.f32 %v2463, 1e-06
      %v2466 = vadd.f32 %v2464, 1e-06
      %v2467 = vrsqrt.pop %v2465
      %v2468 = vrsqrt.pop %v2466
      %v2469 = vmul.f32 %v2452, %v2467
      %v2470 = vmul.f32 %v2453, %v2468
      %v2472 = vlaneseq
      %v2473 = vshrl.u32 %v2472, 7
      %v2474 = vsub.s32 0, %v2473
      %v2475 = vrot.slane %v2454, %v2474
      %v2477 = vmul.f32 %v2469, %v2475
      %v2478 = vmul.f32 %v2470, %v2475
      %v2479 = vld [vmem:[%s400] sm:$0xff]
      %v2480 = vld [vmem:[%s400 + $0x8] sm:$0xff]
      %v2481 = vld [vmem:[%s400 + $0x10] sm:$0xff]
      %v2482 = vld [vmem:[%s400 + $0x18] sm:$0xff]
      %v2484 = vsel %vm420, %v2477, 0
      %v2487 = vsel %vm420, %v2478, 0
      %2489 = vmatprep.subr.mxu0 0.0
      %2490 = vmatpush1.msra.mxu0 %v2479
      %2491 = vmatprep.subr.mxu0 0.0
      %2492 = vmatpush1.msra.mxu0 %v2480
      %2493 = vmatprep.subr.mxu0 0.0
      %2494 = vmatpush1.msra.mxu0 %v2481
      %2495 = vmatprep.subr.mxu0 0.0
      %2496 = vmatpush1.msra.mxu0 %v2482
      %2497 = vmatprep.subr.mxu0 0.0
      %2498 = vmatpush1.msra.mxu0 0.0
      %2499 = vmatprep.subr.mxu0 0.0
      %2500 = vmatpush1.msra.mxu0 0.0
      %2501 = vmatprep.subr.mxu0 0.0
      %2502 = vmatpush1.msra.mxu0 0.0
      %2503 = vmatprep.subr.mxu0 0.0
      %2504 = vmatpush1.msra.mxu0 0.0
      %2505 = vmatprep.subr.mxu0 0.0
      %2506 = vmatpush1.msra.mxu0 0.0
      %2507 = vmatprep.subr.mxu0 0.0
      %2508 = vmatpush1.msra.mxu0 0.0
      %2509 = vmatprep.subr.mxu0 0.0
      %2510 = vmatpush1.msra.mxu0 0.0
      %2511 = vmatprep.subr.mxu0 0.0
      %2512 = vmatpush1.msra.mxu0 0.0
      %2513 = vmatprep.subr.mxu0 0.0
      %2514 = vmatpush1.msra.mxu0 0.0
      %2515 = vmatprep.subr.mxu0 0.0
      %2516 = vmatpush1.msra.mxu0 0.0
      %2517 = vmatprep.subr.mxu0 0.0
      %2518 = vmatpush1.msra.mxu0 0.0
      %2519 = vmatprep.subr.mxu0 0.0
      %2520 = vmatpush1.msra.mxu0 0.0
      %2521 = vmatprep.subr.mxu0 0.0
      %2522 = vmatpush1.msra.mxu0 0.0
      %2523 = vmatprep.subr.mxu0 0.0
      %2524 = vmatpush1.msra.mxu0 0.0
      %2525 = vmatprep.subr.mxu0 0.0
      %2526 = vmatpush1.msra.mxu0 0.0
      %2527 = vmatprep.subr.mxu0 0.0
      %2528 = vmatpush1.msra.mxu0 0.0
      %2529 = vmatprep.subr.mxu0 0.0
      %2530 = vmatpush1.msra.mxu0 0.0
      %2531 = vmatprep.subr.mxu0 0.0
      %2532 = vmatpush1.msra.mxu0 0.0
      %2533 = vmatprep.subr.mxu0 0.0
      %2534 = vmatpush1.msra.mxu0 0.0
      %2535 = vmatprep.subr.mxu0 0.0
      %2536 = vmatpush1.msra.mxu0 0.0
      %2537 = vmatprep.subr.mxu0 0.0
      %2538 = vmatpush1.msra.mxu0 0.0
      %2539 = vmatprep.subr.mxu0 0.0
      %2540 = vmatpush1.msra.mxu0 0.0
      %2541 = vmatprep.subr.mxu0 0.0
      %2542 = vmatpush1.msra.mxu0 0.0
      %2543 = vmatprep.subr.mxu0 0.0
      %2544 = vmatpush1.msra.mxu0 0.0
      %2545 = vmatprep.subr.mxu0 0.0
      %2546 = vmatpush1.msra.mxu0 0.0
      %2547 = vmatprep.subr.mxu0 0.0
      %2548 = vmatpush1.msra.mxu0 0.0
      %2549 = vmatprep.subr.mxu0 0.0
      %2550 = vmatpush1.msra.mxu0 0.0
      %2551 = vmatprep.subr.mxu0 0.0
      %2552 = vmatpush1.msra.mxu0 0.0
      %2553 = vmatprep.mubr.f32.mxu0 0.0
      %2554 = vmatmul.mubr.f32.gmra.mrb[0].mxu0 %v2484
      %v2555 = vpop.f32.mrb[0].mxu0
      %v2556 = vadd.f32 0.0, %v2555
      %v2557 = vpop.f32.mrb[0].mxu0
      %2558 = vmatprep.mubr.f32.mxu0 0.0
      %2559 = vmatmul.mubr.f32.gmra.mrb[0].mxu0 %v2487
      %v2560 = vpop.f32.mrb[0].mxu0
      %v2561 = vadd.f32 0.0, %v2560
      %v2562 = vpop.f32.mrb[0].mxu0
      %2563 = vdwg.mxu0
      %v2564 = vmax.f32 %v2556, 0.0
      %v2565 = vmax.f32 %v2561, 0.0
      %v2566 = vld [vmem:[%s405] sm:$0xff]
      %v2567 = vld [vmem:[%s405 + $0x8] sm:$0xff]
      %v2568 = vld [vmem:[%s405 + $0x10] sm:$0xff]
      %v2569 = vld [vmem:[%s405 + $0x18] sm:$0xff]
      %v2570 = vld [vmem:[%s405 + $0x20] sm:$0xff]
      %v2571 = vld [vmem:[%s405 + $0x28] sm:$0xff]
      %v2572 = vld [vmem:[%s405 + $0x30] sm:$0xff]
      %v2573 = vld [vmem:[%s405 + $0x38] sm:$0xff]
      %vm2574 = vcmask 523264
      %v2576 = vsel %vm2574, %v2564, 0
      %v2579 = vsel %vm2574, %v2565, 0
      %2581 = vmatprep.subr.mxu0 0.0
      %2582 = vmatpush1.msra.mxu0 %v2566
      %2583 = vmatprep.subr.mxu0 0.0
      %2584 = vmatpush1.msra.mxu0 %v2567
      %2585 = vmatprep.subr.mxu0 0.0
      %2586 = vmatpush1.msra.mxu0 %v2568
      %2587 = vmatprep.subr.mxu0 0.0
      %2588 = vmatpush1.msra.mxu0 %v2569
      %2589 = vmatprep.subr.mxu0 0.0
      %2590 = vmatpush1.msra.mxu0 %v2570
      %2591 = vmatprep.subr.mxu0 0.0
      %2592 = vmatpush1.msra.mxu0 %v2571
      %2593 = vmatprep.subr.mxu0 0.0
      %2594 = vmatpush1.msra.mxu0 %v2572
      %2595 = vmatprep.subr.mxu0 0.0
      %2596 = vmatpush1.msra.mxu0 %v2573
      %2597 = vmatprep.subr.mxu0 0.0
      %2598 = vmatpush1.msra.mxu0 0.0
      %2599 = vmatprep.subr.mxu0 0.0
      %2600 = vmatpush1.msra.mxu0 0.0
      %2601 = vmatprep.subr.mxu0 0.0
      %2602 = vmatpush1.msra.mxu0 0.0
      %2603 = vmatprep.subr.mxu0 0.0
      %2604 = vmatpush1.msra.mxu0 0.0
      %2605 = vmatprep.subr.mxu0 0.0
      %2606 = vmatpush1.msra.mxu0 0.0
      %2607 = vmatprep.subr.mxu0 0.0
      %2608 = vmatpush1.msra.mxu0 0.0
      %2609 = vmatprep.subr.mxu0 0.0
      %2610 = vmatpush1.msra.mxu0 0.0
      %2611 = vmatprep.subr.mxu0 0.0
      %2612 = vmatpush1.msra.mxu0 0.0
      %2613 = vmatprep.subr.mxu0 0.0
      %2614 = vmatpush1.msra.mxu0 0.0
      %2615 = vmatprep.subr.mxu0 0.0
      %2616 = vmatpush1.msra.mxu0 0.0
      %2617 = vmatprep.subr.mxu0 0.0
      %2618 = vmatpush1.msra.mxu0 0.0
      %2619 = vmatprep.subr.mxu0 0.0
      %2620 = vmatpush1.msra.mxu0 0.0
      %2621 = vmatprep.subr.mxu0 0.0
      %2622 = vmatpush1.msra.mxu0 0.0
      %2623 = vmatprep.subr.mxu0 0.0
      %2624 = vmatpush1.msra.mxu0 0.0
      %2625 = vmatprep.subr.mxu0 0.0
      %2626 = vmatpush1.msra.mxu0 0.0
      %2627 = vmatprep.subr.mxu0 0.0
      %2628 = vmatpush1.msra.mxu0 0.0
      %2629 = vmatprep.subr.mxu0 0.0
      %2630 = vmatpush1.msra.mxu0 0.0
      %2631 = vmatprep.subr.mxu0 0.0
      %2632 = vmatpush1.msra.mxu0 0.0
      %2633 = vmatprep.subr.mxu0 0.0
      %2634 = vmatpush1.msra.mxu0 0.0
      %2635 = vmatprep.subr.mxu0 0.0
      %2636 = vmatpush1.msra.mxu0 0.0
      %2637 = vmatprep.subr.mxu0 0.0
      %2638 = vmatpush1.msra.mxu0 0.0
      %2639 = vmatprep.subr.mxu0 0.0
      %2640 = vmatpush1.msra.mxu0 0.0
      %2641 = vmatprep.subr.mxu0 0.0
      %2642 = vmatpush1.msra.mxu0 0.0
      %2643 = vmatprep.subr.mxu0 0.0
      %2644 = vmatpush1.msra.mxu0 0.0
      %2645 = vmatprep.mubr.f32.mxu0 0.0
      %2646 = vmatmul.mubr.f32.gmra.mrb[0].mxu0 %v2576
      %v2647 = vpop.f32.mrb[0].mxu0
      %v2648 = vadd.f32 0.0, %v2647
      %v2649 = vpop.f32.mrb[0].mxu0
      %2650 = vmatprep.mubr.f32.mxu0 0.0
      %2651 = vmatmul.mubr.f32.gmra.mrb[0].mxu0 %v2579
      %v2652 = vpop.f32.mrb[0].mxu0
      %v2653 = vadd.f32 0.0, %v2652
      %v2654 = vpop.f32.mrb[0].mxu0
      %2655 = vdwg.mxu0
      %v2656 = vadd.f32 %v2452, %v2648
      %v2657 = vadd.f32 %v2453, %v2653
      %2658 = vst.msk [vmem:[#allocation2] sm:$0xff] %vm420, %v2656
      %2659 = vst.msk [vmem:[#allocation2 + $0x8] sm:$0xff] %vm420, %v2657
      %2660 = vst.msk [vmem:[%s9] sm:$0xff] %vm420, %v2656
      %2661 = vst.msk [vmem:[%s9 + $0x8] sm:$0xff] %vm420, %v2657
      %p2662 = scmp.eq.s32.totalorder %s20, 1
      // Predicated region
      $region61: #{seq2seq_lm_with_value_head_forward.3} parent=55 // pred_check
        %p2663 = pneg %p2662
      $region62: #{seq2seq_lm_with_value_head_forward.3} parent=55 // pred_check_branch
        %2665 = sbr.rel (%p2663) target = $region64
      $region63: #{seq2seq_lm_with_value_head_forward.3} parent=55 // pred_region
        %v2666 = vld [vmem:[%s8] sm:$0x1]
        %v2667 = vmul.f32 %v2656, %v2656
        %v2668 = vmul.f32 %v2657, %v2657
        %v2669 = vsel %vm420, %v2667, 0.0
        %2670 = vadd.xlane.f32.xlu0 %v2669
        %v2671 = vpop.xlane.xlu0 %2670
        %v2672 = vsel %vm420, %v2668, 0.0
        %2673 = vadd.xlane.f32.xlu0 %v2672
        %v2674 = vpop.xlane.xlu0 %2673
        %v2675 = vmul.f32 %v2671, %v427
        %v2676 = vmul.f32 %v2674, %v427
        %v2677 = vadd.f32 %v2675, 1e-06
        %v2678 = vadd.f32 %v2676, 1e-06
        %v2679 = vrsqrt.pop %v2677
        %v2680 = vrsqrt.pop %v2678
        %v2681 = vmul.f32 %v2656, %v2679
        %v2682 = vmul.f32 %v2657, %v2680
        %v2684 = vlaneseq
        %v2685 = vshrl.u32 %v2684, 7
        %v2686 = vsub.s32 0, %v2685
        %v2687 = vrot.slane %v2666, %v2686
        %v2689 = vmul.f32 %v2681, %v2687
        %v2690 = vmul.f32 %v2682, %v2687
        %2691 = vst.msk [vmem:[%s9] sm:$0xff] %vm420, %v2689
        %2692 = vst.msk [vmem:[%s9 + $0x8] sm:$0xff] %vm420, %v2690
      $region64: #{seq2seq_lm_with_value_head_forward.3} parent=55 // pred_fallthru
        _
      // Predicated region
      $region65: #{seq2seq_lm_with_value_head_forward.3} parent=55 // pred_check
        %p2693 = pneg %p252
      $region66: #{seq2seq_lm_with_value_head_forward.3} parent=55 // pred_check_branch
        %2695 = sbr.rel (%p2693) target = $region68
      $region67: #{seq2seq_lm_with_value_head_forward.3} parent=55 // pred_region
        _
      $region68: #{seq2seq_lm_with_value_head_forward.3} parent=55 // pred_fallthru
        _
      // Predicated region
      $region69: #{seq2seq_lm_with_value_head_forward.3} parent=55 // pred_check
        %p2696 = pneg %p252
      $region70: #{seq2seq_lm_with_value_head_forward.3} parent=55 // pred_check_branch
        %2698 = sbr.rel (%p2696) target = $region72
      $region71: #{seq2seq_lm_with_value_head_forward.3} parent=55 // pred_region
        _
      $region72: #{seq2seq_lm_with_value_head_forward.3} parent=55 // pred_fallthru
        _
    $region56: #{seq2seq_lm_with_value_head_forward.3} parent=5 // pred_fallthru
      _
    %p2699 = scmp.le.s32.totalorder 2, %s15
    // Predicated region
    $region73: #{seq2seq_lm_with_value_head_forward.3} parent=5 // pred_check
      %p2700 = pneg %p2699
    $region74: #{seq2seq_lm_with_value_head_forward.3} parent=5 // pred_check_branch
      %2702 = sbr.rel (%p2700) target = $region76
    $region75: #{seq2seq_lm_with_value_head_forward.3} parent=5 // pred_region
      %s2703 = ssub.s32 %s15, 2
    $region76: #{seq2seq_lm_with_value_head_forward.3} parent=5 // pred_fallthru
      _
  $region6: #{seq2seq_lm_with_value_head_forward.3} parent=0 // loop_footer
    %s19 = sadd.s32 1, %s15
  $region7: #{seq2seq_lm_with_value_head_forward.3} parent=0 // loop_footer_branch
    %14 = sbr.rel target = $region3
  $region8: #{seq2seq_lm_with_value_head_forward.3} parent=0 // loop_exit
    _

// kernel: seq2seq_lm_with_value_head_forward.4
$region0: #{seq2seq_lm_with_value_head_forward.4}
  #allocation0 [shape = 'u32[]', space=smem, size = 0x4, offset = 0x4, fixed_abs, tag = 'smem constant byte address 0x4 - core index']
  #allocation1 [shape = 'u32[144,128]{1,0:T(1,128)}', space=vmem, size = 0x12000, scoped, tag = 'internal scratch']
  #allocation2 [shape = 'f32[16,32]{1,0:T(8,128)}', space=vmem, size = 0x2000, scoped, tag = 'scratch operand']
  #allocation3 [shape = 'f32[16,32]{1,0:T(8,128)}', space=vmem, size = 0x2000, scoped, tag = 'scratch operand']
  %s0 = inlined_call_operand.vmem [shape: f32[16,32], index: 0, kind: input, shape index: {}]
  %s1 = inlined_call_operand.vmem [shape: f32[16,32], index: 1, kind: input, shape index: {}]
  %s2 = inlined_call_operand.vmem [shape: f32[4,8,8], index: 2, kind: input, shape index: {}]
  %s3 = inlined_call_operand.vmem [shape: f32[2,8], index: 3, kind: input, shape index: {}]
  %s4 = inlined_call_operand.vmem [shape: f32[2,1,32], index: 4, kind: input, shape index: {}]
  %s5 = inlined_call_operand.vmem [shape: f32[2,32,96], index: 5, kind: input, shape index: {}]
  %s6 = inlined_call_operand.vmem [shape: f32[2,32,32], index: 6, kind: input, shape index: {}]
  %s7 = inlined_call_operand.vmem [shape: f32[2,1,32], index: 7, kind: input, shape index: {}]
  %s8 = inlined_call_operand.vmem [shape: f32[2,32,32], index: 8, kind: input, shape index: {}]
  %s9 = inlined_call_operand.vmem [shape: f32[2,32,64], index: 9, kind: input, shape index: {}]
  %s10 = inlined_call_operand.vmem [shape: f32[2,32,32], index: 10, kind: input, shape index: {}]
  %s11 = inlined_call_operand.vmem [shape: f32[2,1,32], index: 11, kind: input, shape index: {}]
  %s12 = inlined_call_operand.vmem [shape: f32[2,32,64], index: 12, kind: input, shape index: {}]
  %s13 = inlined_call_operand.vmem [shape: f32[2,64,32], index: 13, kind: input, shape index: {}]
  %s14 = inlined_call_operand.vmem [shape: f32[1,32], index: 14, kind: input, shape index: {}]
  %s15 = inlined_call_operand.vmem [shape: f32[2,16,32], index: 15, kind: output, shape index: {0}]
  %s16 = inlined_call_operand.vmem [shape: f32[16,32], index: 16, kind: output, shape index: {1}]
  %17 = xla_tuple %s15, %s16
  %s18 = sld [smem:[#allocation0]]
  $region109: #{seq2seq_lm_with_value_head_forward.4} parent=0
    _
  %s20 = ssub.s32 1, %s18
  %s21 = scalar_select 0, %s20, %s18
  loop: start=0, step=1, limit=4
  $region2: #{seq2seq_lm_with_value_head_forward.4} parent=0 // loop_pre_header
    _
  $region3: #{seq2seq_lm_with_value_head_forward.4} parent=0 // loop_header
    %s23 = sphi 0, %s27
    %p24 = scmp.ge.s32.totalorder %s23, 4
    %s31 = sphi 0, %s31
    %s33 = sphi 0, %s31
    %s34 = sphi 0, %s33
    %s48 = sphi 0, %s34
    %s52 = sphi 0, %s52
    %s54 = sphi 0, %s52
    %s55 = sphi 0, %s54
    %s69 = sphi 0, %s55
    %s73 = sphi 0, %s73
    %s75 = sphi 0, %s73
    %s76 = sphi 0, %s75
    %s90 = sphi 0, %s76
    %s94 = sphi 0, %s94
    %s96 = sphi 0, %s94
    %s97 = sphi 0, %s96
    %s111 = sphi 0, %s97
    %s117 = sphi 0, %s119
    %s120 = sphi 0, %s117
    %s121 = sphi 0, %s120
    %s137 = sphi 0, %s121
    %s143 = sphi 0, %s145
    %s146 = sphi 0, %s143
    %s147 = sphi 0, %s146
    %s163 = sphi 0, %s147
    %s169 = sphi 0, %s171
    %s172 = sphi 0, %s169
    %s173 = sphi 0, %s172
    %s189 = sphi 0, %s173
    %s195 = sphi 0, %s197
    %s198 = sphi 0, %s195
    %s199 = sphi 0, %s198
    %s215 = sphi 0, %s199
    %s221 = sphi 0, %s223
    %s224 = sphi 0, %s221
    %s225 = sphi 0, %s224
    %s241 = sphi 0, %s225
    %s247 = sphi 0, %s249
    %s250 = sphi 0, %s247
    %s251 = sphi 0, %s250
    %s267 = sphi 0, %s251
    %s273 = sphi 0, %s275
    %s276 = sphi 0, %s273
    %s277 = sphi 0, %s276
    %s293 = sphi 0, %s277
    %s299 = sphi 0, %s301
    %s302 = sphi 0, %s299
    %s303 = sphi 0, %s302
    %s319 = sphi 0, %s303
    %s325 = sphi 0, %s327
    %s328 = sphi 0, %s325
    %s329 = sphi 0, %s328
    %s345 = sphi 0, %s329
    %s351 = sphi 0, %s353
    %s354 = sphi 0, %s351
    %s355 = sphi 0, %s354
    %s371 = sphi 0, %s355
    %s375 = sphi 0, %s375
    %s377 = sphi 0, %s375
    %s378 = sphi 0, %s377
    %s392 = sphi 0, %s378
    %s398 = sphi 0, %s400
    %s401 = sphi 0, %s398
    %s402 = sphi 0, %s401
    %s418 = sphi 0, %s402
    %s422 = sphi 0, %s422
    %s424 = sphi 0, %s422
    %s425 = sphi 0, %s424
    %s439 = sphi 0, %s425
  $region4: #{seq2seq_lm_with_value_head_forward.4} parent=0 // loop_header_branch
    %26 = sbr.rel (%p24) target = $region8
  $region5: #{seq2seq_lm_with_value_head_forward.4} parent=0 // loop_body
    %s28 = ssub.s32 %s23, 1
    %s29 = ssub.s32 %s23, 2
    %s30 = sadd.s32 %s23, 1
    %s32 = sadd.s32 %s31, 1
    %p35 = scmp.eq.s32.totalorder %s23, 1
    %p36 = scmp.ne.s32.totalorder %s31, %s33
    %p37 = scmp.eq.s32.totalorder %s23, 0
    %p38 = por %p36, %p37
    %p39 = scmp.ne.s32.totalorder %s31, %s33
    %p40 = scmp.eq.s32.totalorder %s28, 1
    %p41 = por %p39, %p40
    %p42 = scmp.ne.s32.totalorder %s33, %s34
    %p43 = scmp.eq.s32.totalorder %s28, 0
    %p44 = por %p42, %p43
    %p45 = scmp.ne.s32.totalorder %s33, %s34
    %p46 = scmp.eq.s32.totalorder %s29, 1
    %p47 = por %p45, %p46
    %p49 = scmp.ne.s32.totalorder %s34, %s48
    %p50 = scmp.eq.s32.totalorder %s29, 0
    %p51 = por %p49, %p50
    %s53 = sadd.s32 %s52, 1
    %p56 = scmp.eq.s32.totalorder %s23, 1
    %p57 = scmp.ne.s32.totalorder %s52, %s54
    %p58 = scmp.eq.s32.totalorder %s23, 0
    %p59 = por %p57, %p58
    %p60 = scmp.ne.s32.totalorder %s52, %s54
    %p61 = scmp.eq.s32.totalorder %s28, 1
    %p62 = por %p60, %p61
    %p63 = scmp.ne.s32.totalorder %s54, %s55
    %p64 = scmp.eq.s32.totalorder %s28, 0
    %p65 = por %p63, %p64
    %p66 = scmp.ne.s32.totalorder %s54, %s55
    %p67 = scmp.eq.s32.totalorder %s29, 1
    %p68 = por %p66, %p67
    %p70 = scmp.ne.s32.totalorder %s55, %s69
    %p71 = scmp.eq.s32.totalorder %s29, 0
    %p72 = por %p70, %p71
    %s74 = sadd.s32 %s73, 1
    %p77 = scmp.eq.s32.totalorder %s23, 1
    %p78 = scmp.ne.s32.totalorder %s73, %s75
    %p79 = scmp.eq.s32.totalorder %s23, 0
    %p80 = por %p78, %p79
    %p81 = scmp.ne.s32.totalorder %s73, %s75
    %p82 = scmp.eq.s32.totalorder %s28, 1
    %p83 = por %p81, %p82
    %p84 = scmp.ne.s32.totalorder %s75, %s76
    %p85 = scmp.eq.s32.totalorder %s28, 0
    %p86 = por %p84, %p85
    %p87 = scmp.ne.s32.totalorder %s75, %s76
    %p88 = scmp.eq.s32.totalorder %s29, 1
    %p89 = por %p87, %p88
    %p91 = scmp.ne.s32.totalorder %s76, %s90
    %p92 = scmp.eq.s32.totalorder %s29, 0
    %p93 = por %p91, %p92
    %s95 = sadd.s32 %s94, 1
    %p98 = scmp.eq.s32.totalorder %s23, 1
    %p99 = scmp.ne.s32.totalorder %s94, %s96
    %p100 = scmp.eq.s32.totalorder %s23, 0
    %p101 = por %p99, %p100
    %p102 = scmp.ne.s32.totalorder %s94, %s96
    %p103 = scmp.eq.s32.totalorder %s28, 1
    %p104 = por %p102, %p103
    %p105 = scmp.ne.s32.totalorder %s96, %s97
    %p106 = scmp.eq.s32.totalorder %s28, 0
    %p107 = por %p105, %p106
    %p108 = scmp.ne.s32.totalorder %s96, %s97
    %p109 = scmp.eq.s32.totalorder %s29, 1
    %p110 = por %p108, %p109
    %p112 = scmp.ne.s32.totalorder %s97, %s111
    %p113 = scmp.eq.s32.totalorder %s29, 0
    %p114 = por %p112, %p113
    %s115 = ssub.s32 %s23, %s30
    %p116 = scmp.eq.s32.totalorder %s115, 0
    %s118 = sadd.s32 %s117, 1
    %s119 = scalar_select %p116, %s117, %s118
    %p122 = pneg %p116
    %p123 = scmp.eq.s32.totalorder %s23, 1
    %p124 = por %p122, %p123
    %p125 = scmp.ne.s32.totalorder %s117, %s120
    %p126 = scmp.eq.s32.totalorder %s23, 0
    %p127 = por %p125, %p126
    %p128 = scmp.ne.s32.totalorder %s117, %s120
    %p129 = scmp.eq.s32.totalorder %s28, 1
    %p130 = por %p128, %p129
    %p131 = scmp.ne.s32.totalorder %s120, %s121
    %p132 = scmp.eq.s32.totalorder %s28, 0
    %p133 = por %p131, %p132
    %p134 = scmp.ne.s32.totalorder %s120, %s121
    %p135 = scmp.eq.s32.totalorder %s29, 1
    %p136 = por %p134, %p135
    %p138 = scmp.ne.s32.totalorder %s121, %s137
    %p139 = scmp.eq.s32.totalorder %s29, 0
    %p140 = por %p138, %p139
    %s141 = ssub.s32 %s23, %s30
    %p142 = scmp.eq.s32.totalorder %s141, 0
    %s144 = sadd.s32 %s143, 1
    %s145 = scalar_select %p142, %s143, %s144
    %p148 = pneg %p142
    %p149 = scmp.eq.s32.totalorder %s23, 1
    %p150 = por %p148, %p149
    %p151 = scmp.ne.s32.totalorder %s143, %s146
    %p152 = scmp.eq.s32.totalorder %s23, 0
    %p153 = por %p151, %p152
    %p154 = scmp.ne.s32.totalorder %s143, %s146
    %p155 = scmp.eq.s32.totalorder %s28, 1
    %p156 = por %p154, %p155
    %p157 = scmp.ne.s32.totalorder %s146, %s147
    %p158 = scmp.eq.s32.totalorder %s28, 0
    %p159 = por %p157, %p158
    %p160 = scmp.ne.s32.totalorder %s146, %s147
    %p161 = scmp.eq.s32.totalorder %s29, 1
    %p162 = por %p160, %p161
    %p164 = scmp.ne.s32.totalorder %s147, %s163
    %p165 = scmp.eq.s32.totalorder %s29, 0
    %p166 = por %p164, %p165
    %s167 = ssub.s32 %s23, %s30
    %p168 = scmp.eq.s32.totalorder %s167, 0
    %s170 = sadd.s32 %s169, 1
    %s171 = scalar_select %p168, %s169, %s170
    %p174 = pneg %p168
    %p175 = scmp.eq.s32.totalorder %s23, 1
    %p176 = por %p174, %p175
    %p177 = scmp.ne.s32.totalorder %s169, %s172
    %p178 = scmp.eq.s32.totalorder %s23, 0
    %p179 = por %p177, %p178
    %p180 = scmp.ne.s32.totalorder %s169, %s172
    %p181 = scmp.eq.s32.totalorder %s28, 1
    %p182 = por %p180, %p181
    %p183 = scmp.ne.s32.totalorder %s172, %s173
    %p184 = scmp.eq.s32.totalorder %s28, 0
    %p185 = por %p183, %p184
    %p186 = scmp.ne.s32.totalorder %s172, %s173
    %p187 = scmp.eq.s32.totalorder %s29, 1
    %p188 = por %p186, %p187
    %p190 = scmp.ne.s32.totalorder %s173, %s189
    %p191 = scmp.eq.s32.totalorder %s29, 0
    %p192 = por %p190, %p191
    %s193 = ssub.s32 %s23, %s30
    %p194 = scmp.eq.s32.totalorder %s193, 0
    %s196 = sadd.s32 %s195, 1
    %s197 = scalar_select %p194, %s195, %s196
    %p200 = pneg %p194
    %p201 = scmp.eq.s32.totalorder %s23, 1
    %p202 = por %p200, %p201
    %p203 = scmp.ne.s32.totalorder %s195, %s198
    %p204 = scmp.eq.s32.totalorder %s23, 0
    %p205 = por %p203, %p204
    %p206 = scmp.ne.s32.totalorder %s195, %s198
    %p207 = scmp.eq.s32.totalorder %s28, 1
    %p208 = por %p206, %p207
    %p209 = scmp.ne.s32.totalorder %s198, %s199
    %p210 = scmp.eq.s32.totalorder %s28, 0
    %p211 = por %p209, %p210
    %p212 = scmp.ne.s32.totalorder %s198, %s199
    %p213 = scmp.eq.s32.totalorder %s29, 1
    %p214 = por %p212, %p213
    %p216 = scmp.ne.s32.totalorder %s199, %s215
    %p217 = scmp.eq.s32.totalorder %s29, 0
    %p218 = por %p216, %p217
    %s219 = ssub.s32 %s23, %s30
    %p220 = scmp.eq.s32.totalorder %s219, 0
    %s222 = sadd.s32 %s221, 1
    %s223 = scalar_select %p220, %s221, %s222
    %p226 = pneg %p220
    %p227 = scmp.eq.s32.totalorder %s23, 1
    %p228 = por %p226, %p227
    %p229 = scmp.ne.s32.totalorder %s221, %s224
    %p230 = scmp.eq.s32.totalorder %s23, 0
    %p231 = por %p229, %p230
    %p232 = scmp.ne.s32.totalorder %s221, %s224
    %p233 = scmp.eq.s32.totalorder %s28, 1
    %p234 = por %p232, %p233
    %p235 = scmp.ne.s32.totalorder %s224, %s225
    %p236 = scmp.eq.s32.totalorder %s28, 0
    %p237 = por %p235, %p236
    %p238 = scmp.ne.s32.totalorder %s224, %s225
    %p239 = scmp.eq.s32.totalorder %s29, 1
    %p240 = por %p238, %p239
    %p242 = scmp.ne.s32.totalorder %s225, %s241
    %p243 = scmp.eq.s32.totalorder %s29, 0
    %p244 = por %p242, %p243
    %s245 = ssub.s32 %s23, %s30
    %p246 = scmp.eq.s32.totalorder %s245, 0
    %s248 = sadd.s32 %s247, 1
    %s249 = scalar_select %p246, %s247, %s248
    %p252 = pneg %p246
    %p253 = scmp.eq.s32.totalorder %s23, 1
    %p254 = por %p252, %p253
    %p255 = scmp.ne.s32.totalorder %s247, %s250
    %p256 = scmp.eq.s32.totalorder %s23, 0
    %p257 = por %p255, %p256
    %p258 = scmp.ne.s32.totalorder %s247, %s250
    %p259 = scmp.eq.s32.totalorder %s28, 1
    %p260 = por %p258, %p259
    %p261 = scmp.ne.s32.totalorder %s250, %s251
    %p262 = scmp.eq.s32.totalorder %s28, 0
    %p263 = por %p261, %p262
    %p264 = scmp.ne.s32.totalorder %s250, %s251
    %p265 = scmp.eq.s32.totalorder %s29, 1
    %p266 = por %p264, %p265
    %p268 = scmp.ne.s32.totalorder %s251, %s267
    %p269 = scmp.eq.s32.totalorder %s29, 0
    %p270 = por %p268, %p269
    %s271 = ssub.s32 %s23, %s30
    %p272 = scmp.eq.s32.totalorder %s271, 0
    %s274 = sadd.s32 %s273, 1
    %s275 = scalar_select %p272, %s273, %s274
    %p278 = pneg %p272
    %p279 = scmp.eq.s32.totalorder %s23, 1
    %p280 = por %p278, %p279
    %p281 = scmp.ne.s32.totalorder %s273, %s276
    %p282 = scmp.eq.s32.totalorder %s23, 0
    %p283 = por %p281, %p282
    %p284 = scmp.ne.s32.totalorder %s273, %s276
    %p285 = scmp.eq.s32.totalorder %s28, 1
    %p286 = por %p284, %p285
    %p287 = scmp.ne.s32.totalorder %s276, %s277
    %p288 = scmp.eq.s32.totalorder %s28, 0
    %p289 = por %p287, %p288
    %p290 = scmp.ne.s32.totalorder %s276, %s277
    %p291 = scmp.eq.s32.totalorder %s29, 1
    %p292 = por %p290, %p291
    %p294 = scmp.ne.s32.totalorder %s277, %s293
    %p295 = scmp.eq.s32.totalorder %s29, 0
    %p296 = por %p294, %p295
    %s297 = ssub.s32 %s23, %s30
    %p298 = scmp.eq.s32.totalorder %s297, 0
    %s300 = sadd.s32 %s299, 1
    %s301 = scalar_select %p298, %s299, %s300
    %p304 = pneg %p298
    %p305 = scmp.eq.s32.totalorder %s23, 1
    %p306 = por %p304, %p305
    %p307 = scmp.ne.s32.totalorder %s299, %s302
    %p308 = scmp.eq.s32.totalorder %s23, 0
    %p309 = por %p307, %p308
    %p310 = scmp.ne.s32.totalorder %s299, %s302
    %p311 = scmp.eq.s32.totalorder %s28, 1
    %p312 = por %p310, %p311
    %p313 = scmp.ne.s32.totalorder %s302, %s303
    %p314 = scmp.eq.s32.totalorder %s28, 0
    %p315 = por %p313, %p314
    %p316 = scmp.ne.s32.totalorder %s302, %s303
    %p317 = scmp.eq.s32.totalorder %s29, 1
    %p318 = por %p316, %p317
    %p320 = scmp.ne.s32.totalorder %s303, %s319
    %p321 = scmp.eq.s32.totalorder %s29, 0
    %p322 = por %p320, %p321
    %s323 = ssub.s32 %s23, %s30
    %p324 = scmp.eq.s32.totalorder %s323, 0
    %s326 = sadd.s32 %s325, 1
    %s327 = scalar_select %p324, %s325, %s326
    %p330 = pneg %p324
    %p331 = scmp.eq.s32.totalorder %s23, 1
    %p332 = por %p330, %p331
    %p333 = scmp.ne.s32.totalorder %s325, %s328
    %p334 = scmp.eq.s32.totalorder %s23, 0
    %p335 = por %p333, %p334
    %p336 = scmp.ne.s32.totalorder %s325, %s328
    %p337 = scmp.eq.s32.totalorder %s28, 1
    %p338 = por %p336, %p337
    %p339 = scmp.ne.s32.totalorder %s328, %s329
    %p340 = scmp.eq.s32.totalorder %s28, 0
    %p341 = por %p339, %p340
    %p342 = scmp.ne.s32.totalorder %s328, %s329
    %p343 = scmp.eq.s32.totalorder %s29, 1
    %p344 = por %p342, %p343
    %p346 = scmp.ne.s32.totalorder %s329, %s345
    %p347 = scmp.eq.s32.totalorder %s29, 0
    %p348 = por %p346, %p347
    %s349 = ssub.s32 %s23, %s30
    %p350 = scmp.eq.s32.totalorder %s349, 0
    %s352 = sadd.s32 %s351, 1
    %s353 = scalar_select %p350, %s351, %s352
    %p356 = pneg %p350
    %p357 = scmp.eq.s32.totalorder %s23, 1
    %p358 = por %p356, %p357
    %p359 = scmp.ne.s32.totalorder %s351, %s354
    %p360 = scmp.eq.s32.totalorder %s23, 0
    %p361 = por %p359, %p360
    %p362 = scmp.ne.s32.totalorder %s351, %s354
    %p363 = scmp.eq.s32.totalorder %s28, 1
    %p364 = por %p362, %p363
    %p365 = scmp.ne.s32.totalorder %s354, %s355
    %p366 = scmp.eq.s32.totalorder %s28, 0
    %p367 = por %p365, %p366
    %p368 = scmp.ne.s32.totalorder %s354, %s355
    %p369 = scmp.eq.s32.totalorder %s29, 1
    %p370 = por %p368, %p369
    %p372 = scmp.ne.s32.totalorder %s355, %s371
    %p373 = scmp.eq.s32.totalorder %s29, 0
    %p374 = por %p372, %p373
    %s376 = sadd.s32 %s375, 1
    %p379 = scmp.eq.s32.totalorder %s23, 1
    %p380 = scmp.ne.s32.totalorder %s375, %s377
    %p381 = scmp.eq.s32.totalorder %s23, 0
    %p382 = por %p380, %p381
    %p383 = scmp.ne.s32.totalorder %s375, %s377
    %p384 = scmp.eq.s32.totalorder %s28, 1
    %p385 = por %p383, %p384
    %p386 = scmp.ne.s32.totalorder %s377, %s378
    %p387 = scmp.eq.s32.totalorder %s28, 0
    %p388 = por %p386, %p387
    %p389 = scmp.ne.s32.totalorder %s377, %s378
    %p390 = scmp.eq.s32.totalorder %s29, 1
    %p391 = por %p389, %p390
    %p393 = scmp.ne.s32.totalorder %s378, %s392
    %p394 = scmp.eq.s32.totalorder %s29, 0
    %p395 = por %p393, %p394
    %s396 = ssub.s32 %s23, %s30
    %p397 = scmp.eq.s32.totalorder %s396, 0
    %s399 = sadd.s32 %s398, 1
    %s400 = scalar_select %p397, %s398, %s399
    %p403 = pneg %p397
    %p404 = scmp.eq.s32.totalorder %s23, 1
    %p405 = por %p403, %p404
    %p406 = scmp.ne.s32.totalorder %s398, %s401
    %p407 = scmp.eq.s32.totalorder %s23, 0
    %p408 = por %p406, %p407
    %p409 = scmp.ne.s32.totalorder %s398, %s401
    %p410 = scmp.eq.s32.totalorder %s28, 1
    %p411 = por %p409, %p410
    %p412 = scmp.ne.s32.totalorder %s401, %s402
    %p413 = scmp.eq.s32.totalorder %s28, 0
    %p414 = por %p412, %p413
    %p415 = scmp.ne.s32.totalorder %s401, %s402
    %p416 = scmp.eq.s32.totalorder %s29, 1
    %p417 = por %p415, %p416
    %p419 = scmp.ne.s32.totalorder %s402, %s418
    %p420 = scmp.eq.s32.totalorder %s29, 0
    %p421 = por %p419, %p420
    %s423 = sadd.s32 %s422, 1
    %p426 = scmp.eq.s32.totalorder %s23, 1
    %p427 = scmp.ne.s32.totalorder %s422, %s424
    %p428 = scmp.eq.s32.totalorder %s23, 0
    %p429 = por %p427, %p428
    %p430 = scmp.ne.s32.totalorder %s422, %s424
    %p431 = scmp.eq.s32.totalorder %s28, 1
    %p432 = por %p430, %p431
    %p433 = scmp.ne.s32.totalorder %s424, %s425
    %p434 = scmp.eq.s32.totalorder %s28, 0
    %p435 = por %p433, %p434
    %p436 = scmp.ne.s32.totalorder %s424, %s425
    %p437 = scmp.eq.s32.totalorder %s29, 1
    %p438 = por %p436, %p437
    %p440 = scmp.ne.s32.totalorder %s425, %s439
    %p441 = scmp.eq.s32.totalorder %s29, 0
    %p442 = por %p440, %p441
    %p443 = scmp.le.s32.totalorder 1, %s23
    %p444 = scmp.lt.s32.totalorder %s23, 3
    %p445 = pnand %p443, %p444
    %p446 = pneg %p445
    // Predicated region
    $region9: #{seq2seq_lm_with_value_head_forward.4} parent=5 // pred_check
      _
    $region10: #{seq2seq_lm_with_value_head_forward.4} parent=5 // pred_check_branch
      %448 = sbr.rel (%p445) target = $region12
    $region11: #{seq2seq_lm_with_value_head_forward.4} parent=5 // pred_region
      %s449 = ssub.s32 %s23, 1
      // Predicated region
      $region13: #{seq2seq_lm_with_value_head_forward.4} parent=11 // pred_check
        %p450 = pneg %p44
      $region14: #{seq2seq_lm_with_value_head_forward.4} parent=11 // pred_check_branch
        %452 = sbr.rel (%p450) target = $region16
      $region15: #{seq2seq_lm_with_value_head_forward.4} parent=11 // pred_region
        _
      $region16: #{seq2seq_lm_with_value_head_forward.4} parent=11 // pred_fallthru
        _
      // Predicated region
      $region17: #{seq2seq_lm_with_value_head_forward.4} parent=11 // pred_check
        %p453 = pneg %p65
      $region18: #{seq2seq_lm_with_value_head_forward.4} parent=11 // pred_check_branch
        %455 = sbr.rel (%p453) target = $region20
      $region19: #{seq2seq_lm_with_value_head_forward.4} parent=11 // pred_region
        _
      $region20: #{seq2seq_lm_with_value_head_forward.4} parent=11 // pred_fallthru
        _
      // Predicated region
      $region21: #{seq2seq_lm_with_value_head_forward.4} parent=11 // pred_check
        %p456 = pneg %p86
      $region22: #{seq2seq_lm_with_value_head_forward.4} parent=11 // pred_check_branch
        %458 = sbr.rel (%p456) target = $region24
      $region23: #{seq2seq_lm_with_value_head_forward.4} parent=11 // pred_region
        _
      $region24: #{seq2seq_lm_with_value_head_forward.4} parent=11 // pred_fallthru
        _
      // Predicated region
      $region25: #{seq2seq_lm_with_value_head_forward.4} parent=11 // pred_check
        %p459 = pneg %p107
      $region26: #{seq2seq_lm_with_value_head_forward.4} parent=11 // pred_check_branch
        %461 = sbr.rel (%p459) target = $region28
      $region27: #{seq2seq_lm_with_value_head_forward.4} parent=11 // pred_region
        _
      $region28: #{seq2seq_lm_with_value_head_forward.4} parent=11 // pred_fallthru
        _
      // Predicated region
      $region29: #{seq2seq_lm_with_value_head_forward.4} parent=11 // pred_check
        %p462 = pneg %p388
      $region30: #{seq2seq_lm_with_value_head_forward.4} parent=11 // pred_check_branch
        %464 = sbr.rel (%p462) target = $region32
      $region31: #{seq2seq_lm_with_value_head_forward.4} parent=11 // pred_region
        _
      $region32: #{seq2seq_lm_with_value_head_forward.4} parent=11 // pred_fallthru
        _
    $region12: #{seq2seq_lm_with_value_head_forward.4} parent=5 // pred_fallthru
      _
    %p465 = scmp.lt.s32.totalorder %s23, 2
    // Predicated region
    $region33: #{seq2seq_lm_with_value_head_forward.4} parent=5 // pred_check
      %p466 = pneg %p465
    $region34: #{seq2seq_lm_with_value_head_forward.4} parent=5 // pred_check_branch
      %468 = sbr.rel (%p466) target = $region36
    $region35: #{seq2seq_lm_with_value_head_forward.4} parent=5 // pred_region
      // Predicated region
      $region37: #{seq2seq_lm_with_value_head_forward.4} parent=35 // pred_check
        %p469 = pneg %p127
      $region38: #{seq2seq_lm_with_value_head_forward.4} parent=35 // pred_check_branch
        %471 = sbr.rel (%p469) target = $region40
      $region39: #{seq2seq_lm_with_value_head_forward.4} parent=35 // pred_region
        %p472 = scmp.lt.s32.totalorder %s23, 1
        %s473 = scalar_select %p472, %s23, 1
        %s474 = scalar_lea.vmem %s4, %s473
      $region40: #{seq2seq_lm_with_value_head_forward.4} parent=35 // pred_fallthru
        _
      // Predicated region
      $region41: #{seq2seq_lm_with_value_head_forward.4} parent=35 // pred_check
        %p475 = pneg %p153
      $region42: #{seq2seq_lm_with_value_head_forward.4} parent=35 // pred_check_branch
        %477 = sbr.rel (%p475) target = $region44
      $region43: #{seq2seq_lm_with_value_head_forward.4} parent=35 // pred_region
        %p478 = scmp.lt.s32.totalorder %s23, 1
        %s479 = scalar_select %p478, %s23, 1
        %s480 = smul.addr %s479, 4
        %s481 = smul.addr %s480, 8
        %s482 = scalar_lea.vmem %s5, %s481
      $region44: #{seq2seq_lm_with_value_head_forward.4} parent=35 // pred_fallthru
        _
      // Predicated region
      $region45: #{seq2seq_lm_with_value_head_forward.4} parent=35 // pred_check
        %p483 = pneg %p179
      $region46: #{seq2seq_lm_with_value_head_forward.4} parent=35 // pred_check_branch
        %485 = sbr.rel (%p483) target = $region48
      $region47: #{seq2seq_lm_with_value_head_forward.4} parent=35 // pred_region
        %p486 = scmp.lt.s32.totalorder %s23, 1
        %s487 = scalar_select %p486, %s23, 1
        %s488 = smul.addr %s487, 4
        %s489 = smul.addr %s488, 8
        %s490 = scalar_lea.vmem %s6, %s489
      $region48: #{seq2seq_lm_with_value_head_forward.4} parent=35 // pred_fallthru
        _
      // Predicated region
      $region49: #{seq2seq_lm_with_value_head_forward.4} parent=35 // pred_check
        %p491 = pneg %p205
      $region50: #{seq2seq_lm_with_value_head_forward.4} parent=35 // pred_check_branch
        %493 = sbr.rel (%p491) target = $region52
      $region51: #{seq2seq_lm_with_value_head_forward.4} parent=35 // pred_region
        %p494 = scmp.lt.s32.totalorder %s23, 1
        %s495 = scalar_select %p494, %s23, 1
        %s496 = scalar_lea.vmem %s7, %s495
      $region52: #{seq2seq_lm_with_value_head_forward.4} parent=35 // pred_fallthru
        _
      // Predicated region
      $region53: #{seq2seq_lm_with_value_head_forward.4} parent=35 // pred_check
        %p497 = pneg %p231
      $region54: #{seq2seq_lm_with_value_head_forward.4} parent=35 // pred_check_branch
        %499 = sbr.rel (%p497) target = $region56
      $region55: #{seq2seq_lm_with_value_head_forward.4} parent=35 // pred_region
        %p500 = scmp.lt.s32.totalorder %s23, 1
        %s501 = scalar_select %p500, %s23, 1
        %s502 = smul.addr %s501, 4
        %s503 = smul.addr %s502, 8
        %s504 = scalar_lea.vmem %s8, %s503
      $region56: #{seq2seq_lm_with_value_head_forward.4} parent=35 // pred_fallthru
        _
      // Predicated region
      $region57: #{seq2seq_lm_with_value_head_forward.4} parent=35 // pred_check
        %p505 = pneg %p257
      $region58: #{seq2seq_lm_with_value_head_forward.4} parent=35 // pred_check_branch
        %507 = sbr.rel (%p505) target = $region60
      $region59: #{seq2seq_lm_with_value_head_forward.4} parent=35 // pred_region
        %p508 = scmp.lt.s32.totalorder %s23, 1
        %s509 = scalar_select %p508, %s23, 1
        %s510 = smul.addr %s509, 4
        %s511 = smul.addr %s510, 8
        %s512 = scalar_lea.vmem %s9, %s511
      $region60: #{seq2seq_lm_with_value_head_forward.4} parent=35 // pred_fallthru
        _
      // Predicated region
      $region61: #{seq2seq_lm_with_value_head_forward.4} parent=35 // pred_check
        %p513 = pneg %p283
      $region62: #{seq2seq_lm_with_value_head_forward.4} parent=35 // pred_check_branch
        %515 = sbr.rel (%p513) target = $region64
      $region63: #{seq2seq_lm_with_value_head_forward.4} parent=35 // pred_region
        %p516 = scmp.lt.s32.totalorder %s23, 1
        %s517 = scalar_select %p516, %s23, 1
        %s518 = smul.addr %s517, 4
        %s519 = smul.addr %s518, 8
        %s520 = scalar_lea.vmem %s10, %s519
      $region64: #{seq2seq_lm_with_value_head_forward.4} parent=35 // pred_fallthru
        _
      // Predicated region
      $region65: #{seq2seq_lm_with_value_head_forward.4} parent=35 // pred_check
        %p521 = pneg %p309
      $region66: #{seq2seq_lm_with_value_head_forward.4} parent=35 // pred_check_branch
        %523 = sbr.rel (%p521) target = $region68
      $region67: #{seq2seq_lm_with_value_head_forward.4} parent=35 // pred_region
        %p524 = scmp.lt.s32.totalorder %s23, 1
        %s525 = scalar_select %p524, %s23, 1
        %s526 = scalar_lea.vmem %s11, %s525
      $region68: #{seq2seq_lm_with_value_head_forward.4} parent=35 // pred_fallthru
        _
      // Predicated region
      $region69: #{seq2seq_lm_with_value_head_forward.4} parent=35 // pred_check
        %p527 = pneg %p335
      $region70: #{seq2seq_lm_with_value_head_forward.4} parent=35 // pred_check_branch
        %529 = sbr.rel (%p527) target = $region72
      $region71: #{seq2seq_lm_with_value_head_forward.4} parent=35 // pred_region
        %p530 = scmp.lt.s32.totalorder %s23, 1
        %s531 = scalar_select %p530, %s23, 1
        %s532 = smul.addr %s531, 4
        %s533 = smul.addr %s532, 8
        %s534 = scalar_lea.vmem %s12, %s533
      $region72: #{seq2seq_lm_with_value_head_forward.4} parent=35 // pred_fallthru
        _
      // Predicated region
      $region73: #{seq2seq_lm_with_value_head_forward.4} parent=35 // pred_check
        %p535 = pneg %p361
      $region74: #{seq2seq_lm_with_value_head_forward.4} parent=35 // pred_check_branch
        %537 = sbr.rel (%p535) target = $region76
      $region75: #{seq2seq_lm_with_value_head_forward.4} parent=35 // pred_region
        %p538 = scmp.lt.s32.totalorder %s23, 1
        %s539 = scalar_select %p538, %s23, 1
        %s540 = smul.addr %s539, 8
        %s541 = smul.addr %s540, 8
        %s542 = scalar_lea.vmem %s13, %s541
      $region76: #{seq2seq_lm_with_value_head_forward.4} parent=35 // pred_fallthru
        _
    $region36: #{seq2seq_lm_with_value_head_forward.4} parent=5 // pred_fallthru
      _
    %p543 = scmp.le.s32.totalorder 1, %s23
    %p544 = scmp.lt.s32.totalorder %s23, 3
    %p545 = pnand %p543, %p544
    %p546 = pneg %p545
    // Predicated region
    $region77: #{seq2seq_lm_with_value_head_forward.4} parent=5 // pred_check
      _
    $region78: #{seq2seq_lm_with_value_head_forward.4} parent=5 // pred_check_branch
      %548 = sbr.rel (%p545) target = $region80
    $region79: #{seq2seq_lm_with_value_head_forward.4} parent=5 // pred_region
      %s549 = ssub.s32 %s23, 1
      %p550 = pneg %p44
      %p551 = pneg %p41
      %p552 = pneg %p65
      %p553 = pneg %p62
      %p554 = pneg %p86
      %p555 = pneg %p83
      %p556 = pneg %p107
      %p557 = pneg %p104
      %p558 = scmp.lt.s32.totalorder %s28, 1
      %s559 = scalar_select %p558, %s28, 1
      %s560 = scalar_lea.vmem %s4, %s559
      %p561 = pneg %p133
      %p562 = pneg %p130
      %p563 = scmp.lt.s32.totalorder %s28, 1
      %s564 = scalar_select %p563, %s28, 1
      %s565 = smul.addr %s564, 4
      %s566 = smul.addr %s565, 8
      %s567 = scalar_lea.vmem %s5, %s566
      %p568 = pneg %p159
      %p569 = pneg %p156
      %p570 = scmp.lt.s32.totalorder %s28, 1
      %s571 = scalar_select %p570, %s28, 1
      %s572 = smul.addr %s571, 4
      %s573 = smul.addr %s572, 8
      %s574 = scalar_lea.vmem %s6, %s573
      %p575 = pneg %p185
      %p576 = pneg %p182
      %p577 = scmp.lt.s32.totalorder %s28, 1
      %s578 = scalar_select %p577, %s28, 1
      %s579 = scalar_lea.vmem %s7, %s578
      %p580 = pneg %p211
      %p581 = pneg %p208
      %p582 = scmp.lt.s32.totalorder %s28, 1
      %s583 = scalar_select %p582, %s28, 1
      %s584 = smul.addr %s583, 4
      %s585 = smul.addr %s584, 8
      %s586 = scalar_lea.vmem %s8, %s585
      %p587 = pneg %p237
      %p588 = pneg %p234
      %p589 = scmp.lt.s32.totalorder %s28, 1
      %s590 = scalar_select %p589, %s28, 1
      %s591 = smul.addr %s590, 4
      %s592 = smul.addr %s591, 8
      %s593 = scalar_lea.vmem %s9, %s592
      %p594 = pneg %p263
      %p595 = pneg %p260
      %p596 = scmp.lt.s32.totalorder %s28, 1
      %s597 = scalar_select %p596, %s28, 1
      %s598 = smul.addr %s597, 4
      %s599 = smul.addr %s598, 8
      %s600 = scalar_lea.vmem %s10, %s599
      %p601 = pneg %p289
      %p602 = pneg %p286
      %p603 = scmp.lt.s32.totalorder %s28, 1
      %s604 = scalar_select %p603, %s28, 1
      %s605 = scalar_lea.vmem %s11, %s604
      %p606 = pneg %p315
      %p607 = pneg %p312
      %p608 = scmp.lt.s32.totalorder %s28, 1
      %s609 = scalar_select %p608, %s28, 1
      %s610 = smul.addr %s609, 4
      %s611 = smul.addr %s610, 8
      %s612 = scalar_lea.vmem %s12, %s611
      %p613 = pneg %p341
      %p614 = pneg %p338
      %p615 = scmp.lt.s32.totalorder %s28, 1
      %s616 = scalar_select %p615, %s28, 1
      %s617 = smul.addr %s616, 8
      %s618 = smul.addr %s617, 8
      %s619 = scalar_lea.vmem %s13, %s618
      %p620 = pneg %p367
      %p621 = pneg %p364
      %p622 = pneg %p388
      %p623 = pneg %p385
      %p624 = pneg %p414
      %p625 = pneg %p411
      %p626 = scmp.lt.s32.totalorder %s28, 1
      %s627 = scalar_select %p626, %s28, 1
      %s628 = smul.addr %s627, 2
      %s629 = smul.addr %s628, 8
      %s630 = scalar_lea.vmem %s15, %s629
      %p631 = pneg %p435
      %p632 = pneg %p432
      %p633 = scmp.lt.s32.totalorder %s28, 1
      %s634 = scalar_select %p633, %s28, 1
      %s635 = scalar_lea.vmem %s4, %s634
      %p636 = scmp.lt.s32.totalorder %s28, 1
      %s637 = scalar_select %p636, %s28, 1
      %s638 = smul.addr %s637, 4
      %s639 = smul.addr %s638, 8
      %s640 = scalar_lea.vmem %s5, %s639
      %p641 = scmp.lt.s32.totalorder %s28, 1
      %s642 = scalar_select %p641, %s28, 1
      %s643 = smul.addr %s642, 4
      %s644 = smul.addr %s643, 8
      %s645 = scalar_lea.vmem %s6, %s644
      %p646 = scmp.lt.s32.totalorder %s28, 1
      %s647 = scalar_select %p646, %s28, 1
      %s648 = scalar_lea.vmem %s7, %s647
      %p649 = scmp.lt.s32.totalorder %s28, 1
      %s650 = scalar_select %p649, %s28, 1
      %s651 = smul.addr %s650, 4
      %s652 = smul.addr %s651, 8
      %s653 = scalar_lea.vmem %s8, %s652
      %p654 = scmp.lt.s32.totalorder %s28, 1
      %s655 = scalar_select %p654, %s28, 1
      %s656 = smul.addr %s655, 4
      %s657 = smul.addr %s656, 8
      %s658 = scalar_lea.vmem %s9, %s657
      %p659 = scmp.lt.s32.totalorder %s28, 1
      %s660 = scalar_select %p659, %s28, 1
      %s661 = smul.addr %s660, 4
      %s662 = smul.addr %s661, 8
      %s663 = scalar_lea.vmem %s10, %s662
      %p664 = scmp.lt.s32.totalorder %s28, 1
      %s665 = scalar_select %p664, %s28, 1
      %s666 = scalar_lea.vmem %s11, %s665
      %p667 = scmp.lt.s32.totalorder %s28, 1
      %s668 = scalar_select %p667, %s28, 1
      %s669 = smul.addr %s668, 4
      %s670 = smul.addr %s669, 8
      %s671 = scalar_lea.vmem %s12, %s670
      %p672 = scmp.lt.s32.totalorder %s28, 1
      %s673 = scalar_select %p672, %s28, 1
      %s674 = smul.addr %s673, 8
      %s675 = smul.addr %s674, 8
      %s676 = scalar_lea.vmem %s13, %s675
      %p677 = scmp.lt.s32.totalorder %s28, 1
      %s678 = scalar_select %p677, %s28, 1
      %s679 = smul.addr %s678, 2
      %s680 = smul.addr %s679, 8
      %s681 = scalar_lea.vmem %s15, %s680
      %p682 = scmp.eq.s32.totalorder %s28, 0
      // Predicated region
      $region81: #{seq2seq_lm_with_value_head_forward.4} parent=79 // pred_check
        %p683 = pneg %p682
      $region82: #{seq2seq_lm_with_value_head_forward.4} parent=79 // pred_check_branch
        %685 = sbr.rel (%p683) target = $region84
      $region83: #{seq2seq_lm_with_value_head_forward.4} parent=79 // pred_region
        %v686 = vld [vmem:[%s0] sm:$0xff]
        %v687 = vld [vmem:[%s0 + $0x8] sm:$0xff]
        %vm688 = vcmask 261120
        %689 = vst.msk [vmem:[#allocation2] sm:$0xff] %vm688, %v686
        %690 = vst.msk [vmem:[#allocation2 + $0x8] sm:$0xff] %vm688, %v687
      $region84: #{seq2seq_lm_with_value_head_forward.4} parent=79 // pred_fallthru
        _
      %v691 = vld [vmem:[#allocation2] sm:$0xff]
      %v692 = vld [vmem:[#allocation2 + $0x8] sm:$0xff]
      %vm693 = vcmask 261120
      %694 = vst.msk [vmem:[%s681] sm:$0xff] %vm693, %v691
      %695 = vst.msk [vmem:[%s681 + $0x8] sm:$0xff] %vm693, %v692
      %v696 = vld [vmem:[%s635] sm:$0x1]
      %v697 = vmul.f32 %v691, %v691
      %v698 = vmul.f32 %v692, %v692
      %v699 = vsel %vm693, %v697, 0.0
      %700 = vadd.xlane.f32.xlu0 %v699
      %v701 = vpop.xlane.xlu0 %700
      %v702 = vsel %vm693, %v698, 0.0
      %703 = vadd.xlane.f32.xlu0 %v702
      %v704 = vpop.xlane.xlu0 %703
      %v705 = vrcp.pop 32.0
      %v706 = vmul.f32 %v701, %v705
      %v707 = vmul.f32 %v704, %v705
      %v708 = vadd.f32 %v706, 1e-06
      %v709 = vadd.f32 %v707, 1e-06
      %v710 = vrsqrt.pop %v708
      %v711 = vrsqrt.pop %v709
      %v712 = vmul.f32 %v691, %v710
      %v713 = vmul.f32 %v692, %v711
      %v715 = vlaneseq
      %v716 = vshrl.u32 %v715, 7
      %v717 = vsub.s32 0, %v716
      %v718 = vrot.slane %v696, %v717
      %v720 = vmul.f32 %v712, %v718
      %v721 = vmul.f32 %v713, %v718
      %v722 = vld [vmem:[%s640] sm:$0xff]
      %v723 = vld [vmem:[%s640 + $0x8] sm:$0xff]
      %v724 = vld [vmem:[%s640 + $0x10] sm:$0xff]
      %v725 = vld [vmem:[%s640 + $0x18] sm:$0xff]
      %v727 = vsel %vm693, %v720, 0
      %v730 = vsel %vm693, %v721, 0
      %732 = vmatprep.subr.mxu0 0.0
      %733 = vmatpush1.msra.mxu0 %v722
      %734 = vmatprep.subr.mxu0 0.0
      %735 = vmatpush1.msra.mxu0 %v723
      %736 = vmatprep.subr.mxu0 0.0
      %737 = vmatpush1.msra.mxu0 %v724
      %738 = vmatprep.subr.mxu0 0.0
      %739 = vmatpush1.msra.mxu0 %v725
      %740 = vmatprep.subr.mxu0 0.0
      %741 = vmatpush1.msra.mxu0 0.0
      %742 = vmatprep.subr.mxu0 0.0
      %743 = vmatpush1.msra.mxu0 0.0
      %744 = vmatprep.subr.mxu0 0.0
      %745 = vmatpush1.msra.mxu0 0.0
      %746 = vmatprep.subr.mxu0 0.0
      %747 = vmatpush1.msra.mxu0 0.0
      %748 = vmatprep.subr.mxu0 0.0
      %749 = vmatpush1.msra.mxu0 0.0
      %750 = vmatprep.subr.mxu0 0.0
      %751 = vmatpush1.msra.mxu0 0.0
      %752 = vmatprep.subr.mxu0 0.0
      %753 = vmatpush1.msra.mxu0 0.0
      %754 = vmatprep.subr.mxu0 0.0
      %755 = vmatpush1.msra.mxu0 0.0
      %756 = vmatprep.subr.mxu0 0.0
      %757 = vmatpush1.msra.mxu0 0.0
      %758 = vmatprep.subr.mxu0 0.0
      %759 = vmatpush1.msra.mxu0 0.0
      %760 = vmatprep.subr.mxu0 0.0
      %761 = vmatpush1.msra.mxu0 0.0
      %762 = vmatprep.subr.mxu0 0.0
      %763 = vmatpush1.msra.mxu0 0.0
      %764 = vmatprep.subr.mxu0 0.0
      %765 = vmatpush1.msra.mxu0 0.0
      %766 = vmatprep.subr.mxu0 0.0
      %767 = vmatpush1.msra.mxu0 0.0
      %768 = vmatprep.subr.mxu0 0.0
      %769 = vmatpush1.msra.mxu0 0.0
      %770 = vmatprep.subr.mxu0 0.0
      %771 = vmatpush1.msra.mxu0 0.0
      %772 = vmatprep.subr.mxu0 0.0
      %773 = vmatpush1.msra.mxu0 0.0
      %774 = vmatprep.subr.mxu0 0.0
      %775 = vmatpush1.msra.mxu0 0.0
      %776 = vmatprep.subr.mxu0 0.0
      %777 = vmatpush1.msra.mxu0 0.0
      %778 = vmatprep.subr.mxu0 0.0
      %779 = vmatpush1.msra.mxu0 0.0
      %780 = vmatprep.subr.mxu0 0.0
      %781 = vmatpush1.msra.mxu0 0.0
      %782 = vmatprep.subr.mxu0 0.0
      %783 = vmatpush1.msra.mxu0 0.0
      %784 = vmatprep.subr.mxu0 0.0
      %785 = vmatpush1.msra.mxu0 0.0
      %786 = vmatprep.subr.mxu0 0.0
      %787 = vmatpush1.msra.mxu0 0.0
      %788 = vmatprep.subr.mxu0 0.0
      %789 = vmatpush1.msra.mxu0 0.0
      %790 = vmatprep.subr.mxu0 0.0
      %791 = vmatpush1.msra.mxu0 0.0
      %792 = vmatprep.subr.mxu0 0.0
      %793 = vmatpush1.msra.mxu0 0.0
      %794 = vmatprep.subr.mxu0 0.0
      %795 = vmatpush1.msra.mxu0 0.0
      %796 = vmatprep.mubr.f32.mxu0 0.0
      %797 = vmatmul.mubr.f32.gmra.mrb[0].mxu0 %v727
      %v798 = vpop.f32.mrb[0].mxu0
      %v799 = vadd.f32 0.0, %v798
      %v800 = vpop.f32.mrb[0].mxu0
      %801 = vmatprep.mubr.f32.mxu0 0.0
      %802 = vmatmul.mubr.f32.gmra.mrb[0].mxu0 %v730
      %v803 = vpop.f32.mrb[0].mxu0
      %v804 = vadd.f32 0.0, %v803
      %v805 = vpop.f32.mrb[0].mxu0
      %806 = vdwg.mxu0
      %v807 = vld [vmem:[%s2] sm:$0xff]
      %v808 = vld [vmem:[%s2 + $0x8] sm:$0xff]
      %v809 = vld [vmem:[%s2 + $0x10] sm:$0xff]
      %v810 = vld [vmem:[%s2 + $0x18] sm:$0xff]
      %v811 = vld [vmem:[%s645] sm:$0xff]
      %v812 = vld [vmem:[%s645 + $0x8] sm:$0xff]
      %v813 = vld [vmem:[%s645 + $0x10] sm:$0xff]
      %v814 = vld [vmem:[%s645 + $0x18] sm:$0xff]
      %816 = vrot.lane.b32.xlu0 %v799, 96
      %v817 = vpop.permute.xlu0 %816
      %vm818 = vcmask 64512
      %v819 = vsel %vm818, %v799, 0
      %v821 = vsel %vm818, %v817, 0
      %823 = vmatprep.subr.mxu0 0.0
      %824 = vmatpush1.xpose.msra.mxu0 %v821
      %825 = vmatprep.subr.mxu0 0.0
      %826 = vmatpush1.xpose.msra.mxu0 0.0
      %827 = vmatprep.subr.mxu0 0.0
      %828 = vmatpush1.xpose.msra.mxu0 0.0
      %829 = vmatprep.subr.mxu0 0.0
      %830 = vmatpush1.xpose.msra.mxu0 0.0
      %831 = vmatprep.subr.mxu0 0.0
      %832 = vmatpush1.xpose.msra.mxu0 0.0
      %833 = vmatprep.subr.mxu0 0.0
      %834 = vmatpush1.xpose.msra.mxu0 0.0
      %835 = vmatprep.subr.mxu0 0.0
      %836 = vmatpush1.xpose.msra.mxu0 0.0
      %837 = vmatprep.subr.mxu0 0.0
      %838 = vmatpush1.xpose.msra.mxu0 0.0
      %839 = vmatprep.subr.mxu0 0.0
      %840 = vmatpush1.xpose.msra.mxu0 0.0
      %841 = vmatprep.subr.mxu0 0.0
      %842 = vmatpush1.xpose.msra.mxu0 0.0
      %843 = vmatprep.subr.mxu0 0.0
      %844 = vmatpush1.xpose.msra.mxu0 0.0
      %845 = vmatprep.subr.mxu0 0.0
      %846 = vmatpush1.xpose.msra.mxu0 0.0
      %847 = vmatprep.subr.mxu0 0.0
      %848 = vmatpush1.xpose.msra.mxu0 0.0
      %849 = vmatprep.subr.mxu0 0.0
      %850 = vmatpush1.xpose.msra.mxu0 0.0
      %851 = vmatprep.subr.mxu0 0.0
      %852 = vmatpush1.xpose.msra.mxu0 0.0
      %853 = vmatprep.subr.mxu0 0.0
      %854 = vmatpush1.xpose.msra.mxu0 0.0
      %855 = vmatprep.subr.mxu0 0.0
      %856 = vmatpush1.xpose.msra.mxu0 0.0
      %857 = vmatprep.subr.mxu0 0.0
      %858 = vmatpush1.xpose.msra.mxu0 0.0
      %859 = vmatprep.subr.mxu0 0.0
      %860 = vmatpush1.xpose.msra.mxu0 0.0
      %861 = vmatprep.subr.mxu0 0.0
      %862 = vmatpush1.xpose.msra.mxu0 0.0
      %863 = vmatprep.subr.mxu0 0.0
      %864 = vmatpush1.xpose.msra.mxu0 0.0
      %865 = vmatprep.subr.mxu0 0.0
      %866 = vmatpush1.xpose.msra.mxu0 0.0
      %867 = vmatprep.subr.mxu0 0.0
      %868 = vmatpush1.xpose.msra.mxu0 0.0
      %869 = vmatprep.subr.mxu0 0.0
      %870 = vmatpush1.xpose.msra.mxu0 0.0
      %871 = vmatprep.subr.mxu0 0.0
      %872 = vmatpush1.xpose.msra.mxu0 0.0
      %873 = vmatprep.subr.mxu0 0.0
      %874 = vmatpush1.xpose.msra.mxu0 0.0
      %875 = vmatprep.subr.mxu0 0.0
      %876 = vmatpush1.xpose.msra.mxu0 0.0
      %877 = vmatprep.subr.mxu0 0.0
      %878 = vmatpush1.xpose.msra.mxu0 0.0
      %879 = vmatprep.subr.mxu0 0.0
      %880 = vmatpush1.xpose.msra.mxu0 0.0
      %881 = vmatprep.subr.mxu0 0.0
      %882 = vmatpush1.xpose.msra.mxu0 0.0
      %883 = vmatprep.subr.mxu0 0.0
      %884 = vmatpush1.xpose.msra.mxu0 0.0
      %885 = vmatprep.subr.mxu0 0.0
      %886 = vmatpush1.xpose.msra.mxu0 0.0
      %887 = vmatprep.mubr.f32.mxu0 0.0
      %888 = vmatmul.mubr.f32.gmra.mrb[0].mxu0 %v819
      %v889 = vpop.f32.mrb[0].mxu0
      %v890 = vadd.f32 %v807, %v889
      %v891 = vpop.f32.mrb[0].mxu0
      %892 = vdwg.mxu0
      %v893 = vsel %vm818, %v890, -inf
      %894 = vmax.xlane.f32.xlu0 %v893
      %v895 = vpop.xlane.xlu0 %894
      %v896 = vsub.f32 %v890, %v895
      %v897 = vmul.f32 %v896, 1.442695
      %v898 = vpow.pop %v897
      %v899 = vsel %vm818, %v898, 0.0
      %900 = vadd.xlane.f32.xlu0 %v899
      %v901 = vpop.xlane.xlu0 %900
      %v902 = vrcp.pop %v901
      %v903 = vmul.f32 %v898, %v902
      %904 = vrot.lane.b32.xlu0 %v799, 64
      %v905 = vpop.permute.xlu0 %904
      %v908 = vsel %vm818, %v903, 0
      %910 = vmatprep.subr.mxu0 0.0
      %911 = vmatpush1.msra.mxu0 %v905
      %912 = vmatprep.subr.mxu0 0.0
      %913 = vmatpush1.msra.mxu0 0.0
      %914 = vmatprep.subr.mxu0 0.0
      %915 = vmatpush1.msra.mxu0 0.0
      %916 = vmatprep.subr.mxu0 0.0
      %917 = vmatpush1.msra.mxu0 0.0
      %918 = vmatprep.subr.mxu0 0.0
      %919 = vmatpush1.msra.mxu0 0.0
      %920 = vmatprep.subr.mxu0 0.0
      %921 = vmatpush1.msra.mxu0 0.0
      %922 = vmatprep.subr.mxu0 0.0
      %923 = vmatpush1.msra.mxu0 0.0
      %924 = vmatprep.subr.mxu0 0.0
      %925 = vmatpush1.msra.mxu0 0.0
      %926 = vmatprep.subr.mxu0 0.0
      %927 = vmatpush1.msra.mxu0 0.0
      %928 = vmatprep.subr.mxu0 0.0
      %929 = vmatpush1.msra.mxu0 0.0
      %930 = vmatprep.subr.mxu0 0.0
      %931 = vmatpush1.msra.mxu0 0.0
      %932 = vmatprep.subr.mxu0 0.0
      %933 = vmatpush1.msra.mxu0 0.0
      %934 = vmatprep.subr.mxu0 0.0
      %935 = vmatpush1.msra.mxu0 0.0
      %936 = vmatprep.subr.mxu0 0.0
      %937 = vmatpush1.msra.mxu0 0.0
      %938 = vmatprep.subr.mxu0 0.0
      %939 = vmatpush1.msra.mxu0 0.0
      %940 = vmatprep.subr.mxu0 0.0
      %941 = vmatpush1.msra.mxu0 0.0
      %942 = vmatprep.subr.mxu0 0.0
      %943 = vmatpush1.msra.mxu0 0.0
      %944 = vmatprep.subr.mxu0 0.0
      %945 = vmatpush1.msra.mxu0 0.0
      %946 = vmatprep.subr.mxu0 0.0
      %947 = vmatpush1.msra.mxu0 0.0
      %948 = vmatprep.subr.mxu0 0.0
      %949 = vmatpush1.msra.mxu0 0.0
      %950 = vmatprep.subr.mxu0 0.0
      %951 = vmatpush1.msra.mxu0 0.0
      %952 = vmatprep.subr.mxu0 0.0
      %953 = vmatpush1.msra.mxu0 0.0
      %954 = vmatprep.subr.mxu0 0.0
      %955 = vmatpush1.msra.mxu0 0.0
      %956 = vmatprep.subr.mxu0 0.0
      %957 = vmatpush1.msra.mxu0 0.0
      %958 = vmatprep.subr.mxu0 0.0
      %959 = vmatpush1.msra.mxu0 0.0
      %960 = vmatprep.subr.mxu0 0.0
      %961 = vmatpush1.msra.mxu0 0.0
      %962 = vmatprep.subr.mxu0 0.0
      %963 = vmatpush1.msra.mxu0 0.0
      %964 = vmatprep.subr.mxu0 0.0
      %965 = vmatpush1.msra.mxu0 0.0
      %966 = vmatprep.subr.mxu0 0.0
      %967 = vmatpush1.msra.mxu0 0.0
      %968 = vmatprep.subr.mxu0 0.0
      %969 = vmatpush1.msra.mxu0 0.0
      %970 = vmatprep.subr.mxu0 0.0
      %971 = vmatpush1.msra.mxu0 0.0
      %972 = vmatprep.subr.mxu0 0.0
      %973 = vmatpush1.msra.mxu0 0.0
      %974 = vmatprep.mubr.f32.mxu0 0.0
      %975 = vmatmul.mubr.f32.gmra.mrb[0].mxu0 %v908
      %v976 = vpop.f32.mrb[0].mxu0
      %v977 = vadd.f32 0.0, %v976
      %v978 = vpop.f32.mrb[0].mxu0
      %979 = vdwg.mxu0
      %980 = vrot.lane.b32.xlu0 %v799, 120
      %v981 = vpop.permute.xlu0 %980
      %982 = vrot.lane.b32.xlu0 %v799, 88
      %v983 = vpop.permute.xlu0 %982
      %v984 = vsel %vm818, %v981, 0
      %v986 = vsel %vm818, %v983, 0
      %988 = vmatprep.subr.mxu0 0.0
      %989 = vmatpush1.xpose.msra.mxu0 %v986
      %990 = vmatprep.subr.mxu0 0.0
      %991 = vmatpush1.xpose.msra.mxu0 0.0
      %992 = vmatprep.subr.mxu0 0.0
      %993 = vmatpush1.xpose.msra.mxu0 0.0
      %994 = vmatprep.subr.mxu0 0.0
      %995 = vmatpush1.xpose.msra.mxu0 0.0
      %996 = vmatprep.subr.mxu0 0.0
      %997 = vmatpush1.xpose.msra.mxu0 0.0
      %998 = vmatprep.subr.mxu0 0.0
      %999 = vmatpush1.xpose.msra.mxu0 0.0
      %1000 = vmatprep.subr.mxu0 0.0
      %1001 = vmatpush1.xpose.msra.mxu0 0.0
      %1002 = vmatprep.subr.mxu0 0.0
      %1003 = vmatpush1.xpose.msra.mxu0 0.0
      %1004 = vmatprep.subr.mxu0 0.0
      %1005 = vmatpush1.xpose.msra.mxu0 0.0
      %1006 = vmatprep.subr.mxu0 0.0
      %1007 = vmatpush1.xpose.msra.mxu0 0.0
      %1008 = vmatprep.subr.mxu0 0.0
      %1009 = vmatpush1.xpose.msra.mxu0 0.0
      %1010 = vmatprep.subr.mxu0 0.0
      %1011 = vmatpush1.xpose.msra.mxu0 0.0
      %1012 = vmatprep.subr.mxu0 0.0
      %1013 = vmatpush1.xpose.msra.mxu0 0.0
      %1014 = vmatprep.subr.mxu0 0.0
      %1015 = vmatpush1.xpose.msra.mxu0 0.0
      %1016 = vmatprep.subr.mxu0 0.0
      %1017 = vmatpush1.xpose.msra.mxu0 0.0
      %1018 = vmatprep.subr.mxu0 0.0
      %1019 = vmatpush1.xpose.msra.mxu0 0.0
      %1020 = vmatprep.subr.mxu0 0.0
      %1021 = vmatpush1.xpose.msra.mxu0 0.0
      %1022 = vmatprep.subr.mxu0 0.0
      %1023 = vmatpush1.xpose.msra.mxu0 0.0
      %1024 = vmatprep.subr.mxu0 0.0
      %1025 = vmatpush1.xpose.msra.mxu0 0.0
      %1026 = vmatprep.subr.mxu0 0.0
      %1027 = vmatpush1.xpose.msra.mxu0 0.0
      %1028 = vmatprep.subr.mxu0 0.0
      %1029 = vmatpush1.xpose.msra.mxu0 0.0
      %1030 = vmatprep.subr.mxu0 0.0
      %1031 = vmatpush1.xpose.msra.mxu0 0.0
      %1032 = vmatprep.subr.mxu0 0.0
      %1033 = vmatpush1.xpose.msra.mxu0 0.0
      %1034 = vmatprep.subr.mxu0 0.0
      %1035 = vmatpush1.xpose.msra.mxu0 0.0
      %1036 = vmatprep.subr.mxu0 0.0
      %1037 = vmatpush1.xpose.msra.mxu0 0.0
      %1038 = vmatprep.subr.mxu0 0.0
      %1039 = vmatpush1.xpose.msra.mxu0 0.0
      %1040 = vmatprep.subr.mxu0 0.0
      %1041 = vmatpush1.xpose.msra.mxu0 0.0
      %1042 = vmatprep.subr.mxu0 0.0
      %1043 = vmatpush1.xpose.msra.mxu0 0.0
      %1044 = vmatprep.subr.mxu0 0.0
      %1045 = vmatpush1.xpose.msra.mxu0 0.0
      %1046 = vmatprep.subr.mxu0 0.0
      %1047 = vmatpush1.xpose.msra.mxu0 0.0
      %1048 = vmatprep.subr.mxu0 0.0
      %1049 = vmatpush1.xpose.msra.mxu0 0.0
      %1050 = vmatprep.subr.mxu0 0.0
      %1051 = vmatpush1.xpose.msra.mxu0 0.0
      %1052 = vmatprep.mubr.f32.mxu0 0.0
      %1053 = vmatmul.mubr.f32.gmra.mrb[0].mxu0 %v984
      %v1054 = vpop.f32.mrb[0].mxu0
      %v1055 = vadd.f32 %v808, %v1054
      %v1056 = vpop.f32.mrb[0].mxu0
      %1057 = vdwg.mxu0
      %v1058 = vsel %vm818, %v1055, -inf
      %1059 = vmax.xlane.f32.xlu0 %v1058
      %v1060 = vpop.xlane.xlu0 %1059
      %v1061 = vsub.f32 %v1055, %v1060
      %v1062 = vmul.f32 %v1061, 1.442695
      %v1063 = vpow.pop %v1062
      %v1064 = vsel %vm818, %v1063, 0.0
      %1065 = vadd.xlane.f32.xlu0 %v1064
      %v1066 = vpop.xlane.xlu0 %1065
      %v1067 = vrcp.pop %v1066
      %v1068 = vmul.f32 %v1063, %v1067
      %1069 = vrot.lane.b32.xlu0 %v799, 56
      %v1070 = vpop.permute.xlu0 %1069
      %v1073 = vsel %vm818, %v1068, 0
      %1075 = vmatprep.subr.mxu0 0.0
      %1076 = vmatpush1.msra.mxu0 %v1070
      %1077 = vmatprep.subr.mxu0 0.0
      %1078 = vmatpush1.msra.mxu0 0.0
      %1079 = vmatprep.subr.mxu0 0.0
      %1080 = vmatpush1.msra.mxu0 0.0
      %1081 = vmatprep.subr.mxu0 0.0
      %1082 = vmatpush1.msra.mxu0 0.0
      %1083 = vmatprep.subr.mxu0 0.0
      %1084 = vmatpush1.msra.mxu0 0.0
      %1085 = vmatprep.subr.mxu0 0.0
      %1086 = vmatpush1.msra.mxu0 0.0
      %1087 = vmatprep.subr.mxu0 0.0
      %1088 = vmatpush1.msra.mxu0 0.0
      %1089 = vmatprep.subr.mxu0 0.0
      %1090 = vmatpush1.msra.mxu0 0.0
      %1091 = vmatprep.subr.mxu0 0.0
      %1092 = vmatpush1.msra.mxu0 0.0
      %1093 = vmatprep.subr.mxu0 0.0
      %1094 = vmatpush1.msra.mxu0 0.0
      %1095 = vmatprep.subr.mxu0 0.0
      %1096 = vmatpush1.msra.mxu0 0.0
      %1097 = vmatprep.subr.mxu0 0.0
      %1098 = vmatpush1.msra.mxu0 0.0
      %1099 = vmatprep.subr.mxu0 0.0
      %1100 = vmatpush1.msra.mxu0 0.0
      %1101 = vmatprep.subr.mxu0 0.0
      %1102 = vmatpush1.msra.mxu0 0.0
      %1103 = vmatprep.subr.mxu0 0.0
      %1104 = vmatpush1.msra.mxu0 0.0
      %1105 = vmatprep.subr.mxu0 0.0
      %1106 = vmatpush1.msra.mxu0 0.0
      %1107 = vmatprep.subr.mxu0 0.0
      %1108 = vmatpush1.msra.mxu0 0.0
      %1109 = vmatprep.subr.mxu0 0.0
      %1110 = vmatpush1.msra.mxu0 0.0
      %1111 = vmatprep.subr.mxu0 0.0
      %1112 = vmatpush1.msra.mxu0 0.0
      %1113 = vmatprep.subr.mxu0 0.0
      %1114 = vmatpush1.msra.mxu0 0.0
      %1115 = vmatprep.subr.mxu0 0.0
      %1116 = vmatpush1.msra.mxu0 0.0
      %1117 = vmatprep.subr.mxu0 0.0
      %1118 = vmatpush1.msra.mxu0 0.0
      %1119 = vmatprep.subr.mxu0 0.0
      %1120 = vmatpush1.msra.mxu0 0.0
      %1121 = vmatprep.subr.mxu0 0.0
      %1122 = vmatpush1.msra.mxu0 0.0
      %1123 = vmatprep.subr.mxu0 0.0
      %1124 = vmatpush1.msra.mxu0 0.0
      %1125 = vmatprep.subr.mxu0 0.0
      %1126 = vmatpush1.msra.mxu0 0.0
      %1127 = vmatprep.subr.mxu0 0.0
      %1128 = vmatpush1.msra.mxu0 0.0
      %1129 = vmatprep.subr.mxu0 0.0
      %1130 = vmatpush1.msra.mxu0 0.0
      %1131 = vmatprep.subr.mxu0 0.0
      %1132 = vmatpush1.msra.mxu0 0.0
      %1133 = vmatprep.subr.mxu0 0.0
      %1134 = vmatpush1.msra.mxu0 0.0
      %1135 = vmatprep.subr.mxu0 0.0
      %1136 = vmatpush1.msra.mxu0 0.0
      %1137 = vmatprep.subr.mxu0 0.0
      %1138 = vmatpush1.msra.mxu0 0.0
      %1139 = vmatprep.mubr.f32.mxu0 0.0
      %1140 = vmatmul.mubr.f32.gmra.mrb[0].mxu0 %v1073
      %v1141 = vpop.f32.mrb[0].mxu0
      %v1142 = vadd.f32 0.0, %v1141
      %v1143 = vpop.f32.mrb[0].mxu0
      %1144 = vdwg.mxu0
      %v1146 = vsel %vm818, %v1142, 0
      %1148 = vmatprep.subr.mxu0 0.0
      %1149 = vmatpush1.msra.mxu0 %v812
      %1150 = vmatprep.subr.mxu0 0.0
      %1151 = vmatpush1.msra.mxu0 0.0
      %1152 = vmatprep.subr.mxu0 0.0
      %1153 = vmatpush1.msra.mxu0 0.0
      %1154 = vmatprep.subr.mxu0 0.0
      %1155 = vmatpush1.msra.mxu0 0.0
      %1156 = vmatprep.subr.mxu0 0.0
      %1157 = vmatpush1.msra.mxu0 0.0
      %1158 = vmatprep.subr.mxu0 0.0
      %1159 = vmatpush1.msra.mxu0 0.0
      %1160 = vmatprep.subr.mxu0 0.0
      %1161 = vmatpush1.msra.mxu0 0.0
      %1162 = vmatprep.subr.mxu0 0.0
      %1163 = vmatpush1.msra.mxu0 0.0
      %1164 = vmatprep.subr.mxu0 0.0
      %1165 = vmatpush1.msra.mxu0 0.0
      %1166 = vmatprep.subr.mxu0 0.0
      %1167 = vmatpush1.msra.mxu0 0.0
      %1168 = vmatprep.subr.mxu0 0.0
      %1169 = vmatpush1.msra.mxu0 0.0
      %1170 = vmatprep.subr.mxu0 0.0
      %1171 = vmatpush1.msra.mxu0 0.0
      %1172 = vmatprep.subr.mxu0 0.0
      %1173 = vmatpush1.msra.mxu0 0.0
      %1174 = vmatprep.subr.mxu0 0.0
      %1175 = vmatpush1.msra.mxu0 0.0
      %1176 = vmatprep.subr.mxu0 0.0
      %1177 = vmatpush1.msra.mxu0 0.0
      %1178 = vmatprep.subr.mxu0 0.0
      %1179 = vmatpush1.msra.mxu0 0.0
      %1180 = vmatprep.subr.mxu0 0.0
      %1181 = vmatpush1.msra.mxu0 0.0
      %1182 = vmatprep.subr.mxu0 0.0
      %1183 = vmatpush1.msra.mxu0 0.0
      %1184 = vmatprep.subr.mxu0 0.0
      %1185 = vmatpush1.msra.mxu0 0.0
      %1186 = vmatprep.subr.mxu0 0.0
      %1187 = vmatpush1.msra.mxu0 0.0
      %1188 = vmatprep.subr.mxu0 0.0
      %1189 = vmatpush1.msra.mxu0 0.0
      %1190 = vmatprep.subr.mxu0 0.0
      %1191 = vmatpush1.msra.mxu0 0.0
      %1192 = vmatprep.subr.mxu0 0.0
      %1193 = vmatpush1.msra.mxu0 0.0
      %1194 = vmatprep.subr.mxu0 0.0
      %1195 = vmatpush1.msra.mxu0 0.0
      %1196 = vmatprep.subr.mxu0 0.0
      %1197 = vmatpush1.msra.mxu0 0.0
      %1198 = vmatprep.subr.mxu0 0.0
      %1199 = vmatpush1.msra.mxu0 0.0
      %1200 = vmatprep.subr.mxu0 0.0
      %1201 = vmatpush1.msra.mxu0 0.0
      %1202 = vmatprep.subr.mxu0 0.0
      %1203 = vmatpush1.msra.mxu0 0.0
      %1204 = vmatprep.subr.mxu0 0.0
      %1205 = vmatpush1.msra.mxu0 0.0
      %1206 = vmatprep.subr.mxu0 0.0
      %1207 = vmatpush1.msra.mxu0 0.0
      %1208 = vmatprep.subr.mxu0 0.0
      %1209 = vmatpush1.msra.mxu0 0.0
      %1210 = vmatprep.subr.mxu0 0.0
      %1211 = vmatpush1.msra.mxu0 0.0
      %1212 = vmatprep.mubr.f32.mxu0 0.0
      %1213 = vmatmul.mubr.f32.gmra.mrb[0].mxu0 %v1146
      %v1214 = vpop.f32.mrb[0].mxu0
      %v1215 = vadd.f32 0.0, %v1214
      %v1216 = vpop.f32.mrb[0].mxu0
      %1217 = vdwg.mxu0
      %v1219 = vsel %vm818, %v977, 0
      %1221 = vmatprep.subr.mxu0 0.0
      %1222 = vmatpush1.msra.mxu0 %v811
      %1223 = vmatprep.subr.mxu0 0.0
      %1224 = vmatpush1.msra.mxu0 0.0
      %1225 = vmatprep.subr.mxu0 0.0
      %1226 = vmatpush1.msra.mxu0 0.0
      %1227 = vmatprep.subr.mxu0 0.0
      %1228 = vmatpush1.msra.mxu0 0.0
      %1229 = vmatprep.subr.mxu0 0.0
      %1230 = vmatpush1.msra.mxu0 0.0
      %1231 = vmatprep.subr.mxu0 0.0
      %1232 = vmatpush1.msra.mxu0 0.0
      %1233 = vmatprep.subr.mxu0 0.0
      %1234 = vmatpush1.msra.mxu0 0.0
      %1235 = vmatprep.subr.mxu0 0.0
      %1236 = vmatpush1.msra.mxu0 0.0
      %1237 = vmatprep.subr.mxu0 0.0
      %1238 = vmatpush1.msra.mxu0 0.0
      %1239 = vmatprep.subr.mxu0 0.0
      %1240 = vmatpush1.msra.mxu0 0.0
      %1241 = vmatprep.subr.mxu0 0.0
      %1242 = vmatpush1.msra.mxu0 0.0
      %1243 = vmatprep.subr.mxu0 0.0
      %1244 = vmatpush1.msra.mxu0 0.0
      %1245 = vmatprep.subr.mxu0 0.0
      %1246 = vmatpush1.msra.mxu0 0.0
      %1247 = vmatprep.subr.mxu0 0.0
      %1248 = vmatpush1.msra.mxu0 0.0
      %1249 = vmatprep.subr.mxu0 0.0
      %1250 = vmatpush1.msra.mxu0 0.0
      %1251 = vmatprep.subr.mxu0 0.0
      %1252 = vmatpush1.msra.mxu0 0.0
      %1253 = vmatprep.subr.mxu0 0.0
      %1254 = vmatpush1.msra.mxu0 0.0
      %1255 = vmatprep.subr.mxu0 0.0
      %1256 = vmatpush1.msra.mxu0 0.0
      %1257 = vmatprep.subr.mxu0 0.0
      %1258 = vmatpush1.msra.mxu0 0.0
      %1259 = vmatprep.subr.mxu0 0.0
      %1260 = vmatpush1.msra.mxu0 0.0
      %1261 = vmatprep.subr.mxu0 0.0
      %1262 = vmatpush1.msra.mxu0 0.0
      %1263 = vmatprep.subr.mxu0 0.0
      %1264 = vmatpush1.msra.mxu0 0.0
      %1265 = vmatprep.subr.mxu0 0.0
      %1266 = vmatpush1.msra.mxu0 0.0
      %1267 = vmatprep.subr.mxu0 0.0
      %1268 = vmatpush1.msra.mxu0 0.0
      %1269 = vmatprep.subr.mxu0 0.0
      %1270 = vmatpush1.msra.mxu0 0.0
      %1271 = vmatprep.subr.mxu0 0.0
      %1272 = vmatpush1.msra.mxu0 0.0
      %1273 = vmatprep.subr.mxu0 0.0
      %1274 = vmatpush1.msra.mxu0 0.0
      %1275 = vmatprep.subr.mxu0 0.0
      %1276 = vmatpush1.msra.mxu0 0.0
      %1277 = vmatprep.subr.mxu0 0.0
      %1278 = vmatpush1.msra.mxu0 0.0
      %1279 = vmatprep.subr.mxu0 0.0
      %1280 = vmatpush1.msra.mxu0 0.0
      %1281 = vmatprep.subr.mxu0 0.0
      %1282 = vmatpush1.msra.mxu0 0.0
      %1283 = vmatprep.subr.mxu0 0.0
      %1284 = vmatpush1.msra.mxu0 0.0
      %1285 = vmatprep.mubr.f32.mxu0 0.0
      %1286 = vmatmul.mubr.f32.gmra.mrb[0].mxu0 %v1219
      %v1287 = vpop.f32.mrb[0].mxu0
      %v1288 = vadd.f32 %v1215, %v1287
      %v1289 = vpop.f32.mrb[0].mxu0
      %1290 = vdwg.mxu0
      %1291 = vrot.lane.b32.xlu0 %v799, 112
      %v1292 = vpop.permute.xlu0 %1291
      %1293 = vrot.lane.b32.xlu0 %v799, 80
      %v1294 = vpop.permute.xlu0 %1293
      %v1295 = vsel %vm818, %v1292, 0
      %v1297 = vsel %vm818, %v1294, 0
      %1299 = vmatprep.subr.mxu0 0.0
      %1300 = vmatpush1.xpose.msra.mxu0 %v1297
      %1301 = vmatprep.subr.mxu0 0.0
      %1302 = vmatpush1.xpose.msra.mxu0 0.0
      %1303 = vmatprep.subr.mxu0 0.0
      %1304 = vmatpush1.xpose.msra.mxu0 0.0
      %1305 = vmatprep.subr.mxu0 0.0
      %1306 = vmatpush1.xpose.msra.mxu0 0.0
      %1307 = vmatprep.subr.mxu0 0.0
      %1308 = vmatpush1.xpose.msra.mxu0 0.0
      %1309 = vmatprep.subr.mxu0 0.0
      %1310 = vmatpush1.xpose.msra.mxu0 0.0
      %1311 = vmatprep.subr.mxu0 0.0
      %1312 = vmatpush1.xpose.msra.mxu0 0.0
      %1313 = vmatprep.subr.mxu0 0.0
      %1314 = vmatpush1.xpose.msra.mxu0 0.0
      %1315 = vmatprep.subr.mxu0 0.0
      %1316 = vmatpush1.xpose.msra.mxu0 0.0
      %1317 = vmatprep.subr.mxu0 0.0
      %1318 = vmatpush1.xpose.msra.mxu0 0.0
      %1319 = vmatprep.subr.mxu0 0.0
      %1320 = vmatpush1.xpose.msra.mxu0 0.0
      %1321 = vmatprep.subr.mxu0 0.0
      %1322 = vmatpush1.xpose.msra.mxu0 0.0
      %1323 = vmatprep.subr.mxu0 0.0
      %1324 = vmatpush1.xpose.msra.mxu0 0.0
      %1325 = vmatprep.subr.mxu0 0.0
      %1326 = vmatpush1.xpose.msra.mxu0 0.0
      %1327 = vmatprep.subr.mxu0 0.0
      %1328 = vmatpush1.xpose.msra.mxu0 0.0
      %1329 = vmatprep.subr.mxu0 0.0
      %1330 = vmatpush1.xpose.msra.mxu0 0.0
      %1331 = vmatprep.subr.mxu0 0.0
      %1332 = vmatpush1.xpose.msra.mxu0 0.0
      %1333 = vmatprep.subr.mxu0 0.0
      %1334 = vmatpush1.xpose.msra.mxu0 0.0
      %1335 = vmatprep.subr.mxu0 0.0
      %1336 = vmatpush1.xpose.msra.mxu0 0.0
      %1337 = vmatprep.subr.mxu0 0.0
      %1338 = vmatpush1.xpose.msra.mxu0 0.0
      %1339 = vmatprep.subr.mxu0 0.0
      %1340 = vmatpush1.xpose.msra.mxu0 0.0
      %1341 = vmatprep.subr.mxu0 0.0
      %1342 = vmatpush1.xpose.msra.mxu0 0.0
      %1343 = vmatprep.subr.mxu0 0.0
      %1344 = vmatpush1.xpose.msra.mxu0 0.0
      %1345 = vmatprep.subr.mxu0 0.0
      %1346 = vmatpush1.xpose.msra.mxu0 0.0
      %1347 = vmatprep.subr.mxu0 0.0
      %1348 = vmatpush1.xpose.msra.mxu0 0.0
      %1349 = vmatprep.subr.mxu0 0.0
      %1350 = vmatpush1.xpose.msra.mxu0 0.0
      %1351 = vmatprep.subr.mxu0 0.0
      %1352 = vmatpush1.xpose.msra.mxu0 0.0
      %1353 = vmatprep.subr.mxu0 0.0
      %1354 = vmatpush1.xpose.msra.mxu0 0.0
      %1355 = vmatprep.subr.mxu0 0.0
      %1356 = vmatpush1.xpose.msra.mxu0 0.0
      %1357 = vmatprep.subr.mxu0 0.0
      %1358 = vmatpush1.xpose.msra.mxu0 0.0
      %1359 = vmatprep.subr.mxu0 0.0
      %1360 = vmatpush1.xpose.msra.mxu0 0.0
      %1361 = vmatprep.subr.mxu0 0.0
      %1362 = vmatpush1.xpose.msra.mxu0 0.0
      %1363 = vmatprep.mubr.f32.mxu0 0.0
      %1364 = vmatmul.mubr.f32.gmra.mrb[0].mxu0 %v1295
      %v1365 = vpop.f32.mrb[0].mxu0
      %v1366 = vadd.f32 %v809, %v1365
      %v1367 = vpop.f32.mrb[0].mxu0
      %1368 = vdwg.mxu0
      %v1369 = vsel %vm818, %v1366, -inf
      %1370 = vmax.xlane.f32.xlu0 %v1369
      %v1371 = vpop.xlane.xlu0 %1370
      %v1372 = vsub.f32 %v1366, %v1371
      %v1373 = vmul.f32 %v1372, 1.442695
      %v1374 = vpow.pop %v1373
      %v1375 = vsel %vm818, %v1374, 0.0
      %1376 = vadd.xlane.f32.xlu0 %v1375
      %v1377 = vpop.xlane.xlu0 %1376
      %v1378 = vrcp.pop %v1377
      %v1379 = vmul.f32 %v1374, %v1378
      %1380 = vrot.lane.b32.xlu0 %v799, 48
      %v1381 = vpop.permute.xlu0 %1380
      %v1384 = vsel %vm818, %v1379, 0
      %1386 = vmatprep.subr.mxu0 0.0
      %1387 = vmatpush1.msra.mxu0 %v1381
      %1388 = vmatprep.subr.mxu0 0.0
      %1389 = vmatpush1.msra.mxu0 0.0
      %1390 = vmatprep.subr.mxu0 0.0
      %1391 = vmatpush1.msra.mxu0 0.0
      %1392 = vmatprep.subr.mxu0 0.0
      %1393 = vmatpush1.msra.mxu0 0.0
      %1394 = vmatprep.subr.mxu0 0.0
      %1395 = vmatpush1.msra.mxu0 0.0
      %1396 = vmatprep.subr.mxu0 0.0
      %1397 = vmatpush1.msra.mxu0 0.0
      %1398 = vmatprep.subr.mxu0 0.0
      %1399 = vmatpush1.msra.mxu0 0.0
      %1400 = vmatprep.subr.mxu0 0.0
      %1401 = vmatpush1.msra.mxu0 0.0
      %1402 = vmatprep.subr.mxu0 0.0
      %1403 = vmatpush1.msra.mxu0 0.0
      %1404 = vmatprep.subr.mxu0 0.0
      %1405 = vmatpush1.msra.mxu0 0.0
      %1406 = vmatprep.subr.mxu0 0.0
      %1407 = vmatpush1.msra.mxu0 0.0
      %1408 = vmatprep.subr.mxu0 0.0
      %1409 = vmatpush1.msra.mxu0 0.0
      %1410 = vmatprep.subr.mxu0 0.0
      %1411 = vmatpush1.msra.mxu0 0.0
      %1412 = vmatprep.subr.mxu0 0.0
      %1413 = vmatpush1.msra.mxu0 0.0
      %1414 = vmatprep.subr.mxu0 0.0
      %1415 = vmatpush1.msra.mxu0 0.0
      %1416 = vmatprep.subr.mxu0 0.0
      %1417 = vmatpush1.msra.mxu0 0.0
      %1418 = vmatprep.subr.mxu0 0.0
      %1419 = vmatpush1.msra.mxu0 0.0
      %1420 = vmatprep.subr.mxu0 0.0
      %1421 = vmatpush1.msra.mxu0 0.0
      %1422 = vmatprep.subr.mxu0 0.0
      %1423 = vmatpush1.msra.mxu0 0.0
      %1424 = vmatprep.subr.mxu0 0.0
      %1425 = vmatpush1.msra.mxu0 0.0
      %1426 = vmatprep.subr.mxu0 0.0
      %1427 = vmatpush1.msra.mxu0 0.0
      %1428 = vmatprep.subr.mxu0 0.0
      %1429 = vmatpush1.msra.mxu0 0.0
      %1430 = vmatprep.subr.mxu0 0.0
      %1431 = vmatpush1.msra.mxu0 0.0
      %1432 = vmatprep.subr.mxu0 0.0
      %1433 = vmatpush1.msra.mxu0 0.0
      %1434 = vmatprep.subr.mxu0 0.0
      %1435 = vmatpush1.msra.mxu0 0.0
      %1436 = vmatprep.subr.mxu0 0.0
      %1437 = vmatpush1.msra.mxu0 0.0
      %1438 = vmatprep.subr.mxu0 0.0
      %1439 = vmatpush1.msra.mxu0 0.0
      %1440 = vmatprep.subr.mxu0 0.0
      %1441 = vmatpush1.msra.mxu0 0.0
      %1442 = vmatprep.subr.mxu0 0.0
      %1443 = vmatpush1.msra.mxu0 0.0
      %1444 = vmatprep.subr.mxu0 0.0
      %1445 = vmatpush1.msra.mxu0 0.0
      %1446 = vmatprep.subr.mxu0 0.0
      %1447 = vmatpush1.msra.mxu0 0.0
      %1448 = vmatprep.subr.mxu0 0.0
      %1449 = vmatpush1.msra.mxu0 0.0
      %1450 = vmatprep.mubr.f32.mxu0 0.0
      %1451 = vmatmul.mubr.f32.gmra.mrb[0].mxu0 %v1384
      %v1452 = vpop.f32.mrb[0].mxu0
      %v1453 = vadd.f32 0.0, %v1452
      %v1454 = vpop.f32.mrb[0].mxu0
      %1455 = vdwg.mxu0
      %v1457 = vsel %vm818, %v1453, 0
      %1459 = vmatprep.subr.mxu0 0.0
      %1460 = vmatpush1.msra.mxu0 %v813
      %1461 = vmatprep.subr.mxu0 0.0
      %1462 = vmatpush1.msra.mxu0 0.0
      %1463 = vmatprep.subr.mxu0 0.0
      %1464 = vmatpush1.msra.mxu0 0.0
      %1465 = vmatprep.subr.mxu0 0.0
      %1466 = vmatpush1.msra.mxu0 0.0
      %1467 = vmatprep.subr.mxu0 0.0
      %1468 = vmatpush1.msra.mxu0 0.0
      %1469 = vmatprep.subr.mxu0 0.0
      %1470 = vmatpush1.msra.mxu0 0.0
      %1471 = vmatprep.subr.mxu0 0.0
      %1472 = vmatpush1.msra.mxu0 0.0
      %1473 = vmatprep.subr.mxu0 0.0
      %1474 = vmatpush1.msra.mxu0 0.0
      %1475 = vmatprep.subr.mxu0 0.0
      %1476 = vmatpush1.msra.mxu0 0.0
      %1477 = vmatprep.subr.mxu0 0.0
      %1478 = vmatpush1.msra.mxu0 0.0
      %1479 = vmatprep.subr.mxu0 0.0
      %1480 = vmatpush1.msra.mxu0 0.0
      %1481 = vmatprep.subr.mxu0 0.0
      %1482 = vmatpush1.msra.mxu0 0.0
      %1483 = vmatprep.subr.mxu0 0.0
      %1484 = vmatpush1.msra.mxu0 0.0
      %1485 = vmatprep.subr.mxu0 0.0
      %1486 = vmatpush1.msra.mxu0 0.0
      %1487 = vmatprep.subr.mxu0 0.0
      %1488 = vmatpush1.msra.mxu0 0.0
      %1489 = vmatprep.subr.mxu0 0.0
      %1490 = vmatpush1.msra.mxu0 0.0
      %1491 = vmatprep.subr.mxu0 0.0
      %1492 = vmatpush1.msra.mxu0 0.0
      %1493 = vmatprep.subr.mxu0 0.0
      %1494 = vmatpush1.msra.mxu0 0.0
      %1495 = vmatprep.subr.mxu0 0.0
      %1496 = vmatpush1.msra.mxu0 0.0
      %1497 = vmatprep.subr.mxu0 0.0
      %1498 = vmatpush1.msra.mxu0 0.0
      %1499 = vmatprep.subr.mxu0 0.0
      %1500 = vmatpush1.msra.mxu0 0.0
      %1501 = vmatprep.subr.mxu0 0.0
      %1502 = vmatpush1.msra.mxu0 0.0
      %1503 = vmatprep.subr.mxu0 0.0
      %1504 = vmatpush1.msra.mxu0 0.0
      %1505 = vmatprep.subr.mxu0 0.0
      %1506 = vmatpush1.msra.mxu0 0.0
      %1507 = vmatprep.subr.mxu0 0.0
      %1508 = vmatpush1.msra.mxu0 0.0
      %1509 = vmatprep.subr.mxu0 0.0
      %1510 = vmatpush1.msra.mxu0 0.0
      %1511 = vmatprep.subr.mxu0 0.0
      %1512 = vmatpush1.msra.mxu0 0.0
      %1513 = vmatprep.subr.mxu0 0.0
      %1514 = vmatpush1.msra.mxu0 0.0
      %1515 = vmatprep.subr.mxu0 0.0
      %1516 = vmatpush1.msra.mxu0 0.0
      %1517 = vmatprep.subr.mxu0 0.0
      %1518 = vmatpush1.msra.mxu0 0.0
      %1519 = vmatprep.subr.mxu0 0.0
      %1520 = vmatpush1.msra.mxu0 0.0
      %1521 = vmatprep.subr.mxu0 0.0
      %1522 = vmatpush1.msra.mxu0 0.0
      %1523 = vmatprep.mubr.f32.mxu0 0.0
      %1524 = vmatmul.mubr.f32.gmra.mrb[0].mxu0 %v1457
      %v1525 = vpop.f32.mrb[0].mxu0
      %v1526 = vadd.f32 0.0, %v1525
      %v1527 = vpop.f32.mrb[0].mxu0
      %1528 = vdwg.mxu0
      %v1529 = vadd.f32 %v1288, %v1526
      %1530 = vrot.lane.b32.xlu0 %v799, 104
      %v1531 = vpop.permute.xlu0 %1530
      %1532 = vrot.lane.b32.xlu0 %v799, 72
      %v1533 = vpop.permute.xlu0 %1532
      %v1534 = vsel %vm818, %v1531, 0
      %v1536 = vsel %vm818, %v1533, 0
      %1538 = vmatprep.subr.mxu0 0.0
      %1539 = vmatpush1.xpose.msra.mxu0 %v1536
      %1540 = vmatprep.subr.mxu0 0.0
      %1541 = vmatpush1.xpose.msra.mxu0 0.0
      %1542 = vmatprep.subr.mxu0 0.0
      %1543 = vmatpush1.xpose.msra.mxu0 0.0
      %1544 = vmatprep.subr.mxu0 0.0
      %1545 = vmatpush1.xpose.msra.mxu0 0.0
      %1546 = vmatprep.subr.mxu0 0.0
      %1547 = vmatpush1.xpose.msra.mxu0 0.0
      %1548 = vmatprep.subr.mxu0 0.0
      %1549 = vmatpush1.xpose.msra.mxu0 0.0
      %1550 = vmatprep.subr.mxu0 0.0
      %1551 = vmatpush1.xpose.msra.mxu0 0.0
      %1552 = vmatprep.subr.mxu0 0.0
      %1553 = vmatpush1.xpose.msra.mxu0 0.0
      %1554 = vmatprep.subr.mxu0 0.0
      %1555 = vmatpush1.xpose.msra.mxu0 0.0
      %1556 = vmatprep.subr.mxu0 0.0
      %1557 = vmatpush1.xpose.msra.mxu0 0.0
      %1558 = vmatprep.subr.mxu0 0.0
      %1559 = vmatpush1.xpose.msra.mxu0 0.0
      %1560 = vmatprep.subr.mxu0 0.0
      %1561 = vmatpush1.xpose.msra.mxu0 0.0
      %1562 = vmatprep.subr.mxu0 0.0
      %1563 = vmatpush1.xpose.msra.mxu0 0.0
      %1564 = vmatprep.subr.mxu0 0.0
      %1565 = vmatpush1.xpose.msra.mxu0 0.0
      %1566 = vmatprep.subr.mxu0 0.0
      %1567 = vmatpush1.xpose.msra.mxu0 0.0
      %1568 = vmatprep.subr.mxu0 0.0
      %1569 = vmatpush1.xpose.msra.mxu0 0.0
      %1570 = vmatprep.subr.mxu0 0.0
      %1571 = vmatpush1.xpose.msra.mxu0 0.0
      %1572 = vmatprep.subr.mxu0 0.0
      %1573 = vmatpush1.xpose.msra.mxu0 0.0
      %1574 = vmatprep.subr.mxu0 0.0
      %1575 = vmatpush1.xpose.msra.mxu0 0.0
      %1576 = vmatprep.subr.mxu0 0.0
      %1577 = vmatpush1.xpose.msra.mxu0 0.0
      %1578 = vmatprep.subr.mxu0 0.0
      %1579 = vmatpush1.xpose.msra.mxu0 0.0
      %1580 = vmatprep.subr.mxu0 0.0
      %1581 = vmatpush1.xpose.msra.mxu0 0.0
      %1582 = vmatprep.subr.mxu0 0.0
      %1583 = vmatpush1.xpose.msra.mxu0 0.0
      %1584 = vmatprep.subr.mxu0 0.0
      %1585 = vmatpush1.xpose.msra.mxu0 0.0
      %1586 = vmatprep.subr.mxu0 0.0
      %1587 = vmatpush1.xpose.msra.mxu0 0.0
      %1588 = vmatprep.subr.mxu0 0.0
      %1589 = vmatpush1.xpose.msra.mxu0 0.0
      %1590 = vmatprep.subr.mxu0 0.0
      %1591 = vmatpush1.xpose.msra.mxu0 0.0
      %1592 = vmatprep.subr.mxu0 0.0
      %1593 = vmatpush1.xpose.msra.mxu0 0.0
      %1594 = vmatprep.subr.mxu0 0.0
      %1595 = vmatpush1.xpose.msra.mxu0 0.0
      %1596 = vmatprep.subr.mxu0 0.0
      %1597 = vmatpush1.xpose.msra.mxu0 0.0
      %1598 = vmatprep.subr.mxu0 0.0
      %1599 = vmatpush1.xpose.msra.mxu0 0.0
      %1600 = vmatprep.subr.mxu0 0.0
      %1601 = vmatpush1.xpose.msra.mxu0 0.0
      %1602 = vmatprep.mubr.f32.mxu0 0.0
      %1603 = vmatmul.mubr.f32.gmra.mrb[0].mxu0 %v1534
      %v1604 = vpop.f32.mrb[0].mxu0
      %v1605 = vadd.f32 %v810, %v1604
      %v1606 = vpop.f32.mrb[0].mxu0
      %1607 = vdwg.mxu0
      %v1608 = vsel %vm818, %v1605, -inf
      %1609 = vmax.xlane.f32.xlu0 %v1608
      %v1610 = vpop.xlane.xlu0 %1609
      %v1611 = vsub.f32 %v1605, %v1610
      %v1612 = vmul.f32 %v1611, 1.442695
      %v1613 = vpow.pop %v1612
      %v1614 = vsel %vm818, %v1613, 0.0
      %1615 = vadd.xlane.f32.xlu0 %v1614
      %v1616 = vpop.xlane.xlu0 %1615
      %v1617 = vrcp.pop %v1616
      %v1618 = vmul.f32 %v1613, %v1617
      %1619 = vrot.lane.b32.xlu0 %v799, 40
      %v1620 = vpop.permute.xlu0 %1619
      %v1623 = vsel %vm818, %v1618, 0
      %1625 = vmatprep.subr.mxu0 0.0
      %1626 = vmatpush1.msra.mxu0 %v1620
      %1627 = vmatprep.subr.mxu0 0.0
      %1628 = vmatpush1.msra.mxu0 0.0
      %1629 = vmatprep.subr.mxu0 0.0
      %1630 = vmatpush1.msra.mxu0 0.0
      %1631 = vmatprep.subr.mxu0 0.0
      %1632 = vmatpush1.msra.mxu0 0.0
      %1633 = vmatprep.subr.mxu0 0.0
      %1634 = vmatpush1.msra.mxu0 0.0
      %1635 = vmatprep.subr.mxu0 0.0
      %1636 = vmatpush1.msra.mxu0 0.0
      %1637 = vmatprep.subr.mxu0 0.0
      %1638 = vmatpush1.msra.mxu0 0.0
      %1639 = vmatprep.subr.mxu0 0.0
      %1640 = vmatpush1.msra.mxu0 0.0
      %1641 = vmatprep.subr.mxu0 0.0
      %1642 = vmatpush1.msra.mxu0 0.0
      %1643 = vmatprep.subr.mxu0 0.0
      %1644 = vmatpush1.msra.mxu0 0.0
      %1645 = vmatprep.subr.mxu0 0.0
      %1646 = vmatpush1.msra.mxu0 0.0
      %1647 = vmatprep.subr.mxu0 0.0
      %1648 = vmatpush1.msra.mxu0 0.0
      %1649 = vmatprep.subr.mxu0 0.0
      %1650 = vmatpush1.msra.mxu0 0.0
      %1651 = vmatprep.subr.mxu0 0.0
      %1652 = vmatpush1.msra.mxu0 0.0
      %1653 = vmatprep.subr.mxu0 0.0
      %1654 = vmatpush1.msra.mxu0 0.0
      %1655 = vmatprep.subr.mxu0 0.0
      %1656 = vmatpush1.msra.mxu0 0.0
      %1657 = vmatprep.subr.mxu0 0.0
      %1658 = vmatpush1.msra.mxu0 0.0
      %1659 = vmatprep.subr.mxu0 0.0
      %1660 = vmatpush1.msra.mxu0 0.0
      %1661 = vmatprep.subr.mxu0 0.0
      %1662 = vmatpush1.msra.mxu0 0.0
      %1663 = vmatprep.subr.mxu0 0.0
      %1664 = vmatpush1.msra.mxu0 0.0
      %1665 = vmatprep.subr.mxu0 0.0
      %1666 = vmatpush1.msra.mxu0 0.0
      %1667 = vmatprep.subr.mxu0 0.0
      %1668 = vmatpush1.msra.mxu0 0.0
      %1669 = vmatprep.subr.mxu0 0.0
      %1670 = vmatpush1.msra.mxu0 0.0
      %1671 = vmatprep.subr.mxu0 0.0
      %1672 = vmatpush1.msra.mxu0 0.0
      %1673 = vmatprep.subr.mxu0 0.0
      %1674 = vmatpush1.msra.mxu0 0.0
      %1675 = vmatprep.subr.mxu0 0.0
      %1676 = vmatpush1.msra.mxu0 0.0
      %1677 = vmatprep.subr.mxu0 0.0
      %1678 = vmatpush1.msra.mxu0 0.0
      %1679 = vmatprep.subr.mxu0 0.0
      %1680 = vmatpush1.msra.mxu0 0.0
      %1681 = vmatprep.subr.mxu0 0.0
      %1682 = vmatpush1.msra.mxu0 0.0
      %1683 = vmatprep.subr.mxu0 0.0
      %1684 = vmatpush1.msra.mxu0 0.0
      %1685 = vmatprep.subr.mxu0 0.0
      %1686 = vmatpush1.msra.mxu0 0.0
      %1687 = vmatprep.subr.mxu0 0.0
      %1688 = vmatpush1.msra.mxu0 0.0
      %1689 = vmatprep.mubr.f32.mxu0 0.0
      %1690 = vmatmul.mubr.f32.gmra.mrb[0].mxu0 %v1623
      %v1691 = vpop.f32.mrb[0].mxu0
      %v1692 = vadd.f32 0.0, %v1691
      %v1693 = vpop.f32.mrb[0].mxu0
      %1694 = vdwg.mxu0
      %v1696 = vsel %vm818, %v1692, 0
      %1698 = vmatprep.subr.mxu0 0.0
      %1699 = vmatpush1.msra.mxu0 %v814
      %1700 = vmatprep.subr.mxu0 0.0
      %1701 = vmatpush1.msra.mxu0 0.0
      %1702 = vmatprep.subr.mxu0 0.0
      %1703 = vmatpush1.msra.mxu0 0.0
      %1704 = vmatprep.subr.mxu0 0.0
      %1705 = vmatpush1.msra.mxu0 0.0
      %1706 = vmatprep.subr.mxu0 0.0
      %1707 = vmatpush1.msra.mxu0 0.0
      %1708 = vmatprep.subr.mxu0 0.0
      %1709 = vmatpush1.msra.mxu0 0.0
      %1710 = vmatprep.subr.mxu0 0.0
      %1711 = vmatpush1.msra.mxu0 0.0
      %1712 = vmatprep.subr.mxu0 0.0
      %1713 = vmatpush1.msra.mxu0 0.0
      %1714 = vmatprep.subr.mxu0 0.0
      %1715 = vmatpush1.msra.mxu0 0.0
      %1716 = vmatprep.subr.mxu0 0.0
      %1717 = vmatpush1.msra.mxu0 0.0
      %1718 = vmatprep.subr.mxu0 0.0
      %1719 = vmatpush1.msra.mxu0 0.0
      %1720 = vmatprep.subr.mxu0 0.0
      %1721 = vmatpush1.msra.mxu0 0.0
      %1722 = vmatprep.subr.mxu0 0.0
      %1723 = vmatpush1.msra.mxu0 0.0
      %1724 = vmatprep.subr.mxu0 0.0
      %1725 = vmatpush1.msra.mxu0 0.0
      %1726 = vmatprep.subr.mxu0 0.0
      %1727 = vmatpush1.msra.mxu0 0.0
      %1728 = vmatprep.subr.mxu0 0.0
      %1729 = vmatpush1.msra.mxu0 0.0
      %1730 = vmatprep.subr.mxu0 0.0
      %1731 = vmatpush1.msra.mxu0 0.0
      %1732 = vmatprep.subr.mxu0 0.0
      %1733 = vmatpush1.msra.mxu0 0.0
      %1734 = vmatprep.subr.mxu0 0.0
      %1735 = vmatpush1.msra.mxu0 0.0
      %1736 = vmatprep.subr.mxu0 0.0
      %1737 = vmatpush1.msra.mxu0 0.0
      %1738 = vmatprep.subr.mxu0 0.0
      %1739 = vmatpush1.msra.mxu0 0.0
      %1740 = vmatprep.subr.mxu0 0.0
      %1741 = vmatpush1.msra.mxu0 0.0
      %1742 = vmatprep.subr.mxu0 0.0
      %1743 = vmatpush1.msra.mxu0 0.0
      %1744 = vmatprep.subr.mxu0 0.0
      %1745 = vmatpush1.msra.mxu0 0.0
      %1746 = vmatprep.subr.mxu0 0.0
      %1747 = vmatpush1.msra.mxu0 0.0
      %1748 = vmatprep.subr.mxu0 0.0
      %1749 = vmatpush1.msra.mxu0 0.0
      %1750 = vmatprep.subr.mxu0 0.0
      %1751 = vmatpush1.msra.mxu0 0.0
      %1752 = vmatprep.subr.mxu0 0.0
      %1753 = vmatpush1.msra.mxu0 0.0
      %1754 = vmatprep.subr.mxu0 0.0
      %1755 = vmatpush1.msra.mxu0 0.0
      %1756 = vmatprep.subr.mxu0 0.0
      %1757 = vmatpush1.msra.mxu0 0.0
      %1758 = vmatprep.subr.mxu0 0.0
      %1759 = vmatpush1.msra.mxu0 0.0
      %1760 = vmatprep.subr.mxu0 0.0
      %1761 = vmatpush1.msra.mxu0 0.0
      %1762 = vmatprep.mubr.f32.mxu0 0.0
      %1763 = vmatmul.mubr.f32.gmra.mrb[0].mxu0 %v1696
      %v1764 = vpop.f32.mrb[0].mxu0
      %v1765 = vadd.f32 0.0, %v1764
      %v1766 = vpop.f32.mrb[0].mxu0
      %1767 = vdwg.mxu0
      %v1768 = vadd.f32 %v1529, %v1765
      %1769 = vst.msk [vmem:[#allocation3] sm:$0xff] %vm693, %v1768
      %1771 = vrot.lane.b32.xlu0 %v804, 96
      %v1772 = vpop.permute.xlu0 %1771
      %v1773 = vsel %vm818, %v804, 0
      %v1775 = vsel %vm818, %v1772, 0
      %1777 = vmatprep.subr.mxu0 0.0
      %1778 = vmatpush1.xpose.msra.mxu0 %v1775
      %1779 = vmatprep.subr.mxu0 0.0
      %1780 = vmatpush1.xpose.msra.mxu0 0.0
      %1781 = vmatprep.subr.mxu0 0.0
      %1782 = vmatpush1.xpose.msra.mxu0 0.0
      %1783 = vmatprep.subr.mxu0 0.0
      %1784 = vmatpush1.xpose.msra.mxu0 0.0
      %1785 = vmatprep.subr.mxu0 0.0
      %1786 = vmatpush1.xpose.msra.mxu0 0.0
      %1787 = vmatprep.subr.mxu0 0.0
      %1788 = vmatpush1.xpose.msra.mxu0 0.0
      %1789 = vmatprep.subr.mxu0 0.0
      %1790 = vmatpush1.xpose.msra.mxu0 0.0
      %1791 = vmatprep.subr.mxu0 0.0
      %1792 = vmatpush1.xpose.msra.mxu0 0.0
      %1793 = vmatprep.subr.mxu0 0.0
      %1794 = vmatpush1.xpose.msra.mxu0 0.0
      %1795 = vmatprep.subr.mxu0 0.0
      %1796 = vmatpush1.xpose.msra.mxu0 0.0
      %1797 = vmatprep.subr.mxu0 0.0
      %1798 = vmatpush1.xpose.msra.mxu0 0.0
      %1799 = vmatprep.subr.mxu0 0.0
      %1800 = vmatpush1.xpose.msra.mxu0 0.0
      %1801 = vmatprep.subr.mxu0 0.0
      %1802 = vmatpush1.xpose.msra.mxu0 0.0
      %1803 = vmatprep.subr.mxu0 0.0
      %1804 = vmatpush1.xpose.msra.mxu0 0.0
      %1805 = vmatprep.subr.mxu0 0.0
      %1806 = vmatpush1.xpose.msra.mxu0 0.0
      %1807 = vmatprep.subr.mxu0 0.0
      %1808 = vmatpush1.xpose.msra.mxu0 0.0
      %1809 = vmatprep.subr.mxu0 0.0
      %1810 = vmatpush1.xpose.msra.mxu0 0.0
      %1811 = vmatprep.subr.mxu0 0.0
      %1812 = vmatpush1.xpose.msra.mxu0 0.0
      %1813 = vmatprep.subr.mxu0 0.0
      %1814 = vmatpush1.xpose.msra.mxu0 0.0
      %1815 = vmatprep.subr.mxu0 0.0
      %1816 = vmatpush1.xpose.msra.mxu0 0.0
      %1817 = vmatprep.subr.mxu0 0.0
      %1818 = vmatpush1.xpose.msra.mxu0 0.0
      %1819 = vmatprep.subr.mxu0 0.0
      %1820 = vmatpush1.xpose.msra.mxu0 0.0
      %1821 = vmatprep.subr.mxu0 0.0
      %1822 = vmatpush1.xpose.msra.mxu0 0.0
      %1823 = vmatprep.subr.mxu0 0.0
      %1824 = vmatpush1.xpose.msra.mxu0 0.0
      %1825 = vmatprep.subr.mxu0 0.0
      %1826 = vmatpush1.xpose.msra.mxu0 0.0
      %1827 = vmatprep.subr.mxu0 0.0
      %1828 = vmatpush1.xpose.msra.mxu0 0.0
      %1829 = vmatprep.subr.mxu0 0.0
      %1830 = vmatpush1.xpose.msra.mxu0 0.0
      %1831 = vmatprep.subr.mxu0 0.0
      %1832 = vmatpush1.xpose.msra.mxu0 0.0
      %1833 = vmatprep.subr.mxu0 0.0
      %1834 = vmatpush1.xpose.msra.mxu0 0.0
      %1835 = vmatprep.subr.mxu0 0.0
      %1836 = vmatpush1.xpose.msra.mxu0 0.0
      %1837 = vmatprep.subr.mxu0 0.0
      %1838 = vmatpush1.xpose.msra.mxu0 0.0
      %1839 = vmatprep.subr.mxu0 0.0
      %1840 = vmatpush1.xpose.msra.mxu0 0.0
      %1841 = vmatprep.mubr.f32.mxu0 0.0
      %1842 = vmatmul.mubr.f32.gmra.mrb[0].mxu0 %v1773
      %v1843 = vpop.f32.mrb[0].mxu0
      %v1844 = vadd.f32 %v807, %v1843
      %v1845 = vpop.f32.mrb[0].mxu0
      %1846 = vdwg.mxu0
      %v1847 = vsel %vm818, %v1844, -inf
      %1848 = vmax.xlane.f32.xlu0 %v1847
      %v1849 = vpop.xlane.xlu0 %1848
      %v1850 = vsub.f32 %v1844, %v1849
      %v1851 = vmul.f32 %v1850, 1.442695
      %v1852 = vpow.pop %v1851
      %v1853 = vsel %vm818, %v1852, 0.0
      %1854 = vadd.xlane.f32.xlu0 %v1853
      %v1855 = vpop.xlane.xlu0 %1854
      %v1856 = vrcp.pop %v1855
      %v1857 = vmul.f32 %v1852, %v1856
      %1858 = vrot.lane.b32.xlu0 %v804, 64
      %v1859 = vpop.permute.xlu0 %1858
      %v1862 = vsel %vm818, %v1857, 0
      %1864 = vmatprep.subr.mxu0 0.0
      %1865 = vmatpush1.msra.mxu0 %v1859
      %1866 = vmatprep.subr.mxu0 0.0
      %1867 = vmatpush1.msra.mxu0 0.0
      %1868 = vmatprep.subr.mxu0 0.0
      %1869 = vmatpush1.msra.mxu0 0.0
      %1870 = vmatprep.subr.mxu0 0.0
      %1871 = vmatpush1.msra.mxu0 0.0
      %1872 = vmatprep.subr.mxu0 0.0
      %1873 = vmatpush1.msra.mxu0 0.0
      %1874 = vmatprep.subr.mxu0 0.0
      %1875 = vmatpush1.msra.mxu0 0.0
      %1876 = vmatprep.subr.mxu0 0.0
      %1877 = vmatpush1.msra.mxu0 0.0
      %1878 = vmatprep.subr.mxu0 0.0
      %1879 = vmatpush1.msra.mxu0 0.0
      %1880 = vmatprep.subr.mxu0 0.0
      %1881 = vmatpush1.msra.mxu0 0.0
      %1882 = vmatprep.subr.mxu0 0.0
      %1883 = vmatpush1.msra.mxu0 0.0
      %1884 = vmatprep.subr.mxu0 0.0
      %1885 = vmatpush1.msra.mxu0 0.0
      %1886 = vmatprep.subr.mxu0 0.0
      %1887 = vmatpush1.msra.mxu0 0.0
      %1888 = vmatprep.subr.mxu0 0.0
      %1889 = vmatpush1.msra.mxu0 0.0
      %1890 = vmatprep.subr.mxu0 0.0
      %1891 = vmatpush1.msra.mxu0 0.0
      %1892 = vmatprep.subr.mxu0 0.0
      %1893 = vmatpush1.msra.mxu0 0.0
      %1894 = vmatprep.subr.mxu0 0.0
      %1895 = vmatpush1.msra.mxu0 0.0
      %1896 = vmatprep.subr.mxu0 0.0
      %1897 = vmatpush1.msra.mxu0 0.0
      %1898 = vmatprep.subr.mxu0 0.0
      %1899 = vmatpush1.msra.mxu0 0.0
      %1900 = vmatprep.subr.mxu0 0.0
      %1901 = vmatpush1.msra.mxu0 0.0
      %1902 = vmatprep.subr.mxu0 0.0
      %1903 = vmatpush1.msra.mxu0 0.0
      %1904 = vmatprep.subr.mxu0 0.0
      %1905 = vmatpush1.msra.mxu0 0.0
      %1906 = vmatprep.subr.mxu0 0.0
      %1907 = vmatpush1.msra.mxu0 0.0
      %1908 = vmatprep.subr.mxu0 0.0
      %1909 = vmatpush1.msra.mxu0 0.0
      %1910 = vmatprep.subr.mxu0 0.0
      %1911 = vmatpush1.msra.mxu0 0.0
      %1912 = vmatprep.subr.mxu0 0.0
      %1913 = vmatpush1.msra.mxu0 0.0
      %1914 = vmatprep.subr.mxu0 0.0
      %1915 = vmatpush1.msra.mxu0 0.0
      %1916 = vmatprep.subr.mxu0 0.0
      %1917 = vmatpush1.msra.mxu0 0.0
      %1918 = vmatprep.subr.mxu0 0.0
      %1919 = vmatpush1.msra.mxu0 0.0
      %1920 = vmatprep.subr.mxu0 0.0
      %1921 = vmatpush1.msra.mxu0 0.0
      %1922 = vmatprep.subr.mxu0 0.0
      %1923 = vmatpush1.msra.mxu0 0.0
      %1924 = vmatprep.subr.mxu0 0.0
      %1925 = vmatpush1.msra.mxu0 0.0
      %1926 = vmatprep.subr.mxu0 0.0
      %1927 = vmatpush1.msra.mxu0 0.0
      %1928 = vmatprep.mubr.f32.mxu0 0.0
      %1929 = vmatmul.mubr.f32.gmra.mrb[0].mxu0 %v1862
      %v1930 = vpop.f32.mrb[0].mxu0
      %v1931 = vadd.f32 0.0, %v1930
      %v1932 = vpop.f32.mrb[0].mxu0
      %1933 = vdwg.mxu0
      %1934 = vrot.lane.b32.xlu0 %v804, 120
      %v1935 = vpop.permute.xlu0 %1934
      %1936 = vrot.lane.b32.xlu0 %v804, 88
      %v1937 = vpop.permute.xlu0 %1936
      %v1938 = vsel %vm818, %v1935, 0
      %v1940 = vsel %vm818, %v1937, 0
      %1942 = vmatprep.subr.mxu0 0.0
      %1943 = vmatpush1.xpose.msra.mxu0 %v1940
      %1944 = vmatprep.subr.mxu0 0.0
      %1945 = vmatpush1.xpose.msra.mxu0 0.0
      %1946 = vmatprep.subr.mxu0 0.0
      %1947 = vmatpush1.xpose.msra.mxu0 0.0
      %1948 = vmatprep.subr.mxu0 0.0
      %1949 = vmatpush1.xpose.msra.mxu0 0.0
      %1950 = vmatprep.subr.mxu0 0.0
      %1951 = vmatpush1.xpose.msra.mxu0 0.0
      %1952 = vmatprep.subr.mxu0 0.0
      %1953 = vmatpush1.xpose.msra.mxu0 0.0
      %1954 = vmatprep.subr.mxu0 0.0
      %1955 = vmatpush1.xpose.msra.mxu0 0.0
      %1956 = vmatprep.subr.mxu0 0.0
      %1957 = vmatpush1.xpose.msra.mxu0 0.0
      %1958 = vmatprep.subr.mxu0 0.0
      %1959 = vmatpush1.xpose.msra.mxu0 0.0
      %1960 = vmatprep.subr.mxu0 0.0
      %1961 = vmatpush1.xpose.msra.mxu0 0.0
      %1962 = vmatprep.subr.mxu0 0.0
      %1963 = vmatpush1.xpose.msra.mxu0 0.0
      %1964 = vmatprep.subr.mxu0 0.0
      %1965 = vmatpush1.xpose.msra.mxu0 0.0
      %1966 = vmatprep.subr.mxu0 0.0
      %1967 = vmatpush1.xpose.msra.mxu0 0.0
      %1968 = vmatprep.subr.mxu0 0.0
      %1969 = vmatpush1.xpose.msra.mxu0 0.0
      %1970 = vmatprep.subr.mxu0 0.0
      %1971 = vmatpush1.xpose.msra.mxu0 0.0
      %1972 = vmatprep.subr.mxu0 0.0
      %1973 = vmatpush1.xpose.msra.mxu0 0.0
      %1974 = vmatprep.subr.mxu0 0.0
      %1975 = vmatpush1.xpose.msra.mxu0 0.0
      %1976 = vmatprep.subr.mxu0 0.0
      %1977 = vmatpush1.xpose.msra.mxu0 0.0
      %1978 = vmatprep.subr.mxu0 0.0
      %1979 = vmatpush1.xpose.msra.mxu0 0.0
      %1980 = vmatprep.subr.mxu0 0.0
      %1981 = vmatpush1.xpose.msra.mxu0 0.0
      %1982 = vmatprep.subr.mxu0 0.0
      %1983 = vmatpush1.xpose.msra.mxu0 0.0
      %1984 = vmatprep.subr.mxu0 0.0
      %1985 = vmatpush1.xpose.msra.mxu0 0.0
      %1986 = vmatprep.subr.mxu0 0.0
      %1987 = vmatpush1.xpose.msra.mxu0 0.0
      %1988 = vmatprep.subr.mxu0 0.0
      %1989 = vmatpush1.xpose.msra.mxu0 0.0
      %1990 = vmatprep.subr.mxu0 0.0
      %1991 = vmatpush1.xpose.msra.mxu0 0.0
      %1992 = vmatprep.subr.mxu0 0.0
      %1993 = vmatpush1.xpose.msra.mxu0 0.0
      %1994 = vmatprep.subr.mxu0 0.0
      %1995 = vmatpush1.xpose.msra.mxu0 0.0
      %1996 = vmatprep.subr.mxu0 0.0
      %1997 = vmatpush1.xpose.msra.mxu0 0.0
      %1998 = vmatprep.subr.mxu0 0.0
      %1999 = vmatpush1.xpose.msra.mxu0 0.0
      %2000 = vmatprep.subr.mxu0 0.0
      %2001 = vmatpush1.xpose.msra.mxu0 0.0
      %2002 = vmatprep.subr.mxu0 0.0
      %2003 = vmatpush1.xpose.msra.mxu0 0.0
      %2004 = vmatprep.subr.mxu0 0.0
      %2005 = vmatpush1.xpose.msra.mxu0 0.0
      %2006 = vmatprep.mubr.f32.mxu0 0.0
      %2007 = vmatmul.mubr.f32.gmra.mrb[0].mxu0 %v1938
      %v2008 = vpop.f32.mrb[0].mxu0
      %v2009 = vadd.f32 %v808, %v2008
      %v2010 = vpop.f32.mrb[0].mxu0
      %2011 = vdwg.mxu0
      %v2012 = vsel %vm818, %v2009, -inf
      %2013 = vmax.xlane.f32.xlu0 %v2012
      %v2014 = vpop.xlane.xlu0 %2013
      %v2015 = vsub.f32 %v2009, %v2014
      %v2016 = vmul.f32 %v2015, 1.442695
      %v2017 = vpow.pop %v2016
      %v2018 = vsel %vm818, %v2017, 0.0
      %2019 = vadd.xlane.f32.xlu0 %v2018
      %v2020 = vpop.xlane.xlu0 %2019
      %v2021 = vrcp.pop %v2020
      %v2022 = vmul.f32 %v2017, %v2021
      %2023 = vrot.lane.b32.xlu0 %v804, 56
      %v2024 = vpop.permute.xlu0 %2023
      %v2027 = vsel %vm818, %v2022, 0
      %2029 = vmatprep.subr.mxu0 0.0
      %2030 = vmatpush1.msra.mxu0 %v2024
      %2031 = vmatprep.subr.mxu0 0.0
      %2032 = vmatpush1.msra.mxu0 0.0
      %2033 = vmatprep.subr.mxu0 0.0
      %2034 = vmatpush1.msra.mxu0 0.0
      %2035 = vmatprep.subr.mxu0 0.0
      %2036 = vmatpush1.msra.mxu0 0.0
      %2037 = vmatprep.subr.mxu0 0.0
      %2038 = vmatpush1.msra.mxu0 0.0
      %2039 = vmatprep.subr.mxu0 0.0
      %2040 = vmatpush1.msra.mxu0 0.0
      %2041 = vmatprep.subr.mxu0 0.0
      %2042 = vmatpush1.msra.mxu0 0.0
      %2043 = vmatprep.subr.mxu0 0.0
      %2044 = vmatpush1.msra.mxu0 0.0
      %2045 = vmatprep.subr.mxu0 0.0
      %2046 = vmatpush1.msra.mxu0 0.0
      %2047 = vmatprep.subr.mxu0 0.0
      %2048 = vmatpush1.msra.mxu0 0.0
      %2049 = vmatprep.subr.mxu0 0.0
      %2050 = vmatpush1.msra.mxu0 0.0
      %2051 = vmatprep.subr.mxu0 0.0
      %2052 = vmatpush1.msra.mxu0 0.0
      %2053 = vmatprep.subr.mxu0 0.0
      %2054 = vmatpush1.msra.mxu0 0.0
      %2055 = vmatprep.subr.mxu0 0.0
      %2056 = vmatpush1.msra.mxu0 0.0
      %2057 = vmatprep.subr.mxu0 0.0
      %2058 = vmatpush1.msra.mxu0 0.0
      %2059 = vmatprep.subr.mxu0 0.0
      %2060 = vmatpush1.msra.mxu0 0.0
      %2061 = vmatprep.subr.mxu0 0.0
      %2062 = vmatpush1.msra.mxu0 0.0
      %2063 = vmatprep.subr.mxu0 0.0
      %2064 = vmatpush1.msra.mxu0 0.0
      %2065 = vmatprep.subr.mxu0 0.0
      %2066 = vmatpush1.msra.mxu0 0.0
      %2067 = vmatprep.subr.mxu0 0.0
      %2068 = vmatpush1.msra.mxu0 0.0
      %2069 = vmatprep.subr.mxu0 0.0
      %2070 = vmatpush1.msra.mxu0 0.0
      %2071 = vmatprep.subr.mxu0 0.0
      %2072 = vmatpush1.msra.mxu0 0.0
      %2073 = vmatprep.subr.mxu0 0.0
      %2074 = vmatpush1.msra.mxu0 0.0
      %2075 = vmatprep.subr.mxu0 0.0
      %2076 = vmatpush1.msra.mxu0 0.0
      %2077 = vmatprep.subr.mxu0 0.0
      %2078 = vmatpush1.msra.mxu0 0.0
      %2079 = vmatprep.subr.mxu0 0.0
      %2080 = vmatpush1.msra.mxu0 0.0
      %2081 = vmatprep.subr.mxu0 0.0
      %2082 = vmatpush1.msra.mxu0 0.0
      %2083 = vmatprep.subr.mxu0 0.0
      %2084 = vmatpush1.msra.mxu0 0.0
      %2085 = vmatprep.subr.mxu0 0.0
      %2086 = vmatpush1.msra.mxu0 0.0
      %2087 = vmatprep.subr.mxu0 0.0
      %2088 = vmatpush1.msra.mxu0 0.0
      %2089 = vmatprep.subr.mxu0 0.0
      %2090 = vmatpush1.msra.mxu0 0.0
      %2091 = vmatprep.subr.mxu0 0.0
      %2092 = vmatpush1.msra.mxu0 0.0
      %2093 = vmatprep.mubr.f32.mxu0 0.0
      %2094 = vmatmul.mubr.f32.gmra.mrb[0].mxu0 %v2027
      %v2095 = vpop.f32.mrb[0].mxu0
      %v2096 = vadd.f32 0.0, %v2095
      %v2097 = vpop.f32.mrb[0].mxu0
      %2098 = vdwg.mxu0
      %v2100 = vsel %vm818, %v2096, 0
      %2102 = vmatprep.subr.mxu0 0.0
      %2103 = vmatpush1.msra.mxu0 %v812
      %2104 = vmatprep.subr.mxu0 0.0
      %2105 = vmatpush1.msra.mxu0 0.0
      %2106 = vmatprep.subr.mxu0 0.0
      %2107 = vmatpush1.msra.mxu0 0.0
      %2108 = vmatprep.subr.mxu0 0.0
      %2109 = vmatpush1.msra.mxu0 0.0
      %2110 = vmatprep.subr.mxu0 0.0
      %2111 = vmatpush1.msra.mxu0 0.0
      %2112 = vmatprep.subr.mxu0 0.0
      %2113 = vmatpush1.msra.mxu0 0.0
      %2114 = vmatprep.subr.mxu0 0.0
      %2115 = vmatpush1.msra.mxu0 0.0
      %2116 = vmatprep.subr.mxu0 0.0
      %2117 = vmatpush1.msra.mxu0 0.0
      %2118 = vmatprep.subr.mxu0 0.0
      %2119 = vmatpush1.msra.mxu0 0.0
      %2120 = vmatprep.subr.mxu0 0.0
      %2121 = vmatpush1.msra.mxu0 0.0
      %2122 = vmatprep.subr.mxu0 0.0
      %2123 = vmatpush1.msra.mxu0 0.0
      %2124 = vmatprep.subr.mxu0 0.0
      %2125 = vmatpush1.msra.mxu0 0.0
      %2126 = vmatprep.subr.mxu0 0.0
      %2127 = vmatpush1.msra.mxu0 0.0
      %2128 = vmatprep.subr.mxu0 0.0
      %2129 = vmatpush1.msra.mxu0 0.0
      %2130 = vmatprep.subr.mxu0 0.0
      %2131 = vmatpush1.msra.mxu0 0.0
      %2132 = vmatprep.subr.mxu0 0.0
      %2133 = vmatpush1.msra.mxu0 0.0
      %2134 = vmatprep.subr.mxu0 0.0
      %2135 = vmatpush1.msra.mxu0 0.0
      %2136 = vmatprep.subr.mxu0 0.0
      %2137 = vmatpush1.msra.mxu0 0.0
      %2138 = vmatprep.subr.mxu0 0.0
      %2139 = vmatpush1.msra.mxu0 0.0
      %2140 = vmatprep.subr.mxu0 0.0
      %2141 = vmatpush1.msra.mxu0 0.0
      %2142 = vmatprep.subr.mxu0 0.0
      %2143 = vmatpush1.msra.mxu0 0.0
      %2144 = vmatprep.subr.mxu0 0.0
      %2145 = vmatpush1.msra.mxu0 0.0
      %2146 = vmatprep.subr.mxu0 0.0
      %2147 = vmatpush1.msra.mxu0 0.0
      %2148 = vmatprep.subr.mxu0 0.0
      %2149 = vmatpush1.msra.mxu0 0.0
      %2150 = vmatprep.subr.mxu0 0.0
      %2151 = vmatpush1.msra.mxu0 0.0
      %2152 = vmatprep.subr.mxu0 0.0
      %2153 = vmatpush1.msra.mxu0 0.0
      %2154 = vmatprep.subr.mxu0 0.0
      %2155 = vmatpush1.msra.mxu0 0.0
      %2156 = vmatprep.subr.mxu0 0.0
      %2157 = vmatpush1.msra.mxu0 0.0
      %2158 = vmatprep.subr.mxu0 0.0
      %2159 = vmatpush1.msra.mxu0 0.0
      %2160 = vmatprep.subr.mxu0 0.0
      %2161 = vmatpush1.msra.mxu0 0.0
      %2162 = vmatprep.subr.mxu0 0.0
      %2163 = vmatpush1.msra.mxu0 0.0
      %2164 = vmatprep.subr.mxu0 0.0
      %2165 = vmatpush1.msra.mxu0 0.0
      %2166 = vmatprep.mubr.f32.mxu0 0.0
      %2167 = vmatmul.mubr.f32.gmra.mrb[0].mxu0 %v2100
      %v2168 = vpop.f32.mrb[0].mxu0
      %v2169 = vadd.f32 0.0, %v2168
      %v2170 = vpop.f32.mrb[0].mxu0
      %2171 = vdwg.mxu0
      %v2173 = vsel %vm818, %v1931, 0
      %2175 = vmatprep.subr.mxu0 0.0
      %2176 = vmatpush1.msra.mxu0 %v811
      %2177 = vmatprep.subr.mxu0 0.0
      %2178 = vmatpush1.msra.mxu0 0.0
      %2179 = vmatprep.subr.mxu0 0.0
      %2180 = vmatpush1.msra.mxu0 0.0
      %2181 = vmatprep.subr.mxu0 0.0
      %2182 = vmatpush1.msra.mxu0 0.0
      %2183 = vmatprep.subr.mxu0 0.0
      %2184 = vmatpush1.msra.mxu0 0.0
      %2185 = vmatprep.subr.mxu0 0.0
      %2186 = vmatpush1.msra.mxu0 0.0
      %2187 = vmatprep.subr.mxu0 0.0
      %2188 = vmatpush1.msra.mxu0 0.0
      %2189 = vmatprep.subr.mxu0 0.0
      %2190 = vmatpush1.msra.mxu0 0.0
      %2191 = vmatprep.subr.mxu0 0.0
      %2192 = vmatpush1.msra.mxu0 0.0
      %2193 = vmatprep.subr.mxu0 0.0
      %2194 = vmatpush1.msra.mxu0 0.0
      %2195 = vmatprep.subr.mxu0 0.0
      %2196 = vmatpush1.msra.mxu0 0.0
      %2197 = vmatprep.subr.mxu0 0.0
      %2198 = vmatpush1.msra.mxu0 0.0
      %2199 = vmatprep.subr.mxu0 0.0
      %2200 = vmatpush1.msra.mxu0 0.0
      %2201 = vmatprep.subr.mxu0 0.0
      %2202 = vmatpush1.msra.mxu0 0.0
      %2203 = vmatprep.subr.mxu0 0.0
      %2204 = vmatpush1.msra.mxu0 0.0
      %2205 = vmatprep.subr.mxu0 0.0
      %2206 = vmatpush1.msra.mxu0 0.0
      %2207 = vmatprep.subr.mxu0 0.0
      %2208 = vmatpush1.msra.mxu0 0.0
      %2209 = vmatprep.subr.mxu0 0.0
      %2210 = vmatpush1.msra.mxu0 0.0
      %2211 = vmatprep.subr.mxu0 0.0
      %2212 = vmatpush1.msra.mxu0 0.0
      %2213 = vmatprep.subr.mxu0 0.0
      %2214 = vmatpush1.msra.mxu0 0.0
      %2215 = vmatprep.subr.mxu0 0.0
      %2216 = vmatpush1.msra.mxu0 0.0
      %2217 = vmatprep.subr.mxu0 0.0
      %2218 = vmatpush1.msra.mxu0 0.0
      %2219 = vmatprep.subr.mxu0 0.0
      %2220 = vmatpush1.msra.mxu0 0.0
      %2221 = vmatprep.subr.mxu0 0.0
      %2222 = vmatpush1.msra.mxu0 0.0
      %2223 = vmatprep.subr.mxu0 0.0
      %2224 = vmatpush1.msra.mxu0 0.0
      %2225 = vmatprep.subr.mxu0 0.0
      %2226 = vmatpush1.msra.mxu0 0.0
      %2227 = vmatprep.subr.mxu0 0.0
      %2228 = vmatpush1.msra.mxu0 0.0
      %2229 = vmatprep.subr.mxu0 0.0
      %2230 = vmatpush1.msra.mxu0 0.0
      %2231 = vmatprep.subr.mxu0 0.0
      %2232 = vmatpush1.msra.mxu0 0.0
      %2233 = vmatprep.subr.mxu0 0.0
      %2234 = vmatpush1.msra.mxu0 0.0
      %2235 = vmatprep.subr.mxu0 0.0
      %2236 = vmatpush1.msra.mxu0 0.0
      %2237 = vmatprep.subr.mxu0 0.0
      %2238 = vmatpush1.msra.mxu0 0.0
      %2239 = vmatprep.mubr.f32.mxu0 0.0
      %2240 = vmatmul.mubr.f32.gmra.mrb[0].mxu0 %v2173
      %v2241 = vpop.f32.mrb[0].mxu0
      %v2242 = vadd.f32 %v2169, %v2241
      %v2243 = vpop.f32.mrb[0].mxu0
      %2244 = vdwg.mxu0
      %2245 = vrot.lane.b32.xlu0 %v804, 112
      %v2246 = vpop.permute.xlu0 %2245
      %2247 = vrot.lane.b32.xlu0 %v804, 80
      %v2248 = vpop.permute.xlu0 %2247
      %v2249 = vsel %vm818, %v2246, 0
      %v2251 = vsel %vm818, %v2248, 0
      %2253 = vmatprep.subr.mxu0 0.0
      %2254 = vmatpush1.xpose.msra.mxu0 %v2251
      %2255 = vmatprep.subr.mxu0 0.0
      %2256 = vmatpush1.xpose.msra.mxu0 0.0
      %2257 = vmatprep.subr.mxu0 0.0
      %2258 = vmatpush1.xpose.msra.mxu0 0.0
      %2259 = vmatprep.subr.mxu0 0.0
      %2260 = vmatpush1.xpose.msra.mxu0 0.0
      %2261 = vmatprep.subr.mxu0 0.0
      %2262 = vmatpush1.xpose.msra.mxu0 0.0
      %2263 = vmatprep.subr.mxu0 0.0
      %2264 = vmatpush1.xpose.msra.mxu0 0.0
      %2265 = vmatprep.subr.mxu0 0.0
      %2266 = vmatpush1.xpose.msra.mxu0 0.0
      %2267 = vmatprep.subr.mxu0 0.0
      %2268 = vmatpush1.xpose.msra.mxu0 0.0
      %2269 = vmatprep.subr.mxu0 0.0
      %2270 = vmatpush1.xpose.msra.mxu0 0.0
      %2271 = vmatprep.subr.mxu0 0.0
      %2272 = vmatpush1.xpose.msra.mxu0 0.0
      %2273 = vmatprep.subr.mxu0 0.0
      %2274 = vmatpush1.xpose.msra.mxu0 0.0
      %2275 = vmatprep.subr.mxu0 0.0
      %2276 = vmatpush1.xpose.msra.mxu0 0.0
      %2277 = vmatprep.subr.mxu0 0.0
      %2278 = vmatpush1.xpose.msra.mxu0 0.0
      %2279 = vmatprep.subr.mxu0 0.0
      %2280 = vmatpush1.xpose.msra.mxu0 0.0
      %2281 = vmatprep.subr.mxu0 0.0
      %2282 = vmatpush1.xpose.msra.mxu0 0.0
      %2283 = vmatprep.subr.mxu0 0.0
      %2284 = vmatpush1.xpose.msra.mxu0 0.0
      %2285 = vmatprep.subr.mxu0 0.0
      %2286 = vmatpush1.xpose.msra.mxu0 0.0
      %2287 = vmatprep.subr.mxu0 0.0
      %2288 = vmatpush1.xpose.msra.mxu0 0.0
      %2289 = vmatprep.subr.mxu0 0.0
      %2290 = vmatpush1.xpose.msra.mxu0 0.0
      %2291 = vmatprep.subr.mxu0 0.0
      %2292 = vmatpush1.xpose.msra.mxu0 0.0
      %2293 = vmatprep.subr.mxu0 0.0
      %2294 = vmatpush1.xpose.msra.mxu0 0.0
      %2295 = vmatprep.subr.mxu0 0.0
      %2296 = vmatpush1.xpose.msra.mxu0 0.0
      %2297 = vmatprep.subr.mxu0 0.0
      %2298 = vmatpush1.xpose.msra.mxu0 0.0
      %2299 = vmatprep.subr.mxu0 0.0
      %2300 = vmatpush1.xpose.msra.mxu0 0.0
      %2301 = vmatprep.subr.mxu0 0.0
      %2302 = vmatpush1.xpose.msra.mxu0 0.0
      %2303 = vmatprep.subr.mxu0 0.0
      %2304 = vmatpush1.xpose.msra.mxu0 0.0
      %2305 = vmatprep.subr.mxu0 0.0
      %2306 = vmatpush1.xpose.msra.mxu0 0.0
      %2307 = vmatprep.subr.mxu0 0.0
      %2308 = vmatpush1.xpose.msra.mxu0 0.0
      %2309 = vmatprep.subr.mxu0 0.0
      %2310 = vmatpush1.xpose.msra.mxu0 0.0
      %2311 = vmatprep.subr.mxu0 0.0
      %2312 = vmatpush1.xpose.msra.mxu0 0.0
      %2313 = vmatprep.subr.mxu0 0.0
      %2314 = vmatpush1.xpose.msra.mxu0 0.0
      %2315 = vmatprep.subr.mxu0 0.0
      %2316 = vmatpush1.xpose.msra.mxu0 0.0
      %2317 = vmatprep.mubr.f32.mxu0 0.0
      %2318 = vmatmul.mubr.f32.gmra.mrb[0].mxu0 %v2249
      %v2319 = vpop.f32.mrb[0].mxu0
      %v2320 = vadd.f32 %v809, %v2319
      %v2321 = vpop.f32.mrb[0].mxu0
      %2322 = vdwg.mxu0
      %v2323 = vsel %vm818, %v2320, -inf
      %2324 = vmax.xlane.f32.xlu0 %v2323
      %v2325 = vpop.xlane.xlu0 %2324
      %v2326 = vsub.f32 %v2320, %v2325
      %v2327 = vmul.f32 %v2326, 1.442695
      %v2328 = vpow.pop %v2327
      %v2329 = vsel %vm818, %v2328, 0.0
      %2330 = vadd.xlane.f32.xlu0 %v2329
      %v2331 = vpop.xlane.xlu0 %2330
      %v2332 = vrcp.pop %v2331
      %v2333 = vmul.f32 %v2328, %v2332
      %2334 = vrot.lane.b32.xlu0 %v804, 48
      %v2335 = vpop.permute.xlu0 %2334
      %v2338 = vsel %vm818, %v2333, 0
      %2340 = vmatprep.subr.mxu0 0.0
      %2341 = vmatpush1.msra.mxu0 %v2335
      %2342 = vmatprep.subr.mxu0 0.0
      %2343 = vmatpush1.msra.mxu0 0.0
      %2344 = vmatprep.subr.mxu0 0.0
      %2345 = vmatpush1.msra.mxu0 0.0
      %2346 = vmatprep.subr.mxu0 0.0
      %2347 = vmatpush1.msra.mxu0 0.0
      %2348 = vmatprep.subr.mxu0 0.0
      %2349 = vmatpush1.msra.mxu0 0.0
      %2350 = vmatprep.subr.mxu0 0.0
      %2351 = vmatpush1.msra.mxu0 0.0
      %2352 = vmatprep.subr.mxu0 0.0
      %2353 = vmatpush1.msra.mxu0 0.0
      %2354 = vmatprep.subr.mxu0 0.0
      %2355 = vmatpush1.msra.mxu0 0.0
      %2356 = vmatprep.subr.mxu0 0.0
      %2357 = vmatpush1.msra.mxu0 0.0
      %2358 = vmatprep.subr.mxu0 0.0
      %2359 = vmatpush1.msra.mxu0 0.0
      %2360 = vmatprep.subr.mxu0 0.0
      %2361 = vmatpush1.msra.mxu0 0.0
      %2362 = vmatprep.subr.mxu0 0.0
      %2363 = vmatpush1.msra.mxu0 0.0
      %2364 = vmatprep.subr.mxu0 0.0
      %2365 = vmatpush1.msra.mxu0 0.0
      %2366 = vmatprep.subr.mxu0 0.0
      %2367 = vmatpush1.msra.mxu0 0.0
      %2368 = vmatprep.subr.mxu0 0.0
      %2369 = vmatpush1.msra.mxu0 0.0
      %2370 = vmatprep.subr.mxu0 0.0
      %2371 = vmatpush1.msra.mxu0 0.0
      %2372 = vmatprep.subr.mxu0 0.0
      %2373 = vmatpush1.msra.mxu0 0.0
      %2374 = vmatprep.subr.mxu0 0.0
      %2375 = vmatpush1.msra.mxu0 0.0
      %2376 = vmatprep.subr.mxu0 0.0
      %2377 = vmatpush1.msra.mxu0 0.0
      %2378 = vmatprep.subr.mxu0 0.0
      %2379 = vmatpush1.msra.mxu0 0.0
      %2380 = vmatprep.subr.mxu0 0.0
      %2381 = vmatpush1.msra.mxu0 0.0
      %2382 = vmatprep.subr.mxu0 0.0
      %2383 = vmatpush1.msra.mxu0 0.0
      %2384 = vmatprep.subr.mxu0 0.0
      %2385 = vmatpush1.msra.mxu0 0.0
      %2386 = vmatprep.subr.mxu0 0.0
      %2387 = vmatpush1.msra.mxu0 0.0
      %2388 = vmatprep.subr.mxu0 0.0
      %2389 = vmatpush1.msra.mxu0 0.0
      %2390 = vmatprep.subr.mxu0 0.0
      %2391 = vmatpush1.msra.mxu0 0.0
      %2392 = vmatprep.subr.mxu0 0.0
      %2393 = vmatpush1.msra.mxu0 0.0
      %2394 = vmatprep.subr.mxu0 0.0
      %2395 = vmatpush1.msra.mxu0 0.0
      %2396 = vmatprep.subr.mxu0 0.0
      %2397 = vmatpush1.msra.mxu0 0.0
      %2398 = vmatprep.subr.mxu0 0.0
      %2399 = vmatpush1.msra.mxu0 0.0
      %2400 = vmatprep.subr.mxu0 0.0
      %2401 = vmatpush1.msra.mxu0 0.0
      %2402 = vmatprep.subr.mxu0 0.0
      %2403 = vmatpush1.msra.mxu0 0.0
      %2404 = vmatprep.mubr.f32.mxu0 0.0
      %2405 = vmatmul.mubr.f32.gmra.mrb[0].mxu0 %v2338
      %v2406 = vpop.f32.mrb[0].mxu0
      %v2407 = vadd.f32 0.0, %v2406
      %v2408 = vpop.f32.mrb[0].mxu0
      %2409 = vdwg.mxu0
      %v2411 = vsel %vm818, %v2407, 0
      %2413 = vmatprep.subr.mxu0 0.0
      %2414 = vmatpush1.msra.mxu0 %v813
      %2415 = vmatprep.subr.mxu0 0.0
      %2416 = vmatpush1.msra.mxu0 0.0
      %2417 = vmatprep.subr.mxu0 0.0
      %2418 = vmatpush1.msra.mxu0 0.0
      %2419 = vmatprep.subr.mxu0 0.0
      %2420 = vmatpush1.msra.mxu0 0.0
      %2421 = vmatprep.subr.mxu0 0.0
      %2422 = vmatpush1.msra.mxu0 0.0
      %2423 = vmatprep.subr.mxu0 0.0
      %2424 = vmatpush1.msra.mxu0 0.0
      %2425 = vmatprep.subr.mxu0 0.0
      %2426 = vmatpush1.msra.mxu0 0.0
      %2427 = vmatprep.subr.mxu0 0.0
      %2428 = vmatpush1.msra.mxu0 0.0
      %2429 = vmatprep.subr.mxu0 0.0
      %2430 = vmatpush1.msra.mxu0 0.0
      %2431 = vmatprep.subr.mxu0 0.0
      %2432 = vmatpush1.msra.mxu0 0.0
      %2433 = vmatprep.subr.mxu0 0.0
      %2434 = vmatpush1.msra.mxu0 0.0
      %2435 = vmatprep.subr.mxu0 0.0
      %2436 = vmatpush1.msra.mxu0 0.0
      %2437 = vmatprep.subr.mxu0 0.0
      %2438 = vmatpush1.msra.mxu0 0.0
      %2439 = vmatprep.subr.mxu0 0.0
      %2440 = vmatpush1.msra.mxu0 0.0
      %2441 = vmatprep.subr.mxu0 0.0
      %2442 = vmatpush1.msra.mxu0 0.0
      %2443 = vmatprep.subr.mxu0 0.0
      %2444 = vmatpush1.msra.mxu0 0.0
      %2445 = vmatprep.subr.mxu0 0.0
      %2446 = vmatpush1.msra.mxu0 0.0
      %2447 = vmatprep.subr.mxu0 0.0
      %2448 = vmatpush1.msra.mxu0 0.0
      %2449 = vmatprep.subr.mxu0 0.0
      %2450 = vmatpush1.msra.mxu0 0.0
      %2451 = vmatprep.subr.mxu0 0.0
      %2452 = vmatpush1.msra.mxu0 0.0
      %2453 = vmatprep.subr.mxu0 0.0
      %2454 = vmatpush1.msra.mxu0 0.0
      %2455 = vmatprep.subr.mxu0 0.0
      %2456 = vmatpush1.msra.mxu0 0.0
      %2457 = vmatprep.subr.mxu0 0.0
      %2458 = vmatpush1.msra.mxu0 0.0
      %2459 = vmatprep.subr.mxu0 0.0
      %2460 = vmatpush1.msra.mxu0 0.0
      %2461 = vmatprep.subr.mxu0 0.0
      %2462 = vmatpush1.msra.mxu0 0.0
      %2463 = vmatprep.subr.mxu0 0.0
      %2464 = vmatpush1.msra.mxu0 0.0
      %2465 = vmatprep.subr.mxu0 0.0
      %2466 = vmatpush1.msra.mxu0 0.0
      %2467 = vmatprep.subr.mxu0 0.0
      %2468 = vmatpush1.msra.mxu0 0.0
      %2469 = vmatprep.subr.mxu0 0.0
      %2470 = vmatpush1.msra.mxu0 0.0
      %2471 = vmatprep.subr.mxu0 0.0
      %2472 = vmatpush1.msra.mxu0 0.0
      %2473 = vmatprep.subr.mxu0 0.0
      %2474 = vmatpush1.msra.mxu0 0.0
      %2475 = vmatprep.subr.mxu0 0.0
      %2476 = vmatpush1.msra.mxu0 0.0
      %2477 = vmatprep.mubr.f32.mxu0 0.0
      %2478 = vmatmul.mubr.f32.gmra.mrb[0].mxu0 %v2411
      %v2479 = vpop.f32.mrb[0].mxu0
      %v2480 = vadd.f32 0.0, %v2479
      %v2481 = vpop.f32.mrb[0].mxu0
      %2482 = vdwg.mxu0
      %v2483 = vadd.f32 %v2242, %v2480
      %2484 = vrot.lane.b32.xlu0 %v804, 104
      %v2485 = vpop.permute.xlu0 %2484
      %2486 = vrot.lane.b32.xlu0 %v804, 72
      %v2487 = vpop.permute.xlu0 %2486
      %v2488 = vsel %vm818, %v2485, 0
      %v2490 = vsel %vm818, %v2487, 0
      %2492 = vmatprep.subr.mxu0 0.0
      %2493 = vmatpush1.xpose.msra.mxu0 %v2490
      %2494 = vmatprep.subr.mxu0 0.0
      %2495 = vmatpush1.xpose.msra.mxu0 0.0
      %2496 = vmatprep.subr.mxu0 0.0
      %2497 = vmatpush1.xpose.msra.mxu0 0.0
      %2498 = vmatprep.subr.mxu0 0.0
      %2499 = vmatpush1.xpose.msra.mxu0 0.0
      %2500 = vmatprep.subr.mxu0 0.0
      %2501 = vmatpush1.xpose.msra.mxu0 0.0
      %2502 = vmatprep.subr.mxu0 0.0
      %2503 = vmatpush1.xpose.msra.mxu0 0.0
      %2504 = vmatprep.subr.mxu0 0.0
      %2505 = vmatpush1.xpose.msra.mxu0 0.0
      %2506 = vmatprep.subr.mxu0 0.0
      %2507 = vmatpush1.xpose.msra.mxu0 0.0
      %2508 = vmatprep.subr.mxu0 0.0
      %2509 = vmatpush1.xpose.msra.mxu0 0.0
      %2510 = vmatprep.subr.mxu0 0.0
      %2511 = vmatpush1.xpose.msra.mxu0 0.0
      %2512 = vmatprep.subr.mxu0 0.0
      %2513 = vmatpush1.xpose.msra.mxu0 0.0
      %2514 = vmatprep.subr.mxu0 0.0
      %2515 = vmatpush1.xpose.msra.mxu0 0.0
      %2516 = vmatprep.subr.mxu0 0.0
      %2517 = vmatpush1.xpose.msra.mxu0 0.0
      %2518 = vmatprep.subr.mxu0 0.0
      %2519 = vmatpush1.xpose.msra.mxu0 0.0
      %2520 = vmatprep.subr.mxu0 0.0
      %2521 = vmatpush1.xpose.msra.mxu0 0.0
      %2522 = vmatprep.subr.mxu0 0.0
      %2523 = vmatpush1.xpose.msra.mxu0 0.0
      %2524 = vmatprep.subr.mxu0 0.0
      %2525 = vmatpush1.xpose.msra.mxu0 0.0
      %2526 = vmatprep.subr.mxu0 0.0
      %2527 = vmatpush1.xpose.msra.mxu0 0.0
      %2528 = vmatprep.subr.mxu0 0.0
      %2529 = vmatpush1.xpose.msra.mxu0 0.0
      %2530 = vmatprep.subr.mxu0 0.0
      %2531 = vmatpush1.xpose.msra.mxu0 0.0
      %2532 = vmatprep.subr.mxu0 0.0
      %2533 = vmatpush1.xpose.msra.mxu0 0.0
      %2534 = vmatprep.subr.mxu0 0.0
      %2535 = vmatpush1.xpose.msra.mxu0 0.0
      %2536 = vmatprep.subr.mxu0 0.0
      %2537 = vmatpush1.xpose.msra.mxu0 0.0
      %2538 = vmatprep.subr.mxu0 0.0
      %2539 = vmatpush1.xpose.msra.mxu0 0.0
      %2540 = vmatprep.subr.mxu0 0.0
      %2541 = vmatpush1.xpose.msra.mxu0 0.0
      %2542 = vmatprep.subr.mxu0 0.0
      %2543 = vmatpush1.xpose.msra.mxu0 0.0
      %2544 = vmatprep.subr.mxu0 0.0
      %2545 = vmatpush1.xpose.msra.mxu0 0.0
      %2546 = vmatprep.subr.mxu0 0.0
      %2547 = vmatpush1.xpose.msra.mxu0 0.0
      %2548 = vmatprep.subr.mxu0 0.0
      %2549 = vmatpush1.xpose.msra.mxu0 0.0
      %2550 = vmatprep.subr.mxu0 0.0
      %2551 = vmatpush1.xpose.msra.mxu0 0.0
      %2552 = vmatprep.subr.mxu0 0.0
      %2553 = vmatpush1.xpose.msra.mxu0 0.0
      %2554 = vmatprep.subr.mxu0 0.0
      %2555 = vmatpush1.xpose.msra.mxu0 0.0
      %2556 = vmatprep.mubr.f32.mxu0 0.0
      %2557 = vmatmul.mubr.f32.gmra.mrb[0].mxu0 %v2488
      %v2558 = vpop.f32.mrb[0].mxu0
      %v2559 = vadd.f32 %v810, %v2558
      %v2560 = vpop.f32.mrb[0].mxu0
      %2561 = vdwg.mxu0
      %v2562 = vsel %vm818, %v2559, -inf
      %2563 = vmax.xlane.f32.xlu0 %v2562
      %v2564 = vpop.xlane.xlu0 %2563
      %v2565 = vsub.f32 %v2559, %v2564
      %v2566 = vmul.f32 %v2565, 1.442695
      %v2567 = vpow.pop %v2566
      %v2568 = vsel %vm818, %v2567, 0.0
      %2569 = vadd.xlane.f32.xlu0 %v2568
      %v2570 = vpop.xlane.xlu0 %2569
      %v2571 = vrcp.pop %v2570
      %v2572 = vmul.f32 %v2567, %v2571
      %2573 = vrot.lane.b32.xlu0 %v804, 40
      %v2574 = vpop.permute.xlu0 %2573
      %v2577 = vsel %vm818, %v2572, 0
      %2579 = vmatprep.subr.mxu0 0.0
      %2580 = vmatpush1.msra.mxu0 %v2574
      %2581 = vmatprep.subr.mxu0 0.0
      %2582 = vmatpush1.msra.mxu0 0.0
      %2583 = vmatprep.subr.mxu0 0.0
      %2584 = vmatpush1.msra.mxu0 0.0
      %2585 = vmatprep.subr.mxu0 0.0
      %2586 = vmatpush1.msra.mxu0 0.0
      %2587 = vmatprep.subr.mxu0 0.0
      %2588 = vmatpush1.msra.mxu0 0.0
      %2589 = vmatprep.subr.mxu0 0.0
      %2590 = vmatpush1.msra.mxu0 0.0
      %2591 = vmatprep.subr.mxu0 0.0
      %2592 = vmatpush1.msra.mxu0 0.0
      %2593 = vmatprep.subr.mxu0 0.0
      %2594 = vmatpush1.msra.mxu0 0.0
      %2595 = vmatprep.subr.mxu0 0.0
      %2596 = vmatpush1.msra.mxu0 0.0
      %2597 = vmatprep.subr.mxu0 0.0
      %2598 = vmatpush1.msra.mxu0 0.0
      %2599 = vmatprep.subr.mxu0 0.0
      %2600 = vmatpush1.msra.mxu0 0.0
      %2601 = vmatprep.subr.mxu0 0.0
      %2602 = vmatpush1.msra.mxu0 0.0
      %2603 = vmatprep.subr.mxu0 0.0
      %2604 = vmatpush1.msra.mxu0 0.0
      %2605 = vmatprep.subr.mxu0 0.0
      %2606 = vmatpush1.msra.mxu0 0.0
      %2607 = vmatprep.subr.mxu0 0.0
      %2608 = vmatpush1.msra.mxu0 0.0
      %2609 = vmatprep.subr.mxu0 0.0
      %2610 = vmatpush1.msra.mxu0 0.0
      %2611 = vmatprep.subr.mxu0 0.0
      %2612 = vmatpush1.msra.mxu0 0.0
      %2613 = vmatprep.subr.mxu0 0.0
      %2614 = vmatpush1.msra.mxu0 0.0
      %2615 = vmatprep.subr.mxu0 0.0
      %2616 = vmatpush1.msra.mxu0 0.0
      %2617 = vmatprep.subr.mxu0 0.0
      %2618 = vmatpush1.msra.mxu0 0.0
      %2619 = vmatprep.subr.mxu0 0.0
      %2620 = vmatpush1.msra.mxu0 0.0
      %2621 = vmatprep.subr.mxu0 0.0
      %2622 = vmatpush1.msra.mxu0 0.0
      %2623 = vmatprep.subr.mxu0 0.0
      %2624 = vmatpush1.msra.mxu0 0.0
      %2625 = vmatprep.subr.mxu0 0.0
      %2626 = vmatpush1.msra.mxu0 0.0
      %2627 = vmatprep.subr.mxu0 0.0
      %2628 = vmatpush1.msra.mxu0 0.0
      %2629 = vmatprep.subr.mxu0 0.0
      %2630 = vmatpush1.msra.mxu0 0.0
      %2631 = vmatprep.subr.mxu0 0.0
      %2632 = vmatpush1.msra.mxu0 0.0
      %2633 = vmatprep.subr.mxu0 0.0
      %2634 = vmatpush1.msra.mxu0 0.0
      %2635 = vmatprep.subr.mxu0 0.0
      %2636 = vmatpush1.msra.mxu0 0.0
      %2637 = vmatprep.subr.mxu0 0.0
      %2638 = vmatpush1.msra.mxu0 0.0
      %2639 = vmatprep.subr.mxu0 0.0
      %2640 = vmatpush1.msra.mxu0 0.0
      %2641 = vmatprep.subr.mxu0 0.0
      %2642 = vmatpush1.msra.mxu0 0.0
      %2643 = vmatprep.mubr.f32.mxu0 0.0
      %2644 = vmatmul.mubr.f32.gmra.mrb[0].mxu0 %v2577
      %v2645 = vpop.f32.mrb[0].mxu0
      %v2646 = vadd.f32 0.0, %v2645
      %v2647 = vpop.f32.mrb[0].mxu0
      %2648 = vdwg.mxu0
      %v2650 = vsel %vm818, %v2646, 0
      %2652 = vmatprep.subr.mxu0 0.0
      %2653 = vmatpush1.msra.mxu0 %v814
      %2654 = vmatprep.subr.mxu0 0.0
      %2655 = vmatpush1.msra.mxu0 0.0
      %2656 = vmatprep.subr.mxu0 0.0
      %2657 = vmatpush1.msra.mxu0 0.0
      %2658 = vmatprep.subr.mxu0 0.0
      %2659 = vmatpush1.msra.mxu0 0.0
      %2660 = vmatprep.subr.mxu0 0.0
      %2661 = vmatpush1.msra.mxu0 0.0
      %2662 = vmatprep.subr.mxu0 0.0
      %2663 = vmatpush1.msra.mxu0 0.0
      %2664 = vmatprep.subr.mxu0 0.0
      %2665 = vmatpush1.msra.mxu0 0.0
      %2666 = vmatprep.subr.mxu0 0.0
      %2667 = vmatpush1.msra.mxu0 0.0
      %2668 = vmatprep.subr.mxu0 0.0
      %2669 = vmatpush1.msra.mxu0 0.0
      %2670 = vmatprep.subr.mxu0 0.0
      %2671 = vmatpush1.msra.mxu0 0.0
      %2672 = vmatprep.subr.mxu0 0.0
      %2673 = vmatpush1.msra.mxu0 0.0
      %2674 = vmatprep.subr.mxu0 0.0
      %2675 = vmatpush1.msra.mxu0 0.0
      %2676 = vmatprep.subr.mxu0 0.0
      %2677 = vmatpush1.msra.mxu0 0.0
      %2678 = vmatprep.subr.mxu0 0.0
      %2679 = vmatpush1.msra.mxu0 0.0
      %2680 = vmatprep.subr.mxu0 0.0
      %2681 = vmatpush1.msra.mxu0 0.0
      %2682 = vmatprep.subr.mxu0 0.0
      %2683 = vmatpush1.msra.mxu0 0.0
      %2684 = vmatprep.subr.mxu0 0.0
      %2685 = vmatpush1.msra.mxu0 0.0
      %2686 = vmatprep.subr.mxu0 0.0
      %2687 = vmatpush1.msra.mxu0 0.0
      %2688 = vmatprep.subr.mxu0 0.0
      %2689 = vmatpush1.msra.mxu0 0.0
      %2690 = vmatprep.subr.mxu0 0.0
      %2691 = vmatpush1.msra.mxu0 0.0
      %2692 = vmatprep.subr.mxu0 0.0
      %2693 = vmatpush1.msra.mxu0 0.0
      %2694 = vmatprep.subr.mxu0 0.0
      %2695 = vmatpush1.msra.mxu0 0.0
      %2696 = vmatprep.subr.mxu0 0.0
      %2697 = vmatpush1.msra.mxu0 0.0
      %2698 = vmatprep.subr.mxu0 0.0
      %2699 = vmatpush1.msra.mxu0 0.0
      %2700 = vmatprep.subr.mxu0 0.0
      %2701 = vmatpush1.msra.mxu0 0.0
      %2702 = vmatprep.subr.mxu0 0.0
      %2703 = vmatpush1.msra.mxu0 0.0
      %2704 = vmatprep.subr.mxu0 0.0
      %2705 = vmatpush1.msra.mxu0 0.0
      %2706 = vmatprep.subr.mxu0 0.0
      %2707 = vmatpush1.msra.mxu0 0.0
      %2708 = vmatprep.subr.mxu0 0.0
      %2709 = vmatpush1.msra.mxu0 0.0
      %2710 = vmatprep.subr.mxu0 0.0
      %2711 = vmatpush1.msra.mxu0 0.0
      %2712 = vmatprep.subr.mxu0 0.0
      %2713 = vmatpush1.msra.mxu0 0.0
      %2714 = vmatprep.subr.mxu0 0.0
      %2715 = vmatpush1.msra.mxu0 0.0
      %2716 = vmatprep.mubr.f32.mxu0 0.0
      %2717 = vmatmul.mubr.f32.gmra.mrb[0].mxu0 %v2650
      %v2718 = vpop.f32.mrb[0].mxu0
      %v2719 = vadd.f32 0.0, %v2718
      %v2720 = vpop.f32.mrb[0].mxu0
      %2721 = vdwg.mxu0
      %v2722 = vadd.f32 %v2483, %v2719
      %2723 = vst.msk [vmem:[#allocation3 + $0x8] sm:$0xff] %vm693, %v2722
      %v2724 = vld [vmem:[#allocation3] sm:$0xff]
      %v2725 = vld [vmem:[#allocation3 + $0x8] sm:$0xff]
      %v2726 = vadd.f32 %v691, %v2724
      %v2727 = vadd.f32 %v692, %v2725
      %v2728 = vld [vmem:[%s648] sm:$0x1]
      %v2729 = vmul.f32 %v2726, %v2726
      %v2730 = vmul.f32 %v2727, %v2727
      %v2731 = vsel %vm693, %v2729, 0.0
      %2732 = vadd.xlane.f32.xlu0 %v2731
      %v2733 = vpop.xlane.xlu0 %2732
      %v2734 = vsel %vm693, %v2730, 0.0
      %2735 = vadd.xlane.f32.xlu0 %v2734
      %v2736 = vpop.xlane.xlu0 %2735
      %v2737 = vmul.f32 %v2733, %v705
      %v2738 = vmul.f32 %v2736, %v705
      %v2739 = vadd.f32 %v2737, 1e-06
      %v2740 = vadd.f32 %v2738, 1e-06
      %v2741 = vrsqrt.pop %v2739
      %v2742 = vrsqrt.pop %v2740
      %v2743 = vmul.f32 %v2726, %v2741
      %v2744 = vmul.f32 %v2727, %v2742
      %v2746 = vlaneseq
      %v2747 = vshrl.u32 %v2746, 7
      %v2748 = vsub.s32 0, %v2747
      %v2749 = vrot.slane %v2728, %v2748
      %v2751 = vmul.f32 %v2743, %v2749
      %v2752 = vmul.f32 %v2744, %v2749
      %v2753 = vld [vmem:[%s653] sm:$0xff]
      %v2754 = vld [vmem:[%s653 + $0x8] sm:$0xff]
      %v2755 = vld [vmem:[%s653 + $0x10] sm:$0xff]
      %v2756 = vld [vmem:[%s653 + $0x18] sm:$0xff]
      %v2758 = vsel %vm693, %v2751, 0
      %v2761 = vsel %vm693, %v2752, 0
      %2763 = vmatprep.subr.mxu0 0.0
      %2764 = vmatpush1.msra.mxu0 %v2753
      %2765 = vmatprep.subr.mxu0 0.0
      %2766 = vmatpush1.msra.mxu0 %v2754
      %2767 = vmatprep.subr.mxu0 0.0
      %2768 = vmatpush1.msra.mxu0 %v2755
      %2769 = vmatprep.subr.mxu0 0.0
      %2770 = vmatpush1.msra.mxu0 %v2756
      %2771 = vmatprep.subr.mxu0 0.0
      %2772 = vmatpush1.msra.mxu0 0.0
      %2773 = vmatprep.subr.mxu0 0.0
      %2774 = vmatpush1.msra.mxu0 0.0
      %2775 = vmatprep.subr.mxu0 0.0
      %2776 = vmatpush1.msra.mxu0 0.0
      %2777 = vmatprep.subr.mxu0 0.0
      %2778 = vmatpush1.msra.mxu0 0.0
      %2779 = vmatprep.subr.mxu0 0.0
      %2780 = vmatpush1.msra.mxu0 0.0
      %2781 = vmatprep.subr.mxu0 0.0
      %2782 = vmatpush1.msra.mxu0 0.0
      %2783 = vmatprep.subr.mxu0 0.0
      %2784 = vmatpush1.msra.mxu0 0.0
      %2785 = vmatprep.subr.mxu0 0.0
      %2786 = vmatpush1.msra.mxu0 0.0
      %2787 = vmatprep.subr.mxu0 0.0
      %2788 = vmatpush1.msra.mxu0 0.0
      %2789 = vmatprep.subr.mxu0 0.0
      %2790 = vmatpush1.msra.mxu0 0.0
      %2791 = vmatprep.subr.mxu0 0.0
      %2792 = vmatpush1.msra.mxu0 0.0
      %2793 = vmatprep.subr.mxu0 0.0
      %2794 = vmatpush1.msra.mxu0 0.0
      %2795 = vmatprep.subr.mxu0 0.0
      %2796 = vmatpush1.msra.mxu0 0.0
      %2797 = vmatprep.subr.mxu0 0.0
      %2798 = vmatpush1.msra.mxu0 0.0
      %2799 = vmatprep.subr.mxu0 0.0
      %2800 = vmatpush1.msra.mxu0 0.0
      %2801 = vmatprep.subr.mxu0 0.0
      %2802 = vmatpush1.msra.mxu0 0.0
      %2803 = vmatprep.subr.mxu0 0.0
      %2804 = vmatpush1.msra.mxu0 0.0
      %2805 = vmatprep.subr.mxu0 0.0
      %2806 = vmatpush1.msra.mxu0 0.0
      %2807 = vmatprep.subr.mxu0 0.0
      %2808 = vmatpush1.msra.mxu0 0.0
      %2809 = vmatprep.subr.mxu0 0.0
      %2810 = vmatpush1.msra.mxu0 0.0
      %2811 = vmatprep.subr.mxu0 0.0
      %2812 = vmatpush1.msra.mxu0 0.0
      %2813 = vmatprep.subr.mxu0 0.0
      %2814 = vmatpush1.msra.mxu0 0.0
      %2815 = vmatprep.subr.mxu0 0.0
      %2816 = vmatpush1.msra.mxu0 0.0
      %2817 = vmatprep.subr.mxu0 0.0
      %2818 = vmatpush1.msra.mxu0 0.0
      %2819 = vmatprep.subr.mxu0 0.0
      %2820 = vmatpush1.msra.mxu0 0.0
      %2821 = vmatprep.subr.mxu0 0.0
      %2822 = vmatpush1.msra.mxu0 0.0
      %2823 = vmatprep.subr.mxu0 0.0
      %2824 = vmatpush1.msra.mxu0 0.0
      %2825 = vmatprep.subr.mxu0 0.0
      %2826 = vmatpush1.msra.mxu0 0.0
      %2827 = vmatprep.mubr.f32.mxu0 0.0
      %2828 = vmatmul.mubr.f32.gmra.mrb[0].mxu0 %v2758
      %v2829 = vpop.f32.mrb[0].mxu0
      %v2830 = vadd.f32 0.0, %v2829
      %v2831 = vpop.f32.mrb[0].mxu0
      %2832 = vmatprep.mubr.f32.mxu0 0.0
      %2833 = vmatmul.mubr.f32.gmra.mrb[0].mxu0 %v2761
      %v2834 = vpop.f32.mrb[0].mxu0
      %v2835 = vadd.f32 0.0, %v2834
      %v2836 = vpop.f32.mrb[0].mxu0
      %2837 = vdwg.mxu0
      %v2838 = vld [vmem:[%s1] sm:$0xff]
      %v2839 = vld [vmem:[%s1 + $0x8] sm:$0xff]
      %v2840 = vld [vmem:[%s658] sm:$0xff]
      %v2841 = vld [vmem:[%s658 + $0x8] sm:$0xff]
      %v2842 = vld [vmem:[%s658 + $0x10] sm:$0xff]
      %v2843 = vld [vmem:[%s658 + $0x18] sm:$0xff]
      %v2845 = vsel %vm693, %v2838, 0
      %v2848 = vsel %vm693, %v2839, 0
      %2850 = vmatprep.subr.mxu0 0.0
      %2851 = vmatpush1.msra.mxu0 %v2840
      %2852 = vmatprep.subr.mxu0 0.0
      %2853 = vmatpush1.msra.mxu0 %v2841
      %2854 = vmatprep.subr.mxu0 0.0
      %2855 = vmatpush1.msra.mxu0 %v2842
      %2856 = vmatprep.subr.mxu0 0.0
      %2857 = vmatpush1.msra.mxu0 %v2843
      %2858 = vmatprep.subr.mxu0 0.0
      %2859 = vmatpush1.msra.mxu0 0.0
      %2860 = vmatprep.subr.mxu0 0.0
      %2861 = vmatpush1.msra.mxu0 0.0
      %2862 = vmatprep.subr.mxu0 0.0
      %2863 = vmatpush1.msra.mxu0 0.0
      %2864 = vmatprep.subr.mxu0 0.0
      %2865 = vmatpush1.msra.mxu0 0.0
      %2866 = vmatprep.subr.mxu0 0.0
      %2867 = vmatpush1.msra.mxu0 0.0
      %2868 = vmatprep.subr.mxu0 0.0
      %2869 = vmatpush1.msra.mxu0 0.0
      %2870 = vmatprep.subr.mxu0 0.0
      %2871 = vmatpush1.msra.mxu0 0.0
      %2872 = vmatprep.subr.mxu0 0.0
      %2873 = vmatpush1.msra.mxu0 0.0
      %2874 = vmatprep.subr.mxu0 0.0
      %2875 = vmatpush1.msra.mxu0 0.0
      %2876 = vmatprep.subr.mxu0 0.0
      %2877 = vmatpush1.msra.mxu0 0.0
      %2878 = vmatprep.subr.mxu0 0.0
      %2879 = vmatpush1.msra.mxu0 0.0
      %2880 = vmatprep.subr.mxu0 0.0
      %2881 = vmatpush1.msra.mxu0 0.0
      %2882 = vmatprep.subr.mxu0 0.0
      %2883 = vmatpush1.msra.mxu0 0.0
      %2884 = vmatprep.subr.mxu0 0.0
      %2885 = vmatpush1.msra.mxu0 0.0
      %2886 = vmatprep.subr.mxu0 0.0
      %2887 = vmatpush1.msra.mxu0 0.0
      %2888 = vmatprep.subr.mxu0 0.0
      %2889 = vmatpush1.msra.mxu0 0.0
      %2890 = vmatprep.subr.mxu0 0.0
      %2891 = vmatpush1.msra.mxu0 0.0
      %2892 = vmatprep.subr.mxu0 0.0
      %2893 = vmatpush1.msra.mxu0 0.0
      %2894 = vmatprep.subr.mxu0 0.0
      %2895 = vmatpush1.msra.mxu0 0.0
      %2896 = vmatprep.subr.mxu0 0.0
      %2897 = vmatpush1.msra.mxu0 0.0
      %2898 = vmatprep.subr.mxu0 0.0
      %2899 = vmatpush1.msra.mxu0 0.0
      %2900 = vmatprep.subr.mxu0 0.0
      %2901 = vmatpush1.msra.mxu0 0.0
      %2902 = vmatprep.subr.mxu0 0.0
      %2903 = vmatpush1.msra.mxu0 0.0
      %2904 = vmatprep.subr.mxu0 0.0
      %2905 = vmatpush1.msra.mxu0 0.0
      %2906 = vmatprep.subr.mxu0 0.0
      %2907 = vmatpush1.msra.mxu0 0.0
      %2908 = vmatprep.subr.mxu0 0.0
      %2909 = vmatpush1.msra.mxu0 0.0
      %2910 = vmatprep.subr.mxu0 0.0
      %2911 = vmatpush1.msra.mxu0 0.0
      %2912 = vmatprep.subr.mxu0 0.0
      %2913 = vmatpush1.msra.mxu0 0.0
      %2914 = vmatprep.mubr.f32.mxu0 0.0
      %2915 = vmatmul.mubr.f32.gmra.mrb[0].mxu0 %v2845
      %v2916 = vpop.f32.mrb[0].mxu0
      %v2917 = vadd.f32 0.0, %v2916
      %v2918 = vpop.f32.mrb[0].mxu0
      %2919 = vmatprep.mubr.f32.mxu0 0.0
      %2920 = vmatmul.mubr.f32.gmra.mrb[0].mxu0 %v2848
      %v2921 = vpop.f32.mrb[0].mxu0
      %v2922 = vadd.f32 0.0, %v2921
      %v2923 = vpop.f32.mrb[0].mxu0
      %2924 = vdwg.mxu0
      %v2925 = vld [vmem:[%s3] sm:$0x3]
      %v2926 = vld [vmem:[%s663] sm:$0xff]
      %v2927 = vld [vmem:[%s663 + $0x8] sm:$0xff]
      %v2928 = vld [vmem:[%s663 + $0x10] sm:$0xff]
      %v2929 = vld [vmem:[%s663 + $0x18] sm:$0xff]
      %v2930 = vlaneseq
      %v2931 = vshrl.u32 %v2930, 7
      %v2932 = vsub.s32 0, %v2931
      %v2933 = vrot.slane %v2925, %v2932
      %v2935 = vsel %vm818, %v2830, 0
      %v2938 = vsel %vm818, %v2917, 0
      %2940 = vmatprep.subr.mxu0 0.0
      %2941 = vmatpush1.xpose.msra.mxu0 %v2938
      %2942 = vmatprep.subr.mxu0 0.0
      %2943 = vmatpush1.xpose.msra.mxu0 0.0
      %2944 = vmatprep.subr.mxu0 0.0
      %2945 = vmatpush1.xpose.msra.mxu0 0.0
      %2946 = vmatprep.subr.mxu0 0.0
      %2947 = vmatpush1.xpose.msra.mxu0 0.0
      %2948 = vmatprep.subr.mxu0 0.0
      %2949 = vmatpush1.xpose.msra.mxu0 0.0
      %2950 = vmatprep.subr.mxu0 0.0
      %2951 = vmatpush1.xpose.msra.mxu0 0.0
      %2952 = vmatprep.subr.mxu0 0.0
      %2953 = vmatpush1.xpose.msra.mxu0 0.0
      %2954 = vmatprep.subr.mxu0 0.0
      %2955 = vmatpush1.xpose.msra.mxu0 0.0
      %2956 = vmatprep.subr.mxu0 0.0
      %2957 = vmatpush1.xpose.msra.mxu0 0.0
      %2958 = vmatprep.subr.mxu0 0.0
      %2959 = vmatpush1.xpose.msra.mxu0 0.0
      %2960 = vmatprep.subr.mxu0 0.0
      %2961 = vmatpush1.xpose.msra.mxu0 0.0
      %2962 = vmatprep.subr.mxu0 0.0
      %2963 = vmatpush1.xpose.msra.mxu0 0.0
      %2964 = vmatprep.subr.mxu0 0.0
      %2965 = vmatpush1.xpose.msra.mxu0 0.0
      %2966 = vmatprep.subr.mxu0 0.0
      %2967 = vmatpush1.xpose.msra.mxu0 0.0
      %2968 = vmatprep.subr.mxu0 0.0
      %2969 = vmatpush1.xpose.msra.mxu0 0.0
      %2970 = vmatprep.subr.mxu0 0.0
      %2971 = vmatpush1.xpose.msra.mxu0 0.0
      %2972 = vmatprep.subr.mxu0 0.0
      %2973 = vmatpush1.xpose.msra.mxu0 0.0
      %2974 = vmatprep.subr.mxu0 0.0
      %2975 = vmatpush1.xpose.msra.mxu0 0.0
      %2976 = vmatprep.subr.mxu0 0.0
      %2977 = vmatpush1.xpose.msra.mxu0 0.0
      %2978 = vmatprep.subr.mxu0 0.0
      %2979 = vmatpush1.xpose.msra.mxu0 0.0
      %2980 = vmatprep.subr.mxu0 0.0
      %2981 = vmatpush1.xpose.msra.mxu0 0.0
      %2982 = vmatprep.subr.mxu0 0.0
      %2983 = vmatpush1.xpose.msra.mxu0 0.0
      %2984 = vmatprep.subr.mxu0 0.0
      %2985 = vmatpush1.xpose.msra.mxu0 0.0
      %2986 = vmatprep.subr.mxu0 0.0
      %2987 = vmatpush1.xpose.msra.mxu0 0.0
      %2988 = vmatprep.subr.mxu0 0.0
      %2989 = vmatpush1.xpose.msra.mxu0 0.0
      %2990 = vmatprep.subr.mxu0 0.0
      %2991 = vmatpush1.xpose.msra.mxu0 0.0
      %2992 = vmatprep.subr.mxu0 0.0
      %2993 = vmatpush1.xpose.msra.mxu0 0.0
      %2994 = vmatprep.subr.mxu0 0.0
      %2995 = vmatpush1.xpose.msra.mxu0 0.0
      %2996 = vmatprep.subr.mxu0 0.0
      %2997 = vmatpush1.xpose.msra.mxu0 0.0
      %2998 = vmatprep.subr.mxu0 0.0
      %2999 = vmatpush1.xpose.msra.mxu0 0.0
      %3000 = vmatprep.subr.mxu0 0.0
      %3001 = vmatpush1.xpose.msra.mxu0 0.0
      %3002 = vmatprep.subr.mxu0 0.0
      %3003 = vmatpush1.xpose.msra.mxu0 0.0
      %3004 = vmatprep.mubr.f32.mxu0 0.0
      %3005 = vmatmul.mubr.f32.gmra.mrb[0].mxu0 %v2935
      %v3006 = vpop.f32.mrb[0].mxu0
      %v3007 = vadd.f32 %v2933, %v3006
      %v3008 = vpop.f32.mrb[0].mxu0
      %3009 = vdwg.mxu0
      %v3010 = vsel %vm818, %v3007, -inf
      %3011 = vmax.xlane.f32.xlu0 %v3010
      %v3012 = vpop.xlane.xlu0 %3011
      %v3013 = vsub.f32 %v3007, %v3012
      %v3014 = vmul.f32 %v3013, 1.442695
      %v3015 = vpow.pop %v3014
      %v3016 = vsel %vm818, %v3015, 0.0
      %3017 = vadd.xlane.f32.xlu0 %v3016
      %v3018 = vpop.xlane.xlu0 %3017
      %v3019 = vrcp.pop %v3018
      %v3020 = vmul.f32 %v3015, %v3019
      %3021 = vrot.lane.b32.xlu0 %v2917, 96
      %v3022 = vpop.permute.xlu0 %3021
      %v3025 = vsel %vm818, %v3020, 0
      %3027 = vmatprep.subr.mxu0 0.0
      %3028 = vmatpush1.msra.mxu0 %v3022
      %3029 = vmatprep.subr.mxu0 0.0
      %3030 = vmatpush1.msra.mxu0 0.0
      %3031 = vmatprep.subr.mxu0 0.0
      %3032 = vmatpush1.msra.mxu0 0.0
      %3033 = vmatprep.subr.mxu0 0.0
      %3034 = vmatpush1.msra.mxu0 0.0
      %3035 = vmatprep.subr.mxu0 0.0
      %3036 = vmatpush1.msra.mxu0 0.0
      %3037 = vmatprep.subr.mxu0 0.0
      %3038 = vmatpush1.msra.mxu0 0.0
      %3039 = vmatprep.subr.mxu0 0.0
      %3040 = vmatpush1.msra.mxu0 0.0
      %3041 = vmatprep.subr.mxu0 0.0
      %3042 = vmatpush1.msra.mxu0 0.0
      %3043 = vmatprep.subr.mxu0 0.0
      %3044 = vmatpush1.msra.mxu0 0.0
      %3045 = vmatprep.subr.mxu0 0.0
      %3046 = vmatpush1.msra.mxu0 0.0
      %3047 = vmatprep.subr.mxu0 0.0
      %3048 = vmatpush1.msra.mxu0 0.0
      %3049 = vmatprep.subr.mxu0 0.0
      %3050 = vmatpush1.msra.mxu0 0.0
      %3051 = vmatprep.subr.mxu0 0.0
      %3052 = vmatpush1.msra.mxu0 0.0
      %3053 = vmatprep.subr.mxu0 0.0
      %3054 = vmatpush1.msra.mxu0 0.0
      %3055 = vmatprep.subr.mxu0 0.0
      %3056 = vmatpush1.msra.mxu0 0.0
      %3057 = vmatprep.subr.mxu0 0.0
      %3058 = vmatpush1.msra.mxu0 0.0
      %3059 = vmatprep.subr.mxu0 0.0
      %3060 = vmatpush1.msra.mxu0 0.0
      %3061 = vmatprep.subr.mxu0 0.0
      %3062 = vmatpush1.msra.mxu0 0.0
      %3063 = vmatprep.subr.mxu0 0.0
      %3064 = vmatpush1.msra.mxu0 0.0
      %3065 = vmatprep.subr.mxu0 0.0
      %3066 = vmatpush1.msra.mxu0 0.0
      %3067 = vmatprep.subr.mxu0 0.0
      %3068 = vmatpush1.msra.mxu0 0.0
      %3069 = vmatprep.subr.mxu0 0.0
      %3070 = vmatpush1.msra.mxu0 0.0
      %3071 = vmatprep.subr.mxu0 0.0
      %3072 = vmatpush1.msra.mxu0 0.0
      %3073 = vmatprep.subr.mxu0 0.0
      %3074 = vmatpush1.msra.mxu0 0.0
      %3075 = vmatprep.subr.mxu0 0.0
      %3076 = vmatpush1.msra.mxu0 0.0
      %3077 = vmatprep.subr.mxu0 0.0
      %3078 = vmatpush1.msra.mxu0 0.0
      %3079 = vmatprep.subr.mxu0 0.0
      %3080 = vmatpush1.msra.mxu0 0.0
      %3081 = vmatprep.subr.mxu0 0.0
      %3082 = vmatpush1.msra.mxu0 0.0
      %3083 = vmatprep.subr.mxu0 0.0
      %3084 = vmatpush1.msra.mxu0 0.0
      %3085 = vmatprep.subr.mxu0 0.0
      %3086 = vmatpush1.msra.mxu0 0.0
      %3087 = vmatprep.subr.mxu0 0.0
      %3088 = vmatpush1.msra.mxu0 0.0
      %3089 = vmatprep.subr.mxu0 0.0
      %3090 = vmatpush1.msra.mxu0 0.0
      %3091 = vmatprep.mubr.f32.mxu0 0.0
      %3092 = vmatmul.mubr.f32.gmra.mrb[0].mxu0 %v3025
      %v3093 = vpop.f32.mrb[0].mxu0
      %v3094 = vadd.f32 0.0, %v3093
      %v3095 = vpop.f32.mrb[0].mxu0
      %3096 = vdwg.mxu0
      %3097 = vrot.lane.b32.xlu0 %v2830, 120
      %v3098 = vpop.permute.xlu0 %3097
      %3099 = vrot.lane.b32.xlu0 %v2917, 120
      %v3100 = vpop.permute.xlu0 %3099
      %v3101 = vsel %vm818, %v3098, 0
      %v3103 = vsel %vm818, %v3100, 0
      %3105 = vmatprep.subr.mxu0 0.0
      %3106 = vmatpush1.xpose.msra.mxu0 %v3103
      %3107 = vmatprep.subr.mxu0 0.0
      %3108 = vmatpush1.xpose.msra.mxu0 0.0
      %3109 = vmatprep.subr.mxu0 0.0
      %3110 = vmatpush1.xpose.msra.mxu0 0.0
      %3111 = vmatprep.subr.mxu0 0.0
      %3112 = vmatpush1.xpose.msra.mxu0 0.0
      %3113 = vmatprep.subr.mxu0 0.0
      %3114 = vmatpush1.xpose.msra.mxu0 0.0
      %3115 = vmatprep.subr.mxu0 0.0
      %3116 = vmatpush1.xpose.msra.mxu0 0.0
      %3117 = vmatprep.subr.mxu0 0.0
      %3118 = vmatpush1.xpose.msra.mxu0 0.0
      %3119 = vmatprep.subr.mxu0 0.0
      %3120 = vmatpush1.xpose.msra.mxu0 0.0
      %3121 = vmatprep.subr.mxu0 0.0
      %3122 = vmatpush1.xpose.msra.mxu0 0.0
      %3123 = vmatprep.subr.mxu0 0.0
      %3124 = vmatpush1.xpose.msra.mxu0 0.0
      %3125 = vmatprep.subr.mxu0 0.0
      %3126 = vmatpush1.xpose.msra.mxu0 0.0
      %3127 = vmatprep.subr.mxu0 0.0
      %3128 = vmatpush1.xpose.msra.mxu0 0.0
      %3129 = vmatprep.subr.mxu0 0.0
      %3130 = vmatpush1.xpose.msra.mxu0 0.0
      %3131 = vmatprep.subr.mxu0 0.0
      %3132 = vmatpush1.xpose.msra.mxu0 0.0
      %3133 = vmatprep.subr.mxu0 0.0
      %3134 = vmatpush1.xpose.msra.mxu0 0.0
      %3135 = vmatprep.subr.mxu0 0.0
      %3136 = vmatpush1.xpose.msra.mxu0 0.0
      %3137 = vmatprep.subr.mxu0 0.0
      %3138 = vmatpush1.xpose.msra.mxu0 0.0
      %3139 = vmatprep.subr.mxu0 0.0
      %3140 = vmatpush1.xpose.msra.mxu0 0.0
      %3141 = vmatprep.subr.mxu0 0.0
      %3142 = vmatpush1.xpose.msra.mxu0 0.0
      %3143 = vmatprep.subr.mxu0 0.0
      %3144 = vmatpush1.xpose.msra.mxu0 0.0
      %3145 = vmatprep.subr.mxu0 0.0
      %3146 = vmatpush1.xpose.msra.mxu0 0.0
      %3147 = vmatprep.subr.mxu0 0.0
      %3148 = vmatpush1.xpose.msra.mxu0 0.0
      %3149 = vmatprep.subr.mxu0 0.0
      %3150 = vmatpush1.xpose.msra.mxu0 0.0
      %3151 = vmatprep.subr.mxu0 0.0
      %3152 = vmatpush1.xpose.msra.mxu0 0.0
      %3153 = vmatprep.subr.mxu0 0.0
      %3154 = vmatpush1.xpose.msra.mxu0 0.0
      %3155 = vmatprep.subr.mxu0 0.0
      %3156 = vmatpush1.xpose.msra.mxu0 0.0
      %3157 = vmatprep.subr.mxu0 0.0
      %3158 = vmatpush1.xpose.msra.mxu0 0.0
      %3159 = vmatprep.subr.mxu0 0.0
      %3160 = vmatpush1.xpose.msra.mxu0 0.0
      %3161 = vmatprep.subr.mxu0 0.0
      %3162 = vmatpush1.xpose.msra.mxu0 0.0
      %3163 = vmatprep.subr.mxu0 0.0
      %3164 = vmatpush1.xpose.msra.mxu0 0.0
      %3165 = vmatprep.subr.mxu0 0.0
      %3166 = vmatpush1.xpose.msra.mxu0 0.0
      %3167 = vmatprep.subr.mxu0 0.0
      %3168 = vmatpush1.xpose.msra.mxu0 0.0
      %3169 = vmatprep.mubr.f32.mxu0 0.0
      %3170 = vmatmul.mubr.f32.gmra.mrb[0].mxu0 %v3101
      %v3171 = vpop.f32.mrb[0].mxu0
      %v3172 = vadd.f32 %v2933, %v3171
      %v3173 = vpop.f32.mrb[0].mxu0
      %3174 = vdwg.mxu0
      %v3175 = vsel %vm818, %v3172, -inf
      %3176 = vmax.xlane.f32.xlu0 %v3175
      %v3177 = vpop.xlane.xlu0 %3176
      %v3178 = vsub.f32 %v3172, %v3177
      %v3179 = vmul.f32 %v3178, 1.442695
      %v3180 = vpow.pop %v3179
      %v3181 = vsel %vm818, %v3180, 0.0
      %3182 = vadd.xlane.f32.xlu0 %v3181
      %v3183 = vpop.xlane.xlu0 %3182
      %v3184 = vrcp.pop %v3183
      %v3185 = vmul.f32 %v3180, %v3184
      %3186 = vrot.lane.b32.xlu0 %v2917, 88
      %v3187 = vpop.permute.xlu0 %3186
      %v3190 = vsel %vm818, %v3185, 0
      %3192 = vmatprep.subr.mxu0 0.0
      %3193 = vmatpush1.msra.mxu0 %v3187
      %3194 = vmatprep.subr.mxu0 0.0
      %3195 = vmatpush1.msra.mxu0 0.0
      %3196 = vmatprep.subr.mxu0 0.0
      %3197 = vmatpush1.msra.mxu0 0.0
      %3198 = vmatprep.subr.mxu0 0.0
      %3199 = vmatpush1.msra.mxu0 0.0
      %3200 = vmatprep.subr.mxu0 0.0
      %3201 = vmatpush1.msra.mxu0 0.0
      %3202 = vmatprep.subr.mxu0 0.0
      %3203 = vmatpush1.msra.mxu0 0.0
      %3204 = vmatprep.subr.mxu0 0.0
      %3205 = vmatpush1.msra.mxu0 0.0
      %3206 = vmatprep.subr.mxu0 0.0
      %3207 = vmatpush1.msra.mxu0 0.0
      %3208 = vmatprep.subr.mxu0 0.0
      %3209 = vmatpush1.msra.mxu0 0.0
      %3210 = vmatprep.subr.mxu0 0.0
      %3211 = vmatpush1.msra.mxu0 0.0
      %3212 = vmatprep.subr.mxu0 0.0
      %3213 = vmatpush1.msra.mxu0 0.0
      %3214 = vmatprep.subr.mxu0 0.0
      %3215 = vmatpush1.msra.mxu0 0.0
      %3216 = vmatprep.subr.mxu0 0.0
      %3217 = vmatpush1.msra.mxu0 0.0
      %3218 = vmatprep.subr.mxu0 0.0
      %3219 = vmatpush1.msra.mxu0 0.0
      %3220 = vmatprep.subr.mxu0 0.0
      %3221 = vmatpush1.msra.mxu0 0.0
      %3222 = vmatprep.subr.mxu0 0.0
      %3223 = vmatpush1.msra.mxu0 0.0
      %3224 = vmatprep.subr.mxu0 0.0
      %3225 = vmatpush1.msra.mxu0 0.0
      %3226 = vmatprep.subr.mxu0 0.0
      %3227 = vmatpush1.msra.mxu0 0.0
      %3228 = vmatprep.subr.mxu0 0.0
      %3229 = vmatpush1.msra.mxu0 0.0
      %3230 = vmatprep.subr.mxu0 0.0
      %3231 = vmatpush1.msra.mxu0 0.0
      %3232 = vmatprep.subr.mxu0 0.0
      %3233 = vmatpush1.msra.mxu0 0.0
      %3234 = vmatprep.subr.mxu0 0.0
      %3235 = vmatpush1.msra.mxu0 0.0
      %3236 = vmatprep.subr.mxu0 0.0
      %3237 = vmatpush1.msra.mxu0 0.0
      %3238 = vmatprep.subr.mxu0 0.0
      %3239 = vmatpush1.msra.mxu0 0.0
      %3240 = vmatprep.subr.mxu0 0.0
      %3241 = vmatpush1.msra.mxu0 0.0
      %3242 = vmatprep.subr.mxu0 0.0
      %3243 = vmatpush1.msra.mxu0 0.0
      %3244 = vmatprep.subr.mxu0 0.0
      %3245 = vmatpush1.msra.mxu0 0.0
      %3246 = vmatprep.subr.mxu0 0.0
      %3247 = vmatpush1.msra.mxu0 0.0
      %3248 = vmatprep.subr.mxu0 0.0
      %3249 = vmatpush1.msra.mxu0 0.0
      %3250 = vmatprep.subr.mxu0 0.0
      %3251 = vmatpush1.msra.mxu0 0.0
      %3252 = vmatprep.subr.mxu0 0.0
      %3253 = vmatpush1.msra.mxu0 0.0
      %3254 = vmatprep.subr.mxu0 0.0
      %3255 = vmatpush1.msra.mxu0 0.0
      %3256 = vmatprep.mubr.f32.mxu0 0.0
      %3257 = vmatmul.mubr.f32.gmra.mrb[0].mxu0 %v3190
      %v3258 = vpop.f32.mrb[0].mxu0
      %v3259 = vadd.f32 0.0, %v3258
      %v3260 = vpop.f32.mrb[0].mxu0
      %3261 = vdwg.mxu0
      %v3263 = vsel %vm818, %v3259, 0
      %3265 = vmatprep.subr.mxu0 0.0
      %3266 = vmatpush1.msra.mxu0 %v2927
      %3267 = vmatprep.subr.mxu0 0.0
      %3268 = vmatpush1.msra.mxu0 0.0
      %3269 = vmatprep.subr.mxu0 0.0
      %3270 = vmatpush1.msra.mxu0 0.0
      %3271 = vmatprep.subr.mxu0 0.0
      %3272 = vmatpush1.msra.mxu0 0.0
      %3273 = vmatprep.subr.mxu0 0.0
      %3274 = vmatpush1.msra.mxu0 0.0
      %3275 = vmatprep.subr.mxu0 0.0
      %3276 = vmatpush1.msra.mxu0 0.0
      %3277 = vmatprep.subr.mxu0 0.0
      %3278 = vmatpush1.msra.mxu0 0.0
      %3279 = vmatprep.subr.mxu0 0.0
      %3280 = vmatpush1.msra.mxu0 0.0
      %3281 = vmatprep.subr.mxu0 0.0
      %3282 = vmatpush1.msra.mxu0 0.0
      %3283 = vmatprep.subr.mxu0 0.0
      %3284 = vmatpush1.msra.mxu0 0.0
      %3285 = vmatprep.subr.mxu0 0.0
      %3286 = vmatpush1.msra.mxu0 0.0
      %3287 = vmatprep.subr.mxu0 0.0
      %3288 = vmatpush1.msra.mxu0 0.0
      %3289 = vmatprep.subr.mxu0 0.0
      %3290 = vmatpush1.msra.mxu0 0.0
      %3291 = vmatprep.subr.mxu0 0.0
      %3292 = vmatpush1.msra.mxu0 0.0
      %3293 = vmatprep.subr.mxu0 0.0
      %3294 = vmatpush1.msra.mxu0 0.0
      %3295 = vmatprep.subr.mxu0 0.0
      %3296 = vmatpush1.msra.mxu0 0.0
      %3297 = vmatprep.subr.mxu0 0.0
      %3298 = vmatpush1.msra.mxu0 0.0
      %3299 = vmatprep.subr.mxu0 0.0
      %3300 = vmatpush1.msra.mxu0 0.0
      %3301 = vmatprep.subr.mxu0 0.0
      %3302 = vmatpush1.msra.mxu0 0.0
      %3303 = vmatprep.subr.mxu0 0.0
      %3304 = vmatpush1.msra.mxu0 0.0
      %3305 = vmatprep.subr.mxu0 0.0
      %3306 = vmatpush1.msra.mxu0 0.0
      %3307 = vmatprep.subr.mxu0 0.0
      %3308 = vmatpush1.msra.mxu0 0.0
      %3309 = vmatprep.subr.mxu0 0.0
      %3310 = vmatpush1.msra.mxu0 0.0
      %3311 = vmatprep.subr.mxu0 0.0
      %3312 = vmatpush1.msra.mxu0 0.0
      %3313 = vmatprep.subr.mxu0 0.0
      %3314 = vmatpush1.msra.mxu0 0.0
      %3315 = vmatprep.subr.mxu0 0.0
      %3316 = vmatpush1.msra.mxu0 0.0
      %3317 = vmatprep.subr.mxu0 0.0
      %3318 = vmatpush1.msra.mxu0 0.0
      %3319 = vmatprep.subr.mxu0 0.0
      %3320 = vmatpush1.msra.mxu0 0.0
      %3321 = vmatprep.subr.mxu0 0.0
      %3322 = vmatpush1.msra.mxu0 0.0
      %3323 = vmatprep.subr.mxu0 0.0
      %3324 = vmatpush1.msra.mxu0 0.0
      %3325 = vmatprep.subr.mxu0 0.0
      %3326 = vmatpush1.msra.mxu0 0.0
      %3327 = vmatprep.subr.mxu0 0.0
      %3328 = vmatpush1.msra.mxu0 0.0
      %3329 = vmatprep.mubr.f32.mxu0 0.0
      %3330 = vmatmul.mubr.f32.gmra.mrb[0].mxu0 %v3263
      %v3331 = vpop.f32.mrb[0].mxu0
      %v3332 = vadd.f32 0.0, %v3331
      %v3333 = vpop.f32.mrb[0].mxu0
      %3334 = vdwg.mxu0
      %v3336 = vsel %vm818, %v3094, 0
      %3338 = vmatprep.subr.mxu0 0.0
      %3339 = vmatpush1.msra.mxu0 %v2926
      %3340 = vmatprep.subr.mxu0 0.0
      %3341 = vmatpush1.msra.mxu0 0.0
      %3342 = vmatprep.subr.mxu0 0.0
      %3343 = vmatpush1.msra.mxu0 0.0
      %3344 = vmatprep.subr.mxu0 0.0
      %3345 = vmatpush1.msra.mxu0 0.0
      %3346 = vmatprep.subr.mxu0 0.0
      %3347 = vmatpush1.msra.mxu0 0.0
      %3348 = vmatprep.subr.mxu0 0.0
      %3349 = vmatpush1.msra.mxu0 0.0
      %3350 = vmatprep.subr.mxu0 0.0
      %3351 = vmatpush1.msra.mxu0 0.0
      %3352 = vmatprep.subr.mxu0 0.0
      %3353 = vmatpush1.msra.mxu0 0.0
      %3354 = vmatprep.subr.mxu0 0.0
      %3355 = vmatpush1.msra.mxu0 0.0
      %3356 = vmatprep.subr.mxu0 0.0
      %3357 = vmatpush1.msra.mxu0 0.0
      %3358 = vmatprep.subr.mxu0 0.0
      %3359 = vmatpush1.msra.mxu0 0.0
      %3360 = vmatprep.subr.mxu0 0.0
      %3361 = vmatpush1.msra.mxu0 0.0
      %3362 = vmatprep.subr.mxu0 0.0
      %3363 = vmatpush1.msra.mxu0 0.0
      %3364 = vmatprep.subr.mxu0 0.0
      %3365 = vmatpush1.msra.mxu0 0.0
      %3366 = vmatprep.subr.mxu0 0.0
      %3367 = vmatpush1.msra.mxu0 0.0
      %3368 = vmatprep.subr.mxu0 0.0
      %3369 = vmatpush1.msra.mxu0 0.0
      %3370 = vmatprep.subr.mxu0 0.0
      %3371 = vmatpush1.msra.mxu0 0.0
      %3372 = vmatprep.subr.mxu0 0.0
      %3373 = vmatpush1.msra.mxu0 0.0
      %3374 = vmatprep.subr.mxu0 0.0
      %3375 = vmatpush1.msra.mxu0 0.0
      %3376 = vmatprep.subr.mxu0 0.0
      %3377 = vmatpush1.msra.mxu0 0.0
      %3378 = vmatprep.subr.mxu0 0.0
      %3379 = vmatpush1.msra.mxu0 0.0
      %3380 = vmatprep.subr.mxu0 0.0
      %3381 = vmatpush1.msra.mxu0 0.0
      %3382 = vmatprep.subr.mxu0 0.0
      %3383 = vmatpush1.msra.mxu0 0.0
      %3384 = vmatprep.subr.mxu0 0.0
      %3385 = vmatpush1.msra.mxu0 0.0
      %3386 = vmatprep.subr.mxu0 0.0
      %3387 = vmatpush1.msra.mxu0 0.0
      %3388 = vmatprep.subr.mxu0 0.0
      %3389 = vmatpush1.msra.mxu0 0.0
      %3390 = vmatprep.subr.mxu0 0.0
      %3391 = vmatpush1.msra.mxu0 0.0
      %3392 = vmatprep.subr.mxu0 0.0
      %3393 = vmatpush1.msra.mxu0 0.0
      %3394 = vmatprep.subr.mxu0 0.0
      %3395 = vmatpush1.msra.mxu0 0.0
      %3396 = vmatprep.subr.mxu0 0.0
      %3397 = vmatpush1.msra.mxu0 0.0
      %3398 = vmatprep.subr.mxu0 0.0
      %3399 = vmatpush1.msra.mxu0 0.0
      %3400 = vmatprep.subr.mxu0 0.0
      %3401 = vmatpush1.msra.mxu0 0.0
      %3402 = vmatprep.mubr.f32.mxu0 0.0
      %3403 = vmatmul.mubr.f32.gmra.mrb[0].mxu0 %v3336
      %v3404 = vpop.f32.mrb[0].mxu0
      %v3405 = vadd.f32 %v3332, %v3404
      %v3406 = vpop.f32.mrb[0].mxu0
      %3407 = vdwg.mxu0
      %3408 = vrot.lane.b32.xlu0 %v2830, 112
      %v3409 = vpop.permute.xlu0 %3408
      %3410 = vrot.lane.b32.xlu0 %v2917, 112
      %v3411 = vpop.permute.xlu0 %3410
      %v3412 = vsel %vm818, %v3409, 0
      %v3414 = vsel %vm818, %v3411, 0
      %3416 = vmatprep.subr.mxu0 0.0
      %3417 = vmatpush1.xpose.msra.mxu0 %v3414
      %3418 = vmatprep.subr.mxu0 0.0
      %3419 = vmatpush1.xpose.msra.mxu0 0.0
      %3420 = vmatprep.subr.mxu0 0.0
      %3421 = vmatpush1.xpose.msra.mxu0 0.0
      %3422 = vmatprep.subr.mxu0 0.0
      %3423 = vmatpush1.xpose.msra.mxu0 0.0
      %3424 = vmatprep.subr.mxu0 0.0
      %3425 = vmatpush1.xpose.msra.mxu0 0.0
      %3426 = vmatprep.subr.mxu0 0.0
      %3427 = vmatpush1.xpose.msra.mxu0 0.0
      %3428 = vmatprep.subr.mxu0 0.0
      %3429 = vmatpush1.xpose.msra.mxu0 0.0
      %3430 = vmatprep.subr.mxu0 0.0
      %3431 = vmatpush1.xpose.msra.mxu0 0.0
      %3432 = vmatprep.subr.mxu0 0.0
      %3433 = vmatpush1.xpose.msra.mxu0 0.0
      %3434 = vmatprep.subr.mxu0 0.0
      %3435 = vmatpush1.xpose.msra.mxu0 0.0
      %3436 = vmatprep.subr.mxu0 0.0
      %3437 = vmatpush1.xpose.msra.mxu0 0.0
      %3438 = vmatprep.subr.mxu0 0.0
      %3439 = vmatpush1.xpose.msra.mxu0 0.0
      %3440 = vmatprep.subr.mxu0 0.0
      %3441 = vmatpush1.xpose.msra.mxu0 0.0
      %3442 = vmatprep.subr.mxu0 0.0
      %3443 = vmatpush1.xpose.msra.mxu0 0.0
      %3444 = vmatprep.subr.mxu0 0.0
      %3445 = vmatpush1.xpose.msra.mxu0 0.0
      %3446 = vmatprep.subr.mxu0 0.0
      %3447 = vmatpush1.xpose.msra.mxu0 0.0
      %3448 = vmatprep.subr.mxu0 0.0
      %3449 = vmatpush1.xpose.msra.mxu0 0.0
      %3450 = vmatprep.subr.mxu0 0.0
      %3451 = vmatpush1.xpose.msra.mxu0 0.0
      %3452 = vmatprep.subr.mxu0 0.0
      %3453 = vmatpush1.xpose.msra.mxu0 0.0
      %3454 = vmatprep.subr.mxu0 0.0
      %3455 = vmatpush1.xpose.msra.mxu0 0.0
      %3456 = vmatprep.subr.mxu0 0.0
      %3457 = vmatpush1.xpose.msra.mxu0 0.0
      %3458 = vmatprep.subr.mxu0 0.0
      %3459 = vmatpush1.xpose.msra.mxu0 0.0
      %3460 = vmatprep.subr.mxu0 0.0
      %3461 = vmatpush1.xpose.msra.mxu0 0.0
      %3462 = vmatprep.subr.mxu0 0.0
      %3463 = vmatpush1.xpose.msra.mxu0 0.0
      %3464 = vmatprep.subr.mxu0 0.0
      %3465 = vmatpush1.xpose.msra.mxu0 0.0
      %3466 = vmatprep.subr.mxu0 0.0
      %3467 = vmatpush1.xpose.msra.mxu0 0.0
      %3468 = vmatprep.subr.mxu0 0.0
      %3469 = vmatpush1.xpose.msra.mxu0 0.0
      %3470 = vmatprep.subr.mxu0 0.0
      %3471 = vmatpush1.xpose.msra.mxu0 0.0
      %3472 = vmatprep.subr.mxu0 0.0
      %3473 = vmatpush1.xpose.msra.mxu0 0.0
      %3474 = vmatprep.subr.mxu0 0.0
      %3475 = vmatpush1.xpose.msra.mxu0 0.0
      %3476 = vmatprep.subr.mxu0 0.0
      %3477 = vmatpush1.xpose.msra.mxu0 0.0
      %3478 = vmatprep.subr.mxu0 0.0
      %3479 = vmatpush1.xpose.msra.mxu0 0.0
      %3480 = vmatprep.mubr.f32.mxu0 0.0
      %3481 = vmatmul.mubr.f32.gmra.mrb[0].mxu0 %v3412
      %v3482 = vpop.f32.mrb[0].mxu0
      %v3483 = vadd.f32 %v2933, %v3482
      %v3484 = vpop.f32.mrb[0].mxu0
      %3485 = vdwg.mxu0
      %v3486 = vsel %vm818, %v3483, -inf
      %3487 = vmax.xlane.f32.xlu0 %v3486
      %v3488 = vpop.xlane.xlu0 %3487
      %v3489 = vsub.f32 %v3483, %v3488
      %v3490 = vmul.f32 %v3489, 1.442695
      %v3491 = vpow.pop %v3490
      %v3492 = vsel %vm818, %v3491, 0.0
      %3493 = vadd.xlane.f32.xlu0 %v3492
      %v3494 = vpop.xlane.xlu0 %3493
      %v3495 = vrcp.pop %v3494
      %v3496 = vmul.f32 %v3491, %v3495
      %3497 = vrot.lane.b32.xlu0 %v2917, 80
      %v3498 = vpop.permute.xlu0 %3497
      %v3501 = vsel %vm818, %v3496, 0
      %3503 = vmatprep.subr.mxu0 0.0
      %3504 = vmatpush1.msra.mxu0 %v3498
      %3505 = vmatprep.subr.mxu0 0.0
      %3506 = vmatpush1.msra.mxu0 0.0
      %3507 = vmatprep.subr.mxu0 0.0
      %3508 = vmatpush1.msra.mxu0 0.0
      %3509 = vmatprep.subr.mxu0 0.0
      %3510 = vmatpush1.msra.mxu0 0.0
      %3511 = vmatprep.subr.mxu0 0.0
      %3512 = vmatpush1.msra.mxu0 0.0
      %3513 = vmatprep.subr.mxu0 0.0
      %3514 = vmatpush1.msra.mxu0 0.0
      %3515 = vmatprep.subr.mxu0 0.0
      %3516 = vmatpush1.msra.mxu0 0.0
      %3517 = vmatprep.subr.mxu0 0.0
      %3518 = vmatpush1.msra.mxu0 0.0
      %3519 = vmatprep.subr.mxu0 0.0
      %3520 = vmatpush1.msra.mxu0 0.0
      %3521 = vmatprep.subr.mxu0 0.0
      %3522 = vmatpush1.msra.mxu0 0.0
      %3523 = vmatprep.subr.mxu0 0.0
      %3524 = vmatpush1.msra.mxu0 0.0
      %3525 = vmatprep.subr.mxu0 0.0
      %3526 = vmatpush1.msra.mxu0 0.0
      %3527 = vmatprep.subr.mxu0 0.0
      %3528 = vmatpush1.msra.mxu0 0.0
      %3529 = vmatprep.subr.mxu0 0.0
      %3530 = vmatpush1.msra.mxu0 0.0
      %3531 = vmatprep.subr.mxu0 0.0
      %3532 = vmatpush1.msra.mxu0 0.0
      %3533 = vmatprep.subr.mxu0 0.0
      %3534 = vmatpush1.msra.mxu0 0.0
      %3535 = vmatprep.subr.mxu0 0.0
      %3536 = vmatpush1.msra.mxu0 0.0
      %3537 = vmatprep.subr.mxu0 0.0
      %3538 = vmatpush1.msra.mxu0 0.0
      %3539 = vmatprep.subr.mxu0 0.0
      %3540 = vmatpush1.msra.mxu0 0.0
      %3541 = vmatprep.subr.mxu0 0.0
      %3542 = vmatpush1.msra.mxu0 0.0
      %3543 = vmatprep.subr.mxu0 0.0
      %3544 = vmatpush1.msra.mxu0 0.0
      %3545 = vmatprep.subr.mxu0 0.0
      %3546 = vmatpush1.msra.mxu0 0.0
      %3547 = vmatprep.subr.mxu0 0.0
      %3548 = vmatpush1.msra.mxu0 0.0
      %3549 = vmatprep.subr.mxu0 0.0
      %3550 = vmatpush1.msra.mxu0 0.0
      %3551 = vmatprep.subr.mxu0 0.0
      %3552 = vmatpush1.msra.mxu0 0.0
      %3553 = vmatprep.subr.mxu0 0.0
      %3554 = vmatpush1.msra.mxu0 0.0
      %3555 = vmatprep.subr.mxu0 0.0
      %3556 = vmatpush1.msra.mxu0 0.0
      %3557 = vmatprep.subr.mxu0 0.0
      %3558 = vmatpush1.msra.mxu0 0.0
      %3559 = vmatprep.subr.mxu0 0.0
      %3560 = vmatpush1.msra.mxu0 0.0
      %3561 = vmatprep.subr.mxu0 0.0
      %3562 = vmatpush1.msra.mxu0 0.0
      %3563 = vmatprep.subr.mxu0 0.0
      %3564 = vmatpush1.msra.mxu0 0.0
      %3565 = vmatprep.subr.mxu0 0.0
      %3566 = vmatpush1.msra.mxu0 0.0
      %3567 = vmatprep.mubr.f32.mxu0 0.0
      %3568 = vmatmul.mubr.f32.gmra.mrb[0].mxu0 %v3501
      %v3569 = vpop.f32.mrb[0].mxu0
      %v3570 = vadd.f32 0.0, %v3569
      %v3571 = vpop.f32.mrb[0].mxu0
      %3572 = vdwg.mxu0
      %v3574 = vsel %vm818, %v3570, 0
      %3576 = vmatprep.subr.mxu0 0.0
      %3577 = vmatpush1.msra.mxu0 %v2928
      %3578 = vmatprep.subr.mxu0 0.0
      %3579 = vmatpush1.msra.mxu0 0.0
      %3580 = vmatprep.subr.mxu0 0.0
      %3581 = vmatpush1.msra.mxu0 0.0
      %3582 = vmatprep.subr.mxu0 0.0
      %3583 = vmatpush1.msra.mxu0 0.0
      %3584 = vmatprep.subr.mxu0 0.0
      %3585 = vmatpush1.msra.mxu0 0.0
      %3586 = vmatprep.subr.mxu0 0.0
      %3587 = vmatpush1.msra.mxu0 0.0
      %3588 = vmatprep.subr.mxu0 0.0
      %3589 = vmatpush1.msra.mxu0 0.0
      %3590 = vmatprep.subr.mxu0 0.0
      %3591 = vmatpush1.msra.mxu0 0.0
      %3592 = vmatprep.subr.mxu0 0.0
      %3593 = vmatpush1.msra.mxu0 0.0
      %3594 = vmatprep.subr.mxu0 0.0
      %3595 = vmatpush1.msra.mxu0 0.0
      %3596 = vmatprep.subr.mxu0 0.0
      %3597 = vmatpush1.msra.mxu0 0.0
      %3598 = vmatprep.subr.mxu0 0.0
      %3599 = vmatpush1.msra.mxu0 0.0
      %3600 = vmatprep.subr.mxu0 0.0
      %3601 = vmatpush1.msra.mxu0 0.0
      %3602 = vmatprep.subr.mxu0 0.0
      %3603 = vmatpush1.msra.mxu0 0.0
      %3604 = vmatprep.subr.mxu0 0.0
      %3605 = vmatpush1.msra.mxu0 0.0
      %3606 = vmatprep.subr.mxu0 0.0
      %3607 = vmatpush1.msra.mxu0 0.0
      %3608 = vmatprep.subr.mxu0 0.0
      %3609 = vmatpush1.msra.mxu0 0.0
      %3610 = vmatprep.subr.mxu0 0.0
      %3611 = vmatpush1.msra.mxu0 0.0
      %3612 = vmatprep.subr.mxu0 0.0
      %3613 = vmatpush1.msra.mxu0 0.0
      %3614 = vmatprep.subr.mxu0 0.0
      %3615 = vmatpush1.msra.mxu0 0.0
      %3616 = vmatprep.subr.mxu0 0.0
      %3617 = vmatpush1.msra.mxu0 0.0
      %3618 = vmatprep.subr.mxu0 0.0
      %3619 = vmatpush1.msra.mxu0 0.0
      %3620 = vmatprep.subr.mxu0 0.0
      %3621 = vmatpush1.msra.mxu0 0.0
      %3622 = vmatprep.subr.mxu0 0.0
      %3623 = vmatpush1.msra.mxu0 0.0
      %3624 = vmatprep.subr.mxu0 0.0
      %3625 = vmatpush1.msra.mxu0 0.0
      %3626 = vmatprep.subr.mxu0 0.0
      %3627 = vmatpush1.msra.mxu0 0.0
      %3628 = vmatprep.subr.mxu0 0.0
      %3629 = vmatpush1.msra.mxu0 0.0
      %3630 = vmatprep.subr.mxu0 0.0
      %3631 = vmatpush1.msra.mxu0 0.0
      %3632 = vmatprep.subr.mxu0 0.0
      %3633 = vmatpush1.msra.mxu0 0.0
      %3634 = vmatprep.subr.mxu0 0.0
      %3635 = vmatpush1.msra.mxu0 0.0
      %3636 = vmatprep.subr.mxu0 0.0
      %3637 = vmatpush1.msra.mxu0 0.0
      %3638 = vmatprep.subr.mxu0 0.0
      %3639 = vmatpush1.msra.mxu0 0.0
      %3640 = vmatprep.mubr.f32.mxu0 0.0
      %3641 = vmatmul.mubr.f32.gmra.mrb[0].mxu0 %v3574
      %v3642 = vpop.f32.mrb[0].mxu0
      %v3643 = vadd.f32 0.0, %v3642
      %v3644 = vpop.f32.mrb[0].mxu0
      %3645 = vdwg.mxu0
      %v3646 = vadd.f32 %v3405, %v3643
      %3647 = vrot.lane.b32.xlu0 %v2830, 104
      %v3648 = vpop.permute.xlu0 %3647
      %3649 = vrot.lane.b32.xlu0 %v2917, 104
      %v3650 = vpop.permute.xlu0 %3649
      %v3651 = vsel %vm818, %v3648, 0
      %v3653 = vsel %vm818, %v3650, 0
      %3655 = vmatprep.subr.mxu0 0.0
      %3656 = vmatpush1.xpose.msra.mxu0 %v3653
      %3657 = vmatprep.subr.mxu0 0.0
      %3658 = vmatpush1.xpose.msra.mxu0 0.0
      %3659 = vmatprep.subr.mxu0 0.0
      %3660 = vmatpush1.xpose.msra.mxu0 0.0
      %3661 = vmatprep.subr.mxu0 0.0
      %3662 = vmatpush1.xpose.msra.mxu0 0.0
      %3663 = vmatprep.subr.mxu0 0.0
      %3664 = vmatpush1.xpose.msra.mxu0 0.0
      %3665 = vmatprep.subr.mxu0 0.0
      %3666 = vmatpush1.xpose.msra.mxu0 0.0
      %3667 = vmatprep.subr.mxu0 0.0
      %3668 = vmatpush1.xpose.msra.mxu0 0.0
      %3669 = vmatprep.subr.mxu0 0.0
      %3670 = vmatpush1.xpose.msra.mxu0 0.0
      %3671 = vmatprep.subr.mxu0 0.0
      %3672 = vmatpush1.xpose.msra.mxu0 0.0
      %3673 = vmatprep.subr.mxu0 0.0
      %3674 = vmatpush1.xpose.msra.mxu0 0.0
      %3675 = vmatprep.subr.mxu0 0.0
      %3676 = vmatpush1.xpose.msra.mxu0 0.0
      %3677 = vmatprep.subr.mxu0 0.0
      %3678 = vmatpush1.xpose.msra.mxu0 0.0
      %3679 = vmatprep.subr.mxu0 0.0
      %3680 = vmatpush1.xpose.msra.mxu0 0.0
      %3681 = vmatprep.subr.mxu0 0.0
      %3682 = vmatpush1.xpose.msra.mxu0 0.0
      %3683 = vmatprep.subr.mxu0 0.0
      %3684 = vmatpush1.xpose.msra.mxu0 0.0
      %3685 = vmatprep.subr.mxu0 0.0
      %3686 = vmatpush1.xpose.msra.mxu0 0.0
      %3687 = vmatprep.subr.mxu0 0.0
      %3688 = vmatpush1.xpose.msra.mxu0 0.0
      %3689 = vmatprep.subr.mxu0 0.0
      %3690 = vmatpush1.xpose.msra.mxu0 0.0
      %3691 = vmatprep.subr.mxu0 0.0
      %3692 = vmatpush1.xpose.msra.mxu0 0.0
      %3693 = vmatprep.subr.mxu0 0.0
      %3694 = vmatpush1.xpose.msra.mxu0 0.0
      %3695 = vmatprep.subr.mxu0 0.0
      %3696 = vmatpush1.xpose.msra.mxu0 0.0
      %3697 = vmatprep.subr.mxu0 0.0
      %3698 = vmatpush1.xpose.msra.mxu0 0.0
      %3699 = vmatprep.subr.mxu0 0.0
      %3700 = vmatpush1.xpose.msra.mxu0 0.0
      %3701 = vmatprep.subr.mxu0 0.0
      %3702 = vmatpush1.xpose.msra.mxu0 0.0
      %3703 = vmatprep.subr.mxu0 0.0
      %3704 = vmatpush1.xpose.msra.mxu0 0.0
      %3705 = vmatprep.subr.mxu0 0.0
      %3706 = vmatpush1.xpose.msra.mxu0 0.0
      %3707 = vmatprep.subr.mxu0 0.0
      %3708 = vmatpush1.xpose.msra.mxu0 0.0
      %3709 = vmatprep.subr.mxu0 0.0
      %3710 = vmatpush1.xpose.msra.mxu0 0.0
      %3711 = vmatprep.subr.mxu0 0.0
      %3712 = vmatpush1.xpose.msra.mxu0 0.0
      %3713 = vmatprep.subr.mxu0 0.0
      %3714 = vmatpush1.xpose.msra.mxu0 0.0
      %3715 = vmatprep.subr.mxu0 0.0
      %3716 = vmatpush1.xpose.msra.mxu0 0.0
      %3717 = vmatprep.subr.mxu0 0.0
      %3718 = vmatpush1.xpose.msra.mxu0 0.0
      %3719 = vmatprep.mubr.f32.mxu0 0.0
      %3720 = vmatmul.mubr.f32.gmra.mrb[0].mxu0 %v3651
      %v3721 = vpop.f32.mrb[0].mxu0
      %v3722 = vadd.f32 %v2933, %v3721
      %v3723 = vpop.f32.mrb[0].mxu0
      %3724 = vdwg.mxu0
      %v3725 = vsel %vm818, %v3722, -inf
      %3726 = vmax.xlane.f32.xlu0 %v3725
      %v3727 = vpop.xlane.xlu0 %3726
      %v3728 = vsub.f32 %v3722, %v3727
      %v3729 = vmul.f32 %v3728, 1.442695
      %v3730 = vpow.pop %v3729
      %v3731 = vsel %vm818, %v3730, 0.0
      %3732 = vadd.xlane.f32.xlu0 %v3731
      %v3733 = vpop.xlane.xlu0 %3732
      %v3734 = vrcp.pop %v3733
      %v3735 = vmul.f32 %v3730, %v3734
      %3736 = vrot.lane.b32.xlu0 %v2917, 72
      %v3737 = vpop.permute.xlu0 %3736
      %v3740 = vsel %vm818, %v3735, 0
      %3742 = vmatprep.subr.mxu0 0.0
      %3743 = vmatpush1.msra.mxu0 %v3737
      %3744 = vmatprep.subr.mxu0 0.0
      %3745 = vmatpush1.msra.mxu0 0.0
      %3746 = vmatprep.subr.mxu0 0.0
      %3747 = vmatpush1.msra.mxu0 0.0
      %3748 = vmatprep.subr.mxu0 0.0
      %3749 = vmatpush1.msra.mxu0 0.0
      %3750 = vmatprep.subr.mxu0 0.0
      %3751 = vmatpush1.msra.mxu0 0.0
      %3752 = vmatprep.subr.mxu0 0.0
      %3753 = vmatpush1.msra.mxu0 0.0
      %3754 = vmatprep.subr.mxu0 0.0
      %3755 = vmatpush1.msra.mxu0 0.0
      %3756 = vmatprep.subr.mxu0 0.0
      %3757 = vmatpush1.msra.mxu0 0.0
      %3758 = vmatprep.subr.mxu0 0.0
      %3759 = vmatpush1.msra.mxu0 0.0
      %3760 = vmatprep.subr.mxu0 0.0
      %3761 = vmatpush1.msra.mxu0 0.0
      %3762 = vmatprep.subr.mxu0 0.0
      %3763 = vmatpush1.msra.mxu0 0.0
      %3764 = vmatprep.subr.mxu0 0.0
      %3765 = vmatpush1.msra.mxu0 0.0
      %3766 = vmatprep.subr.mxu0 0.0
      %3767 = vmatpush1.msra.mxu0 0.0
      %3768 = vmatprep.subr.mxu0 0.0
      %3769 = vmatpush1.msra.mxu0 0.0
      %3770 = vmatprep.subr.mxu0 0.0
      %3771 = vmatpush1.msra.mxu0 0.0
      %3772 = vmatprep.subr.mxu0 0.0
      %3773 = vmatpush1.msra.mxu0 0.0
      %3774 = vmatprep.subr.mxu0 0.0
      %3775 = vmatpush1.msra.mxu0 0.0
      %3776 = vmatprep.subr.mxu0 0.0
      %3777 = vmatpush1.msra.mxu0 0.0
      %3778 = vmatprep.subr.mxu0 0.0
      %3779 = vmatpush1.msra.mxu0 0.0
      %3780 = vmatprep.subr.mxu0 0.0
      %3781 = vmatpush1.msra.mxu0 0.0
      %3782 = vmatprep.subr.mxu0 0.0
      %3783 = vmatpush1.msra.mxu0 0.0
      %3784 = vmatprep.subr.mxu0 0.0
      %3785 = vmatpush1.msra.mxu0 0.0
      %3786 = vmatprep.subr.mxu0 0.0
      %3787 = vmatpush1.msra.mxu0 0.0
      %3788 = vmatprep.subr.mxu0 0.0
      %3789 = vmatpush1.msra.mxu0 0.0
      %3790 = vmatprep.subr.mxu0 0.0
      %3791 = vmatpush1.msra.mxu0 0.0
      %3792 = vmatprep.subr.mxu0 0.0
      %3793 = vmatpush1.msra.mxu0 0.0
      %3794 = vmatprep.subr.mxu0 0.0
      %3795 = vmatpush1.msra.mxu0 0.0
      %3796 = vmatprep.subr.mxu0 0.0
      %3797 = vmatpush1.msra.mxu0 0.0
      %3798 = vmatprep.subr.mxu0 0.0
      %3799 = vmatpush1.msra.mxu0 0.0
      %3800 = vmatprep.subr.mxu0 0.0
      %3801 = vmatpush1.msra.mxu0 0.0
      %3802 = vmatprep.subr.mxu0 0.0
      %3803 = vmatpush1.msra.mxu0 0.0
      %3804 = vmatprep.subr.mxu0 0.0
      %3805 = vmatpush1.msra.mxu0 0.0
      %3806 = vmatprep.mubr.f32.mxu0 0.0
      %3807 = vmatmul.mubr.f32.gmra.mrb[0].mxu0 %v3740
      %v3808 = vpop.f32.mrb[0].mxu0
      %v3809 = vadd.f32 0.0, %v3808
      %v3810 = vpop.f32.mrb[0].mxu0
      %3811 = vdwg.mxu0
      %v3813 = vsel %vm818, %v3809, 0
      %3815 = vmatprep.subr.mxu0 0.0
      %3816 = vmatpush1.msra.mxu0 %v2929
      %3817 = vmatprep.subr.mxu0 0.0
      %3818 = vmatpush1.msra.mxu0 0.0
      %3819 = vmatprep.subr.mxu0 0.0
      %3820 = vmatpush1.msra.mxu0 0.0
      %3821 = vmatprep.subr.mxu0 0.0
      %3822 = vmatpush1.msra.mxu0 0.0
      %3823 = vmatprep.subr.mxu0 0.0
      %3824 = vmatpush1.msra.mxu0 0.0
      %3825 = vmatprep.subr.mxu0 0.0
      %3826 = vmatpush1.msra.mxu0 0.0
      %3827 = vmatprep.subr.mxu0 0.0
      %3828 = vmatpush1.msra.mxu0 0.0
      %3829 = vmatprep.subr.mxu0 0.0
      %3830 = vmatpush1.msra.mxu0 0.0
      %3831 = vmatprep.subr.mxu0 0.0
      %3832 = vmatpush1.msra.mxu0 0.0
      %3833 = vmatprep.subr.mxu0 0.0
      %3834 = vmatpush1.msra.mxu0 0.0
      %3835 = vmatprep.subr.mxu0 0.0
      %3836 = vmatpush1.msra.mxu0 0.0
      %3837 = vmatprep.subr.mxu0 0.0
      %3838 = vmatpush1.msra.mxu0 0.0
      %3839 = vmatprep.subr.mxu0 0.0
      %3840 = vmatpush1.msra.mxu0 0.0
      %3841 = vmatprep.subr.mxu0 0.0
      %3842 = vmatpush1.msra.mxu0 0.0
      %3843 = vmatprep.subr.mxu0 0.0
      %3844 = vmatpush1.msra.mxu0 0.0
      %3845 = vmatprep.subr.mxu0 0.0
      %3846 = vmatpush1.msra.mxu0 0.0
      %3847 = vmatprep.subr.mxu0 0.0
      %3848 = vmatpush1.msra.mxu0 0.0
      %3849 = vmatprep.subr.mxu0 0.0
      %3850 = vmatpush1.msra.mxu0 0.0
      %3851 = vmatprep.subr.mxu0 0.0
      %3852 = vmatpush1.msra.mxu0 0.0
      %3853 = vmatprep.subr.mxu0 0.0
      %3854 = vmatpush1.msra.mxu0 0.0
      %3855 = vmatprep.subr.mxu0 0.0
      %3856 = vmatpush1.msra.mxu0 0.0
      %3857 = vmatprep.subr.mxu0 0.0
      %3858 = vmatpush1.msra.mxu0 0.0
      %3859 = vmatprep.subr.mxu0 0.0
      %3860 = vmatpush1.msra.mxu0 0.0
      %3861 = vmatprep.subr.mxu0 0.0
      %3862 = vmatpush1.msra.mxu0 0.0
      %3863 = vmatprep.subr.mxu0 0.0
      %3864 = vmatpush1.msra.mxu0 0.0
      %3865 = vmatprep.subr.mxu0 0.0
      %3866 = vmatpush1.msra.mxu0 0.0
      %3867 = vmatprep.subr.mxu0 0.0
      %3868 = vmatpush1.msra.mxu0 0.0
      %3869 = vmatprep.subr.mxu0 0.0
      %3870 = vmatpush1.msra.mxu0 0.0
      %3871 = vmatprep.subr.mxu0 0.0
      %3872 = vmatpush1.msra.mxu0 0.0
      %3873 = vmatprep.subr.mxu0 0.0
      %3874 = vmatpush1.msra.mxu0 0.0
      %3875 = vmatprep.subr.mxu0 0.0
      %3876 = vmatpush1.msra.mxu0 0.0
      %3877 = vmatprep.subr.mxu0 0.0
      %3878 = vmatpush1.msra.mxu0 0.0
      %3879 = vmatprep.mubr.f32.mxu0 0.0
      %3880 = vmatmul.mubr.f32.gmra.mrb[0].mxu0 %v3813
      %v3881 = vpop.f32.mrb[0].mxu0
      %v3882 = vadd.f32 0.0, %v3881
      %v3883 = vpop.f32.mrb[0].mxu0
      %3884 = vdwg.mxu0
      %v3885 = vadd.f32 %v3646, %v3882
      %3886 = vst.msk [vmem:[#allocation3] sm:$0xff] %vm693, %v3885
      %v3887 = vlaneseq
      %v3888 = vshrl.u32 %v3887, 7
      %v3889 = vsub.s32 1, %v3888
      %v3890 = vrot.slane %v2925, %v3889
      %v3892 = vsel %vm818, %v2835, 0
      %v3895 = vsel %vm818, %v2922, 0
      %3897 = vmatprep.subr.mxu0 0.0
      %3898 = vmatpush1.xpose.msra.mxu0 %v3895
      %3899 = vmatprep.subr.mxu0 0.0
      %3900 = vmatpush1.xpose.msra.mxu0 0.0
      %3901 = vmatprep.subr.mxu0 0.0
      %3902 = vmatpush1.xpose.msra.mxu0 0.0
      %3903 = vmatprep.subr.mxu0 0.0
      %3904 = vmatpush1.xpose.msra.mxu0 0.0
      %3905 = vmatprep.subr.mxu0 0.0
      %3906 = vmatpush1.xpose.msra.mxu0 0.0
      %3907 = vmatprep.subr.mxu0 0.0
      %3908 = vmatpush1.xpose.msra.mxu0 0.0
      %3909 = vmatprep.subr.mxu0 0.0
      %3910 = vmatpush1.xpose.msra.mxu0 0.0
      %3911 = vmatprep.subr.mxu0 0.0
      %3912 = vmatpush1.xpose.msra.mxu0 0.0
      %3913 = vmatprep.subr.mxu0 0.0
      %3914 = vmatpush1.xpose.msra.mxu0 0.0
      %3915 = vmatprep.subr.mxu0 0.0
      %3916 = vmatpush1.xpose.msra.mxu0 0.0
      %3917 = vmatprep.subr.mxu0 0.0
      %3918 = vmatpush1.xpose.msra.mxu0 0.0
      %3919 = vmatprep.subr.mxu0 0.0
      %3920 = vmatpush1.xpose.msra.mxu0 0.0
      %3921 = vmatprep.subr.mxu0 0.0
      %3922 = vmatpush1.xpose.msra.mxu0 0.0
      %3923 = vmatprep.subr.mxu0 0.0
      %3924 = vmatpush1.xpose.msra.mxu0 0.0
      %3925 = vmatprep.subr.mxu0 0.0
      %3926 = vmatpush1.xpose.msra.mxu0 0.0
      %3927 = vmatprep.subr.mxu0 0.0
      %3928 = vmatpush1.xpose.msra.mxu0 0.0
      %3929 = vmatprep.subr.mxu0 0.0
      %3930 = vmatpush1.xpose.msra.mxu0 0.0
      %3931 = vmatprep.subr.mxu0 0.0
      %3932 = vmatpush1.xpose.msra.mxu0 0.0
      %3933 = vmatprep.subr.mxu0 0.0
      %3934 = vmatpush1.xpose.msra.mxu0 0.0
      %3935 = vmatprep.subr.mxu0 0.0
      %3936 = vmatpush1.xpose.msra.mxu0 0.0
      %3937 = vmatprep.subr.mxu0 0.0
      %3938 = vmatpush1.xpose.msra.mxu0 0.0
      %3939 = vmatprep.subr.mxu0 0.0
      %3940 = vmatpush1.xpose.msra.mxu0 0.0
      %3941 = vmatprep.subr.mxu0 0.0
      %3942 = vmatpush1.xpose.msra.mxu0 0.0
      %3943 = vmatprep.subr.mxu0 0.0
      %3944 = vmatpush1.xpose.msra.mxu0 0.0
      %3945 = vmatprep.subr.mxu0 0.0
      %3946 = vmatpush1.xpose.msra.mxu0 0.0
      %3947 = vmatprep.subr.mxu0 0.0
      %3948 = vmatpush1.xpose.msra.mxu0 0.0
      %3949 = vmatprep.subr.mxu0 0.0
      %3950 = vmatpush1.xpose.msra.mxu0 0.0
      %3951 = vmatprep.subr.mxu0 0.0
      %3952 = vmatpush1.xpose.msra.mxu0 0.0
      %3953 = vmatprep.subr.mxu0 0.0
      %3954 = vmatpush1.xpose.msra.mxu0 0.0
      %3955 = vmatprep.subr.mxu0 0.0
      %3956 = vmatpush1.xpose.msra.mxu0 0.0
      %3957 = vmatprep.subr.mxu0 0.0
      %3958 = vmatpush1.xpose.msra.mxu0 0.0
      %3959 = vmatprep.subr.mxu0 0.0
      %3960 = vmatpush1.xpose.msra.mxu0 0.0
      %3961 = vmatprep.mubr.f32.mxu0 0.0
      %3962 = vmatmul.mubr.f32.gmra.mrb[0].mxu0 %v3892
      %v3963 = vpop.f32.mrb[0].mxu0
      %v3964 = vadd.f32 %v3890, %v3963
      %v3965 = vpop.f32.mrb[0].mxu0
      %3966 = vdwg.mxu0
      %v3967 = vsel %vm818, %v3964, -inf
      %3968 = vmax.xlane.f32.xlu0 %v3967
      %v3969 = vpop.xlane.xlu0 %3968
      %v3970 = vsub.f32 %v3964, %v3969
      %v3971 = vmul.f32 %v3970, 1.442695
      %v3972 = vpow.pop %v3971
      %v3973 = vsel %vm818, %v3972, 0.0
      %3974 = vadd.xlane.f32.xlu0 %v3973
      %v3975 = vpop.xlane.xlu0 %3974
      %v3976 = vrcp.pop %v3975
      %v3977 = vmul.f32 %v3972, %v3976
      %3978 = vrot.lane.b32.xlu0 %v2922, 96
      %v3979 = vpop.permute.xlu0 %3978
      %v3982 = vsel %vm818, %v3977, 0
      %3984 = vmatprep.subr.mxu0 0.0
      %3985 = vmatpush1.msra.mxu0 %v3979
      %3986 = vmatprep.subr.mxu0 0.0
      %3987 = vmatpush1.msra.mxu0 0.0
      %3988 = vmatprep.subr.mxu0 0.0
      %3989 = vmatpush1.msra.mxu0 0.0
      %3990 = vmatprep.subr.mxu0 0.0
      %3991 = vmatpush1.msra.mxu0 0.0
      %3992 = vmatprep.subr.mxu0 0.0
      %3993 = vmatpush1.msra.mxu0 0.0
      %3994 = vmatprep.subr.mxu0 0.0
      %3995 = vmatpush1.msra.mxu0 0.0
      %3996 = vmatprep.subr.mxu0 0.0
      %3997 = vmatpush1.msra.mxu0 0.0
      %3998 = vmatprep.subr.mxu0 0.0
      %3999 = vmatpush1.msra.mxu0 0.0
      %4000 = vmatprep.subr.mxu0 0.0
      %4001 = vmatpush1.msra.mxu0 0.0
      %4002 = vmatprep.subr.mxu0 0.0
      %4003 = vmatpush1.msra.mxu0 0.0
      %4004 = vmatprep.subr.mxu0 0.0
      %4005 = vmatpush1.msra.mxu0 0.0
      %4006 = vmatprep.subr.mxu0 0.0
      %4007 = vmatpush1.msra.mxu0 0.0
      %4008 = vmatprep.subr.mxu0 0.0
      %4009 = vmatpush1.msra.mxu0 0.0
      %4010 = vmatprep.subr.mxu0 0.0
      %4011 = vmatpush1.msra.mxu0 0.0
      %4012 = vmatprep.subr.mxu0 0.0
      %4013 = vmatpush1.msra.mxu0 0.0
      %4014 = vmatprep.subr.mxu0 0.0
      %4015 = vmatpush1.msra.mxu0 0.0
      %4016 = vmatprep.subr.mxu0 0.0
      %4017 = vmatpush1.msra.mxu0 0.0
      %4018 = vmatprep.subr.mxu0 0.0
      %4019 = vmatpush1.msra.mxu0 0.0
      %4020 = vmatprep.subr.mxu0 0.0
      %4021 = vmatpush1.msra.mxu0 0.0
      %4022 = vmatprep.subr.mxu0 0.0
      %4023 = vmatpush1.msra.mxu0 0.0
      %4024 = vmatprep.subr.mxu0 0.0
      %4025 = vmatpush1.msra.mxu0 0.0
      %4026 = vmatprep.subr.mxu0 0.0
      %4027 = vmatpush1.msra.mxu0 0.0
      %4028 = vmatprep.subr.mxu0 0.0
      %4029 = vmatpush1.msra.mxu0 0.0
      %4030 = vmatprep.subr.mxu0 0.0
      %4031 = vmatpush1.msra.mxu0 0.0
      %4032 = vmatprep.subr.mxu0 0.0
      %4033 = vmatpush1.msra.mxu0 0.0
      %4034 = vmatprep.subr.mxu0 0.0
      %4035 = vmatpush1.msra.mxu0 0.0
      %4036 = vmatprep.subr.mxu0 0.0
      %4037 = vmatpush1.msra.mxu0 0.0
      %4038 = vmatprep.subr.mxu0 0.0
      %4039 = vmatpush1.msra.mxu0 0.0
      %4040 = vmatprep.subr.mxu0 0.0
      %4041 = vmatpush1.msra.mxu0 0.0
      %4042 = vmatprep.subr.mxu0 0.0
      %4043 = vmatpush1.msra.mxu0 0.0
      %4044 = vmatprep.subr.mxu0 0.0
      %4045 = vmatpush1.msra.mxu0 0.0
      %4046 = vmatprep.subr.mxu0 0.0
      %4047 = vmatpush1.msra.mxu0 0.0
      %4048 = vmatprep.mubr.f32.mxu0 0.0
      %4049 = vmatmul.mubr.f32.gmra.mrb[0].mxu0 %v3982
      %v4050 = vpop.f32.mrb[0].mxu0
      %v4051 = vadd.f32 0.0, %v4050
      %v4052 = vpop.f32.mrb[0].mxu0
      %4053 = vdwg.mxu0
      %4054 = vrot.lane.b32.xlu0 %v2835, 120
      %v4055 = vpop.permute.xlu0 %4054
      %4056 = vrot.lane.b32.xlu0 %v2922, 120
      %v4057 = vpop.permute.xlu0 %4056
      %v4058 = vsel %vm818, %v4055, 0
      %v4060 = vsel %vm818, %v4057, 0
      %4062 = vmatprep.subr.mxu0 0.0
      %4063 = vmatpush1.xpose.msra.mxu0 %v4060
      %4064 = vmatprep.subr.mxu0 0.0
      %4065 = vmatpush1.xpose.msra.mxu0 0.0
      %4066 = vmatprep.subr.mxu0 0.0
      %4067 = vmatpush1.xpose.msra.mxu0 0.0
      %4068 = vmatprep.subr.mxu0 0.0
      %4069 = vmatpush1.xpose.msra.mxu0 0.0
      %4070 = vmatprep.subr.mxu0 0.0
      %4071 = vmatpush1.xpose.msra.mxu0 0.0
      %4072 = vmatprep.subr.mxu0 0.0
      %4073 = vmatpush1.xpose.msra.mxu0 0.0
      %4074 = vmatprep.subr.mxu0 0.0
      %4075 = vmatpush1.xpose.msra.mxu0 0.0
      %4076 = vmatprep.subr.mxu0 0.0
      %4077 = vmatpush1.xpose.msra.mxu0 0.0
      %4078 = vmatprep.subr.mxu0 0.0
      %4079 = vmatpush1.xpose.msra.mxu0 0.0
      %4080 = vmatprep.subr.mxu0 0.0
      %4081 = vmatpush1.xpose.msra.mxu0 0.0
      %4082 = vmatprep.subr.mxu0 0.0
      %4083 = vmatpush1.xpose.msra.mxu0 0.0
      %4084 = vmatprep.subr.mxu0 0.0
      %4085 = vmatpush1.xpose.msra.mxu0 0.0
      %4086 = vmatprep.subr.mxu0 0.0
      %4087 = vmatpush1.xpose.msra.mxu0 0.0
      %4088 = vmatprep.subr.mxu0 0.0
      %4089 = vmatpush1.xpose.msra.mxu0 0.0
      %4090 = vmatprep.subr.mxu0 0.0
      %4091 = vmatpush1.xpose.msra.mxu0 0.0
      %4092 = vmatprep.subr.mxu0 0.0
      %4093 = vmatpush1.xpose.msra.mxu0 0.0
      %4094 = vmatprep.subr.mxu0 0.0
      %4095 = vmatpush1.xpose.msra.mxu0 0.0
      %4096 = vmatprep.subr.mxu0 0.0
      %4097 = vmatpush1.xpose.msra.mxu0 0.0
      %4098 = vmatprep.subr.mxu0 0.0
      %4099 = vmatpush1.xpose.msra.mxu0 0.0
      %4100 = vmatprep.subr.mxu0 0.0
      %4101 = vmatpush1.xpose.msra.mxu0 0.0
      %4102 = vmatprep.subr.mxu0 0.0
      %4103 = vmatpush1.xpose.msra.mxu0 0.0
      %4104 = vmatprep.subr.mxu0 0.0
      %4105 = vmatpush1.xpose.msra.mxu0 0.0
      %4106 = vmatprep.subr.mxu0 0.0
      %4107 = vmatpush1.xpose.msra.mxu0 0.0
      %4108 = vmatprep.subr.mxu0 0.0
      %4109 = vmatpush1.xpose.msra.mxu0 0.0
      %4110 = vmatprep.subr.mxu0 0.0
      %4111 = vmatpush1.xpose.msra.mxu0 0.0
      %4112 = vmatprep.subr.mxu0 0.0
      %4113 = vmatpush1.xpose.msra.mxu0 0.0
      %4114 = vmatprep.subr.mxu0 0.0
      %4115 = vmatpush1.xpose.msra.mxu0 0.0
      %4116 = vmatprep.subr.mxu0 0.0
      %4117 = vmatpush1.xpose.msra.mxu0 0.0
      %4118 = vmatprep.subr.mxu0 0.0
      %4119 = vmatpush1.xpose.msra.mxu0 0.0
      %4120 = vmatprep.subr.mxu0 0.0
      %4121 = vmatpush1.xpose.msra.mxu0 0.0
      %4122 = vmatprep.subr.mxu0 0.0
      %4123 = vmatpush1.xpose.msra.mxu0 0.0
      %4124 = vmatprep.subr.mxu0 0.0
      %4125 = vmatpush1.xpose.msra.mxu0 0.0
      %4126 = vmatprep.mubr.f32.mxu0 0.0
      %4127 = vmatmul.mubr.f32.gmra.mrb[0].mxu0 %v4058
      %v4128 = vpop.f32.mrb[0].mxu0
      %v4129 = vadd.f32 %v3890, %v4128
      %v4130 = vpop.f32.mrb[0].mxu0
      %4131 = vdwg.mxu0
      %v4132 = vsel %vm818, %v4129, -inf
      %4133 = vmax.xlane.f32.xlu0 %v4132
      %v4134 = vpop.xlane.xlu0 %4133
      %v4135 = vsub.f32 %v4129, %v4134
      %v4136 = vmul.f32 %v4135, 1.442695
      %v4137 = vpow.pop %v4136
      %v4138 = vsel %vm818, %v4137, 0.0
      %4139 = vadd.xlane.f32.xlu0 %v4138
      %v4140 = vpop.xlane.xlu0 %4139
      %v4141 = vrcp.pop %v4140
      %v4142 = vmul.f32 %v4137, %v4141
      %4143 = vrot.lane.b32.xlu0 %v2922, 88
      %v4144 = vpop.permute.xlu0 %4143
      %v4147 = vsel %vm818, %v4142, 0
      %4149 = vmatprep.subr.mxu0 0.0
      %4150 = vmatpush1.msra.mxu0 %v4144
      %4151 = vmatprep.subr.mxu0 0.0
      %4152 = vmatpush1.msra.mxu0 0.0
      %4153 = vmatprep.subr.mxu0 0.0
      %4154 = vmatpush1.msra.mxu0 0.0
      %4155 = vmatprep.subr.mxu0 0.0
      %4156 = vmatpush1.msra.mxu0 0.0
      %4157 = vmatprep.subr.mxu0 0.0
      %4158 = vmatpush1.msra.mxu0 0.0
      %4159 = vmatprep.subr.mxu0 0.0
      %4160 = vmatpush1.msra.mxu0 0.0
      %4161 = vmatprep.subr.mxu0 0.0
      %4162 = vmatpush1.msra.mxu0 0.0
      %4163 = vmatprep.subr.mxu0 0.0
      %4164 = vmatpush1.msra.mxu0 0.0
      %4165 = vmatprep.subr.mxu0 0.0
      %4166 = vmatpush1.msra.mxu0 0.0
      %4167 = vmatprep.subr.mxu0 0.0
      %4168 = vmatpush1.msra.mxu0 0.0
      %4169 = vmatprep.subr.mxu0 0.0
      %4170 = vmatpush1.msra.mxu0 0.0
      %4171 = vmatprep.subr.mxu0 0.0
      %4172 = vmatpush1.msra.mxu0 0.0
      %4173 = vmatprep.subr.mxu0 0.0
      %4174 = vmatpush1.msra.mxu0 0.0
      %4175 = vmatprep.subr.mxu0 0.0
      %4176 = vmatpush1.msra.mxu0 0.0
      %4177 = vmatprep.subr.mxu0 0.0
      %4178 = vmatpush1.msra.mxu0 0.0
      %4179 = vmatprep.subr.mxu0 0.0
      %4180 = vmatpush1.msra.mxu0 0.0
      %4181 = vmatprep.subr.mxu0 0.0
      %4182 = vmatpush1.msra.mxu0 0.0
      %4183 = vmatprep.subr.mxu0 0.0
      %4184 = vmatpush1.msra.mxu0 0.0
      %4185 = vmatprep.subr.mxu0 0.0
      %4186 = vmatpush1.msra.mxu0 0.0
      %4187 = vmatprep.subr.mxu0 0.0
      %4188 = vmatpush1.msra.mxu0 0.0
      %4189 = vmatprep.subr.mxu0 0.0
      %4190 = vmatpush1.msra.mxu0 0.0
      %4191 = vmatprep.subr.mxu0 0.0
      %4192 = vmatpush1.msra.mxu0 0.0
      %4193 = vmatprep.subr.mxu0 0.0
      %4194 = vmatpush1.msra.mxu0 0.0
      %4195 = vmatprep.subr.mxu0 0.0
      %4196 = vmatpush1.msra.mxu0 0.0
      %4197 = vmatprep.subr.mxu0 0.0
      %4198 = vmatpush1.msra.mxu0 0.0
      %4199 = vmatprep.subr.mxu0 0.0
      %4200 = vmatpush1.msra.mxu0 0.0
      %4201 = vmatprep.subr.mxu0 0.0
      %4202 = vmatpush1.msra.mxu0 0.0
      %4203 = vmatprep.subr.mxu0 0.0
      %4204 = vmatpush1.msra.mxu0 0.0
      %4205 = vmatprep.subr.mxu0 0.0
      %4206 = vmatpush1.msra.mxu0 0.0
      %4207 = vmatprep.subr.mxu0 0.0
      %4208 = vmatpush1.msra.mxu0 0.0
      %4209 = vmatprep.subr.mxu0 0.0
      %4210 = vmatpush1.msra.mxu0 0.0
      %4211 = vmatprep.subr.mxu0 0.0
      %4212 = vmatpush1.msra.mxu0 0.0
      %4213 = vmatprep.mubr.f32.mxu0 0.0
      %4214 = vmatmul.mubr.f32.gmra.mrb[0].mxu0 %v4147
      %v4215 = vpop.f32.mrb[0].mxu0
      %v4216 = vadd.f32 0.0, %v4215
      %v4217 = vpop.f32.mrb[0].mxu0
      %4218 = vdwg.mxu0
      %v4220 = vsel %vm818, %v4216, 0
      %4222 = vmatprep.subr.mxu0 0.0
      %4223 = vmatpush1.msra.mxu0 %v2927
      %4224 = vmatprep.subr.mxu0 0.0
      %4225 = vmatpush1.msra.mxu0 0.0
      %4226 = vmatprep.subr.mxu0 0.0
      %4227 = vmatpush1.msra.mxu0 0.0
      %4228 = vmatprep.subr.mxu0 0.0
      %4229 = vmatpush1.msra.mxu0 0.0
      %4230 = vmatprep.subr.mxu0 0.0
      %4231 = vmatpush1.msra.mxu0 0.0
      %4232 = vmatprep.subr.mxu0 0.0
      %4233 = vmatpush1.msra.mxu0 0.0
      %4234 = vmatprep.subr.mxu0 0.0
      %4235 = vmatpush1.msra.mxu0 0.0
      %4236 = vmatprep.subr.mxu0 0.0
      %4237 = vmatpush1.msra.mxu0 0.0
      %4238 = vmatprep.subr.mxu0 0.0
      %4239 = vmatpush1.msra.mxu0 0.0
      %4240 = vmatprep.subr.mxu0 0.0
      %4241 = vmatpush1.msra.mxu0 0.0
      %4242 = vmatprep.subr.mxu0 0.0
      %4243 = vmatpush1.msra.mxu0 0.0
      %4244 = vmatprep.subr.mxu0 0.0
      %4245 = vmatpush1.msra.mxu0 0.0
      %4246 = vmatprep.subr.mxu0 0.0
      %4247 = vmatpush1.msra.mxu0 0.0
      %4248 = vmatprep.subr.mxu0 0.0
      %4249 = vmatpush1.msra.mxu0 0.0
      %4250 = vmatprep.subr.mxu0 0.0
      %4251 = vmatpush1.msra.mxu0 0.0
      %4252 = vmatprep.subr.mxu0 0.0
      %4253 = vmatpush1.msra.mxu0 0.0
      %4254 = vmatprep.subr.mxu0 0.0
      %4255 = vmatpush1.msra.mxu0 0.0
      %4256 = vmatprep.subr.mxu0 0.0
      %4257 = vmatpush1.msra.mxu0 0.0
      %4258 = vmatprep.subr.mxu0 0.0
      %4259 = vmatpush1.msra.mxu0 0.0
      %4260 = vmatprep.subr.mxu0 0.0
      %4261 = vmatpush1.msra.mxu0 0.0
      %4262 = vmatprep.subr.mxu0 0.0
      %4263 = vmatpush1.msra.mxu0 0.0
      %4264 = vmatprep.subr.mxu0 0.0
      %4265 = vmatpush1.msra.mxu0 0.0
      %4266 = vmatprep.subr.mxu0 0.0
      %4267 = vmatpush1.msra.mxu0 0.0
      %4268 = vmatprep.subr.mxu0 0.0
      %4269 = vmatpush1.msra.mxu0 0.0
      %4270 = vmatprep.subr.mxu0 0.0
      %4271 = vmatpush1.msra.mxu0 0.0
      %4272 = vmatprep.subr.mxu0 0.0
      %4273 = vmatpush1.msra.mxu0 0.0
      %4274 = vmatprep.subr.mxu0 0.0
      %4275 = vmatpush1.msra.mxu0 0.0
      %4276 = vmatprep.subr.mxu0 0.0
      %4277 = vmatpush1.msra.mxu0 0.0
      %4278 = vmatprep.subr.mxu0 0.0
      %4279 = vmatpush1.msra.mxu0 0.0
      %4280 = vmatprep.subr.mxu0 0.0
      %4281 = vmatpush1.msra.mxu0 0.0
      %4282 = vmatprep.subr.mxu0 0.0
      %4283 = vmatpush1.msra.mxu0 0.0
      %4284 = vmatprep.subr.mxu0 0.0
      %4285 = vmatpush1.msra.mxu0 0.0
      %4286 = vmatprep.mubr.f32.mxu0 0.0
      %4287 = vmatmul.mubr.f32.gmra.mrb[0].mxu0 %v4220
      %v4288 = vpop.f32.mrb[0].mxu0
      %v4289 = vadd.f32 0.0, %v4288
      %v4290 = vpop.f32.mrb[0].mxu0
      %4291 = vdwg.mxu0
      %v4293 = vsel %vm818, %v4051, 0
      %4295 = vmatprep.subr.mxu0 0.0
      %4296 = vmatpush1.msra.mxu0 %v2926
      %4297 = vmatprep.subr.mxu0 0.0
      %4298 = vmatpush1.msra.mxu0 0.0
      %4299 = vmatprep.subr.mxu0 0.0
      %4300 = vmatpush1.msra.mxu0 0.0
      %4301 = vmatprep.subr.mxu0 0.0
      %4302 = vmatpush1.msra.mxu0 0.0
      %4303 = vmatprep.subr.mxu0 0.0
      %4304 = vmatpush1.msra.mxu0 0.0
      %4305 = vmatprep.subr.mxu0 0.0
      %4306 = vmatpush1.msra.mxu0 0.0
      %4307 = vmatprep.subr.mxu0 0.0
      %4308 = vmatpush1.msra.mxu0 0.0
      %4309 = vmatprep.subr.mxu0 0.0
      %4310 = vmatpush1.msra.mxu0 0.0
      %4311 = vmatprep.subr.mxu0 0.0
      %4312 = vmatpush1.msra.mxu0 0.0
      %4313 = vmatprep.subr.mxu0 0.0
      %4314 = vmatpush1.msra.mxu0 0.0
      %4315 = vmatprep.subr.mxu0 0.0
      %4316 = vmatpush1.msra.mxu0 0.0
      %4317 = vmatprep.subr.mxu0 0.0
      %4318 = vmatpush1.msra.mxu0 0.0
      %4319 = vmatprep.subr.mxu0 0.0
      %4320 = vmatpush1.msra.mxu0 0.0
      %4321 = vmatprep.subr.mxu0 0.0
      %4322 = vmatpush1.msra.mxu0 0.0
      %4323 = vmatprep.subr.mxu0 0.0
      %4324 = vmatpush1.msra.mxu0 0.0
      %4325 = vmatprep.subr.mxu0 0.0
      %4326 = vmatpush1.msra.mxu0 0.0
      %4327 = vmatprep.subr.mxu0 0.0
      %4328 = vmatpush1.msra.mxu0 0.0
      %4329 = vmatprep.subr.mxu0 0.0
      %4330 = vmatpush1.msra.mxu0 0.0
      %4331 = vmatprep.subr.mxu0 0.0
      %4332 = vmatpush1.msra.mxu0 0.0
      %4333 = vmatprep.subr.mxu0 0.0
      %4334 = vmatpush1.msra.mxu0 0.0
      %4335 = vmatprep.subr.mxu0 0.0
      %4336 = vmatpush1.msra.mxu0 0.0
      %4337 = vmatprep.subr.mxu0 0.0
      %4338 = vmatpush1.msra.mxu0 0.0
      %4339 = vmatprep.subr.mxu0 0.0
      %4340 = vmatpush1.msra.mxu0 0.0
      %4341 = vmatprep.subr.mxu0 0.0
      %4342 = vmatpush1.msra.mxu0 0.0
      %4343 = vmatprep.subr.mxu0 0.0
      %4344 = vmatpush1.msra.mxu0 0.0
      %4345 = vmatprep.subr.mxu0 0.0
      %4346 = vmatpush1.msra.mxu0 0.0
      %4347 = vmatprep.subr.mxu0 0.0
      %4348 = vmatpush1.msra.mxu0 0.0
      %4349 = vmatprep.subr.mxu0 0.0
      %4350 = vmatpush1.msra.mxu0 0.0
      %4351 = vmatprep.subr.mxu0 0.0
      %4352 = vmatpush1.msra.mxu0 0.0
      %4353 = vmatprep.subr.mxu0 0.0
      %4354 = vmatpush1.msra.mxu0 0.0
      %4355 = vmatprep.subr.mxu0 0.0
      %4356 = vmatpush1.msra.mxu0 0.0
      %4357 = vmatprep.subr.mxu0 0.0
      %4358 = vmatpush1.msra.mxu0 0.0
      %4359 = vmatprep.mubr.f32.mxu0 0.0
      %4360 = vmatmul.mubr.f32.gmra.mrb[0].mxu0 %v4293
      %v4361 = vpop.f32.mrb[0].mxu0
      %v4362 = vadd.f32 %v4289, %v4361
      %v4363 = vpop.f32.mrb[0].mxu0
      %4364 = vdwg.mxu0
      %4365 = vrot.lane.b32.xlu0 %v2835, 112
      %v4366 = vpop.permute.xlu0 %4365
      %4367 = vrot.lane.b32.xlu0 %v2922, 112
      %v4368 = vpop.permute.xlu0 %4367
      %v4369 = vsel %vm818, %v4366, 0
      %v4371 = vsel %vm818, %v4368, 0
      %4373 = vmatprep.subr.mxu0 0.0
      %4374 = vmatpush1.xpose.msra.mxu0 %v4371
      %4375 = vmatprep.subr.mxu0 0.0
      %4376 = vmatpush1.xpose.msra.mxu0 0.0
      %4377 = vmatprep.subr.mxu0 0.0
      %4378 = vmatpush1.xpose.msra.mxu0 0.0
      %4379 = vmatprep.subr.mxu0 0.0
      %4380 = vmatpush1.xpose.msra.mxu0 0.0
      %4381 = vmatprep.subr.mxu0 0.0
      %4382 = vmatpush1.xpose.msra.mxu0 0.0
      %4383 = vmatprep.subr.mxu0 0.0
      %4384 = vmatpush1.xpose.msra.mxu0 0.0
      %4385 = vmatprep.subr.mxu0 0.0
      %4386 = vmatpush1.xpose.msra.mxu0 0.0
      %4387 = vmatprep.subr.mxu0 0.0
      %4388 = vmatpush1.xpose.msra.mxu0 0.0
      %4389 = vmatprep.subr.mxu0 0.0
      %4390 = vmatpush1.xpose.msra.mxu0 0.0
      %4391 = vmatprep.subr.mxu0 0.0
      %4392 = vmatpush1.xpose.msra.mxu0 0.0
      %4393 = vmatprep.subr.mxu0 0.0
      %4394 = vmatpush1.xpose.msra.mxu0 0.0
      %4395 = vmatprep.subr.mxu0 0.0
      %4396 = vmatpush1.xpose.msra.mxu0 0.0
      %4397 = vmatprep.subr.mxu0 0.0
      %4398 = vmatpush1.xpose.msra.mxu0 0.0
      %4399 = vmatprep.subr.mxu0 0.0
      %4400 = vmatpush1.xpose.msra.mxu0 0.0
      %4401 = vmatprep.subr.mxu0 0.0
      %4402 = vmatpush1.xpose.msra.mxu0 0.0
      %4403 = vmatprep.subr.mxu0 0.0
      %4404 = vmatpush1.xpose.msra.mxu0 0.0
      %4405 = vmatprep.subr.mxu0 0.0
      %4406 = vmatpush1.xpose.msra.mxu0 0.0
      %4407 = vmatprep.subr.mxu0 0.0
      %4408 = vmatpush1.xpose.msra.mxu0 0.0
      %4409 = vmatprep.subr.mxu0 0.0
      %4410 = vmatpush1.xpose.msra.mxu0 0.0
      %4411 = vmatprep.subr.mxu0 0.0
      %4412 = vmatpush1.xpose.msra.mxu0 0.0
      %4413 = vmatprep.subr.mxu0 0.0
      %4414 = vmatpush1.xpose.msra.mxu0 0.0
      %4415 = vmatprep.subr.mxu0 0.0
      %4416 = vmatpush1.xpose.msra.mxu0 0.0
      %4417 = vmatprep.subr.mxu0 0.0
      %4418 = vmatpush1.xpose.msra.mxu0 0.0
      %4419 = vmatprep.subr.mxu0 0.0
      %4420 = vmatpush1.xpose.msra.mxu0 0.0
      %4421 = vmatprep.subr.mxu0 0.0
      %4422 = vmatpush1.xpose.msra.mxu0 0.0
      %4423 = vmatprep.subr.mxu0 0.0
      %4424 = vmatpush1.xpose.msra.mxu0 0.0
      %4425 = vmatprep.subr.mxu0 0.0
      %4426 = vmatpush1.xpose.msra.mxu0 0.0
      %4427 = vmatprep.subr.mxu0 0.0
      %4428 = vmatpush1.xpose.msra.mxu0 0.0
      %4429 = vmatprep.subr.mxu0 0.0
      %4430 = vmatpush1.xpose.msra.mxu0 0.0
      %4431 = vmatprep.subr.mxu0 0.0
      %4432 = vmatpush1.xpose.msra.mxu0 0.0
      %4433 = vmatprep.subr.mxu0 0.0
      %4434 = vmatpush1.xpose.msra.mxu0 0.0
      %4435 = vmatprep.subr.mxu0 0.0
      %4436 = vmatpush1.xpose.msra.mxu0 0.0
      %4437 = vmatprep.mubr.f32.mxu0 0.0
      %4438 = vmatmul.mubr.f32.gmra.mrb[0].mxu0 %v4369
      %v4439 = vpop.f32.mrb[0].mxu0
      %v4440 = vadd.f32 %v3890, %v4439
      %v4441 = vpop.f32.mrb[0].mxu0
      %4442 = vdwg.mxu0
      %v4443 = vsel %vm818, %v4440, -inf
      %4444 = vmax.xlane.f32.xlu0 %v4443
      %v4445 = vpop.xlane.xlu0 %4444
      %v4446 = vsub.f32 %v4440, %v4445
      %v4447 = vmul.f32 %v4446, 1.442695
      %v4448 = vpow.pop %v4447
      %v4449 = vsel %vm818, %v4448, 0.0
      %4450 = vadd.xlane.f32.xlu0 %v4449
      %v4451 = vpop.xlane.xlu0 %4450
      %v4452 = vrcp.pop %v4451
      %v4453 = vmul.f32 %v4448, %v4452
      %4454 = vrot.lane.b32.xlu0 %v2922, 80
      %v4455 = vpop.permute.xlu0 %4454
      %v4458 = vsel %vm818, %v4453, 0
      %4460 = vmatprep.subr.mxu0 0.0
      %4461 = vmatpush1.msra.mxu0 %v4455
      %4462 = vmatprep.subr.mxu0 0.0
      %4463 = vmatpush1.msra.mxu0 0.0
      %4464 = vmatprep.subr.mxu0 0.0
      %4465 = vmatpush1.msra.mxu0 0.0
      %4466 = vmatprep.subr.mxu0 0.0
      %4467 = vmatpush1.msra.mxu0 0.0
      %4468 = vmatprep.subr.mxu0 0.0
      %4469 = vmatpush1.msra.mxu0 0.0
      %4470 = vmatprep.subr.mxu0 0.0
      %4471 = vmatpush1.msra.mxu0 0.0
      %4472 = vmatprep.subr.mxu0 0.0
      %4473 = vmatpush1.msra.mxu0 0.0
      %4474 = vmatprep.subr.mxu0 0.0
      %4475 = vmatpush1.msra.mxu0 0.0
      %4476 = vmatprep.subr.mxu0 0.0
      %4477 = vmatpush1.msra.mxu0 0.0
      %4478 = vmatprep.subr.mxu0 0.0
      %4479 = vmatpush1.msra.mxu0 0.0
      %4480 = vmatprep.subr.mxu0 0.0
      %4481 = vmatpush1.msra.mxu0 0.0
      %4482 = vmatprep.subr.mxu0 0.0
      %4483 = vmatpush1.msra.mxu0 0.0
      %4484 = vmatprep.subr.mxu0 0.0
      %4485 = vmatpush1.msra.mxu0 0.0
      %4486 = vmatprep.subr.mxu0 0.0
      %4487 = vmatpush1.msra.mxu0 0.0
      %4488 = vmatprep.subr.mxu0 0.0
      %4489 = vmatpush1.msra.mxu0 0.0
      %4490 = vmatprep.subr.mxu0 0.0
      %4491 = vmatpush1.msra.mxu0 0.0
      %4492 = vmatprep.subr.mxu0 0.0
      %4493 = vmatpush1.msra.mxu0 0.0
      %4494 = vmatprep.subr.mxu0 0.0
      %4495 = vmatpush1.msra.mxu0 0.0
      %4496 = vmatprep.subr.mxu0 0.0
      %4497 = vmatpush1.msra.mxu0 0.0
      %4498 = vmatprep.subr.mxu0 0.0
      %4499 = vmatpush1.msra.mxu0 0.0
      %4500 = vmatprep.subr.mxu0 0.0
      %4501 = vmatpush1.msra.mxu0 0.0
      %4502 = vmatprep.subr.mxu0 0.0
      %4503 = vmatpush1.msra.mxu0 0.0
      %4504 = vmatprep.subr.mxu0 0.0
      %4505 = vmatpush1.msra.mxu0 0.0
      %4506 = vmatprep.subr.mxu0 0.0
      %4507 = vmatpush1.msra.mxu0 0.0
      %4508 = vmatprep.subr.mxu0 0.0
      %4509 = vmatpush1.msra.mxu0 0.0
      %4510 = vmatprep.subr.mxu0 0.0
      %4511 = vmatpush1.msra.mxu0 0.0
      %4512 = vmatprep.subr.mxu0 0.0
      %4513 = vmatpush1.msra.mxu0 0.0
      %4514 = vmatprep.subr.mxu0 0.0
      %4515 = vmatpush1.msra.mxu0 0.0
      %4516 = vmatprep.subr.mxu0 0.0
      %4517 = vmatpush1.msra.mxu0 0.0
      %4518 = vmatprep.subr.mxu0 0.0
      %4519 = vmatpush1.msra.mxu0 0.0
      %4520 = vmatprep.subr.mxu0 0.0
      %4521 = vmatpush1.msra.mxu0 0.0
      %4522 = vmatprep.subr.mxu0 0.0
      %4523 = vmatpush1.msra.mxu0 0.0
      %4524 = vmatprep.mubr.f32.mxu0 0.0
      %4525 = vmatmul.mubr.f32.gmra.mrb[0].mxu0 %v4458
      %v4526 = vpop.f32.mrb[0].mxu0
      %v4527 = vadd.f32 0.0, %v4526
      %v4528 = vpop.f32.mrb[0].mxu0
      %4529 = vdwg.mxu0
      %v4531 = vsel %vm818, %v4527, 0
      %4533 = vmatprep.subr.mxu0 0.0
      %4534 = vmatpush1.msra.mxu0 %v2928
      %4535 = vmatprep.subr.mxu0 0.0
      %4536 = vmatpush1.msra.mxu0 0.0
      %4537 = vmatprep.subr.mxu0 0.0
      %4538 = vmatpush1.msra.mxu0 0.0
      %4539 = vmatprep.subr.mxu0 0.0
      %4540 = vmatpush1.msra.mxu0 0.0
      %4541 = vmatprep.subr.mxu0 0.0
      %4542 = vmatpush1.msra.mxu0 0.0
      %4543 = vmatprep.subr.mxu0 0.0
      %4544 = vmatpush1.msra.mxu0 0.0
      %4545 = vmatprep.subr.mxu0 0.0
      %4546 = vmatpush1.msra.mxu0 0.0
      %4547 = vmatprep.subr.mxu0 0.0
      %4548 = vmatpush1.msra.mxu0 0.0
      %4549 = vmatprep.subr.mxu0 0.0
      %4550 = vmatpush1.msra.mxu0 0.0
      %4551 = vmatprep.subr.mxu0 0.0
      %4552 = vmatpush1.msra.mxu0 0.0
      %4553 = vmatprep.subr.mxu0 0.0
      %4554 = vmatpush1.msra.mxu0 0.0
      %4555 = vmatprep.subr.mxu0 0.0
      %4556 = vmatpush1.msra.mxu0 0.0
      %4557 = vmatprep.subr.mxu0 0.0
      %4558 = vmatpush1.msra.mxu0 0.0
      %4559 = vmatprep.subr.mxu0 0.0
      %4560 = vmatpush1.msra.mxu0 0.0
      %4561 = vmatprep.subr.mxu0 0.0
      %4562 = vmatpush1.msra.mxu0 0.0
      %4563 = vmatprep.subr.mxu0 0.0
      %4564 = vmatpush1.msra.mxu0 0.0
      %4565 = vmatprep.subr.mxu0 0.0
      %4566 = vmatpush1.msra.mxu0 0.0
      %4567 = vmatprep.subr.mxu0 0.0
      %4568 = vmatpush1.msra.mxu0 0.0
      %4569 = vmatprep.subr.mxu0 0.0
      %4570 = vmatpush1.msra.mxu0 0.0
      %4571 = vmatprep.subr.mxu0 0.0
      %4572 = vmatpush1.msra.mxu0 0.0
      %4573 = vmatprep.subr.mxu0 0.0
      %4574 = vmatpush1.msra.mxu0 0.0
      %4575 = vmatprep.subr.mxu0 0.0
      %4576 = vmatpush1.msra.mxu0 0.0
      %4577 = vmatprep.subr.mxu0 0.0
      %4578 = vmatpush1.msra.mxu0 0.0
      %4579 = vmatprep.subr.mxu0 0.0
      %4580 = vmatpush1.msra.mxu0 0.0
      %4581 = vmatprep.subr.mxu0 0.0
      %4582 = vmatpush1.msra.mxu0 0.0
      %4583 = vmatprep.subr.mxu0 0.0
      %4584 = vmatpush1.msra.mxu0 0.0
      %4585 = vmatprep.subr.mxu0 0.0
      %4586 = vmatpush1.msra.mxu0 0.0
      %4587 = vmatprep.subr.mxu0 0.0
      %4588 = vmatpush1.msra.mxu0 0.0
      %4589 = vmatprep.subr.mxu0 0.0
      %4590 = vmatpush1.msra.mxu0 0.0
      %4591 = vmatprep.subr.mxu0 0.0
      %4592 = vmatpush1.msra.mxu0 0.0
      %4593 = vmatprep.subr.mxu0 0.0
      %4594 = vmatpush1.msra.mxu0 0.0
      %4595 = vmatprep.subr.mxu0 0.0
      %4596 = vmatpush1.msra.mxu0 0.0
      %4597 = vmatprep.mubr.f32.mxu0 0.0
      %4598 = vmatmul.mubr.f32.gmra.mrb[0].mxu0 %v4531
      %v4599 = vpop.f32.mrb[0].mxu0
      %v4600 = vadd.f32 0.0, %v4599
      %v4601 = vpop.f32.mrb[0].mxu0
      %4602 = vdwg.mxu0
      %v4603 = vadd.f32 %v4362, %v4600
      %4604 = vrot.lane.b32.xlu0 %v2835, 104
      %v4605 = vpop.permute.xlu0 %4604
      %4606 = vrot.lane.b32.xlu0 %v2922, 104
      %v4607 = vpop.permute.xlu0 %4606
      %v4608 = vsel %vm818, %v4605, 0
      %v4610 = vsel %vm818, %v4607, 0
      %4612 = vmatprep.subr.mxu0 0.0
      %4613 = vmatpush1.xpose.msra.mxu0 %v4610
      %4614 = vmatprep.subr.mxu0 0.0
      %4615 = vmatpush1.xpose.msra.mxu0 0.0
      %4616 = vmatprep.subr.mxu0 0.0
      %4617 = vmatpush1.xpose.msra.mxu0 0.0
      %4618 = vmatprep.subr.mxu0 0.0
      %4619 = vmatpush1.xpose.msra.mxu0 0.0
      %4620 = vmatprep.subr.mxu0 0.0
      %4621 = vmatpush1.xpose.msra.mxu0 0.0
      %4622 = vmatprep.subr.mxu0 0.0
      %4623 = vmatpush1.xpose.msra.mxu0 0.0
      %4624 = vmatprep.subr.mxu0 0.0
      %4625 = vmatpush1.xpose.msra.mxu0 0.0
      %4626 = vmatprep.subr.mxu0 0.0
      %4627 = vmatpush1.xpose.msra.mxu0 0.0
      %4628 = vmatprep.subr.mxu0 0.0
      %4629 = vmatpush1.xpose.msra.mxu0 0.0
      %4630 = vmatprep.subr.mxu0 0.0
      %4631 = vmatpush1.xpose.msra.mxu0 0.0
      %4632 = vmatprep.subr.mxu0 0.0
      %4633 = vmatpush1.xpose.msra.mxu0 0.0
      %4634 = vmatprep.subr.mxu0 0.0
      %4635 = vmatpush1.xpose.msra.mxu0 0.0
      %4636 = vmatprep.subr.mxu0 0.0
      %4637 = vmatpush1.xpose.msra.mxu0 0.0
      %4638 = vmatprep.subr.mxu0 0.0
      %4639 = vmatpush1.xpose.msra.mxu0 0.0
      %4640 = vmatprep.subr.mxu0 0.0
      %4641 = vmatpush1.xpose.msra.mxu0 0.0
      %4642 = vmatprep.subr.mxu0 0.0
      %4643 = vmatpush1.xpose.msra.mxu0 0.0
      %4644 = vmatprep.subr.mxu0 0.0
      %4645 = vmatpush1.xpose.msra.mxu0 0.0
      %4646 = vmatprep.subr.mxu0 0.0
      %4647 = vmatpush1.xpose.msra.mxu0 0.0
      %4648 = vmatprep.subr.mxu0 0.0
      %4649 = vmatpush1.xpose.msra.mxu0 0.0
      %4650 = vmatprep.subr.mxu0 0.0
      %4651 = vmatpush1.xpose.msra.mxu0 0.0
      %4652 = vmatprep.subr.mxu0 0.0
      %4653 = vmatpush1.xpose.msra.mxu0 0.0
      %4654 = vmatprep.subr.mxu0 0.0
      %4655 = vmatpush1.xpose.msra.mxu0 0.0
      %4656 = vmatprep.subr.mxu0 0.0
      %4657 = vmatpush1.xpose.msra.mxu0 0.0
      %4658 = vmatprep.subr.mxu0 0.0
      %4659 = vmatpush1.xpose.msra.mxu0 0.0
      %4660 = vmatprep.subr.mxu0 0.0
      %4661 = vmatpush1.xpose.msra.mxu0 0.0
      %4662 = vmatprep.subr.mxu0 0.0
      %4663 = vmatpush1.xpose.msra.mxu0 0.0
      %4664 = vmatprep.subr.mxu0 0.0
      %4665 = vmatpush1.xpose.msra.mxu0 0.0
      %4666 = vmatprep.subr.mxu0 0.0
      %4667 = vmatpush1.xpose.msra.mxu0 0.0
      %4668 = vmatprep.subr.mxu0 0.0
      %4669 = vmatpush1.xpose.msra.mxu0 0.0
      %4670 = vmatprep.subr.mxu0 0.0
      %4671 = vmatpush1.xpose.msra.mxu0 0.0
      %4672 = vmatprep.subr.mxu0 0.0
      %4673 = vmatpush1.xpose.msra.mxu0 0.0
      %4674 = vmatprep.subr.mxu0 0.0
      %4675 = vmatpush1.xpose.msra.mxu0 0.0
      %4676 = vmatprep.mubr.f32.mxu0 0.0
      %4677 = vmatmul.mubr.f32.gmra.mrb[0].mxu0 %v4608
      %v4678 = vpop.f32.mrb[0].mxu0
      %v4679 = vadd.f32 %v3890, %v4678
      %v4680 = vpop.f32.mrb[0].mxu0
      %4681 = vdwg.mxu0
      %v4682 = vsel %vm818, %v4679, -inf
      %4683 = vmax.xlane.f32.xlu0 %v4682
      %v4684 = vpop.xlane.xlu0 %4683
      %v4685 = vsub.f32 %v4679, %v4684
      %v4686 = vmul.f32 %v4685, 1.442695
      %v4687 = vpow.pop %v4686
      %v4688 = vsel %vm818, %v4687, 0.0
      %4689 = vadd.xlane.f32.xlu0 %v4688
      %v4690 = vpop.xlane.xlu0 %4689
      %v4691 = vrcp.pop %v4690
      %v4692 = vmul.f32 %v4687, %v4691
      %4693 = vrot.lane.b32.xlu0 %v2922, 72
      %v4694 = vpop.permute.xlu0 %4693
      %v4697 = vsel %vm818, %v4692, 0
      %4699 = vmatprep.subr.mxu0 0.0
      %4700 = vmatpush1.msra.mxu0 %v4694
      %4701 = vmatprep.subr.mxu0 0.0
      %4702 = vmatpush1.msra.mxu0 0.0
      %4703 = vmatprep.subr.mxu0 0.0
      %4704 = vmatpush1.msra.mxu0 0.0
      %4705 = vmatprep.subr.mxu0 0.0
      %4706 = vmatpush1.msra.mxu0 0.0
      %4707 = vmatprep.subr.mxu0 0.0
      %4708 = vmatpush1.msra.mxu0 0.0
      %4709 = vmatprep.subr.mxu0 0.0
      %4710 = vmatpush1.msra.mxu0 0.0
      %4711 = vmatprep.subr.mxu0 0.0
      %4712 = vmatpush1.msra.mxu0 0.0
      %4713 = vmatprep.subr.mxu0 0.0
      %4714 = vmatpush1.msra.mxu0 0.0
      %4715 = vmatprep.subr.mxu0 0.0
      %4716 = vmatpush1.msra.mxu0 0.0
      %4717 = vmatprep.subr.mxu0 0.0
      %4718 = vmatpush1.msra.mxu0 0.0
      %4719 = vmatprep.subr.mxu0 0.0
      %4720 = vmatpush1.msra.mxu0 0.0
      %4721 = vmatprep.subr.mxu0 0.0
      %4722 = vmatpush1.msra.mxu0 0.0
      %4723 = vmatprep.subr.mxu0 0.0
      %4724 = vmatpush1.msra.mxu0 0.0
      %4725 = vmatprep.subr.mxu0 0.0
      %4726 = vmatpush1.msra.mxu0 0.0
      %4727 = vmatprep.subr.mxu0 0.0
      %4728 = vmatpush1.msra.mxu0 0.0
      %4729 = vmatprep.subr.mxu0 0.0
      %4730 = vmatpush1.msra.mxu0 0.0
      %4731 = vmatprep.subr.mxu0 0.0
      %4732 = vmatpush1.msra.mxu0 0.0
      %4733 = vmatprep.subr.mxu0 0.0
      %4734 = vmatpush1.msra.mxu0 0.0
      %4735 = vmatprep.subr.mxu0 0.0
      %4736 = vmatpush1.msra.mxu0 0.0
      %4737 = vmatprep.subr.mxu0 0.0
      %4738 = vmatpush1.msra.mxu0 0.0
      %4739 = vmatprep.subr.mxu0 0.0
      %4740 = vmatpush1.msra.mxu0 0.0
      %4741 = vmatprep.subr.mxu0 0.0
      %4742 = vmatpush1.msra.mxu0 0.0
      %4743 = vmatprep.subr.mxu0 0.0
      %4744 = vmatpush1.msra.mxu0 0.0
      %4745 = vmatprep.subr.mxu0 0.0
      %4746 = vmatpush1.msra.mxu0 0.0
      %4747 = vmatprep.subr.mxu0 0.0
      %4748 = vmatpush1.msra.mxu0 0.0
      %4749 = vmatprep.subr.mxu0 0.0
      %4750 = vmatpush1.msra.mxu0 0.0
      %4751 = vmatprep.subr.mxu0 0.0
      %4752 = vmatpush1.msra.mxu0 0.0
      %4753 = vmatprep.subr.mxu0 0.0
      %4754 = vmatpush1.msra.mxu0 0.0
      %4755 = vmatprep.subr.mxu0 0.0
      %4756 = vmatpush1.msra.mxu0 0.0
      %4757 = vmatprep.subr.mxu0 0.0
      %4758 = vmatpush1.msra.mxu0 0.0
      %4759 = vmatprep.subr.mxu0 0.0
      %4760 = vmatpush1.msra.mxu0 0.0
      %4761 = vmatprep.subr.mxu0 0.0
      %4762 = vmatpush1.msra.mxu0 0.0
      %4763 = vmatprep.mubr.f32.mxu0 0.0
      %4764 = vmatmul.mubr.f32.gmra.mrb[0].mxu0 %v4697
      %v4765 = vpop.f32.mrb[0].mxu0
      %v4766 = vadd.f32 0.0, %v4765
      %v4767 = vpop.f32.mrb[0].mxu0
      %4768 = vdwg.mxu0
      %v4770 = vsel %vm818, %v4766, 0
      %4772 = vmatprep.subr.mxu0 0.0
      %4773 = vmatpush1.msra.mxu0 %v2929
      %4774 = vmatprep.subr.mxu0 0.0
      %4775 = vmatpush1.msra.mxu0 0.0
      %4776 = vmatprep.subr.mxu0 0.0
      %4777 = vmatpush1.msra.mxu0 0.0
      %4778 = vmatprep.subr.mxu0 0.0
      %4779 = vmatpush1.msra.mxu0 0.0
      %4780 = vmatprep.subr.mxu0 0.0
      %4781 = vmatpush1.msra.mxu0 0.0
      %4782 = vmatprep.subr.mxu0 0.0
      %4783 = vmatpush1.msra.mxu0 0.0
      %4784 = vmatprep.subr.mxu0 0.0
      %4785 = vmatpush1.msra.mxu0 0.0
      %4786 = vmatprep.subr.mxu0 0.0
      %4787 = vmatpush1.msra.mxu0 0.0
      %4788 = vmatprep.subr.mxu0 0.0
      %4789 = vmatpush1.msra.mxu0 0.0
      %4790 = vmatprep.subr.mxu0 0.0
      %4791 = vmatpush1.msra.mxu0 0.0
      %4792 = vmatprep.subr.mxu0 0.0
      %4793 = vmatpush1.msra.mxu0 0.0
      %4794 = vmatprep.subr.mxu0 0.0
      %4795 = vmatpush1.msra.mxu0 0.0
      %4796 = vmatprep.subr.mxu0 0.0
      %4797 = vmatpush1.msra.mxu0 0.0
      %4798 = vmatprep.subr.mxu0 0.0
      %4799 = vmatpush1.msra.mxu0 0.0
      %4800 = vmatprep.subr.mxu0 0.0
      %4801 = vmatpush1.msra.mxu0 0.0
      %4802 = vmatprep.subr.mxu0 0.0
      %4803 = vmatpush1.msra.mxu0 0.0
      %4804 = vmatprep.subr.mxu0 0.0
      %4805 = vmatpush1.msra.mxu0 0.0
      %4806 = vmatprep.subr.mxu0 0.0
      %4807 = vmatpush1.msra.mxu0 0.0
      %4808 = vmatprep.subr.mxu0 0.0
      %4809 = vmatpush1.msra.mxu0 0.0
      %4810 = vmatprep.subr.mxu0 0.0
      %4811 = vmatpush1.msra.mxu0 0.0
      %4812 = vmatprep.subr.mxu0 0.0
      %4813 = vmatpush1.msra.mxu0 0.0
      %4814 = vmatprep.subr.mxu0 0.0
      %4815 = vmatpush1.msra.mxu0 0.0
      %4816 = vmatprep.subr.mxu0 0.0
      %4817 = vmatpush1.msra.mxu0 0.0
      %4818 = vmatprep.subr.mxu0 0.0
      %4819 = vmatpush1.msra.mxu0 0.0
      %4820 = vmatprep.subr.mxu0 0.0
      %4821 = vmatpush1.msra.mxu0 0.0
      %4822 = vmatprep.subr.mxu0 0.0
      %4823 = vmatpush1.msra.mxu0 0.0
      %4824 = vmatprep.subr.mxu0 0.0
      %4825 = vmatpush1.msra.mxu0 0.0
      %4826 = vmatprep.subr.mxu0 0.0
      %4827 = vmatpush1.msra.mxu0 0.0
      %4828 = vmatprep.subr.mxu0 0.0
      %4829 = vmatpush1.msra.mxu0 0.0
      %4830 = vmatprep.subr.mxu0 0.0
      %4831 = vmatpush1.msra.mxu0 0.0
      %4832 = vmatprep.subr.mxu0 0.0
      %4833 = vmatpush1.msra.mxu0 0.0
      %4834 = vmatprep.subr.mxu0 0.0
      %4835 = vmatpush1.msra.mxu0 0.0
      %4836 = vmatprep.mubr.f32.mxu0 0.0
      %4837 = vmatmul.mubr.f32.gmra.mrb[0].mxu0 %v4770
      %v4838 = vpop.f32.mrb[0].mxu0
      %v4839 = vadd.f32 0.0, %v4838
      %v4840 = vpop.f32.mrb[0].mxu0
      %4841 = vdwg.mxu0
      %v4842 = vadd.f32 %v4603, %v4839
      %4843 = vst.msk [vmem:[#allocation3 + $0x8] sm:$0xff] %vm693, %v4842
      %v4844 = vld [vmem:[#allocation3] sm:$0xff]
      %v4845 = vld [vmem:[#allocation3 + $0x8] sm:$0xff]
      %v4846 = vadd.f32 %v2726, %v4844
      %v4847 = vadd.f32 %v2727, %v4845
      %v4848 = vld [vmem:[%s666] sm:$0x1]
      %v4849 = vmul.f32 %v4846, %v4846
      %v4850 = vmul.f32 %v4847, %v4847
      %v4851 = vsel %vm693, %v4849, 0.0
      %4852 = vadd.xlane.f32.xlu0 %v4851
      %v4853 = vpop.xlane.xlu0 %4852
      %v4854 = vsel %vm693, %v4850, 0.0
      %4855 = vadd.xlane.f32.xlu0 %v4854
      %v4856 = vpop.xlane.xlu0 %4855
      %v4857 = vmul.f32 %v4853, %v705
      %v4858 = vmul.f32 %v4856, %v705
      %v4859 = vadd.f32 %v4857, 1e-06
      %v4860 = vadd.f32 %v4858, 1e-06
      %v4861 = vrsqrt.pop %v4859
      %v4862 = vrsqrt.pop %v4860
      %v4863 = vmul.f32 %v4846, %v4861
      %v4864 = vmul.f32 %v4847, %v4862
      %v4866 = vlaneseq
      %v4867 = vshrl.u32 %v4866, 7
      %v4868 = vsub.s32 0, %v4867
      %v4869 = vrot.slane %v4848, %v4868
      %v4871 = vmul.f32 %v4863, %v4869
      %v4872 = vmul.f32 %v4864, %v4869
      %v4873 = vld [vmem:[%s671] sm:$0xff]
      %v4874 = vld [vmem:[%s671 + $0x8] sm:$0xff]
      %v4875 = vld [vmem:[%s671 + $0x10] sm:$0xff]
      %v4876 = vld [vmem:[%s671 + $0x18] sm:$0xff]
      %v4878 = vsel %vm693, %v4871, 0
      %v4881 = vsel %vm693, %v4872, 0
      %4883 = vmatprep.subr.mxu0 0.0
      %4884 = vmatpush1.msra.mxu0 %v4873
      %4885 = vmatprep.subr.mxu0 0.0
      %4886 = vmatpush1.msra.mxu0 %v4874
      %4887 = vmatprep.subr.mxu0 0.0
      %4888 = vmatpush1.msra.mxu0 %v4875
      %4889 = vmatprep.subr.mxu0 0.0
      %4890 = vmatpush1.msra.mxu0 %v4876
      %4891 = vmatprep.subr.mxu0 0.0
      %4892 = vmatpush1.msra.mxu0 0.0
      %4893 = vmatprep.subr.mxu0 0.0
      %4894 = vmatpush1.msra.mxu0 0.0
      %4895 = vmatprep.subr.mxu0 0.0
      %4896 = vmatpush1.msra.mxu0 0.0
      %4897 = vmatprep.subr.mxu0 0.0
      %4898 = vmatpush1.msra.mxu0 0.0
      %4899 = vmatprep.subr.mxu0 0.0
      %4900 = vmatpush1.msra.mxu0 0.0
      %4901 = vmatprep.subr.mxu0 0.0
      %4902 = vmatpush1.msra.mxu0 0.0
      %4903 = vmatprep.subr.mxu0 0.0
      %4904 = vmatpush1.msra.mxu0 0.0
      %4905 = vmatprep.subr.mxu0 0.0
      %4906 = vmatpush1.msra.mxu0 0.0
      %4907 = vmatprep.subr.mxu0 0.0
      %4908 = vmatpush1.msra.mxu0 0.0
      %4909 = vmatprep.subr.mxu0 0.0
      %4910 = vmatpush1.msra.mxu0 0.0
      %4911 = vmatprep.subr.mxu0 0.0
      %4912 = vmatpush1.msra.mxu0 0.0
      %4913 = vmatprep.subr.mxu0 0.0
      %4914 = vmatpush1.msra.mxu0 0.0
      %4915 = vmatprep.subr.mxu0 0.0
      %4916 = vmatpush1.msra.mxu0 0.0
      %4917 = vmatprep.subr.mxu0 0.0
      %4918 = vmatpush1.msra.mxu0 0.0
      %4919 = vmatprep.subr.mxu0 0.0
      %4920 = vmatpush1.msra.mxu0 0.0
      %4921 = vmatprep.subr.mxu0 0.0
      %4922 = vmatpush1.msra.mxu0 0.0
      %4923 = vmatprep.subr.mxu0 0.0
      %4924 = vmatpush1.msra.mxu0 0.0
      %4925 = vmatprep.subr.mxu0 0.0
      %4926 = vmatpush1.msra.mxu0 0.0
      %4927 = vmatprep.subr.mxu0 0.0
      %4928 = vmatpush1.msra.mxu0 0.0
      %4929 = vmatprep.subr.mxu0 0.0
      %4930 = vmatpush1.msra.mxu0 0.0
      %4931 = vmatprep.subr.mxu0 0.0
      %4932 = vmatpush1.msra.mxu0 0.0
      %4933 = vmatprep.subr.mxu0 0.0
      %4934 = vmatpush1.msra.mxu0 0.0
      %4935 = vmatprep.subr.mxu0 0.0
      %4936 = vmatpush1.msra.mxu0 0.0
      %4937 = vmatprep.subr.mxu0 0.0
      %4938 = vmatpush1.msra.mxu0 0.0
      %4939 = vmatprep.subr.mxu0 0.0
      %4940 = vmatpush1.msra.mxu0 0.0
      %4941 = vmatprep.subr.mxu0 0.0
      %4942 = vmatpush1.msra.mxu0 0.0
      %4943 = vmatprep.subr.mxu0 0.0
      %4944 = vmatpush1.msra.mxu0 0.0
      %4945 = vmatprep.subr.mxu0 0.0
      %4946 = vmatpush1.msra.mxu0 0.0
      %4947 = vmatprep.mubr.f32.mxu0 0.0
      %4948 = vmatmul.mubr.f32.gmra.mrb[0].mxu0 %v4878
      %v4949 = vpop.f32.mrb[0].mxu0
      %v4950 = vadd.f32 0.0, %v4949
      %v4951 = vpop.f32.mrb[0].mxu0
      %4952 = vmatprep.mubr.f32.mxu0 0.0
      %4953 = vmatmul.mubr.f32.gmra.mrb[0].mxu0 %v4881
      %v4954 = vpop.f32.mrb[0].mxu0
      %v4955 = vadd.f32 0.0, %v4954
      %v4956 = vpop.f32.mrb[0].mxu0
      %4957 = vdwg.mxu0
      %v4958 = vmax.f32 %v4950, 0.0
      %v4959 = vmax.f32 %v4955, 0.0
      %v4960 = vld [vmem:[%s676] sm:$0xff]
      %v4961 = vld [vmem:[%s676 + $0x8] sm:$0xff]
      %v4962 = vld [vmem:[%s676 + $0x10] sm:$0xff]
      %v4963 = vld [vmem:[%s676 + $0x18] sm:$0xff]
      %v4964 = vld [vmem:[%s676 + $0x20] sm:$0xff]
      %v4965 = vld [vmem:[%s676 + $0x28] sm:$0xff]
      %v4966 = vld [vmem:[%s676 + $0x30] sm:$0xff]
      %v4967 = vld [vmem:[%s676 + $0x38] sm:$0xff]
      %vm4968 = vcmask 523264
      %v4970 = vsel %vm4968, %v4958, 0
      %v4973 = vsel %vm4968, %v4959, 0
      %4975 = vmatprep.subr.mxu0 0.0
      %4976 = vmatpush1.msra.mxu0 %v4960
      %4977 = vmatprep.subr.mxu0 0.0
      %4978 = vmatpush1.msra.mxu0 %v4961
      %4979 = vmatprep.subr.mxu0 0.0
      %4980 = vmatpush1.msra.mxu0 %v4962
      %4981 = vmatprep.subr.mxu0 0.0
      %4982 = vmatpush1.msra.mxu0 %v4963
      %4983 = vmatprep.subr.mxu0 0.0
      %4984 = vmatpush1.msra.mxu0 %v4964
      %4985 = vmatprep.subr.mxu0 0.0
      %4986 = vmatpush1.msra.mxu0 %v4965
      %4987 = vmatprep.subr.mxu0 0.0
      %4988 = vmatpush1.msra.mxu0 %v4966
      %4989 = vmatprep.subr.mxu0 0.0
      %4990 = vmatpush1.msra.mxu0 %v4967
      %4991 = vmatprep.subr.mxu0 0.0
      %4992 = vmatpush1.msra.mxu0 0.0
      %4993 = vmatprep.subr.mxu0 0.0
      %4994 = vmatpush1.msra.mxu0 0.0
      %4995 = vmatprep.subr.mxu0 0.0
      %4996 = vmatpush1.msra.mxu0 0.0
      %4997 = vmatprep.subr.mxu0 0.0
      %4998 = vmatpush1.msra.mxu0 0.0
      %4999 = vmatprep.subr.mxu0 0.0
      %5000 = vmatpush1.msra.mxu0 0.0
      %5001 = vmatprep.subr.mxu0 0.0
      %5002 = vmatpush1.msra.mxu0 0.0
      %5003 = vmatprep.subr.mxu0 0.0
      %5004 = vmatpush1.msra.mxu0 0.0
      %5005 = vmatprep.subr.mxu0 0.0
      %5006 = vmatpush1.msra.mxu0 0.0
      %5007 = vmatprep.subr.mxu0 0.0
      %5008 = vmatpush1.msra.mxu0 0.0
      %5009 = vmatprep.subr.mxu0 0.0
      %5010 = vmatpush1.msra.mxu0 0.0
      %5011 = vmatprep.subr.mxu0 0.0
      %5012 = vmatpush1.msra.mxu0 0.0
      %5013 = vmatprep.subr.mxu0 0.0
      %5014 = vmatpush1.msra.mxu0 0.0
      %5015 = vmatprep.subr.mxu0 0.0
      %5016 = vmatpush1.msra.mxu0 0.0
      %5017 = vmatprep.subr.mxu0 0.0
      %5018 = vmatpush1.msra.mxu0 0.0
      %5019 = vmatprep.subr.mxu0 0.0
      %5020 = vmatpush1.msra.mxu0 0.0
      %5021 = vmatprep.subr.mxu0 0.0
      %5022 = vmatpush1.msra.mxu0 0.0
      %5023 = vmatprep.subr.mxu0 0.0
      %5024 = vmatpush1.msra.mxu0 0.0
      %5025 = vmatprep.subr.mxu0 0.0
      %5026 = vmatpush1.msra.mxu0 0.0
      %5027 = vmatprep.subr.mxu0 0.0
      %5028 = vmatpush1.msra.mxu0 0.0
      %5029 = vmatprep.subr.mxu0 0.0
      %5030 = vmatpush1.msra.mxu0 0.0
      %5031 = vmatprep.subr.mxu0 0.0
      %5032 = vmatpush1.msra.mxu0 0.0
      %5033 = vmatprep.subr.mxu0 0.0
      %5034 = vmatpush1.msra.mxu0 0.0
      %5035 = vmatprep.subr.mxu0 0.0
      %5036 = vmatpush1.msra.mxu0 0.0
      %5037 = vmatprep.subr.mxu0 0.0
      %5038 = vmatpush1.msra.mxu0 0.0
      %5039 = vmatprep.mubr.f32.mxu0 0.0
      %5040 = vmatmul.mubr.f32.gmra.mrb[0].mxu0 %v4970
      %v5041 = vpop.f32.mrb[0].mxu0
      %v5042 = vadd.f32 0.0, %v5041
      %v5043 = vpop.f32.mrb[0].mxu0
      %5044 = vmatprep.mubr.f32.mxu0 0.0
      %5045 = vmatmul.mubr.f32.gmra.mrb[0].mxu0 %v4973
      %v5046 = vpop.f32.mrb[0].mxu0
      %v5047 = vadd.f32 0.0, %v5046
      %v5048 = vpop.f32.mrb[0].mxu0
      %5049 = vdwg.mxu0
      %v5050 = vadd.f32 %v4846, %v5042
      %v5051 = vadd.f32 %v4847, %v5047
      %5052 = vst.msk [vmem:[#allocation2] sm:$0xff] %vm693, %v5050
      %5053 = vst.msk [vmem:[#allocation2 + $0x8] sm:$0xff] %vm693, %v5051
      %5054 = vst.msk [vmem:[%s16] sm:$0xff] %vm693, %v5050
      %5055 = vst.msk [vmem:[%s16 + $0x8] sm:$0xff] %vm693, %v5051
      %p5056 = scmp.eq.s32.totalorder %s28, 1
      // Predicated region
      $region85: #{seq2seq_lm_with_value_head_forward.4} parent=79 // pred_check
        %p5057 = pneg %p5056
      $region86: #{seq2seq_lm_with_value_head_forward.4} parent=79 // pred_check_branch
        %5059 = sbr.rel (%p5057) target = $region88
      $region87: #{seq2seq_lm_with_value_head_forward.4} parent=79 // pred_region
        %v5060 = vld [vmem:[%s14] sm:$0x1]
        %v5061 = vmul.f32 %v5050, %v5050
        %v5062 = vmul.f32 %v5051, %v5051
        %v5063 = vsel %vm693, %v5061, 0.0
        %5064 = vadd.xlane.f32.xlu0 %v5063
        %v5065 = vpop.xlane.xlu0 %5064
        %v5066 = vsel %vm693, %v5062, 0.0
        %5067 = vadd.xlane.f32.xlu0 %v5066
        %v5068 = vpop.xlane.xlu0 %5067
        %v5069 = vmul.f32 %v5065, %v705
        %v5070 = vmul.f32 %v5068, %v705
        %v5071 = vadd.f32 %v5069, 1e-06
        %v5072 = vadd.f32 %v5070, 1e-06
        %v5073 = vrsqrt.pop %v5071
        %v5074 = vrsqrt.pop %v5072
        %v5075 = vmul.f32 %v5050, %v5073
        %v5076 = vmul.f32 %v5051, %v5074
        %v5078 = vlaneseq
        %v5079 = vshrl.u32 %v5078, 7
        %v5080 = vsub.s32 0, %v5079
        %v5081 = vrot.slane %v5060, %v5080
        %v5083 = vmul.f32 %v5075, %v5081
        %v5084 = vmul.f32 %v5076, %v5081
        %5085 = vst.msk [vmem:[%s16] sm:$0xff] %vm693, %v5083
        %5086 = vst.msk [vmem:[%s16 + $0x8] sm:$0xff] %vm693, %v5084
      $region88: #{seq2seq_lm_with_value_head_forward.4} parent=79 // pred_fallthru
        _
      %p5087 = scmp.lt.s32.totalorder %s28, 1
      %s5088 = scalar_select %p5087, %s28, 1
      %s5089 = smul.addr %s5088, 2
      %s5090 = smul.addr %s5089, 8
      %s5091 = scalar_lea.vmem %s15, %s5090
      // Predicated region
      $region89: #{seq2seq_lm_with_value_head_forward.4} parent=79 // pred_check
        %p5092 = pneg %p411
      $region90: #{seq2seq_lm_with_value_head_forward.4} parent=79 // pred_check_branch
        %5094 = sbr.rel (%p5092) target = $region92
      $region91: #{seq2seq_lm_with_value_head_forward.4} parent=79 // pred_region
        _
      $region92: #{seq2seq_lm_with_value_head_forward.4} parent=79 // pred_fallthru
        _
      // Predicated region
      $region93: #{seq2seq_lm_with_value_head_forward.4} parent=79 // pred_check
        %p5095 = pneg %p432
      $region94: #{seq2seq_lm_with_value_head_forward.4} parent=79 // pred_check_branch
        %5097 = sbr.rel (%p5095) target = $region96
      $region95: #{seq2seq_lm_with_value_head_forward.4} parent=79 // pred_region
        _
      $region96: #{seq2seq_lm_with_value_head_forward.4} parent=79 // pred_fallthru
        _
      // Predicated region
      $region97: #{seq2seq_lm_with_value_head_forward.4} parent=79 // pred_check
        %p5098 = pneg %p432
      $region98: #{seq2seq_lm_with_value_head_forward.4} parent=79 // pred_check_branch
        %5100 = sbr.rel (%p5098) target = $region100
      $region99: #{seq2seq_lm_with_value_head_forward.4} parent=79 // pred_region
        _
      $region100: #{seq2seq_lm_with_value_head_forward.4} parent=79 // pred_fallthru
        _
    $region80: #{seq2seq_lm_with_value_head_forward.4} parent=5 // pred_fallthru
      _
    %p5101 = scmp.le.s32.totalorder 2, %s23
    // Predicated region
    $region101: #{seq2seq_lm_with_value_head_forward.4} parent=5 // pred_check
      %p5102 = pneg %p5101
    $region102: #{seq2seq_lm_with_value_head_forward.4} parent=5 // pred_check_branch
      %5104 = sbr.rel (%p5102) target = $region104
    $region103: #{seq2seq_lm_with_value_head_forward.4} parent=5 // pred_region
      %s5105 = ssub.s32 %s23, 2
      // Predicated region
      $region105: #{seq2seq_lm_with_value_head_forward.4} parent=103 // pred_check
        %p5106 = pneg %p417
      $region106: #{seq2seq_lm_with_value_head_forward.4} parent=103 // pred_check_branch
        %5108 = sbr.rel (%p5106) target = $region108
      $region107: #{seq2seq_lm_with_value_head_forward.4} parent=103 // pred_region
        %p5109 = scmp.lt.s32.totalorder %s29, 1
        %s5110 = scalar_select %p5109, %s29, 1
        %s5111 = smul.addr %s5110, 2
        %s5112 = smul.addr %s5111, 8
        %s5113 = scalar_lea.vmem %s15, %s5112
      $region108: #{seq2seq_lm_with_value_head_forward.4} parent=103 // pred_fallthru
        _
    $region104: #{seq2seq_lm_with_value_head_forward.4} parent=5 // pred_fallthru
      _
  $region6: #{seq2seq_lm_with_value_head_forward.4} parent=0 // loop_footer
    %s27 = sadd.s32 1, %s23
  $region7: #{seq2seq_lm_with_value_head_forward.4} parent=0 // loop_footer_branch
    %22 = sbr.rel target = $region3
  $region8: #{seq2seq_lm_with_value_head_forward.4} parent=0 // loop_exit
    _

</llo_original>
